<compile_context>
chip_gen: v6e
topology: v6e:2x2x1
jax: 0.10.0
libtpu: 0.0.40
codegen_flags: <defaults>
</compile_context>

<pallas_src>
from functools import partial

import jax
import jax.numpy as jnp
from jax.experimental import pallas as pl
from jax.experimental.pallas import tpu as pltpu


# ----------------------------- Pallas kernel ------------------------------ #
def gru_kernel(gi_ref, whh_ref, bhn_ref,        # inputs
               out_ref, hid_ref,                # outputs
               h_scratch,                       # scratch (carried hidden)
               *, hidden_p, t_chunk):
    """Processes one (batch_chunk, time_chunk) tile; time chunks are sequential."""
    c = pl.program_id(1)                        # time-chunk index

    @pl.when(c == 0)
    def _():
        h_scratch[...] = jnp.zeros_like(h_scratch)

    whh = whh_ref[...]                          # (Hp, 3Hp), resident across chunks
    bhn = bhn_ref[...]                          # (1, Hp)  n-gate hidden bias
    Hp = hidden_p

    def step(i, h):
        gi_t = gi_ref[i]                        # (Bc, 3Hp) precomputed input proj
        gh = jnp.dot(h.astype(whh.dtype), whh,
                     preferred_element_type=jnp.float32)          # (Bc, 3Hp) MXU
        r = jax.nn.sigmoid(gi_t[:, 0 * Hp:1 * Hp] + gh[:, 0 * Hp:1 * Hp])
        z = jax.nn.sigmoid(gi_t[:, 1 * Hp:2 * Hp] + gh[:, 1 * Hp:2 * Hp])
        n = jnp.tanh(gi_t[:, 2 * Hp:3 * Hp] + r * (gh[:, 2 * Hp:3 * Hp] + bhn))
        h_new = (1.0 - z) * n + z * h
        out_ref[i] = h_new.astype(out_ref.dtype)                  # dense (Bc,Hp) store
        return h_new

    h_last = jax.lax.fori_loop(0, t_chunk, step, h_scratch[...],
                               unroll=True if t_chunk <= 16 else 8)
    h_scratch[...] = h_last

    @pl.when(c == pl.num_programs(1) - 1)
    def _():
        hid_ref[...] = h_last.astype(hid_ref.dtype)


def gru_pallas(gi_tm, w_hh_t, b_hn, *, t_chunk, b_chunk):
    """gi_tm: (T, Bp, 3Hp) f32.  w_hh_t: (Hp, 3Hp).  b_hn: (1, Hp)."""
    T, Bp, threeHp = gi_tm.shape
    Hp = w_hh_t.shape[0]
    nb = Bp // b_chunk
    nc = T // t_chunk

    out_tm, hid = pl.pallas_call(
        partial(gru_kernel, hidden_p=Hp, t_chunk=t_chunk),
        out_shape=(
            jax.ShapeDtypeStruct((T, Bp, Hp), jnp.float32),   # per-step outputs (time-major)
            jax.ShapeDtypeStruct((Bp, Hp), jnp.float32),      # final hidden
        ),
        grid_spec=pltpu.PrefetchScalarGridSpec(
            num_scalar_prefetch=0,
            grid=(nb, nc),
            in_specs=[
                pl.BlockSpec((t_chunk, b_chunk, threeHp), lambda b, c: (c, b, 0)),
                pl.BlockSpec((Hp, threeHp), lambda b, c: (0, 0)),   # W_hh^T resident
                pl.BlockSpec((1, Hp), lambda b, c: (0, 0)),         # b_hn
            ],
            out_specs=[
                pl.BlockSpec((t_chunk, b_chunk, Hp), lambda b, c: (c, b, 0)),
                pl.BlockSpec((b_chunk, Hp), lambda b, c: (b, 0)),
            ],
            scratch_shapes=[pltpu.VMEM((b_chunk, Hp), jnp.float32)],
        ),
        compiler_params=pltpu.CompilerParams(
            dimension_semantics=("parallel", "arbitrary")),
    )(gi_tm, w_hh_t, b_hn)
    return out_tm, hid


# ------------------------------ Encoder wrapper ---------------------------- #
def _round_up(n, m):
    return (n + m - 1) // m * m


def _largest_divisor_leq(n, cap):
    d = min(n, cap)
    while n % d:
        d -= 1
    return d


def init_encoder_params(key, input_size, embed_size, hidden_size):
    k_emb, k1, k2, k3, k4 = jax.random.split(key, 5)
    # nn.Embedding: N(0,1) init, padding_idx=0 row zeroed.
    emb_w = jax.random.normal(k_emb, (input_size, embed_size), jnp.float32)
    emb_w = emb_w.at[0].set(0.0)
    # nn.GRU: U(-1/sqrt(H), 1/sqrt(H)); gate order (r, z, n).
    bound = 1.0 / jnp.sqrt(hidden_size)
    w_ih = jax.random.uniform(k1, (3 * hidden_size, embed_size), jnp.float32, -bound, bound)
    w_hh = jax.random.uniform(k2, (3 * hidden_size, hidden_size), jnp.float32, -bound, bound)
    b_ih = jax.random.uniform(k3, (3 * hidden_size,), jnp.float32, -bound, bound)
    b_hh = jax.random.uniform(k4, (3 * hidden_size,), jnp.float32, -bound, bound)
    return dict(emb_w=emb_w, w_ih=w_ih, w_hh=w_hh, b_ih=b_ih, b_hh=b_hh)


def encoder_forward(params, x):
    """x: (B, T) int32 token ids.  Returns (outputs (B,T,H), hidden (1,B,H))."""
    emb_w, w_ih, w_hh = params["emb_w"], params["w_ih"], params["w_hh"]
    b_ih, b_hh = params["b_ih"], params["b_hh"]
    B, T = x.shape
    H = w_hh.shape[1]

    Hp = _round_up(H, 128)        # lane-align hidden
    Bp = _round_up(B, 8)          # sublane-align batch
    dH = Hp - H

    # --- pad weights gate-wise so each gate lands at a lane-aligned offset ---
    def pad_gate_rows(m):                          # (3H, D) -> (3Hp, D)
        g = m.reshape(3, H, m.shape[1])
        return jnp.pad(g, ((0, 0), (0, dH), (0, 0))).reshape(3 * Hp, m.shape[1])

    def pad_gate_vec(v):                           # (3H,) -> (3Hp,)
        return jnp.pad(v.reshape(3, H), ((0, 0), (0, dH))).reshape(3 * Hp)

    w_ih_p = pad_gate_rows(w_ih)                              # (3Hp, E)
    w_hh_p = jnp.pad(pad_gate_rows(w_hh), ((0, 0), (0, dH)))  # (3Hp, Hp)
    b_ih_p = pad_gate_vec(b_ih)
    b_hh_p = pad_gate_vec(b_hh)

    # Fold b_ih and the r/z hidden biases into the hoisted input projection;
    # only the n-gate hidden bias stays in the kernel (inside the r*(...) term).
    b_fold = b_ih_p + jnp.concatenate(
        [b_hh_p[0 * Hp:1 * Hp], b_hh_p[1 * Hp:2 * Hp], jnp.zeros((Hp,), jnp.float32)])
    b_hn = b_hh_p[2 * Hp:3 * Hp].reshape(1, Hp)

    # --- time-major embedding gather (transpose the tiny id matrix, not activations)
    emb_tm = jnp.take(emb_w, x.T, axis=0)                     # (T, B, E)

    # --- hoisted input projection: one big (T*B, E) x (E, 3Hp) matmul (glue) --
    gi = emb_tm @ w_ih_p.T + b_fold                           # (T, B, 3Hp)
    gi = jnp.pad(gi, ((0, 0), (0, Bp - B), (0, 0)))           # pad batch to 8

    # --- chunking: time chunks sequential, batch chunks parallel (megacore) ---
    t_chunk = _largest_divisor_leq(T, 128)
    b_chunk = Bp // 2 if (Bp > 8 and (Bp // 2) % 8 == 0) else Bp

    out_tm, hid = gru_pallas(gi, w_hh_p.T, b_hn,
                             t_chunk=t_chunk, b_chunk=b_chunk)

    outputs = jnp.transpose(out_tm[:, :B, :H], (1, 0, 2))     # (B, T, H) batch-first
    hidden = hid[:B, :H][None]                                # (1, B, H) like nn.GRU
    return outputs, hidden


# Pure-JAX reference (lax.scan) for correctness checking.
def encoder_reference(params, x):
    embedded = jnp.take(params["emb_w"], x, axis=0)           # (B, T, E)
    H = params["w_hh"].shape[1]
    w_ih_t, w_hh_t = params["w_ih"].T, params["w_hh"].T
    b_ih, b_hh = params["b_ih"], params["b_hh"]

    def step(h, x_t):
        gi = x_t @ w_ih_t + b_ih
        gh = h @ w_hh_t + b_hh
        r = jax.nn.sigmoid(gi[:, :H] + gh[:, :H])
        z = jax.nn.sigmoid(gi[:, H:2 * H] + gh[:, H:2 * H])
        n = jnp.tanh(gi[:, 2 * H:] + r * gh[:, 2 * H:])
        h_new = (1.0 - z) * n + z * h
        return h_new, h_new

    h0 = jnp.zeros((x.shape[0], H), jnp.float32)
    h_last, outs = jax.lax.scan(step, h0, jnp.transpose(embedded, (1, 0, 2)))
    return jnp.transpose(outs, (1, 0, 2)), h_last[None]


# ----------------------------------- main ---------------------------------- #
if __name__ == "__main__":
    INPUT_SIZE = 20          # vocab size
    EMBED_SIZE = 256         # as in the PyTorch spec
    HIDDEN_SIZE = 512
    B, T = 2, 8

    key = jax.random.PRNGKey(0)
    k_params, k_x = jax.random.split(key)
    params = init_encoder_params(k_params, INPUT_SIZE, EMBED_SIZE, HIDDEN_SIZE)

    # token ids in [0, vocab); force a couple of padding (0) tokens
    x = jax.random.randint(k_x, (B, T), 0, INPUT_SIZE, dtype=jnp.int32)
    x = x.at[0, -1].set(0).at[1, -2:].set(0)

    fwd = jax.jit(encoder_forward)
    outputs, hidden = jax.block_until_ready(fwd(params, x))

    ref_out, ref_hid = encoder_reference(params, x)
    assert outputs.shape == (B, T, HIDDEN_SIZE)
    assert hidden.shape == (1, B, HIDDEN_SIZE)
    assert jnp.allclose(outputs, ref_out, rtol=1e-4, atol=1e-4)
    assert jnp.allclose(hidden, ref_hid, rtol=1e-4, atol=1e-4)

    print("KERNEL_OK")
</pallas_src>

<mosaic_0001>
module attributes {stable_mosaic.version = 11 : i64} {
  func.func @gru_kernel(%arg0: i32, %arg1: i32, %arg2: memref<8x8x1536xf32, #tpu.memory_space<vmem>>, %arg3: memref<512x1536xf32, #tpu.memory_space<vmem>>, %arg4: memref<1x512xf32, #tpu.memory_space<vmem>>, %arg5: memref<8x8x512xf32, #tpu.memory_space<vmem>>, %arg6: memref<8x512xf32, #tpu.memory_space<vmem>>, %arg7: memref<8x512xf32, #tpu.memory_space<vmem>>) attributes {dimension_semantics = [#tpu.dimension_semantics<parallel>, #tpu.dimension_semantics<arbitrary>], iteration_bounds = array<i64: 1, 1>, scalar_prefetch = 0 : i64, scratch_operands = 1 : i64, tpu.core_type = #tpu.core_type<tc>, window_params = [{transform_indices = @transform_0, window_bounds = array<i64: 8, 8, 1536>}, {pipeline_mode = #tpu.pipeline_mode<synchronous>, transform_indices = @transform_1, window_bounds = array<i64: 512, 1536>}, {pipeline_mode = #tpu.pipeline_mode<synchronous>, transform_indices = @transform_2, window_bounds = array<i64: 1, 512>}, {transform_indices = @transform_3, window_bounds = array<i64: 8, 8, 512>}, {transform_indices = @transform_4, window_bounds = array<i64: 8, 512>}]} {
    %c0_i32 = arith.constant 0 : i32
    %0 = arith.cmpi eq, %arg1, %c0_i32 : i32
    %1 = arith.extui %0 : i1 to i32
    %c0_i32_0 = arith.constant 0 : i32
    %2 = arith.cmpi ne, %1, %c0_i32_0 : i32
    scf.if %2 {
      %cst_74 = arith.constant 0.000000e+00 : f32
      %298 = vector.broadcast %cst_74 : f32 to vector<8x512xf32>
      %c0_75 = arith.constant 0 : index
      %c0_76 = arith.constant 0 : index
      %299 = vector.load %arg7[%c0_75, %c0_76] : memref<8x512xf32, #tpu.memory_space<vmem>>, vector<8x512xf32>
      tpu.vector_store %arg7[%c0_75, %c0_76], %298 {strides = array<i32>} : memref<8x512xf32, #tpu.memory_space<vmem>>, vector<8x512xf32>,
    } else {
    }
    %c0 = arith.constant 0 : index
    %c0_1 = arith.constant 0 : index
    %3 = vector.load %arg3[%c0, %c0_1] : memref<512x1536xf32, #tpu.memory_space<vmem>>, vector<512x1536xf32>
    %c0_2 = arith.constant 0 : index
    %c0_3 = arith.constant 0 : index
    %4 = vector.load %arg4[%c0_2, %c0_3] : memref<1x512xf32, #tpu.memory_space<vmem>>, vector<1x512xf32>
    %c0_4 = arith.constant 0 : index
    %c0_5 = arith.constant 0 : index
    %5 = vector.load %arg7[%c0_4, %c0_5] : memref<8x512xf32, #tpu.memory_space<vmem>>, vector<8x512xf32>
    %c0_i32_6 = arith.constant 0 : i32
    %6 = arith.index_cast %c0_i32_6 : i32 to index
    %c0_7 = arith.constant 0 : index
    %c0_8 = arith.constant 0 : index
    %7 = vector.load %arg2[%6, %c0_7, %c0_8] : memref<8x8x1536xf32, #tpu.memory_space<vmem>>, vector<1x8x1536xf32>
    %8 = vector.shape_cast %7 : vector<1x8x1536xf32> to vector<8x1536xf32>
    %cst = arith.constant dense<0.000000e+00> : vector<8x1536xf32>
    %9 = tpu.matmul %5, %3, %cst {dimension_numbers = #tpu.dot_dimension_numbers<[1], [0], [0], [1], [0, 0, 1, 1], [], []>} : vector<8x512xf32>, vector<512x1536xf32>, vector<8x1536xf32> -> vector<8x1536xf32>
    %10 = vector.extract_strided_slice %8 {offsets = [0, 0], sizes = [8, 512], strides = [1, 1]} : vector<8x1536xf32> to vector<8x512xf32>
    %11 = vector.extract_strided_slice %9 {offsets = [0, 0], sizes = [8, 512], strides = [1, 1]} : vector<8x1536xf32> to vector<8x512xf32>
    %12 = arith.addf %10, %11 : vector<8x512xf32>
    %13 = arith.negf %12 : vector<8x512xf32>
    %14 = math.exp %13 : vector<8x512xf32>
    %cst_9 = arith.constant 1.000000e+00 : f32
    %15 = vector.broadcast %cst_9 : f32 to vector<8x512xf32>
    %16 = arith.addf %15, %14 : vector<8x512xf32>
    %17 = arith.divf %15, %16 : vector<8x512xf32>
    %18 = vector.extract_strided_slice %8 {offsets = [0, 512], sizes = [8, 512], strides = [1, 1]} : vector<8x1536xf32> to vector<8x512xf32>
    %19 = vector.extract_strided_slice %9 {offsets = [0, 512], sizes = [8, 512], strides = [1, 1]} : vector<8x1536xf32> to vector<8x512xf32>
    %20 = arith.addf %18, %19 : vector<8x512xf32>
    %21 = arith.negf %20 : vector<8x512xf32>
    %22 = math.exp %21 : vector<8x512xf32>
    %cst_10 = arith.constant 1.000000e+00 : f32
    %23 = vector.broadcast %cst_10 : f32 to vector<8x512xf32>
    %24 = arith.addf %23, %22 : vector<8x512xf32>
    %25 = arith.divf %23, %24 : vector<8x512xf32>
    %26 = vector.extract_strided_slice %8 {offsets = [0, 1024], sizes = [8, 512], strides = [1, 1]} : vector<8x1536xf32> to vector<8x512xf32>
    %27 = vector.extract_strided_slice %9 {offsets = [0, 1024], sizes = [8, 512], strides = [1, 1]} : vector<8x1536xf32> to vector<8x512xf32>
    %28 = vector.broadcast %4 : vector<1x512xf32> to vector<8x512xf32>
    %29 = arith.addf %27, %28 : vector<8x512xf32>
    %30 = arith.mulf %17, %29 : vector<8x512xf32>
    %31 = arith.addf %26, %30 : vector<8x512xf32>
    %32 = math.tanh %31 : vector<8x512xf32>
    %cst_11 = arith.constant 1.000000e+00 : f32
    %33 = vector.broadcast %cst_11 : f32 to vector<8x512xf32>
    %34 = arith.subf %33, %25 : vector<8x512xf32>
    %35 = arith.mulf %34, %32 : vector<8x512xf32>
    %36 = arith.mulf %25, %5 : vector<8x512xf32>
    %37 = arith.addf %35, %36 : vector<8x512xf32>
    %38 = arith.index_cast %c0_i32_6 : i32 to index
    %c0_12 = arith.constant 0 : index
    %c0_13 = arith.constant 0 : index
    %39 = vector.load %arg5[%38, %c0_12, %c0_13] : memref<8x8x512xf32, #tpu.memory_space<vmem>>, vector<1x8x512xf32>
    %40 = vector.shape_cast %39 : vector<1x8x512xf32> to vector<8x512xf32>
    %41 = vector.shape_cast %37 : vector<8x512xf32> to vector<1x8x512xf32>
    tpu.vector_store %arg5[%38, %c0_12, %c0_13], %41 {strides = array<i32>} : memref<8x8x512xf32, #tpu.memory_space<vmem>>, vector<1x8x512xf32>,
    %c1_i32 = arith.constant 1 : i32
    %42 = arith.index_cast %c1_i32 : i32 to index
    %c0_14 = arith.constant 0 : index
    %c0_15 = arith.constant 0 : index
    %43 = vector.load %arg2[%42, %c0_14, %c0_15] : memref<8x8x1536xf32, #tpu.memory_space<vmem>>, vector<1x8x1536xf32>
    %44 = vector.shape_cast %43 : vector<1x8x1536xf32> to vector<8x1536xf32>
    %cst_16 = arith.constant dense<0.000000e+00> : vector<8x1536xf32>
    %45 = tpu.matmul %37, %3, %cst_16 {dimension_numbers = #tpu.dot_dimension_numbers<[1], [0], [0], [1], [0, 0, 1, 1], [], []>} : vector<8x512xf32>, vector<512x1536xf32>, vector<8x1536xf32> -> vector<8x1536xf32>
    %46 = vector.extract_strided_slice %44 {offsets = [0, 0], sizes = [8, 512], strides = [1, 1]} : vector<8x1536xf32> to vector<8x512xf32>
    %47 = vector.extract_strided_slice %45 {offsets = [0, 0], sizes = [8, 512], strides = [1, 1]} : vector<8x1536xf32> to vector<8x512xf32>
    %48 = arith.addf %46, %47 : vector<8x512xf32>
    %49 = arith.negf %48 : vector<8x512xf32>
    %50 = math.exp %49 : vector<8x512xf32>
    %cst_17 = arith.constant 1.000000e+00 : f32
    %51 = vector.broadcast %cst_17 : f32 to vector<8x512xf32>
    %52 = arith.addf %51, %50 : vector<8x512xf32>
    %53 = arith.divf %51, %52 : vector<8x512xf32>
    %54 = vector.extract_strided_slice %44 {offsets = [0, 512], sizes = [8, 512], strides = [1, 1]} : vector<8x1536xf32> to vector<8x512xf32>
    %55 = vector.extract_strided_slice %45 {offsets = [0, 512], sizes = [8, 512], strides = [1, 1]} : vector<8x1536xf32> to vector<8x512xf32>
    %56 = arith.addf %54, %55 : vector<8x512xf32>
    %57 = arith.negf %56 : vector<8x512xf32>
    %58 = math.exp %57 : vector<8x512xf32>
    %cst_18 = arith.constant 1.000000e+00 : f32
    %59 = vector.broadcast %cst_18 : f32 to vector<8x512xf32>
    %60 = arith.addf %59, %58 : vector<8x512xf32>
    %61 = arith.divf %59, %60 : vector<8x512xf32>
    %62 = vector.extract_strided_slice %44 {offsets = [0, 1024], sizes = [8, 512], strides = [1, 1]} : vector<8x1536xf32> to vector<8x512xf32>
    %63 = vector.extract_strided_slice %45 {offsets = [0, 1024], sizes = [8, 512], strides = [1, 1]} : vector<8x1536xf32> to vector<8x512xf32>
    %64 = vector.broadcast %4 : vector<1x512xf32> to vector<8x512xf32>
    %65 = arith.addf %63, %64 : vector<8x512xf32>
    %66 = arith.mulf %53, %65 : vector<8x512xf32>
    %67 = arith.addf %62, %66 : vector<8x512xf32>
    %68 = math.tanh %67 : vector<8x512xf32>
    %cst_19 = arith.constant 1.000000e+00 : f32
    %69 = vector.broadcast %cst_19 : f32 to vector<8x512xf32>
    %70 = arith.subf %69, %61 : vector<8x512xf32>
    %71 = arith.mulf %70, %68 : vector<8x512xf32>
    %72 = arith.mulf %61, %37 : vector<8x512xf32>
    %73 = arith.addf %71, %72 : vector<8x512xf32>
    %74 = arith.index_cast %c1_i32 : i32 to index
    %c0_20 = arith.constant 0 : index
    %c0_21 = arith.constant 0 : index
    %75 = vector.load %arg5[%74, %c0_20, %c0_21] : memref<8x8x512xf32, #tpu.memory_space<vmem>>, vector<1x8x512xf32>
    %76 = vector.shape_cast %75 : vector<1x8x512xf32> to vector<8x512xf32>
    %77 = vector.shape_cast %73 : vector<8x512xf32> to vector<1x8x512xf32>
    tpu.vector_store %arg5[%74, %c0_20, %c0_21], %77 {strides = array<i32>} : memref<8x8x512xf32, #tpu.memory_space<vmem>>, vector<1x8x512xf32>,
    %c2_i32 = arith.constant 2 : i32
    %78 = arith.index_cast %c2_i32 : i32 to index
    %c0_22 = arith.constant 0 : index
    %c0_23 = arith.constant 0 : index
    %79 = vector.load %arg2[%78, %c0_22, %c0_23] : memref<8x8x1536xf32, #tpu.memory_space<vmem>>, vector<1x8x1536xf32>
    %80 = vector.shape_cast %79 : vector<1x8x1536xf32> to vector<8x1536xf32>
    %cst_24 = arith.constant dense<0.000000e+00> : vector<8x1536xf32>
    %81 = tpu.matmul %73, %3, %cst_24 {dimension_numbers = #tpu.dot_dimension_numbers<[1], [0], [0], [1], [0, 0, 1, 1], [], []>} : vector<8x512xf32>, vector<512x1536xf32>, vector<8x1536xf32> -> vector<8x1536xf32>
    %82 = vector.extract_strided_slice %80 {offsets = [0, 0], sizes = [8, 512], strides = [1, 1]} : vector<8x1536xf32> to vector<8x512xf32>
    %83 = vector.extract_strided_slice %81 {offsets = [0, 0], sizes = [8, 512], strides = [1, 1]} : vector<8x1536xf32> to vector<8x512xf32>
    %84 = arith.addf %82, %83 : vector<8x512xf32>
    %85 = arith.negf %84 : vector<8x512xf32>
    %86 = math.exp %85 : vector<8x512xf32>
    %cst_25 = arith.constant 1.000000e+00 : f32
    %87 = vector.broadcast %cst_25 : f32 to vector<8x512xf32>
    %88 = arith.addf %87, %86 : vector<8x512xf32>
    %89 = arith.divf %87, %88 : vector<8x512xf32>
    %90 = vector.extract_strided_slice %80 {offsets = [0, 512], sizes = [8, 512], strides = [1, 1]} : vector<8x1536xf32> to vector<8x512xf32>
    %91 = vector.extract_strided_slice %81 {offsets = [0, 512], sizes = [8, 512], strides = [1, 1]} : vector<8x1536xf32> to vector<8x512xf32>
    %92 = arith.addf %90, %91 : vector<8x512xf32>
    %93 = arith.negf %92 : vector<8x512xf32>
    %94 = math.exp %93 : vector<8x512xf32>
    %cst_26 = arith.constant 1.000000e+00 : f32
    %95 = vector.broadcast %cst_26 : f32 to vector<8x512xf32>
    %96 = arith.addf %95, %94 : vector<8x512xf32>
    %97 = arith.divf %95, %96 : vector<8x512xf32>
    %98 = vector.extract_strided_slice %80 {offsets = [0, 1024], sizes = [8, 512], strides = [1, 1]} : vector<8x1536xf32> to vector<8x512xf32>
    %99 = vector.extract_strided_slice %81 {offsets = [0, 1024], sizes = [8, 512], strides = [1, 1]} : vector<8x1536xf32> to vector<8x512xf32>
    %100 = vector.broadcast %4 : vector<1x512xf32> to vector<8x512xf32>
    %101 = arith.addf %99, %100 : vector<8x512xf32>
    %102 = arith.mulf %89, %101 : vector<8x512xf32>
    %103 = arith.addf %98, %102 : vector<8x512xf32>
    %104 = math.tanh %103 : vector<8x512xf32>
    %cst_27 = arith.constant 1.000000e+00 : f32
    %105 = vector.broadcast %cst_27 : f32 to vector<8x512xf32>
    %106 = arith.subf %105, %97 : vector<8x512xf32>
    %107 = arith.mulf %106, %104 : vector<8x512xf32>
    %108 = arith.mulf %97, %73 : vector<8x512xf32>
    %109 = arith.addf %107, %108 : vector<8x512xf32>
    %110 = arith.index_cast %c2_i32 : i32 to index
    %c0_28 = arith.constant 0 : index
    %c0_29 = arith.constant 0 : index
    %111 = vector.load %arg5[%110, %c0_28, %c0_29] : memref<8x8x512xf32, #tpu.memory_space<vmem>>, vector<1x8x512xf32>
    %112 = vector.shape_cast %111 : vector<1x8x512xf32> to vector<8x512xf32>
    %113 = vector.shape_cast %109 : vector<8x512xf32> to vector<1x8x512xf32>
    tpu.vector_store %arg5[%110, %c0_28, %c0_29], %113 {strides = array<i32>} : memref<8x8x512xf32, #tpu.memory_space<vmem>>, vector<1x8x512xf32>,
    %c3_i32 = arith.constant 3 : i32
    %114 = arith.index_cast %c3_i32 : i32 to index
    %c0_30 = arith.constant 0 : index
    %c0_31 = arith.constant 0 : index
    %115 = vector.load %arg2[%114, %c0_30, %c0_31] : memref<8x8x1536xf32, #tpu.memory_space<vmem>>, vector<1x8x1536xf32>
    %116 = vector.shape_cast %115 : vector<1x8x1536xf32> to vector<8x1536xf32>
    %cst_32 = arith.constant dense<0.000000e+00> : vector<8x1536xf32>
    %117 = tpu.matmul %109, %3, %cst_32 {dimension_numbers = #tpu.dot_dimension_numbers<[1], [0], [0], [1], [0, 0, 1, 1], [], []>} : vector<8x512xf32>, vector<512x1536xf32>, vector<8x1536xf32> -> vector<8x1536xf32>
    %118 = vector.extract_strided_slice %116 {offsets = [0, 0], sizes = [8, 512], strides = [1, 1]} : vector<8x1536xf32> to vector<8x512xf32>
    %119 = vector.extract_strided_slice %117 {offsets = [0, 0], sizes = [8, 512], strides = [1, 1]} : vector<8x1536xf32> to vector<8x512xf32>
    %120 = arith.addf %118, %119 : vector<8x512xf32>
    %121 = arith.negf %120 : vector<8x512xf32>
    %122 = math.exp %121 : vector<8x512xf32>
    %cst_33 = arith.constant 1.000000e+00 : f32
    %123 = vector.broadcast %cst_33 : f32 to vector<8x512xf32>
    %124 = arith.addf %123, %122 : vector<8x512xf32>
    %125 = arith.divf %123, %124 : vector<8x512xf32>
    %126 = vector.extract_strided_slice %116 {offsets = [0, 512], sizes = [8, 512], strides = [1, 1]} : vector<8x1536xf32> to vector<8x512xf32>
    %127 = vector.extract_strided_slice %117 {offsets = [0, 512], sizes = [8, 512], strides = [1, 1]} : vector<8x1536xf32> to vector<8x512xf32>
    %128 = arith.addf %126, %127 : vector<8x512xf32>
    %129 = arith.negf %128 : vector<8x512xf32>
    %130 = math.exp %129 : vector<8x512xf32>
    %cst_34 = arith.constant 1.000000e+00 : f32
    %131 = vector.broadcast %cst_34 : f32 to vector<8x512xf32>
    %132 = arith.addf %131, %130 : vector<8x512xf32>
    %133 = arith.divf %131, %132 : vector<8x512xf32>
    %134 = vector.extract_strided_slice %116 {offsets = [0, 1024], sizes = [8, 512], strides = [1, 1]} : vector<8x1536xf32> to vector<8x512xf32>
    %135 = vector.extract_strided_slice %117 {offsets = [0, 1024], sizes = [8, 512], strides = [1, 1]} : vector<8x1536xf32> to vector<8x512xf32>
    %136 = vector.broadcast %4 : vector<1x512xf32> to vector<8x512xf32>
    %137 = arith.addf %135, %136 : vector<8x512xf32>
    %138 = arith.mulf %125, %137 : vector<8x512xf32>
    %139 = arith.addf %134, %138 : vector<8x512xf32>
    %140 = math.tanh %139 : vector<8x512xf32>
    %cst_35 = arith.constant 1.000000e+00 : f32
    %141 = vector.broadcast %cst_35 : f32 to vector<8x512xf32>
    %142 = arith.subf %141, %133 : vector<8x512xf32>
    %143 = arith.mulf %142, %140 : vector<8x512xf32>
    %144 = arith.mulf %133, %109 : vector<8x512xf32>
    %145 = arith.addf %143, %144 : vector<8x512xf32>
    %146 = arith.index_cast %c3_i32 : i32 to index
    %c0_36 = arith.constant 0 : index
    %c0_37 = arith.constant 0 : index
    %147 = vector.load %arg5[%146, %c0_36, %c0_37] : memref<8x8x512xf32, #tpu.memory_space<vmem>>, vector<1x8x512xf32>
    %148 = vector.shape_cast %147 : vector<1x8x512xf32> to vector<8x512xf32>
    %149 = vector.shape_cast %145 : vector<8x512xf32> to vector<1x8x512xf32>
    tpu.vector_store %arg5[%146, %c0_36, %c0_37], %149 {strides = array<i32>} : memref<8x8x512xf32, #tpu.memory_space<vmem>>, vector<1x8x512xf32>,
    %c4_i32 = arith.constant 4 : i32
    %150 = arith.index_cast %c4_i32 : i32 to index
    %c0_38 = arith.constant 0 : index
    %c0_39 = arith.constant 0 : index
    %151 = vector.load %arg2[%150, %c0_38, %c0_39] : memref<8x8x1536xf32, #tpu.memory_space<vmem>>, vector<1x8x1536xf32>
    %152 = vector.shape_cast %151 : vector<1x8x1536xf32> to vector<8x1536xf32>
    %cst_40 = arith.constant dense<0.000000e+00> : vector<8x1536xf32>
    %153 = tpu.matmul %145, %3, %cst_40 {dimension_numbers = #tpu.dot_dimension_numbers<[1], [0], [0], [1], [0, 0, 1, 1], [], []>} : vector<8x512xf32>, vector<512x1536xf32>, vector<8x1536xf32> -> vector<8x1536xf32>
    %154 = vector.extract_strided_slice %152 {offsets = [0, 0], sizes = [8, 512], strides = [1, 1]} : vector<8x1536xf32> to vector<8x512xf32>
    %155 = vector.extract_strided_slice %153 {offsets = [0, 0], sizes = [8, 512], strides = [1, 1]} : vector<8x1536xf32> to vector<8x512xf32>
    %156 = arith.addf %154, %155 : vector<8x512xf32>
    %157 = arith.negf %156 : vector<8x512xf32>
    %158 = math.exp %157 : vector<8x512xf32>
    %cst_41 = arith.constant 1.000000e+00 : f32
    %159 = vector.broadcast %cst_41 : f32 to vector<8x512xf32>
    %160 = arith.addf %159, %158 : vector<8x512xf32>
    %161 = arith.divf %159, %160 : vector<8x512xf32>
    %162 = vector.extract_strided_slice %152 {offsets = [0, 512], sizes = [8, 512], strides = [1, 1]} : vector<8x1536xf32> to vector<8x512xf32>
    %163 = vector.extract_strided_slice %153 {offsets = [0, 512], sizes = [8, 512], strides = [1, 1]} : vector<8x1536xf32> to vector<8x512xf32>
    %164 = arith.addf %162, %163 : vector<8x512xf32>
    %165 = arith.negf %164 : vector<8x512xf32>
    %166 = math.exp %165 : vector<8x512xf32>
    %cst_42 = arith.constant 1.000000e+00 : f32
    %167 = vector.broadcast %cst_42 : f32 to vector<8x512xf32>
    %168 = arith.addf %167, %166 : vector<8x512xf32>
    %169 = arith.divf %167, %168 : vector<8x512xf32>
    %170 = vector.extract_strided_slice %152 {offsets = [0, 1024], sizes = [8, 512], strides = [1, 1]} : vector<8x1536xf32> to vector<8x512xf32>
    %171 = vector.extract_strided_slice %153 {offsets = [0, 1024], sizes = [8, 512], strides = [1, 1]} : vector<8x1536xf32> to vector<8x512xf32>
    %172 = vector.broadcast %4 : vector<1x512xf32> to vector<8x512xf32>
    %173 = arith.addf %171, %172 : vector<8x512xf32>
    %174 = arith.mulf %161, %173 : vector<8x512xf32>
    %175 = arith.addf %170, %174 : vector<8x512xf32>
    %176 = math.tanh %175 : vector<8x512xf32>
    %cst_43 = arith.constant 1.000000e+00 : f32
    %177 = vector.broadcast %cst_43 : f32 to vector<8x512xf32>
    %178 = arith.subf %177, %169 : vector<8x512xf32>
    %179 = arith.mulf %178, %176 : vector<8x512xf32>
    %180 = arith.mulf %169, %145 : vector<8x512xf32>
    %181 = arith.addf %179, %180 : vector<8x512xf32>
    %182 = arith.index_cast %c4_i32 : i32 to index
    %c0_44 = arith.constant 0 : index
    %c0_45 = arith.constant 0 : index
    %183 = vector.load %arg5[%182, %c0_44, %c0_45] : memref<8x8x512xf32, #tpu.memory_space<vmem>>, vector<1x8x512xf32>
    %184 = vector.shape_cast %183 : vector<1x8x512xf32> to vector<8x512xf32>
    %185 = vector.shape_cast %181 : vector<8x512xf32> to vector<1x8x512xf32>
    tpu.vector_store %arg5[%182, %c0_44, %c0_45], %185 {strides = array<i32>} : memref<8x8x512xf32, #tpu.memory_space<vmem>>, vector<1x8x512xf32>,
    %c5_i32 = arith.constant 5 : i32
    %186 = arith.index_cast %c5_i32 : i32 to index
    %c0_46 = arith.constant 0 : index
    %c0_47 = arith.constant 0 : index
    %187 = vector.load %arg2[%186, %c0_46, %c0_47] : memref<8x8x1536xf32, #tpu.memory_space<vmem>>, vector<1x8x1536xf32>
    %188 = vector.shape_cast %187 : vector<1x8x1536xf32> to vector<8x1536xf32>
    %cst_48 = arith.constant dense<0.000000e+00> : vector<8x1536xf32>
    %189 = tpu.matmul %181, %3, %cst_48 {dimension_numbers = #tpu.dot_dimension_numbers<[1], [0], [0], [1], [0, 0, 1, 1], [], []>} : vector<8x512xf32>, vector<512x1536xf32>, vector<8x1536xf32> -> vector<8x1536xf32>
    %190 = vector.extract_strided_slice %188 {offsets = [0, 0], sizes = [8, 512], strides = [1, 1]} : vector<8x1536xf32> to vector<8x512xf32>
    %191 = vector.extract_strided_slice %189 {offsets = [0, 0], sizes = [8, 512], strides = [1, 1]} : vector<8x1536xf32> to vector<8x512xf32>
    %192 = arith.addf %190, %191 : vector<8x512xf32>
    %193 = arith.negf %192 : vector<8x512xf32>
    %194 = math.exp %193 : vector<8x512xf32>
    %cst_49 = arith.constant 1.000000e+00 : f32
    %195 = vector.broadcast %cst_49 : f32 to vector<8x512xf32>
    %196 = arith.addf %195, %194 : vector<8x512xf32>
    %197 = arith.divf %195, %196 : vector<8x512xf32>
    %198 = vector.extract_strided_slice %188 {offsets = [0, 512], sizes = [8, 512], strides = [1, 1]} : vector<8x1536xf32> to vector<8x512xf32>
    %199 = vector.extract_strided_slice %189 {offsets = [0, 512], sizes = [8, 512], strides = [1, 1]} : vector<8x1536xf32> to vector<8x512xf32>
    %200 = arith.addf %198, %199 : vector<8x512xf32>
    %201 = arith.negf %200 : vector<8x512xf32>
    %202 = math.exp %201 : vector<8x512xf32>
    %cst_50 = arith.constant 1.000000e+00 : f32
    %203 = vector.broadcast %cst_50 : f32 to vector<8x512xf32>
    %204 = arith.addf %203, %202 : vector<8x512xf32>
    %205 = arith.divf %203, %204 : vector<8x512xf32>
    %206 = vector.extract_strided_slice %188 {offsets = [0, 1024], sizes = [8, 512], strides = [1, 1]} : vector<8x1536xf32> to vector<8x512xf32>
    %207 = vector.extract_strided_slice %189 {offsets = [0, 1024], sizes = [8, 512], strides = [1, 1]} : vector<8x1536xf32> to vector<8x512xf32>
    %208 = vector.broadcast %4 : vector<1x512xf32> to vector<8x512xf32>
    %209 = arith.addf %207, %208 : vector<8x512xf32>
    %210 = arith.mulf %197, %209 : vector<8x512xf32>
    %211 = arith.addf %206, %210 : vector<8x512xf32>
    %212 = math.tanh %211 : vector<8x512xf32>
    %cst_51 = arith.constant 1.000000e+00 : f32
    %213 = vector.broadcast %cst_51 : f32 to vector<8x512xf32>
    %214 = arith.subf %213, %205 : vector<8x512xf32>
    %215 = arith.mulf %214, %212 : vector<8x512xf32>
    %216 = arith.mulf %205, %181 : vector<8x512xf32>
    %217 = arith.addf %215, %216 : vector<8x512xf32>
    %218 = arith.index_cast %c5_i32 : i32 to index
    %c0_52 = arith.constant 0 : index
    %c0_53 = arith.constant 0 : index
    %219 = vector.load %arg5[%218, %c0_52, %c0_53] : memref<8x8x512xf32, #tpu.memory_space<vmem>>, vector<1x8x512xf32>
    %220 = vector.shape_cast %219 : vector<1x8x512xf32> to vector<8x512xf32>
    %221 = vector.shape_cast %217 : vector<8x512xf32> to vector<1x8x512xf32>
    tpu.vector_store %arg5[%218, %c0_52, %c0_53], %221 {strides = array<i32>} : memref<8x8x512xf32, #tpu.memory_space<vmem>>, vector<1x8x512xf32>,
    %c6_i32 = arith.constant 6 : i32
    %222 = arith.index_cast %c6_i32 : i32 to index
    %c0_54 = arith.constant 0 : index
    %c0_55 = arith.constant 0 : index
    %223 = vector.load %arg2[%222, %c0_54, %c0_55] : memref<8x8x1536xf32, #tpu.memory_space<vmem>>, vector<1x8x1536xf32>
    %224 = vector.shape_cast %223 : vector<1x8x1536xf32> to vector<8x1536xf32>
    %cst_56 = arith.constant dense<0.000000e+00> : vector<8x1536xf32>
    %225 = tpu.matmul %217, %3, %cst_56 {dimension_numbers = #tpu.dot_dimension_numbers<[1], [0], [0], [1], [0, 0, 1, 1], [], []>} : vector<8x512xf32>, vector<512x1536xf32>, vector<8x1536xf32> -> vector<8x1536xf32>
    %226 = vector.extract_strided_slice %224 {offsets = [0, 0], sizes = [8, 512], strides = [1, 1]} : vector<8x1536xf32> to vector<8x512xf32>
    %227 = vector.extract_strided_slice %225 {offsets = [0, 0], sizes = [8, 512], strides = [1, 1]} : vector<8x1536xf32> to vector<8x512xf32>
    %228 = arith.addf %226, %227 : vector<8x512xf32>
    %229 = arith.negf %228 : vector<8x512xf32>
    %230 = math.exp %229 : vector<8x512xf32>
    %cst_57 = arith.constant 1.000000e+00 : f32
    %231 = vector.broadcast %cst_57 : f32 to vector<8x512xf32>
    %232 = arith.addf %231, %230 : vector<8x512xf32>
    %233 = arith.divf %231, %232 : vector<8x512xf32>
    %234 = vector.extract_strided_slice %224 {offsets = [0, 512], sizes = [8, 512], strides = [1, 1]} : vector<8x1536xf32> to vector<8x512xf32>
    %235 = vector.extract_strided_slice %225 {offsets = [0, 512], sizes = [8, 512], strides = [1, 1]} : vector<8x1536xf32> to vector<8x512xf32>
    %236 = arith.addf %234, %235 : vector<8x512xf32>
    %237 = arith.negf %236 : vector<8x512xf32>
    %238 = math.exp %237 : vector<8x512xf32>
    %cst_58 = arith.constant 1.000000e+00 : f32
    %239 = vector.broadcast %cst_58 : f32 to vector<8x512xf32>
    %240 = arith.addf %239, %238 : vector<8x512xf32>
    %241 = arith.divf %239, %240 : vector<8x512xf32>
    %242 = vector.extract_strided_slice %224 {offsets = [0, 1024], sizes = [8, 512], strides = [1, 1]} : vector<8x1536xf32> to vector<8x512xf32>
    %243 = vector.extract_strided_slice %225 {offsets = [0, 1024], sizes = [8, 512], strides = [1, 1]} : vector<8x1536xf32> to vector<8x512xf32>
    %244 = vector.broadcast %4 : vector<1x512xf32> to vector<8x512xf32>
    %245 = arith.addf %243, %244 : vector<8x512xf32>
    %246 = arith.mulf %233, %245 : vector<8x512xf32>
    %247 = arith.addf %242, %246 : vector<8x512xf32>
    %248 = math.tanh %247 : vector<8x512xf32>
    %cst_59 = arith.constant 1.000000e+00 : f32
    %249 = vector.broadcast %cst_59 : f32 to vector<8x512xf32>
    %250 = arith.subf %249, %241 : vector<8x512xf32>
    %251 = arith.mulf %250, %248 : vector<8x512xf32>
    %252 = arith.mulf %241, %217 : vector<8x512xf32>
    %253 = arith.addf %251, %252 : vector<8x512xf32>
    %254 = arith.index_cast %c6_i32 : i32 to index
    %c0_60 = arith.constant 0 : index
    %c0_61 = arith.constant 0 : index
    %255 = vector.load %arg5[%254, %c0_60, %c0_61] : memref<8x8x512xf32, #tpu.memory_space<vmem>>, vector<1x8x512xf32>
    %256 = vector.shape_cast %255 : vector<1x8x512xf32> to vector<8x512xf32>
    %257 = vector.shape_cast %253 : vector<8x512xf32> to vector<1x8x512xf32>
    tpu.vector_store %arg5[%254, %c0_60, %c0_61], %257 {strides = array<i32>} : memref<8x8x512xf32, #tpu.memory_space<vmem>>, vector<1x8x512xf32>,
    %c7_i32 = arith.constant 7 : i32
    %258 = arith.index_cast %c7_i32 : i32 to index
    %c0_62 = arith.constant 0 : index
    %c0_63 = arith.constant 0 : index
    %259 = vector.load %arg2[%258, %c0_62, %c0_63] : memref<8x8x1536xf32, #tpu.memory_space<vmem>>, vector<1x8x1536xf32>
    %260 = vector.shape_cast %259 : vector<1x8x1536xf32> to vector<8x1536xf32>
    %cst_64 = arith.constant dense<0.000000e+00> : vector<8x1536xf32>
    %261 = tpu.matmul %253, %3, %cst_64 {dimension_numbers = #tpu.dot_dimension_numbers<[1], [0], [0], [1], [0, 0, 1, 1], [], []>} : vector<8x512xf32>, vector<512x1536xf32>, vector<8x1536xf32> -> vector<8x1536xf32>
    %262 = vector.extract_strided_slice %260 {offsets = [0, 0], sizes = [8, 512], strides = [1, 1]} : vector<8x1536xf32> to vector<8x512xf32>
    %263 = vector.extract_strided_slice %261 {offsets = [0, 0], sizes = [8, 512], strides = [1, 1]} : vector<8x1536xf32> to vector<8x512xf32>
    %264 = arith.addf %262, %263 : vector<8x512xf32>
    %265 = arith.negf %264 : vector<8x512xf32>
    %266 = math.exp %265 : vector<8x512xf32>
    %cst_65 = arith.constant 1.000000e+00 : f32
    %267 = vector.broadcast %cst_65 : f32 to vector<8x512xf32>
    %268 = arith.addf %267, %266 : vector<8x512xf32>
    %269 = arith.divf %267, %268 : vector<8x512xf32>
    %270 = vector.extract_strided_slice %260 {offsets = [0, 512], sizes = [8, 512], strides = [1, 1]} : vector<8x1536xf32> to vector<8x512xf32>
    %271 = vector.extract_strided_slice %261 {offsets = [0, 512], sizes = [8, 512], strides = [1, 1]} : vector<8x1536xf32> to vector<8x512xf32>
    %272 = arith.addf %270, %271 : vector<8x512xf32>
    %273 = arith.negf %272 : vector<8x512xf32>
    %274 = math.exp %273 : vector<8x512xf32>
    %cst_66 = arith.constant 1.000000e+00 : f32
    %275 = vector.broadcast %cst_66 : f32 to vector<8x512xf32>
    %276 = arith.addf %275, %274 : vector<8x512xf32>
    %277 = arith.divf %275, %276 : vector<8x512xf32>
    %278 = vector.extract_strided_slice %260 {offsets = [0, 1024], sizes = [8, 512], strides = [1, 1]} : vector<8x1536xf32> to vector<8x512xf32>
    %279 = vector.extract_strided_slice %261 {offsets = [0, 1024], sizes = [8, 512], strides = [1, 1]} : vector<8x1536xf32> to vector<8x512xf32>
    %280 = vector.broadcast %4 : vector<1x512xf32> to vector<8x512xf32>
    %281 = arith.addf %279, %280 : vector<8x512xf32>
    %282 = arith.mulf %269, %281 : vector<8x512xf32>
    %283 = arith.addf %278, %282 : vector<8x512xf32>
    %284 = math.tanh %283 : vector<8x512xf32>
    %cst_67 = arith.constant 1.000000e+00 : f32
    %285 = vector.broadcast %cst_67 : f32 to vector<8x512xf32>
    %286 = arith.subf %285, %277 : vector<8x512xf32>
    %287 = arith.mulf %286, %284 : vector<8x512xf32>
    %288 = arith.mulf %277, %253 : vector<8x512xf32>
    %289 = arith.addf %287, %288 : vector<8x512xf32>
    %290 = arith.index_cast %c7_i32 : i32 to index
    %c0_68 = arith.constant 0 : index
    %c0_69 = arith.constant 0 : index
    %291 = vector.load %arg5[%290, %c0_68, %c0_69] : memref<8x8x512xf32, #tpu.memory_space<vmem>>, vector<1x8x512xf32>
    %292 = vector.shape_cast %291 : vector<1x8x512xf32> to vector<8x512xf32>
    %293 = vector.shape_cast %289 : vector<8x512xf32> to vector<1x8x512xf32>
    tpu.vector_store %arg5[%290, %c0_68, %c0_69], %293 {strides = array<i32>} : memref<8x8x512xf32, #tpu.memory_space<vmem>>, vector<1x8x512xf32>,
    %c8_i32 = arith.constant 8 : i32
    %c0_70 = arith.constant 0 : index
    %c0_71 = arith.constant 0 : index
    %294 = vector.load %arg7[%c0_70, %c0_71] : memref<8x512xf32, #tpu.memory_space<vmem>>, vector<8x512xf32>
    tpu.vector_store %arg7[%c0_70, %c0_71], %289 {strides = array<i32>} : memref<8x512xf32, #tpu.memory_space<vmem>>, vector<8x512xf32>,
    %c0_i32_72 = arith.constant 0 : i32
    %295 = arith.cmpi eq, %arg1, %c0_i32_72 : i32
    %296 = arith.extui %295 : i1 to i32
    %c0_i32_73 = arith.constant 0 : i32
    %297 = arith.cmpi ne, %296, %c0_i32_73 : i32
    scf.if %297 {
      %c0_74 = arith.constant 0 : index
      %c0_75 = arith.constant 0 : index
      %298 = vector.load %arg6[%c0_74, %c0_75] : memref<8x512xf32, #tpu.memory_space<vmem>>, vector<8x512xf32>
      tpu.vector_store %arg6[%c0_74, %c0_75], %289 {strides = array<i32>} : memref<8x512xf32, #tpu.memory_space<vmem>>, vector<8x512xf32>,
    } else {
    }
    return
  }
  func.func @transform_0(%arg0: i32, %arg1: i32) -> (i32, i32, i32) {
    %c0_i32 = arith.constant 0 : i32
    %c0_i32_0 = arith.constant 0 : i32
    return %arg1, %arg0, %c0_i32 : i32, i32, i32
  }
  func.func @transform_1(%arg0: i32, %arg1: i32) -> (i32, i32) {
    %c0_i32 = arith.constant 0 : i32
    %c0_i32_0 = arith.constant 0 : i32
    %c0_i32_1 = arith.constant 0 : i32
    return %c0_i32, %c0_i32_0 : i32, i32
  }
  func.func @transform_2(%arg0: i32, %arg1: i32) -> (i32, i32) {
    %c0_i32 = arith.constant 0 : i32
    %c0_i32_0 = arith.constant 0 : i32
    %c0_i32_1 = arith.constant 0 : i32
    return %c0_i32, %c0_i32_0 : i32, i32
  }
  func.func @transform_3(%arg0: i32, %arg1: i32) -> (i32, i32, i32) {
    %c0_i32 = arith.constant 0 : i32
    %c0_i32_0 = arith.constant 0 : i32
    return %arg1, %arg0, %c0_i32 : i32, i32, i32
  }
  func.func @transform_4(%arg0: i32, %arg1: i32) -> (i32, i32) {
    %c0_i32 = arith.constant 0 : i32
    %c0_i32_0 = arith.constant 0 : i32
    return %arg0, %c0_i32 : i32, i32
  }
}

</mosaic_0001>

<llo_original>
// kernel: encoder_forward.1
$region0: #{encoder_forward.1}
  #allocation0 [shape = 'u32[]', space=smem, size = 0x4, offset = 0x4, fixed_abs, tag = 'smem constant byte address 0x4 - core index']
  #allocation1 [shape = 'u32[144,128]{1,0:T(1,128)}', space=vmem, size = 0x12000, scoped, tag = 'internal scratch']
  #allocation2 [shape = 'f32[8,512]{1,0:T(8,128)}', space=vmem, size = 0x4000, scoped, tag = 'scratch operand']
  %s0 = inlined_call_operand.vmem [shape: f32[8,8,1536], index: 0, kind: input, shape index: {}]
  %s1 = inlined_call_operand.vmem [shape: f32[512,1536], index: 1, kind: input, shape index: {}]
  %s2 = inlined_call_operand.vmem [shape: f32[1,512], index: 2, kind: input, shape index: {}]
  %s3 = inlined_call_operand.vmem [shape: f32[8,8,512], index: 3, kind: output, shape index: {0}]
  %s4 = inlined_call_operand.vmem [shape: f32[8,512], index: 4, kind: output, shape index: {1}]
  %5 = xla_tuple %s3, %s4
  %s6 = sld [smem:[#allocation0]]
  $region38: #{encoder_forward.1} parent=0
    _
  %s8 = ssub.s32 1, %s6
  %s9 = scalar_select 0, %s8, %s6
  // Predicated region
  $region2: #{encoder_forward.1} parent=0 // pred_check
    _
  $region3: #{encoder_forward.1} parent=0 // pred_check_branch
    %11 = sbr.rel (0) target = $region5
  $region4: #{encoder_forward.1} parent=0 // pred_region
    _
  $region5: #{encoder_forward.1} parent=0 // pred_fallthru
    _
  // Predicated region
  $region6: #{encoder_forward.1} parent=0 // pred_check
    _
  $region7: #{encoder_forward.1} parent=0 // pred_check_branch
    %13 = sbr.rel (0) target = $region9
  $region8: #{encoder_forward.1} parent=0 // pred_region
    _
  $region9: #{encoder_forward.1} parent=0 // pred_fallthru
    _
  // Predicated region
  $region10: #{encoder_forward.1} parent=0 // pred_check
    _
  $region11: #{encoder_forward.1} parent=0 // pred_check_branch
    %15 = sbr.rel (0) target = $region13
  $region12: #{encoder_forward.1} parent=0 // pred_region
    _
  $region13: #{encoder_forward.1} parent=0 // pred_fallthru
    _
  %p16 = scmp.eq.s32.totalorder 0, 0
  // Predicated region
  $region14: #{encoder_forward.1} parent=0 // pred_check
    %p17 = pneg %p16
  $region15: #{encoder_forward.1} parent=0 // pred_check_branch
    %19 = sbr.rel (%p17) target = $region17
  $region16: #{encoder_forward.1} parent=0 // pred_region
    %20 = vst [vmem:[#allocation2] sm:$0xff] 0.0
    %21 = vst [vmem:[#allocation2 + $0x8] sm:$0xff] 0.0
    %22 = vst [vmem:[#allocation2 + $0x10] sm:$0xff] 0.0
    %23 = vst [vmem:[#allocation2 + $0x18] sm:$0xff] 0.0
  $region17: #{encoder_forward.1} parent=0 // pred_fallthru
    _
  %v24 = vld [vmem:[%s1] sm:$0xff]
  %v25 = vld [vmem:[%s1 + $0x8] sm:$0xff]
  %v26 = vld [vmem:[%s1 + $0x10] sm:$0xff]
  %v27 = vld [vmem:[%s1 + $0x18] sm:$0xff]
  %v28 = vld [vmem:[%s1 + $0x20] sm:$0xff]
  %v29 = vld [vmem:[%s1 + $0x28] sm:$0xff]
  %v30 = vld [vmem:[%s1 + $0x30] sm:$0xff]
  %v31 = vld [vmem:[%s1 + $0x38] sm:$0xff]
  %v32 = vld [vmem:[%s1 + $0x40] sm:$0xff]
  %v33 = vld [vmem:[%s1 + $0x48] sm:$0xff]
  %v34 = vld [vmem:[%s1 + $0x50] sm:$0xff]
  %v35 = vld [vmem:[%s1 + $0x58] sm:$0xff]
  %v36 = vld [vmem:[%s1 + $0x60] sm:$0xff]
  %v37 = vld [vmem:[%s1 + $0x68] sm:$0xff]
  %v38 = vld [vmem:[%s1 + $0x70] sm:$0xff]
  %v39 = vld [vmem:[%s1 + $0x78] sm:$0xff]
  %v40 = vld [vmem:[%s1 + $0x80] sm:$0xff]
  %v41 = vld [vmem:[%s1 + $0x88] sm:$0xff]
  %v42 = vld [vmem:[%s1 + $0x90] sm:$0xff]
  %v43 = vld [vmem:[%s1 + $0x98] sm:$0xff]
  %v44 = vld [vmem:[%s1 + $0xa0] sm:$0xff]
  %v45 = vld [vmem:[%s1 + $0xa8] sm:$0xff]
  %v46 = vld [vmem:[%s1 + $0xb0] sm:$0xff]
  %v47 = vld [vmem:[%s1 + $0xb8] sm:$0xff]
  %v48 = vld [vmem:[%s1 + $0xc0] sm:$0xff]
  %v49 = vld [vmem:[%s1 + $0xc8] sm:$0xff]
  %v50 = vld [vmem:[%s1 + $0xd0] sm:$0xff]
  %v51 = vld [vmem:[%s1 + $0xd8] sm:$0xff]
  %v52 = vld [vmem:[%s1 + $0xe0] sm:$0xff]
  %v53 = vld [vmem:[%s1 + $0xe8] sm:$0xff]
  %v54 = vld [vmem:[%s1 + $0xf0] sm:$0xff]
  %v55 = vld [vmem:[%s1 + $0xf8] sm:$0xff]
  %v56 = vld [vmem:[%s1 + $0x100] sm:$0xff]
  %v57 = vld [vmem:[%s1 + $0x108] sm:$0xff]
  %v58 = vld [vmem:[%s1 + $0x110] sm:$0xff]
  %v59 = vld [vmem:[%s1 + $0x118] sm:$0xff]
  %v60 = vld [vmem:[%s1 + $0x120] sm:$0xff]
  %v61 = vld [vmem:[%s1 + $0x128] sm:$0xff]
  %v62 = vld [vmem:[%s1 + $0x130] sm:$0xff]
  %v63 = vld [vmem:[%s1 + $0x138] sm:$0xff]
  %v64 = vld [vmem:[%s1 + $0x140] sm:$0xff]
  %v65 = vld [vmem:[%s1 + $0x148] sm:$0xff]
  %v66 = vld [vmem:[%s1 + $0x150] sm:$0xff]
  %v67 = vld [vmem:[%s1 + $0x158] sm:$0xff]
  %v68 = vld [vmem:[%s1 + $0x160] sm:$0xff]
  %v69 = vld [vmem:[%s1 + $0x168] sm:$0xff]
  %v70 = vld [vmem:[%s1 + $0x170] sm:$0xff]
  %v71 = vld [vmem:[%s1 + $0x178] sm:$0xff]
  %v72 = vld [vmem:[%s1 + $0x180] sm:$0xff]
  %v73 = vld [vmem:[%s1 + $0x188] sm:$0xff]
  %v74 = vld [vmem:[%s1 + $0x190] sm:$0xff]
  %v75 = vld [vmem:[%s1 + $0x198] sm:$0xff]
  %v76 = vld [vmem:[%s1 + $0x1a0] sm:$0xff]
  %v77 = vld [vmem:[%s1 + $0x1a8] sm:$0xff]
  %v78 = vld [vmem:[%s1 + $0x1b0] sm:$0xff]
  %v79 = vld [vmem:[%s1 + $0x1b8] sm:$0xff]
  %v80 = vld [vmem:[%s1 + $0x1c0] sm:$0xff]
  %v81 = vld [vmem:[%s1 + $0x1c8] sm:$0xff]
  %v82 = vld [vmem:[%s1 + $0x1d0] sm:$0xff]
  %v83 = vld [vmem:[%s1 + $0x1d8] sm:$0xff]
  %v84 = vld [vmem:[%s1 + $0x1e0] sm:$0xff]
  %v85 = vld [vmem:[%s1 + $0x1e8] sm:$0xff]
  %v86 = vld [vmem:[%s1 + $0x1f0] sm:$0xff]
  %v87 = vld [vmem:[%s1 + $0x1f8] sm:$0xff]
  %v88 = vld [vmem:[%s1 + $0x200] sm:$0xff]
  %v89 = vld [vmem:[%s1 + $0x208] sm:$0xff]
  %v90 = vld [vmem:[%s1 + $0x210] sm:$0xff]
  %v91 = vld [vmem:[%s1 + $0x218] sm:$0xff]
  %v92 = vld [vmem:[%s1 + $0x220] sm:$0xff]
  %v93 = vld [vmem:[%s1 + $0x228] sm:$0xff]
  %v94 = vld [vmem:[%s1 + $0x230] sm:$0xff]
  %v95 = vld [vmem:[%s1 + $0x238] sm:$0xff]
  %v96 = vld [vmem:[%s1 + $0x240] sm:$0xff]
  %v97 = vld [vmem:[%s1 + $0x248] sm:$0xff]
  %v98 = vld [vmem:[%s1 + $0x250] sm:$0xff]
  %v99 = vld [vmem:[%s1 + $0x258] sm:$0xff]
  %v100 = vld [vmem:[%s1 + $0x260] sm:$0xff]
  %v101 = vld [vmem:[%s1 + $0x268] sm:$0xff]
  %v102 = vld [vmem:[%s1 + $0x270] sm:$0xff]
  %v103 = vld [vmem:[%s1 + $0x278] sm:$0xff]
  %v104 = vld [vmem:[%s1 + $0x280] sm:$0xff]
  %v105 = vld [vmem:[%s1 + $0x288] sm:$0xff]
  %v106 = vld [vmem:[%s1 + $0x290] sm:$0xff]
  %v107 = vld [vmem:[%s1 + $0x298] sm:$0xff]
  %v108 = vld [vmem:[%s1 + $0x2a0] sm:$0xff]
  %v109 = vld [vmem:[%s1 + $0x2a8] sm:$0xff]
  %v110 = vld [vmem:[%s1 + $0x2b0] sm:$0xff]
  %v111 = vld [vmem:[%s1 + $0x2b8] sm:$0xff]
  %v112 = vld [vmem:[%s1 + $0x2c0] sm:$0xff]
  %v113 = vld [vmem:[%s1 + $0x2c8] sm:$0xff]
  %v114 = vld [vmem:[%s1 + $0x2d0] sm:$0xff]
  %v115 = vld [vmem:[%s1 + $0x2d8] sm:$0xff]
  %v116 = vld [vmem:[%s1 + $0x2e0] sm:$0xff]
  %v117 = vld [vmem:[%s1 + $0x2e8] sm:$0xff]
  %v118 = vld [vmem:[%s1 + $0x2f0] sm:$0xff]
  %v119 = vld [vmem:[%s1 + $0x2f8] sm:$0xff]
  %v120 = vld [vmem:[%s1 + $0x300] sm:$0xff]
  %v121 = vld [vmem:[%s1 + $0x308] sm:$0xff]
  %v122 = vld [vmem:[%s1 + $0x310] sm:$0xff]
  %v123 = vld [vmem:[%s1 + $0x318] sm:$0xff]
  %v124 = vld [vmem:[%s1 + $0x320] sm:$0xff]
  %v125 = vld [vmem:[%s1 + $0x328] sm:$0xff]
  %v126 = vld [vmem:[%s1 + $0x330] sm:$0xff]
  %v127 = vld [vmem:[%s1 + $0x338] sm:$0xff]
  %v128 = vld [vmem:[%s1 + $0x340] sm:$0xff]
  %v129 = vld [vmem:[%s1 + $0x348] sm:$0xff]
  %v130 = vld [vmem:[%s1 + $0x350] sm:$0xff]
  %v131 = vld [vmem:[%s1 + $0x358] sm:$0xff]
  %v132 = vld [vmem:[%s1 + $0x360] sm:$0xff]
  %v133 = vld [vmem:[%s1 + $0x368] sm:$0xff]
  %v134 = vld [vmem:[%s1 + $0x370] sm:$0xff]
  %v135 = vld [vmem:[%s1 + $0x378] sm:$0xff]
  %v136 = vld [vmem:[%s1 + $0x380] sm:$0xff]
  %v137 = vld [vmem:[%s1 + $0x388] sm:$0xff]
  %v138 = vld [vmem:[%s1 + $0x390] sm:$0xff]
  %v139 = vld [vmem:[%s1 + $0x398] sm:$0xff]
  %v140 = vld [vmem:[%s1 + $0x3a0] sm:$0xff]
  %v141 = vld [vmem:[%s1 + $0x3a8] sm:$0xff]
  %v142 = vld [vmem:[%s1 + $0x3b0] sm:$0xff]
  %v143 = vld [vmem:[%s1 + $0x3b8] sm:$0xff]
  %v144 = vld [vmem:[%s1 + $0x3c0] sm:$0xff]
  %v145 = vld [vmem:[%s1 + $0x3c8] sm:$0xff]
  %v146 = vld [vmem:[%s1 + $0x3d0] sm:$0xff]
  %v147 = vld [vmem:[%s1 + $0x3d8] sm:$0xff]
  %v148 = vld [vmem:[%s1 + $0x3e0] sm:$0xff]
  %v149 = vld [vmem:[%s1 + $0x3e8] sm:$0xff]
  %v150 = vld [vmem:[%s1 + $0x3f0] sm:$0xff]
  %v151 = vld [vmem:[%s1 + $0x3f8] sm:$0xff]
  %v152 = vld [vmem:[%s1 + $0x400] sm:$0xff]
  %v153 = vld [vmem:[%s1 + $0x408] sm:$0xff]
  %v154 = vld [vmem:[%s1 + $0x410] sm:$0xff]
  %v155 = vld [vmem:[%s1 + $0x418] sm:$0xff]
  %v156 = vld [vmem:[%s1 + $0x420] sm:$0xff]
  %v157 = vld [vmem:[%s1 + $0x428] sm:$0xff]
  %v158 = vld [vmem:[%s1 + $0x430] sm:$0xff]
  %v159 = vld [vmem:[%s1 + $0x438] sm:$0xff]
  %v160 = vld [vmem:[%s1 + $0x440] sm:$0xff]
  %v161 = vld [vmem:[%s1 + $0x448] sm:$0xff]
  %v162 = vld [vmem:[%s1 + $0x450] sm:$0xff]
  %v163 = vld [vmem:[%s1 + $0x458] sm:$0xff]
  %v164 = vld [vmem:[%s1 + $0x460] sm:$0xff]
  %v165 = vld [vmem:[%s1 + $0x468] sm:$0xff]
  %v166 = vld [vmem:[%s1 + $0x470] sm:$0xff]
  %v167 = vld [vmem:[%s1 + $0x478] sm:$0xff]
  %v168 = vld [vmem:[%s1 + $0x480] sm:$0xff]
  %v169 = vld [vmem:[%s1 + $0x488] sm:$0xff]
  %v170 = vld [vmem:[%s1 + $0x490] sm:$0xff]
  %v171 = vld [vmem:[%s1 + $0x498] sm:$0xff]
  %v172 = vld [vmem:[%s1 + $0x4a0] sm:$0xff]
  %v173 = vld [vmem:[%s1 + $0x4a8] sm:$0xff]
  %v174 = vld [vmem:[%s1 + $0x4b0] sm:$0xff]
  %v175 = vld [vmem:[%s1 + $0x4b8] sm:$0xff]
  %v176 = vld [vmem:[%s1 + $0x4c0] sm:$0xff]
  %v177 = vld [vmem:[%s1 + $0x4c8] sm:$0xff]
  %v178 = vld [vmem:[%s1 + $0x4d0] sm:$0xff]
  %v179 = vld [vmem:[%s1 + $0x4d8] sm:$0xff]
  %v180 = vld [vmem:[%s1 + $0x4e0] sm:$0xff]
  %v181 = vld [vmem:[%s1 + $0x4e8] sm:$0xff]
  %v182 = vld [vmem:[%s1 + $0x4f0] sm:$0xff]
  %v183 = vld [vmem:[%s1 + $0x4f8] sm:$0xff]
  %v184 = vld [vmem:[%s1 + $0x500] sm:$0xff]
  %v185 = vld [vmem:[%s1 + $0x508] sm:$0xff]
  %v186 = vld [vmem:[%s1 + $0x510] sm:$0xff]
  %v187 = vld [vmem:[%s1 + $0x518] sm:$0xff]
  %v188 = vld [vmem:[%s1 + $0x520] sm:$0xff]
  %v189 = vld [vmem:[%s1 + $0x528] sm:$0xff]
  %v190 = vld [vmem:[%s1 + $0x530] sm:$0xff]
  %v191 = vld [vmem:[%s1 + $0x538] sm:$0xff]
  %v192 = vld [vmem:[%s1 + $0x540] sm:$0xff]
  %v193 = vld [vmem:[%s1 + $0x548] sm:$0xff]
  %v194 = vld [vmem:[%s1 + $0x550] sm:$0xff]
  %v195 = vld [vmem:[%s1 + $0x558] sm:$0xff]
  %v196 = vld [vmem:[%s1 + $0x560] sm:$0xff]
  %v197 = vld [vmem:[%s1 + $0x568] sm:$0xff]
  %v198 = vld [vmem:[%s1 + $0x570] sm:$0xff]
  %v199 = vld [vmem:[%s1 + $0x578] sm:$0xff]
  %v200 = vld [vmem:[%s1 + $0x580] sm:$0xff]
  %v201 = vld [vmem:[%s1 + $0x588] sm:$0xff]
  %v202 = vld [vmem:[%s1 + $0x590] sm:$0xff]
  %v203 = vld [vmem:[%s1 + $0x598] sm:$0xff]
  %v204 = vld [vmem:[%s1 + $0x5a0] sm:$0xff]
  %v205 = vld [vmem:[%s1 + $0x5a8] sm:$0xff]
  %v206 = vld [vmem:[%s1 + $0x5b0] sm:$0xff]
  %v207 = vld [vmem:[%s1 + $0x5b8] sm:$0xff]
  %v208 = vld [vmem:[%s1 + $0x5c0] sm:$0xff]
  %v209 = vld [vmem:[%s1 + $0x5c8] sm:$0xff]
  %v210 = vld [vmem:[%s1 + $0x5d0] sm:$0xff]
  %v211 = vld [vmem:[%s1 + $0x5d8] sm:$0xff]
  %v212 = vld [vmem:[%s1 + $0x5e0] sm:$0xff]
  %v213 = vld [vmem:[%s1 + $0x5e8] sm:$0xff]
  %v214 = vld [vmem:[%s1 + $0x5f0] sm:$0xff]
  %v215 = vld [vmem:[%s1 + $0x5f8] sm:$0xff]
  %v216 = vld [vmem:[%s1 + $0x600] sm:$0xff]
  %v217 = vld [vmem:[%s1 + $0x608] sm:$0xff]
  %v218 = vld [vmem:[%s1 + $0x610] sm:$0xff]
  %v219 = vld [vmem:[%s1 + $0x618] sm:$0xff]
  %v220 = vld [vmem:[%s1 + $0x620] sm:$0xff]
  %v221 = vld [vmem:[%s1 + $0x628] sm:$0xff]
  %v222 = vld [vmem:[%s1 + $0x630] sm:$0xff]
  %v223 = vld [vmem:[%s1 + $0x638] sm:$0xff]
  %v224 = vld [vmem:[%s1 + $0x640] sm:$0xff]
  %v225 = vld [vmem:[%s1 + $0x648] sm:$0xff]
  %v226 = vld [vmem:[%s1 + $0x650] sm:$0xff]
  %v227 = vld [vmem:[%s1 + $0x658] sm:$0xff]
  %v228 = vld [vmem:[%s1 + $0x660] sm:$0xff]
  %v229 = vld [vmem:[%s1 + $0x668] sm:$0xff]
  %v230 = vld [vmem:[%s1 + $0x670] sm:$0xff]
  %v231 = vld [vmem:[%s1 + $0x678] sm:$0xff]
  %v232 = vld [vmem:[%s1 + $0x680] sm:$0xff]
  %v233 = vld [vmem:[%s1 + $0x688] sm:$0xff]
  %v234 = vld [vmem:[%s1 + $0x690] sm:$0xff]
  %v235 = vld [vmem:[%s1 + $0x698] sm:$0xff]
  %v236 = vld [vmem:[%s1 + $0x6a0] sm:$0xff]
  %v237 = vld [vmem:[%s1 + $0x6a8] sm:$0xff]
  %v238 = vld [vmem:[%s1 + $0x6b0] sm:$0xff]
  %v239 = vld [vmem:[%s1 + $0x6b8] sm:$0xff]
  %v240 = vld [vmem:[%s1 + $0x6c0] sm:$0xff]
  %v241 = vld [vmem:[%s1 + $0x6c8] sm:$0xff]
  %v242 = vld [vmem:[%s1 + $0x6d0] sm:$0xff]
  %v243 = vld [vmem:[%s1 + $0x6d8] sm:$0xff]
  %v244 = vld [vmem:[%s1 + $0x6e0] sm:$0xff]
  %v245 = vld [vmem:[%s1 + $0x6e8] sm:$0xff]
  %v246 = vld [vmem:[%s1 + $0x6f0] sm:$0xff]
  %v247 = vld [vmem:[%s1 + $0x6f8] sm:$0xff]
  %v248 = vld [vmem:[%s1 + $0x700] sm:$0xff]
  %v249 = vld [vmem:[%s1 + $0x708] sm:$0xff]
  %v250 = vld [vmem:[%s1 + $0x710] sm:$0xff]
  %v251 = vld [vmem:[%s1 + $0x718] sm:$0xff]
  %v252 = vld [vmem:[%s1 + $0x720] sm:$0xff]
  %v253 = vld [vmem:[%s1 + $0x728] sm:$0xff]
  %v254 = vld [vmem:[%s1 + $0x730] sm:$0xff]
  %v255 = vld [vmem:[%s1 + $0x738] sm:$0xff]
  %v256 = vld [vmem:[%s1 + $0x740] sm:$0xff]
  %v257 = vld [vmem:[%s1 + $0x748] sm:$0xff]
  %v258 = vld [vmem:[%s1 + $0x750] sm:$0xff]
  %v259 = vld [vmem:[%s1 + $0x758] sm:$0xff]
  %v260 = vld [vmem:[%s1 + $0x760] sm:$0xff]
  %v261 = vld [vmem:[%s1 + $0x768] sm:$0xff]
  %v262 = vld [vmem:[%s1 + $0x770] sm:$0xff]
  %v263 = vld [vmem:[%s1 + $0x778] sm:$0xff]
  %v264 = vld [vmem:[%s1 + $0x780] sm:$0xff]
  %v265 = vld [vmem:[%s1 + $0x788] sm:$0xff]
  %v266 = vld [vmem:[%s1 + $0x790] sm:$0xff]
  %v267 = vld [vmem:[%s1 + $0x798] sm:$0xff]
  %v268 = vld [vmem:[%s1 + $0x7a0] sm:$0xff]
  %v269 = vld [vmem:[%s1 + $0x7a8] sm:$0xff]
  %v270 = vld [vmem:[%s1 + $0x7b0] sm:$0xff]
  %v271 = vld [vmem:[%s1 + $0x7b8] sm:$0xff]
  %v272 = vld [vmem:[%s1 + $0x7c0] sm:$0xff]
  %v273 = vld [vmem:[%s1 + $0x7c8] sm:$0xff]
  %v274 = vld [vmem:[%s1 + $0x7d0] sm:$0xff]
  %v275 = vld [vmem:[%s1 + $0x7d8] sm:$0xff]
  %v276 = vld [vmem:[%s1 + $0x7e0] sm:$0xff]
  %v277 = vld [vmem:[%s1 + $0x7e8] sm:$0xff]
  %v278 = vld [vmem:[%s1 + $0x7f0] sm:$0xff]
  %v279 = vld [vmem:[%s1 + $0x7f8] sm:$0xff]
  %v280 = vld [vmem:[%s1 + $0x800] sm:$0xff]
  %v281 = vld [vmem:[%s1 + $0x808] sm:$0xff]
  %v282 = vld [vmem:[%s1 + $0x810] sm:$0xff]
  %v283 = vld [vmem:[%s1 + $0x818] sm:$0xff]
  %v284 = vld [vmem:[%s1 + $0x820] sm:$0xff]
  %v285 = vld [vmem:[%s1 + $0x828] sm:$0xff]
  %v286 = vld [vmem:[%s1 + $0x830] sm:$0xff]
  %v287 = vld [vmem:[%s1 + $0x838] sm:$0xff]
  %v288 = vld [vmem:[%s1 + $0x840] sm:$0xff]
  %v289 = vld [vmem:[%s1 + $0x848] sm:$0xff]
  %v290 = vld [vmem:[%s1 + $0x850] sm:$0xff]
  %v291 = vld [vmem:[%s1 + $0x858] sm:$0xff]
  %v292 = vld [vmem:[%s1 + $0x860] sm:$0xff]
  %v293 = vld [vmem:[%s1 + $0x868] sm:$0xff]
  %v294 = vld [vmem:[%s1 + $0x870] sm:$0xff]
  %v295 = vld [vmem:[%s1 + $0x878] sm:$0xff]
  %v296 = vld [vmem:[%s1 + $0x880] sm:$0xff]
  %v297 = vld [vmem:[%s1 + $0x888] sm:$0xff]
  %v298 = vld [vmem:[%s1 + $0x890] sm:$0xff]
  %v299 = vld [vmem:[%s1 + $0x898] sm:$0xff]
  %v300 = vld [vmem:[%s1 + $0x8a0] sm:$0xff]
  %v301 = vld [vmem:[%s1 + $0x8a8] sm:$0xff]
  %v302 = vld [vmem:[%s1 + $0x8b0] sm:$0xff]
  %v303 = vld [vmem:[%s1 + $0x8b8] sm:$0xff]
  %v304 = vld [vmem:[%s1 + $0x8c0] sm:$0xff]
  %v305 = vld [vmem:[%s1 + $0x8c8] sm:$0xff]
  %v306 = vld [vmem:[%s1 + $0x8d0] sm:$0xff]
  %v307 = vld [vmem:[%s1 + $0x8d8] sm:$0xff]
  %v308 = vld [vmem:[%s1 + $0x8e0] sm:$0xff]
  %v309 = vld [vmem:[%s1 + $0x8e8] sm:$0xff]
  %v310 = vld [vmem:[%s1 + $0x8f0] sm:$0xff]
  %v311 = vld [vmem:[%s1 + $0x8f8] sm:$0xff]
  %v312 = vld [vmem:[%s1 + $0x900] sm:$0xff]
  %v313 = vld [vmem:[%s1 + $0x908] sm:$0xff]
  %v314 = vld [vmem:[%s1 + $0x910] sm:$0xff]
  %v315 = vld [vmem:[%s1 + $0x918] sm:$0xff]
  %v316 = vld [vmem:[%s1 + $0x920] sm:$0xff]
  %v317 = vld [vmem:[%s1 + $0x928] sm:$0xff]
  %v318 = vld [vmem:[%s1 + $0x930] sm:$0xff]
  %v319 = vld [vmem:[%s1 + $0x938] sm:$0xff]
  %v320 = vld [vmem:[%s1 + $0x940] sm:$0xff]
  %v321 = vld [vmem:[%s1 + $0x948] sm:$0xff]
  %v322 = vld [vmem:[%s1 + $0x950] sm:$0xff]
  %v323 = vld [vmem:[%s1 + $0x958] sm:$0xff]
  %v324 = vld [vmem:[%s1 + $0x960] sm:$0xff]
  %v325 = vld [vmem:[%s1 + $0x968] sm:$0xff]
  %v326 = vld [vmem:[%s1 + $0x970] sm:$0xff]
  %v327 = vld [vmem:[%s1 + $0x978] sm:$0xff]
  %v328 = vld [vmem:[%s1 + $0x980] sm:$0xff]
  %v329 = vld [vmem:[%s1 + $0x988] sm:$0xff]
  %v330 = vld [vmem:[%s1 + $0x990] sm:$0xff]
  %v331 = vld [vmem:[%s1 + $0x998] sm:$0xff]
  %v332 = vld [vmem:[%s1 + $0x9a0] sm:$0xff]
  %v333 = vld [vmem:[%s1 + $0x9a8] sm:$0xff]
  %v334 = vld [vmem:[%s1 + $0x9b0] sm:$0xff]
  %v335 = vld [vmem:[%s1 + $0x9b8] sm:$0xff]
  %v336 = vld [vmem:[%s1 + $0x9c0] sm:$0xff]
  %v337 = vld [vmem:[%s1 + $0x9c8] sm:$0xff]
  %v338 = vld [vmem:[%s1 + $0x9d0] sm:$0xff]
  %v339 = vld [vmem:[%s1 + $0x9d8] sm:$0xff]
  %v340 = vld [vmem:[%s1 + $0x9e0] sm:$0xff]
  %v341 = vld [vmem:[%s1 + $0x9e8] sm:$0xff]
  %v342 = vld [vmem:[%s1 + $0x9f0] sm:$0xff]
  %v343 = vld [vmem:[%s1 + $0x9f8] sm:$0xff]
  %v344 = vld [vmem:[%s1 + $0xa00] sm:$0xff]
  %v345 = vld [vmem:[%s1 + $0xa08] sm:$0xff]
  %v346 = vld [vmem:[%s1 + $0xa10] sm:$0xff]
  %v347 = vld [vmem:[%s1 + $0xa18] sm:$0xff]
  %v348 = vld [vmem:[%s1 + $0xa20] sm:$0xff]
  %v349 = vld [vmem:[%s1 + $0xa28] sm:$0xff]
  %v350 = vld [vmem:[%s1 + $0xa30] sm:$0xff]
  %v351 = vld [vmem:[%s1 + $0xa38] sm:$0xff]
  %v352 = vld [vmem:[%s1 + $0xa40] sm:$0xff]
  %v353 = vld [vmem:[%s1 + $0xa48] sm:$0xff]
  %v354 = vld [vmem:[%s1 + $0xa50] sm:$0xff]
  %v355 = vld [vmem:[%s1 + $0xa58] sm:$0xff]
  %v356 = vld [vmem:[%s1 + $0xa60] sm:$0xff]
  %v357 = vld [vmem:[%s1 + $0xa68] sm:$0xff]
  %v358 = vld [vmem:[%s1 + $0xa70] sm:$0xff]
  %v359 = vld [vmem:[%s1 + $0xa78] sm:$0xff]
  %v360 = vld [vmem:[%s1 + $0xa80] sm:$0xff]
  %v361 = vld [vmem:[%s1 + $0xa88] sm:$0xff]
  %v362 = vld [vmem:[%s1 + $0xa90] sm:$0xff]
  %v363 = vld [vmem:[%s1 + $0xa98] sm:$0xff]
  %v364 = vld [vmem:[%s1 + $0xaa0] sm:$0xff]
  %v365 = vld [vmem:[%s1 + $0xaa8] sm:$0xff]
  %v366 = vld [vmem:[%s1 + $0xab0] sm:$0xff]
  %v367 = vld [vmem:[%s1 + $0xab8] sm:$0xff]
  %v368 = vld [vmem:[%s1 + $0xac0] sm:$0xff]
  %v369 = vld [vmem:[%s1 + $0xac8] sm:$0xff]
  %v370 = vld [vmem:[%s1 + $0xad0] sm:$0xff]
  %v371 = vld [vmem:[%s1 + $0xad8] sm:$0xff]
  %v372 = vld [vmem:[%s1 + $0xae0] sm:$0xff]
  %v373 = vld [vmem:[%s1 + $0xae8] sm:$0xff]
  %v374 = vld [vmem:[%s1 + $0xaf0] sm:$0xff]
  %v375 = vld [vmem:[%s1 + $0xaf8] sm:$0xff]
  %v376 = vld [vmem:[%s1 + $0xb00] sm:$0xff]
  %v377 = vld [vmem:[%s1 + $0xb08] sm:$0xff]
  %v378 = vld [vmem:[%s1 + $0xb10] sm:$0xff]
  %v379 = vld [vmem:[%s1 + $0xb18] sm:$0xff]
  %v380 = vld [vmem:[%s1 + $0xb20] sm:$0xff]
  %v381 = vld [vmem:[%s1 + $0xb28] sm:$0xff]
  %v382 = vld [vmem:[%s1 + $0xb30] sm:$0xff]
  %v383 = vld [vmem:[%s1 + $0xb38] sm:$0xff]
  %v384 = vld [vmem:[%s1 + $0xb40] sm:$0xff]
  %v385 = vld [vmem:[%s1 + $0xb48] sm:$0xff]
  %v386 = vld [vmem:[%s1 + $0xb50] sm:$0xff]
  %v387 = vld [vmem:[%s1 + $0xb58] sm:$0xff]
  %v388 = vld [vmem:[%s1 + $0xb60] sm:$0xff]
  %v389 = vld [vmem:[%s1 + $0xb68] sm:$0xff]
  %v390 = vld [vmem:[%s1 + $0xb70] sm:$0xff]
  %v391 = vld [vmem:[%s1 + $0xb78] sm:$0xff]
  %v392 = vld [vmem:[%s1 + $0xb80] sm:$0xff]
  %v393 = vld [vmem:[%s1 + $0xb88] sm:$0xff]
  %v394 = vld [vmem:[%s1 + $0xb90] sm:$0xff]
  %v395 = vld [vmem:[%s1 + $0xb98] sm:$0xff]
  %v396 = vld [vmem:[%s1 + $0xba0] sm:$0xff]
  %v397 = vld [vmem:[%s1 + $0xba8] sm:$0xff]
  %v398 = vld [vmem:[%s1 + $0xbb0] sm:$0xff]
  %v399 = vld [vmem:[%s1 + $0xbb8] sm:$0xff]
  %v400 = vld [vmem:[%s1 + $0xbc0] sm:$0xff]
  %v401 = vld [vmem:[%s1 + $0xbc8] sm:$0xff]
  %v402 = vld [vmem:[%s1 + $0xbd0] sm:$0xff]
  %v403 = vld [vmem:[%s1 + $0xbd8] sm:$0xff]
  %v404 = vld [vmem:[%s1 + $0xbe0] sm:$0xff]
  %v405 = vld [vmem:[%s1 + $0xbe8] sm:$0xff]
  %v406 = vld [vmem:[%s1 + $0xbf0] sm:$0xff]
  %v407 = vld [vmem:[%s1 + $0xbf8] sm:$0xff]
  %v408 = vld [vmem:[%s1 + $0xc00] sm:$0xff]
  %v409 = vld [vmem:[%s1 + $0xc08] sm:$0xff]
  %v410 = vld [vmem:[%s1 + $0xc10] sm:$0xff]
  %v411 = vld [vmem:[%s1 + $0xc18] sm:$0xff]
  %v412 = vld [vmem:[%s1 + $0xc20] sm:$0xff]
  %v413 = vld [vmem:[%s1 + $0xc28] sm:$0xff]
  %v414 = vld [vmem:[%s1 + $0xc30] sm:$0xff]
  %v415 = vld [vmem:[%s1 + $0xc38] sm:$0xff]
  %v416 = vld [vmem:[%s1 + $0xc40] sm:$0xff]
  %v417 = vld [vmem:[%s1 + $0xc48] sm:$0xff]
  %v418 = vld [vmem:[%s1 + $0xc50] sm:$0xff]
  %v419 = vld [vmem:[%s1 + $0xc58] sm:$0xff]
  %v420 = vld [vmem:[%s1 + $0xc60] sm:$0xff]
  %v421 = vld [vmem:[%s1 + $0xc68] sm:$0xff]
  %v422 = vld [vmem:[%s1 + $0xc70] sm:$0xff]
  %v423 = vld [vmem:[%s1 + $0xc78] sm:$0xff]
  %v424 = vld [vmem:[%s1 + $0xc80] sm:$0xff]
  %v425 = vld [vmem:[%s1 + $0xc88] sm:$0xff]
  %v426 = vld [vmem:[%s1 + $0xc90] sm:$0xff]
  %v427 = vld [vmem:[%s1 + $0xc98] sm:$0xff]
  %v428 = vld [vmem:[%s1 + $0xca0] sm:$0xff]
  %v429 = vld [vmem:[%s1 + $0xca8] sm:$0xff]
  %v430 = vld [vmem:[%s1 + $0xcb0] sm:$0xff]
  %v431 = vld [vmem:[%s1 + $0xcb8] sm:$0xff]
  %v432 = vld [vmem:[%s1 + $0xcc0] sm:$0xff]
  %v433 = vld [vmem:[%s1 + $0xcc8] sm:$0xff]
  %v434 = vld [vmem:[%s1 + $0xcd0] sm:$0xff]
  %v435 = vld [vmem:[%s1 + $0xcd8] sm:$0xff]
  %v436 = vld [vmem:[%s1 + $0xce0] sm:$0xff]
  %v437 = vld [vmem:[%s1 + $0xce8] sm:$0xff]
  %v438 = vld [vmem:[%s1 + $0xcf0] sm:$0xff]
  %v439 = vld [vmem:[%s1 + $0xcf8] sm:$0xff]
  %v440 = vld [vmem:[%s1 + $0xd00] sm:$0xff]
  %v441 = vld [vmem:[%s1 + $0xd08] sm:$0xff]
  %v442 = vld [vmem:[%s1 + $0xd10] sm:$0xff]
  %v443 = vld [vmem:[%s1 + $0xd18] sm:$0xff]
  %v444 = vld [vmem:[%s1 + $0xd20] sm:$0xff]
  %v445 = vld [vmem:[%s1 + $0xd28] sm:$0xff]
  %v446 = vld [vmem:[%s1 + $0xd30] sm:$0xff]
  %v447 = vld [vmem:[%s1 + $0xd38] sm:$0xff]
  %v448 = vld [vmem:[%s1 + $0xd40] sm:$0xff]
  %v449 = vld [vmem:[%s1 + $0xd48] sm:$0xff]
  %v450 = vld [vmem:[%s1 + $0xd50] sm:$0xff]
  %v451 = vld [vmem:[%s1 + $0xd58] sm:$0xff]
  %v452 = vld [vmem:[%s1 + $0xd60] sm:$0xff]
  %v453 = vld [vmem:[%s1 + $0xd68] sm:$0xff]
  %v454 = vld [vmem:[%s1 + $0xd70] sm:$0xff]
  %v455 = vld [vmem:[%s1 + $0xd78] sm:$0xff]
  %v456 = vld [vmem:[%s1 + $0xd80] sm:$0xff]
  %v457 = vld [vmem:[%s1 + $0xd88] sm:$0xff]
  %v458 = vld [vmem:[%s1 + $0xd90] sm:$0xff]
  %v459 = vld [vmem:[%s1 + $0xd98] sm:$0xff]
  %v460 = vld [vmem:[%s1 + $0xda0] sm:$0xff]
  %v461 = vld [vmem:[%s1 + $0xda8] sm:$0xff]
  %v462 = vld [vmem:[%s1 + $0xdb0] sm:$0xff]
  %v463 = vld [vmem:[%s1 + $0xdb8] sm:$0xff]
  %v464 = vld [vmem:[%s1 + $0xdc0] sm:$0xff]
  %v465 = vld [vmem:[%s1 + $0xdc8] sm:$0xff]
  %v466 = vld [vmem:[%s1 + $0xdd0] sm:$0xff]
  %v467 = vld [vmem:[%s1 + $0xdd8] sm:$0xff]
  %v468 = vld [vmem:[%s1 + $0xde0] sm:$0xff]
  %v469 = vld [vmem:[%s1 + $0xde8] sm:$0xff]
  %v470 = vld [vmem:[%s1 + $0xdf0] sm:$0xff]
  %v471 = vld [vmem:[%s1 + $0xdf8] sm:$0xff]
  %v472 = vld [vmem:[%s1 + $0xe00] sm:$0xff]
  %v473 = vld [vmem:[%s1 + $0xe08] sm:$0xff]
  %v474 = vld [vmem:[%s1 + $0xe10] sm:$0xff]
  %v475 = vld [vmem:[%s1 + $0xe18] sm:$0xff]
  %v476 = vld [vmem:[%s1 + $0xe20] sm:$0xff]
  %v477 = vld [vmem:[%s1 + $0xe28] sm:$0xff]
  %v478 = vld [vmem:[%s1 + $0xe30] sm:$0xff]
  %v479 = vld [vmem:[%s1 + $0xe38] sm:$0xff]
  %v480 = vld [vmem:[%s1 + $0xe40] sm:$0xff]
  %v481 = vld [vmem:[%s1 + $0xe48] sm:$0xff]
  %v482 = vld [vmem:[%s1 + $0xe50] sm:$0xff]
  %v483 = vld [vmem:[%s1 + $0xe58] sm:$0xff]
  %v484 = vld [vmem:[%s1 + $0xe60] sm:$0xff]
  %v485 = vld [vmem:[%s1 + $0xe68] sm:$0xff]
  %v486 = vld [vmem:[%s1 + $0xe70] sm:$0xff]
  %v487 = vld [vmem:[%s1 + $0xe78] sm:$0xff]
  %v488 = vld [vmem:[%s1 + $0xe80] sm:$0xff]
  %v489 = vld [vmem:[%s1 + $0xe88] sm:$0xff]
  %v490 = vld [vmem:[%s1 + $0xe90] sm:$0xff]
  %v491 = vld [vmem:[%s1 + $0xe98] sm:$0xff]
  %v492 = vld [vmem:[%s1 + $0xea0] sm:$0xff]
  %v493 = vld [vmem:[%s1 + $0xea8] sm:$0xff]
  %v494 = vld [vmem:[%s1 + $0xeb0] sm:$0xff]
  %v495 = vld [vmem:[%s1 + $0xeb8] sm:$0xff]
  %v496 = vld [vmem:[%s1 + $0xec0] sm:$0xff]
  %v497 = vld [vmem:[%s1 + $0xec8] sm:$0xff]
  %v498 = vld [vmem:[%s1 + $0xed0] sm:$0xff]
  %v499 = vld [vmem:[%s1 + $0xed8] sm:$0xff]
  %v500 = vld [vmem:[%s1 + $0xee0] sm:$0xff]
  %v501 = vld [vmem:[%s1 + $0xee8] sm:$0xff]
  %v502 = vld [vmem:[%s1 + $0xef0] sm:$0xff]
  %v503 = vld [vmem:[%s1 + $0xef8] sm:$0xff]
  %v504 = vld [vmem:[%s1 + $0xf00] sm:$0xff]
  %v505 = vld [vmem:[%s1 + $0xf08] sm:$0xff]
  %v506 = vld [vmem:[%s1 + $0xf10] sm:$0xff]
  %v507 = vld [vmem:[%s1 + $0xf18] sm:$0xff]
  %v508 = vld [vmem:[%s1 + $0xf20] sm:$0xff]
  %v509 = vld [vmem:[%s1 + $0xf28] sm:$0xff]
  %v510 = vld [vmem:[%s1 + $0xf30] sm:$0xff]
  %v511 = vld [vmem:[%s1 + $0xf38] sm:$0xff]
  %v512 = vld [vmem:[%s1 + $0xf40] sm:$0xff]
  %v513 = vld [vmem:[%s1 + $0xf48] sm:$0xff]
  %v514 = vld [vmem:[%s1 + $0xf50] sm:$0xff]
  %v515 = vld [vmem:[%s1 + $0xf58] sm:$0xff]
  %v516 = vld [vmem:[%s1 + $0xf60] sm:$0xff]
  %v517 = vld [vmem:[%s1 + $0xf68] sm:$0xff]
  %v518 = vld [vmem:[%s1 + $0xf70] sm:$0xff]
  %v519 = vld [vmem:[%s1 + $0xf78] sm:$0xff]
  %v520 = vld [vmem:[%s1 + $0xf80] sm:$0xff]
  %v521 = vld [vmem:[%s1 + $0xf88] sm:$0xff]
  %v522 = vld [vmem:[%s1 + $0xf90] sm:$0xff]
  %v523 = vld [vmem:[%s1 + $0xf98] sm:$0xff]
  %v524 = vld [vmem:[%s1 + $0xfa0] sm:$0xff]
  %v525 = vld [vmem:[%s1 + $0xfa8] sm:$0xff]
  %v526 = vld [vmem:[%s1 + $0xfb0] sm:$0xff]
  %v527 = vld [vmem:[%s1 + $0xfb8] sm:$0xff]
  %v528 = vld [vmem:[%s1 + $0xfc0] sm:$0xff]
  %v529 = vld [vmem:[%s1 + $0xfc8] sm:$0xff]
  %v530 = vld [vmem:[%s1 + $0xfd0] sm:$0xff]
  %v531 = vld [vmem:[%s1 + $0xfd8] sm:$0xff]
  %v532 = vld [vmem:[%s1 + $0xfe0] sm:$0xff]
  %v533 = vld [vmem:[%s1 + $0xfe8] sm:$0xff]
  %v534 = vld [vmem:[%s1 + $0xff0] sm:$0xff]
  %v535 = vld [vmem:[%s1 + $0xff8] sm:$0xff]
  %v536 = vld [vmem:[%s1 + $0x1000] sm:$0xff]
  %v537 = vld [vmem:[%s1 + $0x1008] sm:$0xff]
  %v538 = vld [vmem:[%s1 + $0x1010] sm:$0xff]
  %v539 = vld [vmem:[%s1 + $0x1018] sm:$0xff]
  %v540 = vld [vmem:[%s1 + $0x1020] sm:$0xff]
  %v541 = vld [vmem:[%s1 + $0x1028] sm:$0xff]
  %v542 = vld [vmem:[%s1 + $0x1030] sm:$0xff]
  %v543 = vld [vmem:[%s1 + $0x1038] sm:$0xff]
  %v544 = vld [vmem:[%s1 + $0x1040] sm:$0xff]
  %v545 = vld [vmem:[%s1 + $0x1048] sm:$0xff]
  %v546 = vld [vmem:[%s1 + $0x1050] sm:$0xff]
  %v547 = vld [vmem:[%s1 + $0x1058] sm:$0xff]
  %v548 = vld [vmem:[%s1 + $0x1060] sm:$0xff]
  %v549 = vld [vmem:[%s1 + $0x1068] sm:$0xff]
  %v550 = vld [vmem:[%s1 + $0x1070] sm:$0xff]
  %v551 = vld [vmem:[%s1 + $0x1078] sm:$0xff]
  %v552 = vld [vmem:[%s1 + $0x1080] sm:$0xff]
  %v553 = vld [vmem:[%s1 + $0x1088] sm:$0xff]
  %v554 = vld [vmem:[%s1 + $0x1090] sm:$0xff]
  %v555 = vld [vmem:[%s1 + $0x1098] sm:$0xff]
  %v556 = vld [vmem:[%s1 + $0x10a0] sm:$0xff]
  %v557 = vld [vmem:[%s1 + $0x10a8] sm:$0xff]
  %v558 = vld [vmem:[%s1 + $0x10b0] sm:$0xff]
  %v559 = vld [vmem:[%s1 + $0x10b8] sm:$0xff]
  %v560 = vld [vmem:[%s1 + $0x10c0] sm:$0xff]
  %v561 = vld [vmem:[%s1 + $0x10c8] sm:$0xff]
  %v562 = vld [vmem:[%s1 + $0x10d0] sm:$0xff]
  %v563 = vld [vmem:[%s1 + $0x10d8] sm:$0xff]
  %v564 = vld [vmem:[%s1 + $0x10e0] sm:$0xff]
  %v565 = vld [vmem:[%s1 + $0x10e8] sm:$0xff]
  %v566 = vld [vmem:[%s1 + $0x10f0] sm:$0xff]
  %v567 = vld [vmem:[%s1 + $0x10f8] sm:$0xff]
  %v568 = vld [vmem:[%s1 + $0x1100] sm:$0xff]
  %v569 = vld [vmem:[%s1 + $0x1108] sm:$0xff]
  %v570 = vld [vmem:[%s1 + $0x1110] sm:$0xff]
  %v571 = vld [vmem:[%s1 + $0x1118] sm:$0xff]
  %v572 = vld [vmem:[%s1 + $0x1120] sm:$0xff]
  %v573 = vld [vmem:[%s1 + $0x1128] sm:$0xff]
  %v574 = vld [vmem:[%s1 + $0x1130] sm:$0xff]
  %v575 = vld [vmem:[%s1 + $0x1138] sm:$0xff]
  %v576 = vld [vmem:[%s1 + $0x1140] sm:$0xff]
  %v577 = vld [vmem:[%s1 + $0x1148] sm:$0xff]
  %v578 = vld [vmem:[%s1 + $0x1150] sm:$0xff]
  %v579 = vld [vmem:[%s1 + $0x1158] sm:$0xff]
  %v580 = vld [vmem:[%s1 + $0x1160] sm:$0xff]
  %v581 = vld [vmem:[%s1 + $0x1168] sm:$0xff]
  %v582 = vld [vmem:[%s1 + $0x1170] sm:$0xff]
  %v583 = vld [vmem:[%s1 + $0x1178] sm:$0xff]
  %v584 = vld [vmem:[%s1 + $0x1180] sm:$0xff]
  %v585 = vld [vmem:[%s1 + $0x1188] sm:$0xff]
  %v586 = vld [vmem:[%s1 + $0x1190] sm:$0xff]
  %v587 = vld [vmem:[%s1 + $0x1198] sm:$0xff]
  %v588 = vld [vmem:[%s1 + $0x11a0] sm:$0xff]
  %v589 = vld [vmem:[%s1 + $0x11a8] sm:$0xff]
  %v590 = vld [vmem:[%s1 + $0x11b0] sm:$0xff]
  %v591 = vld [vmem:[%s1 + $0x11b8] sm:$0xff]
  %v592 = vld [vmem:[%s1 + $0x11c0] sm:$0xff]
  %v593 = vld [vmem:[%s1 + $0x11c8] sm:$0xff]
  %v594 = vld [vmem:[%s1 + $0x11d0] sm:$0xff]
  %v595 = vld [vmem:[%s1 + $0x11d8] sm:$0xff]
  %v596 = vld [vmem:[%s1 + $0x11e0] sm:$0xff]
  %v597 = vld [vmem:[%s1 + $0x11e8] sm:$0xff]
  %v598 = vld [vmem:[%s1 + $0x11f0] sm:$0xff]
  %v599 = vld [vmem:[%s1 + $0x11f8] sm:$0xff]
  %v600 = vld [vmem:[%s1 + $0x1200] sm:$0xff]
  %v601 = vld [vmem:[%s1 + $0x1208] sm:$0xff]
  %v602 = vld [vmem:[%s1 + $0x1210] sm:$0xff]
  %v603 = vld [vmem:[%s1 + $0x1218] sm:$0xff]
  %v604 = vld [vmem:[%s1 + $0x1220] sm:$0xff]
  %v605 = vld [vmem:[%s1 + $0x1228] sm:$0xff]
  %v606 = vld [vmem:[%s1 + $0x1230] sm:$0xff]
  %v607 = vld [vmem:[%s1 + $0x1238] sm:$0xff]
  %v608 = vld [vmem:[%s1 + $0x1240] sm:$0xff]
  %v609 = vld [vmem:[%s1 + $0x1248] sm:$0xff]
  %v610 = vld [vmem:[%s1 + $0x1250] sm:$0xff]
  %v611 = vld [vmem:[%s1 + $0x1258] sm:$0xff]
  %v612 = vld [vmem:[%s1 + $0x1260] sm:$0xff]
  %v613 = vld [vmem:[%s1 + $0x1268] sm:$0xff]
  %v614 = vld [vmem:[%s1 + $0x1270] sm:$0xff]
  %v615 = vld [vmem:[%s1 + $0x1278] sm:$0xff]
  %v616 = vld [vmem:[%s1 + $0x1280] sm:$0xff]
  %v617 = vld [vmem:[%s1 + $0x1288] sm:$0xff]
  %v618 = vld [vmem:[%s1 + $0x1290] sm:$0xff]
  %v619 = vld [vmem:[%s1 + $0x1298] sm:$0xff]
  %v620 = vld [vmem:[%s1 + $0x12a0] sm:$0xff]
  %v621 = vld [vmem:[%s1 + $0x12a8] sm:$0xff]
  %v622 = vld [vmem:[%s1 + $0x12b0] sm:$0xff]
  %v623 = vld [vmem:[%s1 + $0x12b8] sm:$0xff]
  %v624 = vld [vmem:[%s1 + $0x12c0] sm:$0xff]
  %v625 = vld [vmem:[%s1 + $0x12c8] sm:$0xff]
  %v626 = vld [vmem:[%s1 + $0x12d0] sm:$0xff]
  %v627 = vld [vmem:[%s1 + $0x12d8] sm:$0xff]
  %v628 = vld [vmem:[%s1 + $0x12e0] sm:$0xff]
  %v629 = vld [vmem:[%s1 + $0x12e8] sm:$0xff]
  %v630 = vld [vmem:[%s1 + $0x12f0] sm:$0xff]
  %v631 = vld [vmem:[%s1 + $0x12f8] sm:$0xff]
  %v632 = vld [vmem:[%s1 + $0x1300] sm:$0xff]
  %v633 = vld [vmem:[%s1 + $0x1308] sm:$0xff]
  %v634 = vld [vmem:[%s1 + $0x1310] sm:$0xff]
  %v635 = vld [vmem:[%s1 + $0x1318] sm:$0xff]
  %v636 = vld [vmem:[%s1 + $0x1320] sm:$0xff]
  %v637 = vld [vmem:[%s1 + $0x1328] sm:$0xff]
  %v638 = vld [vmem:[%s1 + $0x1330] sm:$0xff]
  %v639 = vld [vmem:[%s1 + $0x1338] sm:$0xff]
  %v640 = vld [vmem:[%s1 + $0x1340] sm:$0xff]
  %v641 = vld [vmem:[%s1 + $0x1348] sm:$0xff]
  %v642 = vld [vmem:[%s1 + $0x1350] sm:$0xff]
  %v643 = vld [vmem:[%s1 + $0x1358] sm:$0xff]
  %v644 = vld [vmem:[%s1 + $0x1360] sm:$0xff]
  %v645 = vld [vmem:[%s1 + $0x1368] sm:$0xff]
  %v646 = vld [vmem:[%s1 + $0x1370] sm:$0xff]
  %v647 = vld [vmem:[%s1 + $0x1378] sm:$0xff]
  %v648 = vld [vmem:[%s1 + $0x1380] sm:$0xff]
  %v649 = vld [vmem:[%s1 + $0x1388] sm:$0xff]
  %v650 = vld [vmem:[%s1 + $0x1390] sm:$0xff]
  %v651 = vld [vmem:[%s1 + $0x1398] sm:$0xff]
  %v652 = vld [vmem:[%s1 + $0x13a0] sm:$0xff]
  %v653 = vld [vmem:[%s1 + $0x13a8] sm:$0xff]
  %v654 = vld [vmem:[%s1 + $0x13b0] sm:$0xff]
  %v655 = vld [vmem:[%s1 + $0x13b8] sm:$0xff]
  %v656 = vld [vmem:[%s1 + $0x13c0] sm:$0xff]
  %v657 = vld [vmem:[%s1 + $0x13c8] sm:$0xff]
  %v658 = vld [vmem:[%s1 + $0x13d0] sm:$0xff]
  %v659 = vld [vmem:[%s1 + $0x13d8] sm:$0xff]
  %v660 = vld [vmem:[%s1 + $0x13e0] sm:$0xff]
  %v661 = vld [vmem:[%s1 + $0x13e8] sm:$0xff]
  %v662 = vld [vmem:[%s1 + $0x13f0] sm:$0xff]
  %v663 = vld [vmem:[%s1 + $0x13f8] sm:$0xff]
  %v664 = vld [vmem:[%s1 + $0x1400] sm:$0xff]
  %v665 = vld [vmem:[%s1 + $0x1408] sm:$0xff]
  %v666 = vld [vmem:[%s1 + $0x1410] sm:$0xff]
  %v667 = vld [vmem:[%s1 + $0x1418] sm:$0xff]
  %v668 = vld [vmem:[%s1 + $0x1420] sm:$0xff]
  %v669 = vld [vmem:[%s1 + $0x1428] sm:$0xff]
  %v670 = vld [vmem:[%s1 + $0x1430] sm:$0xff]
  %v671 = vld [vmem:[%s1 + $0x1438] sm:$0xff]
  %v672 = vld [vmem:[%s1 + $0x1440] sm:$0xff]
  %v673 = vld [vmem:[%s1 + $0x1448] sm:$0xff]
  %v674 = vld [vmem:[%s1 + $0x1450] sm:$0xff]
  %v675 = vld [vmem:[%s1 + $0x1458] sm:$0xff]
  %v676 = vld [vmem:[%s1 + $0x1460] sm:$0xff]
  %v677 = vld [vmem:[%s1 + $0x1468] sm:$0xff]
  %v678 = vld [vmem:[%s1 + $0x1470] sm:$0xff]
  %v679 = vld [vmem:[%s1 + $0x1478] sm:$0xff]
  %v680 = vld [vmem:[%s1 + $0x1480] sm:$0xff]
  %v681 = vld [vmem:[%s1 + $0x1488] sm:$0xff]
  %v682 = vld [vmem:[%s1 + $0x1490] sm:$0xff]
  %v683 = vld [vmem:[%s1 + $0x1498] sm:$0xff]
  %v684 = vld [vmem:[%s1 + $0x14a0] sm:$0xff]
  %v685 = vld [vmem:[%s1 + $0x14a8] sm:$0xff]
  %v686 = vld [vmem:[%s1 + $0x14b0] sm:$0xff]
  %v687 = vld [vmem:[%s1 + $0x14b8] sm:$0xff]
  %v688 = vld [vmem:[%s1 + $0x14c0] sm:$0xff]
  %v689 = vld [vmem:[%s1 + $0x14c8] sm:$0xff]
  %v690 = vld [vmem:[%s1 + $0x14d0] sm:$0xff]
  %v691 = vld [vmem:[%s1 + $0x14d8] sm:$0xff]
  %v692 = vld [vmem:[%s1 + $0x14e0] sm:$0xff]
  %v693 = vld [vmem:[%s1 + $0x14e8] sm:$0xff]
  %v694 = vld [vmem:[%s1 + $0x14f0] sm:$0xff]
  %v695 = vld [vmem:[%s1 + $0x14f8] sm:$0xff]
  %v696 = vld [vmem:[%s1 + $0x1500] sm:$0xff]
  %v697 = vld [vmem:[%s1 + $0x1508] sm:$0xff]
  %v698 = vld [vmem:[%s1 + $0x1510] sm:$0xff]
  %v699 = vld [vmem:[%s1 + $0x1518] sm:$0xff]
  %v700 = vld [vmem:[%s1 + $0x1520] sm:$0xff]
  %v701 = vld [vmem:[%s1 + $0x1528] sm:$0xff]
  %v702 = vld [vmem:[%s1 + $0x1530] sm:$0xff]
  %v703 = vld [vmem:[%s1 + $0x1538] sm:$0xff]
  %v704 = vld [vmem:[%s1 + $0x1540] sm:$0xff]
  %v705 = vld [vmem:[%s1 + $0x1548] sm:$0xff]
  %v706 = vld [vmem:[%s1 + $0x1550] sm:$0xff]
  %v707 = vld [vmem:[%s1 + $0x1558] sm:$0xff]
  %v708 = vld [vmem:[%s1 + $0x1560] sm:$0xff]
  %v709 = vld [vmem:[%s1 + $0x1568] sm:$0xff]
  %v710 = vld [vmem:[%s1 + $0x1570] sm:$0xff]
  %v711 = vld [vmem:[%s1 + $0x1578] sm:$0xff]
  %v712 = vld [vmem:[%s1 + $0x1580] sm:$0xff]
  %v713 = vld [vmem:[%s1 + $0x1588] sm:$0xff]
  %v714 = vld [vmem:[%s1 + $0x1590] sm:$0xff]
  %v715 = vld [vmem:[%s1 + $0x1598] sm:$0xff]
  %v716 = vld [vmem:[%s1 + $0x15a0] sm:$0xff]
  %v717 = vld [vmem:[%s1 + $0x15a8] sm:$0xff]
  %v718 = vld [vmem:[%s1 + $0x15b0] sm:$0xff]
  %v719 = vld [vmem:[%s1 + $0x15b8] sm:$0xff]
  %v720 = vld [vmem:[%s1 + $0x15c0] sm:$0xff]
  %v721 = vld [vmem:[%s1 + $0x15c8] sm:$0xff]
  %v722 = vld [vmem:[%s1 + $0x15d0] sm:$0xff]
  %v723 = vld [vmem:[%s1 + $0x15d8] sm:$0xff]
  %v724 = vld [vmem:[%s1 + $0x15e0] sm:$0xff]
  %v725 = vld [vmem:[%s1 + $0x15e8] sm:$0xff]
  %v726 = vld [vmem:[%s1 + $0x15f0] sm:$0xff]
  %v727 = vld [vmem:[%s1 + $0x15f8] sm:$0xff]
  %v728 = vld [vmem:[%s1 + $0x1600] sm:$0xff]
  %v729 = vld [vmem:[%s1 + $0x1608] sm:$0xff]
  %v730 = vld [vmem:[%s1 + $0x1610] sm:$0xff]
  %v731 = vld [vmem:[%s1 + $0x1618] sm:$0xff]
  %v732 = vld [vmem:[%s1 + $0x1620] sm:$0xff]
  %v733 = vld [vmem:[%s1 + $0x1628] sm:$0xff]
  %v734 = vld [vmem:[%s1 + $0x1630] sm:$0xff]
  %v735 = vld [vmem:[%s1 + $0x1638] sm:$0xff]
  %v736 = vld [vmem:[%s1 + $0x1640] sm:$0xff]
  %v737 = vld [vmem:[%s1 + $0x1648] sm:$0xff]
  %v738 = vld [vmem:[%s1 + $0x1650] sm:$0xff]
  %v739 = vld [vmem:[%s1 + $0x1658] sm:$0xff]
  %v740 = vld [vmem:[%s1 + $0x1660] sm:$0xff]
  %v741 = vld [vmem:[%s1 + $0x1668] sm:$0xff]
  %v742 = vld [vmem:[%s1 + $0x1670] sm:$0xff]
  %v743 = vld [vmem:[%s1 + $0x1678] sm:$0xff]
  %v744 = vld [vmem:[%s1 + $0x1680] sm:$0xff]
  %v745 = vld [vmem:[%s1 + $0x1688] sm:$0xff]
  %v746 = vld [vmem:[%s1 + $0x1690] sm:$0xff]
  %v747 = vld [vmem:[%s1 + $0x1698] sm:$0xff]
  %v748 = vld [vmem:[%s1 + $0x16a0] sm:$0xff]
  %v749 = vld [vmem:[%s1 + $0x16a8] sm:$0xff]
  %v750 = vld [vmem:[%s1 + $0x16b0] sm:$0xff]
  %v751 = vld [vmem:[%s1 + $0x16b8] sm:$0xff]
  %v752 = vld [vmem:[%s1 + $0x16c0] sm:$0xff]
  %v753 = vld [vmem:[%s1 + $0x16c8] sm:$0xff]
  %v754 = vld [vmem:[%s1 + $0x16d0] sm:$0xff]
  %v755 = vld [vmem:[%s1 + $0x16d8] sm:$0xff]
  %v756 = vld [vmem:[%s1 + $0x16e0] sm:$0xff]
  %v757 = vld [vmem:[%s1 + $0x16e8] sm:$0xff]
  %v758 = vld [vmem:[%s1 + $0x16f0] sm:$0xff]
  %v759 = vld [vmem:[%s1 + $0x16f8] sm:$0xff]
  %v760 = vld [vmem:[%s1 + $0x1700] sm:$0xff]
  %v761 = vld [vmem:[%s1 + $0x1708] sm:$0xff]
  %v762 = vld [vmem:[%s1 + $0x1710] sm:$0xff]
  %v763 = vld [vmem:[%s1 + $0x1718] sm:$0xff]
  %v764 = vld [vmem:[%s1 + $0x1720] sm:$0xff]
  %v765 = vld [vmem:[%s1 + $0x1728] sm:$0xff]
  %v766 = vld [vmem:[%s1 + $0x1730] sm:$0xff]
  %v767 = vld [vmem:[%s1 + $0x1738] sm:$0xff]
  %v768 = vld [vmem:[%s1 + $0x1740] sm:$0xff]
  %v769 = vld [vmem:[%s1 + $0x1748] sm:$0xff]
  %v770 = vld [vmem:[%s1 + $0x1750] sm:$0xff]
  %v771 = vld [vmem:[%s1 + $0x1758] sm:$0xff]
  %v772 = vld [vmem:[%s1 + $0x1760] sm:$0xff]
  %v773 = vld [vmem:[%s1 + $0x1768] sm:$0xff]
  %v774 = vld [vmem:[%s1 + $0x1770] sm:$0xff]
  %v775 = vld [vmem:[%s1 + $0x1778] sm:$0xff]
  %v776 = vld [vmem:[%s1 + $0x1780] sm:$0xff]
  %v777 = vld [vmem:[%s1 + $0x1788] sm:$0xff]
  %v778 = vld [vmem:[%s1 + $0x1790] sm:$0xff]
  %v779 = vld [vmem:[%s1 + $0x1798] sm:$0xff]
  %v780 = vld [vmem:[%s1 + $0x17a0] sm:$0xff]
  %v781 = vld [vmem:[%s1 + $0x17a8] sm:$0xff]
  %v782 = vld [vmem:[%s1 + $0x17b0] sm:$0xff]
  %v783 = vld [vmem:[%s1 + $0x17b8] sm:$0xff]
  %v784 = vld [vmem:[%s1 + $0x17c0] sm:$0xff]
  %v785 = vld [vmem:[%s1 + $0x17c8] sm:$0xff]
  %v786 = vld [vmem:[%s1 + $0x17d0] sm:$0xff]
  %v787 = vld [vmem:[%s1 + $0x17d8] sm:$0xff]
  %v788 = vld [vmem:[%s1 + $0x17e0] sm:$0xff]
  %v789 = vld [vmem:[%s1 + $0x17e8] sm:$0xff]
  %v790 = vld [vmem:[%s1 + $0x17f0] sm:$0xff]
  %v791 = vld [vmem:[%s1 + $0x17f8] sm:$0xff]
  %v792 = vld [vmem:[%s2] sm:$0xf]
  %v793 = vld [vmem:[#allocation2] sm:$0xff]
  %v794 = vld [vmem:[#allocation2 + $0x8] sm:$0xff]
  %v795 = vld [vmem:[#allocation2 + $0x10] sm:$0xff]
  %v796 = vld [vmem:[#allocation2 + $0x18] sm:$0xff]
  %v797 = vld [vmem:[%s0] sm:$0xff]
  %v798 = vld [vmem:[%s0 + $0x8] sm:$0xff]
  %v799 = vld [vmem:[%s0 + $0x10] sm:$0xff]
  %v800 = vld [vmem:[%s0 + $0x18] sm:$0xff]
  %v801 = vld [vmem:[%s0 + $0x20] sm:$0xff]
  %v802 = vld [vmem:[%s0 + $0x28] sm:$0xff]
  %v803 = vld [vmem:[%s0 + $0x30] sm:$0xff]
  %v804 = vld [vmem:[%s0 + $0x38] sm:$0xff]
  %v805 = vld [vmem:[%s0 + $0x40] sm:$0xff]
  %v806 = vld [vmem:[%s0 + $0x48] sm:$0xff]
  %v807 = vld [vmem:[%s0 + $0x50] sm:$0xff]
  %v808 = vld [vmem:[%s0 + $0x58] sm:$0xff]
  %809 = vmatprep.subr.mxu0 %v205
  %810 = vmatpush1.msra.mxu0 %v204
  %811 = vmatprep.subr.mxu0 %v193
  %812 = vmatpush1.msra.mxu0 %v192
  %813 = vmatprep.subr.mxu0 %v181
  %814 = vmatpush1.msra.mxu0 %v180
  %815 = vmatprep.subr.mxu0 %v169
  %816 = vmatpush1.msra.mxu0 %v168
  %817 = vmatprep.subr.mxu0 %v157
  %818 = vmatpush1.msra.mxu0 %v156
  %819 = vmatprep.subr.mxu0 %v145
  %820 = vmatpush1.msra.mxu0 %v144
  %821 = vmatprep.subr.mxu0 %v133
  %822 = vmatpush1.msra.mxu0 %v132
  %823 = vmatprep.subr.mxu0 %v121
  %824 = vmatpush1.msra.mxu0 %v120
  %825 = vmatprep.subr.mxu0 %v109
  %826 = vmatpush1.msra.mxu0 %v108
  %827 = vmatprep.subr.mxu0 %v97
  %828 = vmatpush1.msra.mxu0 %v96
  %829 = vmatprep.subr.mxu0 %v85
  %830 = vmatpush1.msra.mxu0 %v84
  %831 = vmatprep.subr.mxu0 %v73
  %832 = vmatpush1.msra.mxu0 %v72
  %833 = vmatprep.subr.mxu0 %v61
  %834 = vmatpush1.msra.mxu0 %v60
  %835 = vmatprep.subr.mxu0 %v49
  %836 = vmatpush1.msra.mxu0 %v48
  %837 = vmatprep.subr.mxu0 %v37
  %838 = vmatpush1.msra.mxu0 %v36
  %839 = vmatprep.subr.mxu0 %v25
  %840 = vmatpush1.msra.mxu0 %v24
  %841 = vmatprep.subr.mxu0 %v397
  %842 = vmatpush2.msra.mxu0 %v396
  %843 = vmatprep.subr.mxu0 %v385
  %844 = vmatpush2.msra.mxu0 %v384
  %845 = vmatprep.subr.mxu0 %v373
  %846 = vmatpush2.msra.mxu0 %v372
  %847 = vmatprep.subr.mxu0 %v361
  %848 = vmatpush2.msra.mxu0 %v360
  %849 = vmatprep.subr.mxu0 %v349
  %850 = vmatpush2.msra.mxu0 %v348
  %851 = vmatprep.subr.mxu0 %v337
  %852 = vmatpush2.msra.mxu0 %v336
  %853 = vmatprep.subr.mxu0 %v325
  %854 = vmatpush2.msra.mxu0 %v324
  %855 = vmatprep.subr.mxu0 %v313
  %856 = vmatpush2.msra.mxu0 %v312
  %857 = vmatprep.subr.mxu0 %v301
  %858 = vmatpush2.msra.mxu0 %v300
  %859 = vmatprep.subr.mxu0 %v289
  %860 = vmatpush2.msra.mxu0 %v288
  %861 = vmatprep.subr.mxu0 %v277
  %862 = vmatpush2.msra.mxu0 %v276
  %863 = vmatprep.subr.mxu0 %v265
  %864 = vmatpush2.msra.mxu0 %v264
  %865 = vmatprep.subr.mxu0 %v253
  %866 = vmatpush2.msra.mxu0 %v252
  %867 = vmatprep.subr.mxu0 %v241
  %868 = vmatpush2.msra.mxu0 %v240
  %869 = vmatprep.subr.mxu0 %v229
  %870 = vmatpush2.msra.mxu0 %v228
  %871 = vmatprep.subr.mxu0 %v217
  %872 = vmatpush2.msra.mxu0 %v216
  %873 = vmatprep.mubr.f32.mxu0 %v794
  %874 = vmatmul.mubr.f32.gmra.mxu0 %v793
  %v875 = vpop.f32.mrf.mxu0
  %v876 = vadd.f32 0.0, %v875
  %v877 = vpop.f32.mrf.mxu0
  %v878 = vadd.f32 0.0, %v877
  %879 = vdwg.mxu0
  %880 = vmatprep.subr.mxu0 %v589
  %881 = vmatpush1.msra.mxu0 %v588
  %882 = vmatprep.subr.mxu0 %v577
  %883 = vmatpush1.msra.mxu0 %v576
  %884 = vmatprep.subr.mxu0 %v565
  %885 = vmatpush1.msra.mxu0 %v564
  %886 = vmatprep.subr.mxu0 %v553
  %887 = vmatpush1.msra.mxu0 %v552
  %888 = vmatprep.subr.mxu0 %v541
  %889 = vmatpush1.msra.mxu0 %v540
  %890 = vmatprep.subr.mxu0 %v529
  %891 = vmatpush1.msra.mxu0 %v528
  %892 = vmatprep.subr.mxu0 %v517
  %893 = vmatpush1.msra.mxu0 %v516
  %894 = vmatprep.subr.mxu0 %v505
  %895 = vmatpush1.msra.mxu0 %v504
  %896 = vmatprep.subr.mxu0 %v493
  %897 = vmatpush1.msra.mxu0 %v492
  %898 = vmatprep.subr.mxu0 %v481
  %899 = vmatpush1.msra.mxu0 %v480
  %900 = vmatprep.subr.mxu0 %v469
  %901 = vmatpush1.msra.mxu0 %v468
  %902 = vmatprep.subr.mxu0 %v457
  %903 = vmatpush1.msra.mxu0 %v456
  %904 = vmatprep.subr.mxu0 %v445
  %905 = vmatpush1.msra.mxu0 %v444
  %906 = vmatprep.subr.mxu0 %v433
  %907 = vmatpush1.msra.mxu0 %v432
  %908 = vmatprep.subr.mxu0 %v421
  %909 = vmatpush1.msra.mxu0 %v420
  %910 = vmatprep.subr.mxu0 %v409
  %911 = vmatpush1.msra.mxu0 %v408
  %912 = vmatprep.subr.mxu0 %v781
  %913 = vmatpush2.msra.mxu0 %v780
  %914 = vmatprep.subr.mxu0 %v769
  %915 = vmatpush2.msra.mxu0 %v768
  %916 = vmatprep.subr.mxu0 %v757
  %917 = vmatpush2.msra.mxu0 %v756
  %918 = vmatprep.subr.mxu0 %v745
  %919 = vmatpush2.msra.mxu0 %v744
  %920 = vmatprep.subr.mxu0 %v733
  %921 = vmatpush2.msra.mxu0 %v732
  %922 = vmatprep.subr.mxu0 %v721
  %923 = vmatpush2.msra.mxu0 %v720
  %924 = vmatprep.subr.mxu0 %v709
  %925 = vmatpush2.msra.mxu0 %v708
  %926 = vmatprep.subr.mxu0 %v697
  %927 = vmatpush2.msra.mxu0 %v696
  %928 = vmatprep.subr.mxu0 %v685
  %929 = vmatpush2.msra.mxu0 %v684
  %930 = vmatprep.subr.mxu0 %v673
  %931 = vmatpush2.msra.mxu0 %v672
  %932 = vmatprep.subr.mxu0 %v661
  %933 = vmatpush2.msra.mxu0 %v660
  %934 = vmatprep.subr.mxu0 %v649
  %935 = vmatpush2.msra.mxu0 %v648
  %936 = vmatprep.subr.mxu0 %v637
  %937 = vmatpush2.msra.mxu0 %v636
  %938 = vmatprep.subr.mxu0 %v625
  %939 = vmatpush2.msra.mxu0 %v624
  %940 = vmatprep.subr.mxu0 %v613
  %941 = vmatpush2.msra.mxu0 %v612
  %942 = vmatprep.subr.mxu0 %v601
  %943 = vmatpush2.msra.mxu0 %v600
  %944 = vmatprep.mubr.f32.mxu0 %v796
  %945 = vmatmul.mubr.f32.gmra.mxu0 %v795
  %v946 = vpop.f32.mrf.mxu0
  %v947 = vadd.f32 %v876, %v946
  %v948 = vpop.f32.mrf.mxu0
  %v949 = vadd.f32 %v878, %v948
  %950 = vdwg.mxu0
  %951 = vmatprep.subr.mxu0 %v207
  %952 = vmatpush1.msra.mxu0 %v206
  %953 = vmatprep.subr.mxu0 %v195
  %954 = vmatpush1.msra.mxu0 %v194
  %955 = vmatprep.subr.mxu0 %v183
  %956 = vmatpush1.msra.mxu0 %v182
  %957 = vmatprep.subr.mxu0 %v171
  %958 = vmatpush1.msra.mxu0 %v170
  %959 = vmatprep.subr.mxu0 %v159
  %960 = vmatpush1.msra.mxu0 %v158
  %961 = vmatprep.subr.mxu0 %v147
  %962 = vmatpush1.msra.mxu0 %v146
  %963 = vmatprep.subr.mxu0 %v135
  %964 = vmatpush1.msra.mxu0 %v134
  %965 = vmatprep.subr.mxu0 %v123
  %966 = vmatpush1.msra.mxu0 %v122
  %967 = vmatprep.subr.mxu0 %v111
  %968 = vmatpush1.msra.mxu0 %v110
  %969 = vmatprep.subr.mxu0 %v99
  %970 = vmatpush1.msra.mxu0 %v98
  %971 = vmatprep.subr.mxu0 %v87
  %972 = vmatpush1.msra.mxu0 %v86
  %973 = vmatprep.subr.mxu0 %v75
  %974 = vmatpush1.msra.mxu0 %v74
  %975 = vmatprep.subr.mxu0 %v63
  %976 = vmatpush1.msra.mxu0 %v62
  %977 = vmatprep.subr.mxu0 %v51
  %978 = vmatpush1.msra.mxu0 %v50
  %979 = vmatprep.subr.mxu0 %v39
  %980 = vmatpush1.msra.mxu0 %v38
  %981 = vmatprep.subr.mxu0 %v27
  %982 = vmatpush1.msra.mxu0 %v26
  %983 = vmatprep.subr.mxu0 %v399
  %984 = vmatpush2.msra.mxu0 %v398
  %985 = vmatprep.subr.mxu0 %v387
  %986 = vmatpush2.msra.mxu0 %v386
  %987 = vmatprep.subr.mxu0 %v375
  %988 = vmatpush2.msra.mxu0 %v374
  %989 = vmatprep.subr.mxu0 %v363
  %990 = vmatpush2.msra.mxu0 %v362
  %991 = vmatprep.subr.mxu0 %v351
  %992 = vmatpush2.msra.mxu0 %v350
  %993 = vmatprep.subr.mxu0 %v339
  %994 = vmatpush2.msra.mxu0 %v338
  %995 = vmatprep.subr.mxu0 %v327
  %996 = vmatpush2.msra.mxu0 %v326
  %997 = vmatprep.subr.mxu0 %v315
  %998 = vmatpush2.msra.mxu0 %v314
  %999 = vmatprep.subr.mxu0 %v303
  %1000 = vmatpush2.msra.mxu0 %v302
  %1001 = vmatprep.subr.mxu0 %v291
  %1002 = vmatpush2.msra.mxu0 %v290
  %1003 = vmatprep.subr.mxu0 %v279
  %1004 = vmatpush2.msra.mxu0 %v278
  %1005 = vmatprep.subr.mxu0 %v267
  %1006 = vmatpush2.msra.mxu0 %v266
  %1007 = vmatprep.subr.mxu0 %v255
  %1008 = vmatpush2.msra.mxu0 %v254
  %1009 = vmatprep.subr.mxu0 %v243
  %1010 = vmatpush2.msra.mxu0 %v242
  %1011 = vmatprep.subr.mxu0 %v231
  %1012 = vmatpush2.msra.mxu0 %v230
  %1013 = vmatprep.subr.mxu0 %v219
  %1014 = vmatpush2.msra.mxu0 %v218
  %1015 = vmatprep.mubr.f32.mxu0 %v794
  %1016 = vmatmul.mubr.f32.gmra.mxu0 %v793
  %v1017 = vpop.f32.mrf.mxu0
  %v1018 = vadd.f32 0.0, %v1017
  %v1019 = vpop.f32.mrf.mxu0
  %v1020 = vadd.f32 0.0, %v1019
  %1021 = vdwg.mxu0
  %1022 = vmatprep.subr.mxu0 %v591
  %1023 = vmatpush1.msra.mxu0 %v590
  %1024 = vmatprep.subr.mxu0 %v579
  %1025 = vmatpush1.msra.mxu0 %v578
  %1026 = vmatprep.subr.mxu0 %v567
  %1027 = vmatpush1.msra.mxu0 %v566
  %1028 = vmatprep.subr.mxu0 %v555
  %1029 = vmatpush1.msra.mxu0 %v554
  %1030 = vmatprep.subr.mxu0 %v543
  %1031 = vmatpush1.msra.mxu0 %v542
  %1032 = vmatprep.subr.mxu0 %v531
  %1033 = vmatpush1.msra.mxu0 %v530
  %1034 = vmatprep.subr.mxu0 %v519
  %1035 = vmatpush1.msra.mxu0 %v518
  %1036 = vmatprep.subr.mxu0 %v507
  %1037 = vmatpush1.msra.mxu0 %v506
  %1038 = vmatprep.subr.mxu0 %v495
  %1039 = vmatpush1.msra.mxu0 %v494
  %1040 = vmatprep.subr.mxu0 %v483
  %1041 = vmatpush1.msra.mxu0 %v482
  %1042 = vmatprep.subr.mxu0 %v471
  %1043 = vmatpush1.msra.mxu0 %v470
  %1044 = vmatprep.subr.mxu0 %v459
  %1045 = vmatpush1.msra.mxu0 %v458
  %1046 = vmatprep.subr.mxu0 %v447
  %1047 = vmatpush1.msra.mxu0 %v446
  %1048 = vmatprep.subr.mxu0 %v435
  %1049 = vmatpush1.msra.mxu0 %v434
  %1050 = vmatprep.subr.mxu0 %v423
  %1051 = vmatpush1.msra.mxu0 %v422
  %1052 = vmatprep.subr.mxu0 %v411
  %1053 = vmatpush1.msra.mxu0 %v410
  %1054 = vmatprep.subr.mxu0 %v783
  %1055 = vmatpush2.msra.mxu0 %v782
  %1056 = vmatprep.subr.mxu0 %v771
  %1057 = vmatpush2.msra.mxu0 %v770
  %1058 = vmatprep.subr.mxu0 %v759
  %1059 = vmatpush2.msra.mxu0 %v758
  %1060 = vmatprep.subr.mxu0 %v747
  %1061 = vmatpush2.msra.mxu0 %v746
  %1062 = vmatprep.subr.mxu0 %v735
  %1063 = vmatpush2.msra.mxu0 %v734
  %1064 = vmatprep.subr.mxu0 %v723
  %1065 = vmatpush2.msra.mxu0 %v722
  %1066 = vmatprep.subr.mxu0 %v711
  %1067 = vmatpush2.msra.mxu0 %v710
  %1068 = vmatprep.subr.mxu0 %v699
  %1069 = vmatpush2.msra.mxu0 %v698
  %1070 = vmatprep.subr.mxu0 %v687
  %1071 = vmatpush2.msra.mxu0 %v686
  %1072 = vmatprep.subr.mxu0 %v675
  %1073 = vmatpush2.msra.mxu0 %v674
  %1074 = vmatprep.subr.mxu0 %v663
  %1075 = vmatpush2.msra.mxu0 %v662
  %1076 = vmatprep.subr.mxu0 %v651
  %1077 = vmatpush2.msra.mxu0 %v650
  %1078 = vmatprep.subr.mxu0 %v639
  %1079 = vmatpush2.msra.mxu0 %v638
  %1080 = vmatprep.subr.mxu0 %v627
  %1081 = vmatpush2.msra.mxu0 %v626
  %1082 = vmatprep.subr.mxu0 %v615
  %1083 = vmatpush2.msra.mxu0 %v614
  %1084 = vmatprep.subr.mxu0 %v603
  %1085 = vmatpush2.msra.mxu0 %v602
  %1086 = vmatprep.mubr.f32.mxu0 %v796
  %1087 = vmatmul.mubr.f32.gmra.mxu0 %v795
  %v1088 = vpop.f32.mrf.mxu0
  %v1089 = vadd.f32 %v1018, %v1088
  %v1090 = vpop.f32.mrf.mxu0
  %v1091 = vadd.f32 %v1020, %v1090
  %1092 = vdwg.mxu0
  %1093 = vmatprep.subr.mxu0 %v209
  %1094 = vmatpush1.msra.mxu0 %v208
  %1095 = vmatprep.subr.mxu0 %v197
  %1096 = vmatpush1.msra.mxu0 %v196
  %1097 = vmatprep.subr.mxu0 %v185
  %1098 = vmatpush1.msra.mxu0 %v184
  %1099 = vmatprep.subr.mxu0 %v173
  %1100 = vmatpush1.msra.mxu0 %v172
  %1101 = vmatprep.subr.mxu0 %v161
  %1102 = vmatpush1.msra.mxu0 %v160
  %1103 = vmatprep.subr.mxu0 %v149
  %1104 = vmatpush1.msra.mxu0 %v148
  %1105 = vmatprep.subr.mxu0 %v137
  %1106 = vmatpush1.msra.mxu0 %v136
  %1107 = vmatprep.subr.mxu0 %v125
  %1108 = vmatpush1.msra.mxu0 %v124
  %1109 = vmatprep.subr.mxu0 %v113
  %1110 = vmatpush1.msra.mxu0 %v112
  %1111 = vmatprep.subr.mxu0 %v101
  %1112 = vmatpush1.msra.mxu0 %v100
  %1113 = vmatprep.subr.mxu0 %v89
  %1114 = vmatpush1.msra.mxu0 %v88
  %1115 = vmatprep.subr.mxu0 %v77
  %1116 = vmatpush1.msra.mxu0 %v76
  %1117 = vmatprep.subr.mxu0 %v65
  %1118 = vmatpush1.msra.mxu0 %v64
  %1119 = vmatprep.subr.mxu0 %v53
  %1120 = vmatpush1.msra.mxu0 %v52
  %1121 = vmatprep.subr.mxu0 %v41
  %1122 = vmatpush1.msra.mxu0 %v40
  %1123 = vmatprep.subr.mxu0 %v29
  %1124 = vmatpush1.msra.mxu0 %v28
  %1125 = vmatprep.subr.mxu0 %v401
  %1126 = vmatpush2.msra.mxu0 %v400
  %1127 = vmatprep.subr.mxu0 %v389
  %1128 = vmatpush2.msra.mxu0 %v388
  %1129 = vmatprep.subr.mxu0 %v377
  %1130 = vmatpush2.msra.mxu0 %v376
  %1131 = vmatprep.subr.mxu0 %v365
  %1132 = vmatpush2.msra.mxu0 %v364
  %1133 = vmatprep.subr.mxu0 %v353
  %1134 = vmatpush2.msra.mxu0 %v352
  %1135 = vmatprep.subr.mxu0 %v341
  %1136 = vmatpush2.msra.mxu0 %v340
  %1137 = vmatprep.subr.mxu0 %v329
  %1138 = vmatpush2.msra.mxu0 %v328
  %1139 = vmatprep.subr.mxu0 %v317
  %1140 = vmatpush2.msra.mxu0 %v316
  %1141 = vmatprep.subr.mxu0 %v305
  %1142 = vmatpush2.msra.mxu0 %v304
  %1143 = vmatprep.subr.mxu0 %v293
  %1144 = vmatpush2.msra.mxu0 %v292
  %1145 = vmatprep.subr.mxu0 %v281
  %1146 = vmatpush2.msra.mxu0 %v280
  %1147 = vmatprep.subr.mxu0 %v269
  %1148 = vmatpush2.msra.mxu0 %v268
  %1149 = vmatprep.subr.mxu0 %v257
  %1150 = vmatpush2.msra.mxu0 %v256
  %1151 = vmatprep.subr.mxu0 %v245
  %1152 = vmatpush2.msra.mxu0 %v244
  %1153 = vmatprep.subr.mxu0 %v233
  %1154 = vmatpush2.msra.mxu0 %v232
  %1155 = vmatprep.subr.mxu0 %v221
  %1156 = vmatpush2.msra.mxu0 %v220
  %1157 = vmatprep.mubr.f32.mxu0 %v794
  %1158 = vmatmul.mubr.f32.gmra.mxu0 %v793
  %v1159 = vpop.f32.mrf.mxu0
  %v1160 = vadd.f32 0.0, %v1159
  %v1161 = vpop.f32.mrf.mxu0
  %v1162 = vadd.f32 0.0, %v1161
  %1163 = vdwg.mxu0
  %1164 = vmatprep.subr.mxu0 %v593
  %1165 = vmatpush1.msra.mxu0 %v592
  %1166 = vmatprep.subr.mxu0 %v581
  %1167 = vmatpush1.msra.mxu0 %v580
  %1168 = vmatprep.subr.mxu0 %v569
  %1169 = vmatpush1.msra.mxu0 %v568
  %1170 = vmatprep.subr.mxu0 %v557
  %1171 = vmatpush1.msra.mxu0 %v556
  %1172 = vmatprep.subr.mxu0 %v545
  %1173 = vmatpush1.msra.mxu0 %v544
  %1174 = vmatprep.subr.mxu0 %v533
  %1175 = vmatpush1.msra.mxu0 %v532
  %1176 = vmatprep.subr.mxu0 %v521
  %1177 = vmatpush1.msra.mxu0 %v520
  %1178 = vmatprep.subr.mxu0 %v509
  %1179 = vmatpush1.msra.mxu0 %v508
  %1180 = vmatprep.subr.mxu0 %v497
  %1181 = vmatpush1.msra.mxu0 %v496
  %1182 = vmatprep.subr.mxu0 %v485
  %1183 = vmatpush1.msra.mxu0 %v484
  %1184 = vmatprep.subr.mxu0 %v473
  %1185 = vmatpush1.msra.mxu0 %v472
  %1186 = vmatprep.subr.mxu0 %v461
  %1187 = vmatpush1.msra.mxu0 %v460
  %1188 = vmatprep.subr.mxu0 %v449
  %1189 = vmatpush1.msra.mxu0 %v448
  %1190 = vmatprep.subr.mxu0 %v437
  %1191 = vmatpush1.msra.mxu0 %v436
  %1192 = vmatprep.subr.mxu0 %v425
  %1193 = vmatpush1.msra.mxu0 %v424
  %1194 = vmatprep.subr.mxu0 %v413
  %1195 = vmatpush1.msra.mxu0 %v412
  %1196 = vmatprep.subr.mxu0 %v785
  %1197 = vmatpush2.msra.mxu0 %v784
  %1198 = vmatprep.subr.mxu0 %v773
  %1199 = vmatpush2.msra.mxu0 %v772
  %1200 = vmatprep.subr.mxu0 %v761
  %1201 = vmatpush2.msra.mxu0 %v760
  %1202 = vmatprep.subr.mxu0 %v749
  %1203 = vmatpush2.msra.mxu0 %v748
  %1204 = vmatprep.subr.mxu0 %v737
  %1205 = vmatpush2.msra.mxu0 %v736
  %1206 = vmatprep.subr.mxu0 %v725
  %1207 = vmatpush2.msra.mxu0 %v724
  %1208 = vmatprep.subr.mxu0 %v713
  %1209 = vmatpush2.msra.mxu0 %v712
  %1210 = vmatprep.subr.mxu0 %v701
  %1211 = vmatpush2.msra.mxu0 %v700
  %1212 = vmatprep.subr.mxu0 %v689
  %1213 = vmatpush2.msra.mxu0 %v688
  %1214 = vmatprep.subr.mxu0 %v677
  %1215 = vmatpush2.msra.mxu0 %v676
  %1216 = vmatprep.subr.mxu0 %v665
  %1217 = vmatpush2.msra.mxu0 %v664
  %1218 = vmatprep.subr.mxu0 %v653
  %1219 = vmatpush2.msra.mxu0 %v652
  %1220 = vmatprep.subr.mxu0 %v641
  %1221 = vmatpush2.msra.mxu0 %v640
  %1222 = vmatprep.subr.mxu0 %v629
  %1223 = vmatpush2.msra.mxu0 %v628
  %1224 = vmatprep.subr.mxu0 %v617
  %1225 = vmatpush2.msra.mxu0 %v616
  %1226 = vmatprep.subr.mxu0 %v605
  %1227 = vmatpush2.msra.mxu0 %v604
  %1228 = vmatprep.mubr.f32.mxu0 %v796
  %1229 = vmatmul.mubr.f32.gmra.mxu0 %v795
  %v1230 = vpop.f32.mrf.mxu0
  %v1231 = vadd.f32 %v1160, %v1230
  %v1232 = vpop.f32.mrf.mxu0
  %v1233 = vadd.f32 %v1162, %v1232
  %1234 = vdwg.mxu0
  %1235 = vmatprep.subr.mxu0 %v211
  %1236 = vmatpush1.msra.mxu0 %v210
  %1237 = vmatprep.subr.mxu0 %v199
  %1238 = vmatpush1.msra.mxu0 %v198
  %1239 = vmatprep.subr.mxu0 %v187
  %1240 = vmatpush1.msra.mxu0 %v186
  %1241 = vmatprep.subr.mxu0 %v175
  %1242 = vmatpush1.msra.mxu0 %v174
  %1243 = vmatprep.subr.mxu0 %v163
  %1244 = vmatpush1.msra.mxu0 %v162
  %1245 = vmatprep.subr.mxu0 %v151
  %1246 = vmatpush1.msra.mxu0 %v150
  %1247 = vmatprep.subr.mxu0 %v139
  %1248 = vmatpush1.msra.mxu0 %v138
  %1249 = vmatprep.subr.mxu0 %v127
  %1250 = vmatpush1.msra.mxu0 %v126
  %1251 = vmatprep.subr.mxu0 %v115
  %1252 = vmatpush1.msra.mxu0 %v114
  %1253 = vmatprep.subr.mxu0 %v103
  %1254 = vmatpush1.msra.mxu0 %v102
  %1255 = vmatprep.subr.mxu0 %v91
  %1256 = vmatpush1.msra.mxu0 %v90
  %1257 = vmatprep.subr.mxu0 %v79
  %1258 = vmatpush1.msra.mxu0 %v78
  %1259 = vmatprep.subr.mxu0 %v67
  %1260 = vmatpush1.msra.mxu0 %v66
  %1261 = vmatprep.subr.mxu0 %v55
  %1262 = vmatpush1.msra.mxu0 %v54
  %1263 = vmatprep.subr.mxu0 %v43
  %1264 = vmatpush1.msra.mxu0 %v42
  %1265 = vmatprep.subr.mxu0 %v31
  %1266 = vmatpush1.msra.mxu0 %v30
  %1267 = vmatprep.subr.mxu0 %v403
  %1268 = vmatpush2.msra.mxu0 %v402
  %1269 = vmatprep.subr.mxu0 %v391
  %1270 = vmatpush2.msra.mxu0 %v390
  %1271 = vmatprep.subr.mxu0 %v379
  %1272 = vmatpush2.msra.mxu0 %v378
  %1273 = vmatprep.subr.mxu0 %v367
  %1274 = vmatpush2.msra.mxu0 %v366
  %1275 = vmatprep.subr.mxu0 %v355
  %1276 = vmatpush2.msra.mxu0 %v354
  %1277 = vmatprep.subr.mxu0 %v343
  %1278 = vmatpush2.msra.mxu0 %v342
  %1279 = vmatprep.subr.mxu0 %v331
  %1280 = vmatpush2.msra.mxu0 %v330
  %1281 = vmatprep.subr.mxu0 %v319
  %1282 = vmatpush2.msra.mxu0 %v318
  %1283 = vmatprep.subr.mxu0 %v307
  %1284 = vmatpush2.msra.mxu0 %v306
  %1285 = vmatprep.subr.mxu0 %v295
  %1286 = vmatpush2.msra.mxu0 %v294
  %1287 = vmatprep.subr.mxu0 %v283
  %1288 = vmatpush2.msra.mxu0 %v282
  %1289 = vmatprep.subr.mxu0 %v271
  %1290 = vmatpush2.msra.mxu0 %v270
  %1291 = vmatprep.subr.mxu0 %v259
  %1292 = vmatpush2.msra.mxu0 %v258
  %1293 = vmatprep.subr.mxu0 %v247
  %1294 = vmatpush2.msra.mxu0 %v246
  %1295 = vmatprep.subr.mxu0 %v235
  %1296 = vmatpush2.msra.mxu0 %v234
  %1297 = vmatprep.subr.mxu0 %v223
  %1298 = vmatpush2.msra.mxu0 %v222
  %1299 = vmatprep.mubr.f32.mxu0 %v794
  %1300 = vmatmul.mubr.f32.gmra.mxu0 %v793
  %v1301 = vpop.f32.mrf.mxu0
  %v1302 = vadd.f32 0.0, %v1301
  %v1303 = vpop.f32.mrf.mxu0
  %v1304 = vadd.f32 0.0, %v1303
  %1305 = vdwg.mxu0
  %1306 = vmatprep.subr.mxu0 %v595
  %1307 = vmatpush1.msra.mxu0 %v594
  %1308 = vmatprep.subr.mxu0 %v583
  %1309 = vmatpush1.msra.mxu0 %v582
  %1310 = vmatprep.subr.mxu0 %v571
  %1311 = vmatpush1.msra.mxu0 %v570
  %1312 = vmatprep.subr.mxu0 %v559
  %1313 = vmatpush1.msra.mxu0 %v558
  %1314 = vmatprep.subr.mxu0 %v547
  %1315 = vmatpush1.msra.mxu0 %v546
  %1316 = vmatprep.subr.mxu0 %v535
  %1317 = vmatpush1.msra.mxu0 %v534
  %1318 = vmatprep.subr.mxu0 %v523
  %1319 = vmatpush1.msra.mxu0 %v522
  %1320 = vmatprep.subr.mxu0 %v511
  %1321 = vmatpush1.msra.mxu0 %v510
  %1322 = vmatprep.subr.mxu0 %v499
  %1323 = vmatpush1.msra.mxu0 %v498
  %1324 = vmatprep.subr.mxu0 %v487
  %1325 = vmatpush1.msra.mxu0 %v486
  %1326 = vmatprep.subr.mxu0 %v475
  %1327 = vmatpush1.msra.mxu0 %v474
  %1328 = vmatprep.subr.mxu0 %v463
  %1329 = vmatpush1.msra.mxu0 %v462
  %1330 = vmatprep.subr.mxu0 %v451
  %1331 = vmatpush1.msra.mxu0 %v450
  %1332 = vmatprep.subr.mxu0 %v439
  %1333 = vmatpush1.msra.mxu0 %v438
  %1334 = vmatprep.subr.mxu0 %v427
  %1335 = vmatpush1.msra.mxu0 %v426
  %1336 = vmatprep.subr.mxu0 %v415
  %1337 = vmatpush1.msra.mxu0 %v414
  %1338 = vmatprep.subr.mxu0 %v787
  %1339 = vmatpush2.msra.mxu0 %v786
  %1340 = vmatprep.subr.mxu0 %v775
  %1341 = vmatpush2.msra.mxu0 %v774
  %1342 = vmatprep.subr.mxu0 %v763
  %1343 = vmatpush2.msra.mxu0 %v762
  %1344 = vmatprep.subr.mxu0 %v751
  %1345 = vmatpush2.msra.mxu0 %v750
  %1346 = vmatprep.subr.mxu0 %v739
  %1347 = vmatpush2.msra.mxu0 %v738
  %1348 = vmatprep.subr.mxu0 %v727
  %1349 = vmatpush2.msra.mxu0 %v726
  %1350 = vmatprep.subr.mxu0 %v715
  %1351 = vmatpush2.msra.mxu0 %v714
  %1352 = vmatprep.subr.mxu0 %v703
  %1353 = vmatpush2.msra.mxu0 %v702
  %1354 = vmatprep.subr.mxu0 %v691
  %1355 = vmatpush2.msra.mxu0 %v690
  %1356 = vmatprep.subr.mxu0 %v679
  %1357 = vmatpush2.msra.mxu0 %v678
  %1358 = vmatprep.subr.mxu0 %v667
  %1359 = vmatpush2.msra.mxu0 %v666
  %1360 = vmatprep.subr.mxu0 %v655
  %1361 = vmatpush2.msra.mxu0 %v654
  %1362 = vmatprep.subr.mxu0 %v643
  %1363 = vmatpush2.msra.mxu0 %v642
  %1364 = vmatprep.subr.mxu0 %v631
  %1365 = vmatpush2.msra.mxu0 %v630
  %1366 = vmatprep.subr.mxu0 %v619
  %1367 = vmatpush2.msra.mxu0 %v618
  %1368 = vmatprep.subr.mxu0 %v607
  %1369 = vmatpush2.msra.mxu0 %v606
  %1370 = vmatprep.mubr.f32.mxu0 %v796
  %1371 = vmatmul.mubr.f32.gmra.mxu0 %v795
  %v1372 = vpop.f32.mrf.mxu0
  %v1373 = vadd.f32 %v1302, %v1372
  %v1374 = vpop.f32.mrf.mxu0
  %v1375 = vadd.f32 %v1304, %v1374
  %1376 = vdwg.mxu0
  %1377 = vmatprep.subr.mxu0 %v213
  %1378 = vmatpush1.msra.mxu0 %v212
  %1379 = vmatprep.subr.mxu0 %v201
  %1380 = vmatpush1.msra.mxu0 %v200
  %1381 = vmatprep.subr.mxu0 %v189
  %1382 = vmatpush1.msra.mxu0 %v188
  %1383 = vmatprep.subr.mxu0 %v177
  %1384 = vmatpush1.msra.mxu0 %v176
  %1385 = vmatprep.subr.mxu0 %v165
  %1386 = vmatpush1.msra.mxu0 %v164
  %1387 = vmatprep.subr.mxu0 %v153
  %1388 = vmatpush1.msra.mxu0 %v152
  %1389 = vmatprep.subr.mxu0 %v141
  %1390 = vmatpush1.msra.mxu0 %v140
  %1391 = vmatprep.subr.mxu0 %v129
  %1392 = vmatpush1.msra.mxu0 %v128
  %1393 = vmatprep.subr.mxu0 %v117
  %1394 = vmatpush1.msra.mxu0 %v116
  %1395 = vmatprep.subr.mxu0 %v105
  %1396 = vmatpush1.msra.mxu0 %v104
  %1397 = vmatprep.subr.mxu0 %v93
  %1398 = vmatpush1.msra.mxu0 %v92
  %1399 = vmatprep.subr.mxu0 %v81
  %1400 = vmatpush1.msra.mxu0 %v80
  %1401 = vmatprep.subr.mxu0 %v69
  %1402 = vmatpush1.msra.mxu0 %v68
  %1403 = vmatprep.subr.mxu0 %v57
  %1404 = vmatpush1.msra.mxu0 %v56
  %1405 = vmatprep.subr.mxu0 %v45
  %1406 = vmatpush1.msra.mxu0 %v44
  %1407 = vmatprep.subr.mxu0 %v33
  %1408 = vmatpush1.msra.mxu0 %v32
  %1409 = vmatprep.subr.mxu0 %v405
  %1410 = vmatpush2.msra.mxu0 %v404
  %1411 = vmatprep.subr.mxu0 %v393
  %1412 = vmatpush2.msra.mxu0 %v392
  %1413 = vmatprep.subr.mxu0 %v381
  %1414 = vmatpush2.msra.mxu0 %v380
  %1415 = vmatprep.subr.mxu0 %v369
  %1416 = vmatpush2.msra.mxu0 %v368
  %1417 = vmatprep.subr.mxu0 %v357
  %1418 = vmatpush2.msra.mxu0 %v356
  %1419 = vmatprep.subr.mxu0 %v345
  %1420 = vmatpush2.msra.mxu0 %v344
  %1421 = vmatprep.subr.mxu0 %v333
  %1422 = vmatpush2.msra.mxu0 %v332
  %1423 = vmatprep.subr.mxu0 %v321
  %1424 = vmatpush2.msra.mxu0 %v320
  %1425 = vmatprep.subr.mxu0 %v309
  %1426 = vmatpush2.msra.mxu0 %v308
  %1427 = vmatprep.subr.mxu0 %v297
  %1428 = vmatpush2.msra.mxu0 %v296
  %1429 = vmatprep.subr.mxu0 %v285
  %1430 = vmatpush2.msra.mxu0 %v284
  %1431 = vmatprep.subr.mxu0 %v273
  %1432 = vmatpush2.msra.mxu0 %v272
  %1433 = vmatprep.subr.mxu0 %v261
  %1434 = vmatpush2.msra.mxu0 %v260
  %1435 = vmatprep.subr.mxu0 %v249
  %1436 = vmatpush2.msra.mxu0 %v248
  %1437 = vmatprep.subr.mxu0 %v237
  %1438 = vmatpush2.msra.mxu0 %v236
  %1439 = vmatprep.subr.mxu0 %v225
  %1440 = vmatpush2.msra.mxu0 %v224
  %1441 = vmatprep.mubr.f32.mxu0 %v794
  %1442 = vmatmul.mubr.f32.gmra.mxu0 %v793
  %v1443 = vpop.f32.mrf.mxu0
  %v1444 = vadd.f32 0.0, %v1443
  %v1445 = vpop.f32.mrf.mxu0
  %v1446 = vadd.f32 0.0, %v1445
  %1447 = vdwg.mxu0
  %1448 = vmatprep.subr.mxu0 %v597
  %1449 = vmatpush1.msra.mxu0 %v596
  %1450 = vmatprep.subr.mxu0 %v585
  %1451 = vmatpush1.msra.mxu0 %v584
  %1452 = vmatprep.subr.mxu0 %v573
  %1453 = vmatpush1.msra.mxu0 %v572
  %1454 = vmatprep.subr.mxu0 %v561
  %1455 = vmatpush1.msra.mxu0 %v560
  %1456 = vmatprep.subr.mxu0 %v549
  %1457 = vmatpush1.msra.mxu0 %v548
  %1458 = vmatprep.subr.mxu0 %v537
  %1459 = vmatpush1.msra.mxu0 %v536
  %1460 = vmatprep.subr.mxu0 %v525
  %1461 = vmatpush1.msra.mxu0 %v524
  %1462 = vmatprep.subr.mxu0 %v513
  %1463 = vmatpush1.msra.mxu0 %v512
  %1464 = vmatprep.subr.mxu0 %v501
  %1465 = vmatpush1.msra.mxu0 %v500
  %1466 = vmatprep.subr.mxu0 %v489
  %1467 = vmatpush1.msra.mxu0 %v488
  %1468 = vmatprep.subr.mxu0 %v477
  %1469 = vmatpush1.msra.mxu0 %v476
  %1470 = vmatprep.subr.mxu0 %v465
  %1471 = vmatpush1.msra.mxu0 %v464
  %1472 = vmatprep.subr.mxu0 %v453
  %1473 = vmatpush1.msra.mxu0 %v452
  %1474 = vmatprep.subr.mxu0 %v441
  %1475 = vmatpush1.msra.mxu0 %v440
  %1476 = vmatprep.subr.mxu0 %v429
  %1477 = vmatpush1.msra.mxu0 %v428
  %1478 = vmatprep.subr.mxu0 %v417
  %1479 = vmatpush1.msra.mxu0 %v416
  %1480 = vmatprep.subr.mxu0 %v789
  %1481 = vmatpush2.msra.mxu0 %v788
  %1482 = vmatprep.subr.mxu0 %v777
  %1483 = vmatpush2.msra.mxu0 %v776
  %1484 = vmatprep.subr.mxu0 %v765
  %1485 = vmatpush2.msra.mxu0 %v764
  %1486 = vmatprep.subr.mxu0 %v753
  %1487 = vmatpush2.msra.mxu0 %v752
  %1488 = vmatprep.subr.mxu0 %v741
  %1489 = vmatpush2.msra.mxu0 %v740
  %1490 = vmatprep.subr.mxu0 %v729
  %1491 = vmatpush2.msra.mxu0 %v728
  %1492 = vmatprep.subr.mxu0 %v717
  %1493 = vmatpush2.msra.mxu0 %v716
  %1494 = vmatprep.subr.mxu0 %v705
  %1495 = vmatpush2.msra.mxu0 %v704
  %1496 = vmatprep.subr.mxu0 %v693
  %1497 = vmatpush2.msra.mxu0 %v692
  %1498 = vmatprep.subr.mxu0 %v681
  %1499 = vmatpush2.msra.mxu0 %v680
  %1500 = vmatprep.subr.mxu0 %v669
  %1501 = vmatpush2.msra.mxu0 %v668
  %1502 = vmatprep.subr.mxu0 %v657
  %1503 = vmatpush2.msra.mxu0 %v656
  %1504 = vmatprep.subr.mxu0 %v645
  %1505 = vmatpush2.msra.mxu0 %v644
  %1506 = vmatprep.subr.mxu0 %v633
  %1507 = vmatpush2.msra.mxu0 %v632
  %1508 = vmatprep.subr.mxu0 %v621
  %1509 = vmatpush2.msra.mxu0 %v620
  %1510 = vmatprep.subr.mxu0 %v609
  %1511 = vmatpush2.msra.mxu0 %v608
  %1512 = vmatprep.mubr.f32.mxu0 %v796
  %1513 = vmatmul.mubr.f32.gmra.mxu0 %v795
  %v1514 = vpop.f32.mrf.mxu0
  %v1515 = vadd.f32 %v1444, %v1514
  %v1516 = vpop.f32.mrf.mxu0
  %v1517 = vadd.f32 %v1446, %v1516
  %1518 = vdwg.mxu0
  %1519 = vmatprep.subr.mxu0 %v215
  %1520 = vmatpush1.msra.mxu0 %v214
  %1521 = vmatprep.subr.mxu0 %v203
  %1522 = vmatpush1.msra.mxu0 %v202
  %1523 = vmatprep.subr.mxu0 %v191
  %1524 = vmatpush1.msra.mxu0 %v190
  %1525 = vmatprep.subr.mxu0 %v179
  %1526 = vmatpush1.msra.mxu0 %v178
  %1527 = vmatprep.subr.mxu0 %v167
  %1528 = vmatpush1.msra.mxu0 %v166
  %1529 = vmatprep.subr.mxu0 %v155
  %1530 = vmatpush1.msra.mxu0 %v154
  %1531 = vmatprep.subr.mxu0 %v143
  %1532 = vmatpush1.msra.mxu0 %v142
  %1533 = vmatprep.subr.mxu0 %v131
  %1534 = vmatpush1.msra.mxu0 %v130
  %1535 = vmatprep.subr.mxu0 %v119
  %1536 = vmatpush1.msra.mxu0 %v118
  %1537 = vmatprep.subr.mxu0 %v107
  %1538 = vmatpush1.msra.mxu0 %v106
  %1539 = vmatprep.subr.mxu0 %v95
  %1540 = vmatpush1.msra.mxu0 %v94
  %1541 = vmatprep.subr.mxu0 %v83
  %1542 = vmatpush1.msra.mxu0 %v82
  %1543 = vmatprep.subr.mxu0 %v71
  %1544 = vmatpush1.msra.mxu0 %v70
  %1545 = vmatprep.subr.mxu0 %v59
  %1546 = vmatpush1.msra.mxu0 %v58
  %1547 = vmatprep.subr.mxu0 %v47
  %1548 = vmatpush1.msra.mxu0 %v46
  %1549 = vmatprep.subr.mxu0 %v35
  %1550 = vmatpush1.msra.mxu0 %v34
  %1551 = vmatprep.subr.mxu0 %v407
  %1552 = vmatpush2.msra.mxu0 %v406
  %1553 = vmatprep.subr.mxu0 %v395
  %1554 = vmatpush2.msra.mxu0 %v394
  %1555 = vmatprep.subr.mxu0 %v383
  %1556 = vmatpush2.msra.mxu0 %v382
  %1557 = vmatprep.subr.mxu0 %v371
  %1558 = vmatpush2.msra.mxu0 %v370
  %1559 = vmatprep.subr.mxu0 %v359
  %1560 = vmatpush2.msra.mxu0 %v358
  %1561 = vmatprep.subr.mxu0 %v347
  %1562 = vmatpush2.msra.mxu0 %v346
  %1563 = vmatprep.subr.mxu0 %v335
  %1564 = vmatpush2.msra.mxu0 %v334
  %1565 = vmatprep.subr.mxu0 %v323
  %1566 = vmatpush2.msra.mxu0 %v322
  %1567 = vmatprep.subr.mxu0 %v311
  %1568 = vmatpush2.msra.mxu0 %v310
  %1569 = vmatprep.subr.mxu0 %v299
  %1570 = vmatpush2.msra.mxu0 %v298
  %1571 = vmatprep.subr.mxu0 %v287
  %1572 = vmatpush2.msra.mxu0 %v286
  %1573 = vmatprep.subr.mxu0 %v275
  %1574 = vmatpush2.msra.mxu0 %v274
  %1575 = vmatprep.subr.mxu0 %v263
  %1576 = vmatpush2.msra.mxu0 %v262
  %1577 = vmatprep.subr.mxu0 %v251
  %1578 = vmatpush2.msra.mxu0 %v250
  %1579 = vmatprep.subr.mxu0 %v239
  %1580 = vmatpush2.msra.mxu0 %v238
  %1581 = vmatprep.subr.mxu0 %v227
  %1582 = vmatpush2.msra.mxu0 %v226
  %1583 = vmatprep.mubr.f32.mxu0 %v794
  %1584 = vmatmul.mubr.f32.gmra.mxu0 %v793
  %v1585 = vpop.f32.mrf.mxu0
  %v1586 = vadd.f32 0.0, %v1585
  %v1587 = vpop.f32.mrf.mxu0
  %v1588 = vadd.f32 0.0, %v1587
  %1589 = vdwg.mxu0
  %1590 = vmatprep.subr.mxu0 %v599
  %1591 = vmatpush1.msra.mxu0 %v598
  %1592 = vmatprep.subr.mxu0 %v587
  %1593 = vmatpush1.msra.mxu0 %v586
  %1594 = vmatprep.subr.mxu0 %v575
  %1595 = vmatpush1.msra.mxu0 %v574
  %1596 = vmatprep.subr.mxu0 %v563
  %1597 = vmatpush1.msra.mxu0 %v562
  %1598 = vmatprep.subr.mxu0 %v551
  %1599 = vmatpush1.msra.mxu0 %v550
  %1600 = vmatprep.subr.mxu0 %v539
  %1601 = vmatpush1.msra.mxu0 %v538
  %1602 = vmatprep.subr.mxu0 %v527
  %1603 = vmatpush1.msra.mxu0 %v526
  %1604 = vmatprep.subr.mxu0 %v515
  %1605 = vmatpush1.msra.mxu0 %v514
  %1606 = vmatprep.subr.mxu0 %v503
  %1607 = vmatpush1.msra.mxu0 %v502
  %1608 = vmatprep.subr.mxu0 %v491
  %1609 = vmatpush1.msra.mxu0 %v490
  %1610 = vmatprep.subr.mxu0 %v479
  %1611 = vmatpush1.msra.mxu0 %v478
  %1612 = vmatprep.subr.mxu0 %v467
  %1613 = vmatpush1.msra.mxu0 %v466
  %1614 = vmatprep.subr.mxu0 %v455
  %1615 = vmatpush1.msra.mxu0 %v454
  %1616 = vmatprep.subr.mxu0 %v443
  %1617 = vmatpush1.msra.mxu0 %v442
  %1618 = vmatprep.subr.mxu0 %v431
  %1619 = vmatpush1.msra.mxu0 %v430
  %1620 = vmatprep.subr.mxu0 %v419
  %1621 = vmatpush1.msra.mxu0 %v418
  %1622 = vmatprep.subr.mxu0 %v791
  %1623 = vmatpush2.msra.mxu0 %v790
  %1624 = vmatprep.subr.mxu0 %v779
  %1625 = vmatpush2.msra.mxu0 %v778
  %1626 = vmatprep.subr.mxu0 %v767
  %1627 = vmatpush2.msra.mxu0 %v766
  %1628 = vmatprep.subr.mxu0 %v755
  %1629 = vmatpush2.msra.mxu0 %v754
  %1630 = vmatprep.subr.mxu0 %v743
  %1631 = vmatpush2.msra.mxu0 %v742
  %1632 = vmatprep.subr.mxu0 %v731
  %1633 = vmatpush2.msra.mxu0 %v730
  %1634 = vmatprep.subr.mxu0 %v719
  %1635 = vmatpush2.msra.mxu0 %v718
  %1636 = vmatprep.subr.mxu0 %v707
  %1637 = vmatpush2.msra.mxu0 %v706
  %1638 = vmatprep.subr.mxu0 %v695
  %1639 = vmatpush2.msra.mxu0 %v694
  %1640 = vmatprep.subr.mxu0 %v683
  %1641 = vmatpush2.msra.mxu0 %v682
  %1642 = vmatprep.subr.mxu0 %v671
  %1643 = vmatpush2.msra.mxu0 %v670
  %1644 = vmatprep.subr.mxu0 %v659
  %1645 = vmatpush2.msra.mxu0 %v658
  %1646 = vmatprep.subr.mxu0 %v647
  %1647 = vmatpush2.msra.mxu0 %v646
  %1648 = vmatprep.subr.mxu0 %v635
  %1649 = vmatpush2.msra.mxu0 %v634
  %1650 = vmatprep.subr.mxu0 %v623
  %1651 = vmatpush2.msra.mxu0 %v622
  %1652 = vmatprep.subr.mxu0 %v611
  %1653 = vmatpush2.msra.mxu0 %v610
  %1654 = vmatprep.mubr.f32.mxu0 %v796
  %1655 = vmatmul.mubr.f32.gmra.mxu0 %v795
  %v1656 = vpop.f32.mrf.mxu0
  %v1657 = vadd.f32 %v1586, %v1656
  %v1658 = vpop.f32.mrf.mxu0
  %v1659 = vadd.f32 %v1588, %v1658
  %1660 = vdwg.mxu0
  %v1661 = vadd.f32 %v797, %v947
  %v1662 = vadd.f32 %v798, %v949
  %v1663 = vadd.f32 %v799, %v1089
  %v1664 = vadd.f32 %v800, %v1091
  %v1665 = vxor.u32 %v1661, 2147483648
  %v1666 = vxor.u32 %v1662, 2147483648
  %v1667 = vxor.u32 %v1663, 2147483648
  %v1668 = vxor.u32 %v1664, 2147483648
  %v1669 = vmul.f32 %v1665, 1.442695
  %v1670 = vpow.pop %v1669
  %v1671 = vmul.f32 %v1666, 1.442695
  %v1672 = vpow.pop %v1671
  %v1673 = vmul.f32 %v1667, 1.442695
  %v1674 = vpow.pop %v1673
  %v1675 = vmul.f32 %v1668, 1.442695
  %v1676 = vpow.pop %v1675
  %v1677 = vadd.f32 %v1670, 1.0
  %v1678 = vadd.f32 %v1672, 1.0
  %v1679 = vadd.f32 %v1674, 1.0
  %v1680 = vadd.f32 %v1676, 1.0
  %v1681 = vrcp.pop %v1677
  %v1682 = vmul.f32 1.0, %v1681
  %v1683 = vrcp.pop %v1678
  %v1684 = vmul.f32 1.0, %v1683
  %v1685 = vrcp.pop %v1679
  %v1686 = vmul.f32 1.0, %v1685
  %v1687 = vrcp.pop %v1680
  %v1688 = vmul.f32 1.0, %v1687
  %v1689 = vadd.f32 %v801, %v1231
  %v1690 = vadd.f32 %v802, %v1233
  %v1691 = vadd.f32 %v803, %v1373
  %v1692 = vadd.f32 %v804, %v1375
  %v1693 = vxor.u32 %v1689, 2147483648
  %v1694 = vxor.u32 %v1690, 2147483648
  %v1695 = vxor.u32 %v1691, 2147483648
  %v1696 = vxor.u32 %v1692, 2147483648
  %v1697 = vmul.f32 %v1693, 1.442695
  %v1698 = vpow.pop %v1697
  %v1699 = vmul.f32 %v1694, 1.442695
  %v1700 = vpow.pop %v1699
  %v1701 = vmul.f32 %v1695, 1.442695
  %v1702 = vpow.pop %v1701
  %v1703 = vmul.f32 %v1696, 1.442695
  %v1704 = vpow.pop %v1703
  %v1705 = vadd.f32 %v1698, 1.0
  %v1706 = vadd.f32 %v1700, 1.0
  %v1707 = vadd.f32 %v1702, 1.0
  %v1708 = vadd.f32 %v1704, 1.0
  %v1709 = vrcp.pop %v1705
  %v1710 = vmul.f32 1.0, %v1709
  %v1711 = vrcp.pop %v1706
  %v1712 = vmul.f32 1.0, %v1711
  %v1713 = vrcp.pop %v1707
  %v1714 = vmul.f32 1.0, %v1713
  %v1715 = vrcp.pop %v1708
  %v1716 = vmul.f32 1.0, %v1715
  %v1718 = vlaneseq
  %v1719 = vshrl.u32 %v1718, 7
  %v1720 = vsub.s32 0, %v1719
  %v1721 = vrot.slane %v792, %v1720
  %v1722 = vlaneseq
  %v1723 = vshrl.u32 %v1722, 7
  %v1724 = vsub.s32 1, %v1723
  %v1725 = vrot.slane %v792, %v1724
  %v1726 = vlaneseq
  %v1727 = vshrl.u32 %v1726, 7
  %v1728 = vsub.s32 2, %v1727
  %v1729 = vrot.slane %v792, %v1728
  %v1730 = vlaneseq
  %v1731 = vshrl.u32 %v1730, 7
  %v1732 = vsub.s32 3, %v1731
  %v1733 = vrot.slane %v792, %v1732
  %v1738 = vadd.f32 %v1515, %v1721
  %v1739 = vadd.f32 %v1517, %v1725
  %v1740 = vadd.f32 %v1657, %v1729
  %v1741 = vadd.f32 %v1659, %v1733
  %v1742 = vmul.f32 %v1682, %v1738
  %v1743 = vmul.f32 %v1684, %v1739
  %v1744 = vmul.f32 %v1686, %v1740
  %v1745 = vmul.f32 %v1688, %v1741
  %v1746 = vadd.f32 %v805, %v1742
  %v1747 = vadd.f32 %v806, %v1743
  %v1748 = vadd.f32 %v807, %v1744
  %v1749 = vadd.f32 %v808, %v1745
  %v1750 = vtanh.pop %v1746
  %v1751 = vtanh.pop %v1747
  %v1752 = vtanh.pop %v1748
  %v1753 = vtanh.pop %v1749
  %v1754 = vsub.f32 1.0, %v1710
  %v1755 = vsub.f32 1.0, %v1712
  %v1756 = vsub.f32 1.0, %v1714
  %v1757 = vsub.f32 1.0, %v1716
  %v1758 = vmul.f32 %v1754, %v1750
  %v1759 = vmul.f32 %v1755, %v1751
  %v1760 = vmul.f32 %v1756, %v1752
  %v1761 = vmul.f32 %v1757, %v1753
  %v1762 = vmul.f32 %v1710, %v793
  %v1763 = vmul.f32 %v1712, %v794
  %v1764 = vmul.f32 %v1714, %v795
  %v1765 = vmul.f32 %v1716, %v796
  %v1766 = vadd.f32 %v1758, %v1762
  %v1767 = vadd.f32 %v1759, %v1763
  %v1768 = vadd.f32 %v1760, %v1764
  %v1769 = vadd.f32 %v1761, %v1765
  %1770 = vst [vmem:[%s3] sm:$0xff] %v1766
  %1771 = vst [vmem:[%s3 + $0x8] sm:$0xff] %v1767
  %1772 = vst [vmem:[%s3 + $0x10] sm:$0xff] %v1768
  %1773 = vst [vmem:[%s3 + $0x18] sm:$0xff] %v1769
  %s1774 = scalar_lea.vmem %s0, 96
  %v1775 = vld [vmem:[%s1774] sm:$0xff]
  %v1776 = vld [vmem:[%s1774 + $0x8] sm:$0xff]
  %v1777 = vld [vmem:[%s1774 + $0x10] sm:$0xff]
  %v1778 = vld [vmem:[%s1774 + $0x18] sm:$0xff]
  %v1779 = vld [vmem:[%s1774 + $0x20] sm:$0xff]
  %v1780 = vld [vmem:[%s1774 + $0x28] sm:$0xff]
  %v1781 = vld [vmem:[%s1774 + $0x30] sm:$0xff]
  %v1782 = vld [vmem:[%s1774 + $0x38] sm:$0xff]
  %v1783 = vld [vmem:[%s1774 + $0x40] sm:$0xff]
  %v1784 = vld [vmem:[%s1774 + $0x48] sm:$0xff]
  %v1785 = vld [vmem:[%s1774 + $0x50] sm:$0xff]
  %v1786 = vld [vmem:[%s1774 + $0x58] sm:$0xff]
  %1787 = vmatprep.subr.mxu0 %v205
  %1788 = vmatpush1.msra.mxu0 %v204
  %1789 = vmatprep.subr.mxu0 %v193
  %1790 = vmatpush1.msra.mxu0 %v192
  %1791 = vmatprep.subr.mxu0 %v181
  %1792 = vmatpush1.msra.mxu0 %v180
  %1793 = vmatprep.subr.mxu0 %v169
  %1794 = vmatpush1.msra.mxu0 %v168
  %1795 = vmatprep.subr.mxu0 %v157
  %1796 = vmatpush1.msra.mxu0 %v156
  %1797 = vmatprep.subr.mxu0 %v145
  %1798 = vmatpush1.msra.mxu0 %v144
  %1799 = vmatprep.subr.mxu0 %v133
  %1800 = vmatpush1.msra.mxu0 %v132
  %1801 = vmatprep.subr.mxu0 %v121
  %1802 = vmatpush1.msra.mxu0 %v120
  %1803 = vmatprep.subr.mxu0 %v109
  %1804 = vmatpush1.msra.mxu0 %v108
  %1805 = vmatprep.subr.mxu0 %v97
  %1806 = vmatpush1.msra.mxu0 %v96
  %1807 = vmatprep.subr.mxu0 %v85
  %1808 = vmatpush1.msra.mxu0 %v84
  %1809 = vmatprep.subr.mxu0 %v73
  %1810 = vmatpush1.msra.mxu0 %v72
  %1811 = vmatprep.subr.mxu0 %v61
  %1812 = vmatpush1.msra.mxu0 %v60
  %1813 = vmatprep.subr.mxu0 %v49
  %1814 = vmatpush1.msra.mxu0 %v48
  %1815 = vmatprep.subr.mxu0 %v37
  %1816 = vmatpush1.msra.mxu0 %v36
  %1817 = vmatprep.subr.mxu0 %v25
  %1818 = vmatpush1.msra.mxu0 %v24
  %1819 = vmatprep.subr.mxu0 %v397
  %1820 = vmatpush2.msra.mxu0 %v396
  %1821 = vmatprep.subr.mxu0 %v385
  %1822 = vmatpush2.msra.mxu0 %v384
  %1823 = vmatprep.subr.mxu0 %v373
  %1824 = vmatpush2.msra.mxu0 %v372
  %1825 = vmatprep.subr.mxu0 %v361
  %1826 = vmatpush2.msra.mxu0 %v360
  %1827 = vmatprep.subr.mxu0 %v349
  %1828 = vmatpush2.msra.mxu0 %v348
  %1829 = vmatprep.subr.mxu0 %v337
  %1830 = vmatpush2.msra.mxu0 %v336
  %1831 = vmatprep.subr.mxu0 %v325
  %1832 = vmatpush2.msra.mxu0 %v324
  %1833 = vmatprep.subr.mxu0 %v313
  %1834 = vmatpush2.msra.mxu0 %v312
  %1835 = vmatprep.subr.mxu0 %v301
  %1836 = vmatpush2.msra.mxu0 %v300
  %1837 = vmatprep.subr.mxu0 %v289
  %1838 = vmatpush2.msra.mxu0 %v288
  %1839 = vmatprep.subr.mxu0 %v277
  %1840 = vmatpush2.msra.mxu0 %v276
  %1841 = vmatprep.subr.mxu0 %v265
  %1842 = vmatpush2.msra.mxu0 %v264
  %1843 = vmatprep.subr.mxu0 %v253
  %1844 = vmatpush2.msra.mxu0 %v252
  %1845 = vmatprep.subr.mxu0 %v241
  %1846 = vmatpush2.msra.mxu0 %v240
  %1847 = vmatprep.subr.mxu0 %v229
  %1848 = vmatpush2.msra.mxu0 %v228
  %1849 = vmatprep.subr.mxu0 %v217
  %1850 = vmatpush2.msra.mxu0 %v216
  %1851 = vmatprep.mubr.f32.mxu0 %v1767
  %1852 = vmatmul.mubr.f32.gmra.mxu0 %v1766
  %v1853 = vpop.f32.mrf.mxu0
  %v1854 = vadd.f32 0.0, %v1853
  %v1855 = vpop.f32.mrf.mxu0
  %v1856 = vadd.f32 0.0, %v1855
  %1857 = vdwg.mxu0
  %1858 = vmatprep.subr.mxu0 %v589
  %1859 = vmatpush1.msra.mxu0 %v588
  %1860 = vmatprep.subr.mxu0 %v577
  %1861 = vmatpush1.msra.mxu0 %v576
  %1862 = vmatprep.subr.mxu0 %v565
  %1863 = vmatpush1.msra.mxu0 %v564
  %1864 = vmatprep.subr.mxu0 %v553
  %1865 = vmatpush1.msra.mxu0 %v552
  %1866 = vmatprep.subr.mxu0 %v541
  %1867 = vmatpush1.msra.mxu0 %v540
  %1868 = vmatprep.subr.mxu0 %v529
  %1869 = vmatpush1.msra.mxu0 %v528
  %1870 = vmatprep.subr.mxu0 %v517
  %1871 = vmatpush1.msra.mxu0 %v516
  %1872 = vmatprep.subr.mxu0 %v505
  %1873 = vmatpush1.msra.mxu0 %v504
  %1874 = vmatprep.subr.mxu0 %v493
  %1875 = vmatpush1.msra.mxu0 %v492
  %1876 = vmatprep.subr.mxu0 %v481
  %1877 = vmatpush1.msra.mxu0 %v480
  %1878 = vmatprep.subr.mxu0 %v469
  %1879 = vmatpush1.msra.mxu0 %v468
  %1880 = vmatprep.subr.mxu0 %v457
  %1881 = vmatpush1.msra.mxu0 %v456
  %1882 = vmatprep.subr.mxu0 %v445
  %1883 = vmatpush1.msra.mxu0 %v444
  %1884 = vmatprep.subr.mxu0 %v433
  %1885 = vmatpush1.msra.mxu0 %v432
  %1886 = vmatprep.subr.mxu0 %v421
  %1887 = vmatpush1.msra.mxu0 %v420
  %1888 = vmatprep.subr.mxu0 %v409
  %1889 = vmatpush1.msra.mxu0 %v408
  %1890 = vmatprep.subr.mxu0 %v781
  %1891 = vmatpush2.msra.mxu0 %v780
  %1892 = vmatprep.subr.mxu0 %v769
  %1893 = vmatpush2.msra.mxu0 %v768
  %1894 = vmatprep.subr.mxu0 %v757
  %1895 = vmatpush2.msra.mxu0 %v756
  %1896 = vmatprep.subr.mxu0 %v745
  %1897 = vmatpush2.msra.mxu0 %v744
  %1898 = vmatprep.subr.mxu0 %v733
  %1899 = vmatpush2.msra.mxu0 %v732
  %1900 = vmatprep.subr.mxu0 %v721
  %1901 = vmatpush2.msra.mxu0 %v720
  %1902 = vmatprep.subr.mxu0 %v709
  %1903 = vmatpush2.msra.mxu0 %v708
  %1904 = vmatprep.subr.mxu0 %v697
  %1905 = vmatpush2.msra.mxu0 %v696
  %1906 = vmatprep.subr.mxu0 %v685
  %1907 = vmatpush2.msra.mxu0 %v684
  %1908 = vmatprep.subr.mxu0 %v673
  %1909 = vmatpush2.msra.mxu0 %v672
  %1910 = vmatprep.subr.mxu0 %v661
  %1911 = vmatpush2.msra.mxu0 %v660
  %1912 = vmatprep.subr.mxu0 %v649
  %1913 = vmatpush2.msra.mxu0 %v648
  %1914 = vmatprep.subr.mxu0 %v637
  %1915 = vmatpush2.msra.mxu0 %v636
  %1916 = vmatprep.subr.mxu0 %v625
  %1917 = vmatpush2.msra.mxu0 %v624
  %1918 = vmatprep.subr.mxu0 %v613
  %1919 = vmatpush2.msra.mxu0 %v612
  %1920 = vmatprep.subr.mxu0 %v601
  %1921 = vmatpush2.msra.mxu0 %v600
  %1922 = vmatprep.mubr.f32.mxu0 %v1769
  %1923 = vmatmul.mubr.f32.gmra.mxu0 %v1768
  %v1924 = vpop.f32.mrf.mxu0
  %v1925 = vadd.f32 %v1854, %v1924
  %v1926 = vpop.f32.mrf.mxu0
  %v1927 = vadd.f32 %v1856, %v1926
  %1928 = vdwg.mxu0
  %1929 = vmatprep.subr.mxu0 %v207
  %1930 = vmatpush1.msra.mxu0 %v206
  %1931 = vmatprep.subr.mxu0 %v195
  %1932 = vmatpush1.msra.mxu0 %v194
  %1933 = vmatprep.subr.mxu0 %v183
  %1934 = vmatpush1.msra.mxu0 %v182
  %1935 = vmatprep.subr.mxu0 %v171
  %1936 = vmatpush1.msra.mxu0 %v170
  %1937 = vmatprep.subr.mxu0 %v159
  %1938 = vmatpush1.msra.mxu0 %v158
  %1939 = vmatprep.subr.mxu0 %v147
  %1940 = vmatpush1.msra.mxu0 %v146
  %1941 = vmatprep.subr.mxu0 %v135
  %1942 = vmatpush1.msra.mxu0 %v134
  %1943 = vmatprep.subr.mxu0 %v123
  %1944 = vmatpush1.msra.mxu0 %v122
  %1945 = vmatprep.subr.mxu0 %v111
  %1946 = vmatpush1.msra.mxu0 %v110
  %1947 = vmatprep.subr.mxu0 %v99
  %1948 = vmatpush1.msra.mxu0 %v98
  %1949 = vmatprep.subr.mxu0 %v87
  %1950 = vmatpush1.msra.mxu0 %v86
  %1951 = vmatprep.subr.mxu0 %v75
  %1952 = vmatpush1.msra.mxu0 %v74
  %1953 = vmatprep.subr.mxu0 %v63
  %1954 = vmatpush1.msra.mxu0 %v62
  %1955 = vmatprep.subr.mxu0 %v51
  %1956 = vmatpush1.msra.mxu0 %v50
  %1957 = vmatprep.subr.mxu0 %v39
  %1958 = vmatpush1.msra.mxu0 %v38
  %1959 = vmatprep.subr.mxu0 %v27
  %1960 = vmatpush1.msra.mxu0 %v26
  %1961 = vmatprep.subr.mxu0 %v399
  %1962 = vmatpush2.msra.mxu0 %v398
  %1963 = vmatprep.subr.mxu0 %v387
  %1964 = vmatpush2.msra.mxu0 %v386
  %1965 = vmatprep.subr.mxu0 %v375
  %1966 = vmatpush2.msra.mxu0 %v374
  %1967 = vmatprep.subr.mxu0 %v363
  %1968 = vmatpush2.msra.mxu0 %v362
  %1969 = vmatprep.subr.mxu0 %v351
  %1970 = vmatpush2.msra.mxu0 %v350
  %1971 = vmatprep.subr.mxu0 %v339
  %1972 = vmatpush2.msra.mxu0 %v338
  %1973 = vmatprep.subr.mxu0 %v327
  %1974 = vmatpush2.msra.mxu0 %v326
  %1975 = vmatprep.subr.mxu0 %v315
  %1976 = vmatpush2.msra.mxu0 %v314
  %1977 = vmatprep.subr.mxu0 %v303
  %1978 = vmatpush2.msra.mxu0 %v302
  %1979 = vmatprep.subr.mxu0 %v291
  %1980 = vmatpush2.msra.mxu0 %v290
  %1981 = vmatprep.subr.mxu0 %v279
  %1982 = vmatpush2.msra.mxu0 %v278
  %1983 = vmatprep.subr.mxu0 %v267
  %1984 = vmatpush2.msra.mxu0 %v266
  %1985 = vmatprep.subr.mxu0 %v255
  %1986 = vmatpush2.msra.mxu0 %v254
  %1987 = vmatprep.subr.mxu0 %v243
  %1988 = vmatpush2.msra.mxu0 %v242
  %1989 = vmatprep.subr.mxu0 %v231
  %1990 = vmatpush2.msra.mxu0 %v230
  %1991 = vmatprep.subr.mxu0 %v219
  %1992 = vmatpush2.msra.mxu0 %v218
  %1993 = vmatprep.mubr.f32.mxu0 %v1767
  %1994 = vmatmul.mubr.f32.gmra.mxu0 %v1766
  %v1995 = vpop.f32.mrf.mxu0
  %v1996 = vadd.f32 0.0, %v1995
  %v1997 = vpop.f32.mrf.mxu0
  %v1998 = vadd.f32 0.0, %v1997
  %1999 = vdwg.mxu0
  %2000 = vmatprep.subr.mxu0 %v591
  %2001 = vmatpush1.msra.mxu0 %v590
  %2002 = vmatprep.subr.mxu0 %v579
  %2003 = vmatpush1.msra.mxu0 %v578
  %2004 = vmatprep.subr.mxu0 %v567
  %2005 = vmatpush1.msra.mxu0 %v566
  %2006 = vmatprep.subr.mxu0 %v555
  %2007 = vmatpush1.msra.mxu0 %v554
  %2008 = vmatprep.subr.mxu0 %v543
  %2009 = vmatpush1.msra.mxu0 %v542
  %2010 = vmatprep.subr.mxu0 %v531
  %2011 = vmatpush1.msra.mxu0 %v530
  %2012 = vmatprep.subr.mxu0 %v519
  %2013 = vmatpush1.msra.mxu0 %v518
  %2014 = vmatprep.subr.mxu0 %v507
  %2015 = vmatpush1.msra.mxu0 %v506
  %2016 = vmatprep.subr.mxu0 %v495
  %2017 = vmatpush1.msra.mxu0 %v494
  %2018 = vmatprep.subr.mxu0 %v483
  %2019 = vmatpush1.msra.mxu0 %v482
  %2020 = vmatprep.subr.mxu0 %v471
  %2021 = vmatpush1.msra.mxu0 %v470
  %2022 = vmatprep.subr.mxu0 %v459
  %2023 = vmatpush1.msra.mxu0 %v458
  %2024 = vmatprep.subr.mxu0 %v447
  %2025 = vmatpush1.msra.mxu0 %v446
  %2026 = vmatprep.subr.mxu0 %v435
  %2027 = vmatpush1.msra.mxu0 %v434
  %2028 = vmatprep.subr.mxu0 %v423
  %2029 = vmatpush1.msra.mxu0 %v422
  %2030 = vmatprep.subr.mxu0 %v411
  %2031 = vmatpush1.msra.mxu0 %v410
  %2032 = vmatprep.subr.mxu0 %v783
  %2033 = vmatpush2.msra.mxu0 %v782
  %2034 = vmatprep.subr.mxu0 %v771
  %2035 = vmatpush2.msra.mxu0 %v770
  %2036 = vmatprep.subr.mxu0 %v759
  %2037 = vmatpush2.msra.mxu0 %v758
  %2038 = vmatprep.subr.mxu0 %v747
  %2039 = vmatpush2.msra.mxu0 %v746
  %2040 = vmatprep.subr.mxu0 %v735
  %2041 = vmatpush2.msra.mxu0 %v734
  %2042 = vmatprep.subr.mxu0 %v723
  %2043 = vmatpush2.msra.mxu0 %v722
  %2044 = vmatprep.subr.mxu0 %v711
  %2045 = vmatpush2.msra.mxu0 %v710
  %2046 = vmatprep.subr.mxu0 %v699
  %2047 = vmatpush2.msra.mxu0 %v698
  %2048 = vmatprep.subr.mxu0 %v687
  %2049 = vmatpush2.msra.mxu0 %v686
  %2050 = vmatprep.subr.mxu0 %v675
  %2051 = vmatpush2.msra.mxu0 %v674
  %2052 = vmatprep.subr.mxu0 %v663
  %2053 = vmatpush2.msra.mxu0 %v662
  %2054 = vmatprep.subr.mxu0 %v651
  %2055 = vmatpush2.msra.mxu0 %v650
  %2056 = vmatprep.subr.mxu0 %v639
  %2057 = vmatpush2.msra.mxu0 %v638
  %2058 = vmatprep.subr.mxu0 %v627
  %2059 = vmatpush2.msra.mxu0 %v626
  %2060 = vmatprep.subr.mxu0 %v615
  %2061 = vmatpush2.msra.mxu0 %v614
  %2062 = vmatprep.subr.mxu0 %v603
  %2063 = vmatpush2.msra.mxu0 %v602
  %2064 = vmatprep.mubr.f32.mxu0 %v1769
  %2065 = vmatmul.mubr.f32.gmra.mxu0 %v1768
  %v2066 = vpop.f32.mrf.mxu0
  %v2067 = vadd.f32 %v1996, %v2066
  %v2068 = vpop.f32.mrf.mxu0
  %v2069 = vadd.f32 %v1998, %v2068
  %2070 = vdwg.mxu0
  %2071 = vmatprep.subr.mxu0 %v209
  %2072 = vmatpush1.msra.mxu0 %v208
  %2073 = vmatprep.subr.mxu0 %v197
  %2074 = vmatpush1.msra.mxu0 %v196
  %2075 = vmatprep.subr.mxu0 %v185
  %2076 = vmatpush1.msra.mxu0 %v184
  %2077 = vmatprep.subr.mxu0 %v173
  %2078 = vmatpush1.msra.mxu0 %v172
  %2079 = vmatprep.subr.mxu0 %v161
  %2080 = vmatpush1.msra.mxu0 %v160
  %2081 = vmatprep.subr.mxu0 %v149
  %2082 = vmatpush1.msra.mxu0 %v148
  %2083 = vmatprep.subr.mxu0 %v137
  %2084 = vmatpush1.msra.mxu0 %v136
  %2085 = vmatprep.subr.mxu0 %v125
  %2086 = vmatpush1.msra.mxu0 %v124
  %2087 = vmatprep.subr.mxu0 %v113
  %2088 = vmatpush1.msra.mxu0 %v112
  %2089 = vmatprep.subr.mxu0 %v101
  %2090 = vmatpush1.msra.mxu0 %v100
  %2091 = vmatprep.subr.mxu0 %v89
  %2092 = vmatpush1.msra.mxu0 %v88
  %2093 = vmatprep.subr.mxu0 %v77
  %2094 = vmatpush1.msra.mxu0 %v76
  %2095 = vmatprep.subr.mxu0 %v65
  %2096 = vmatpush1.msra.mxu0 %v64
  %2097 = vmatprep.subr.mxu0 %v53
  %2098 = vmatpush1.msra.mxu0 %v52
  %2099 = vmatprep.subr.mxu0 %v41
  %2100 = vmatpush1.msra.mxu0 %v40
  %2101 = vmatprep.subr.mxu0 %v29
  %2102 = vmatpush1.msra.mxu0 %v28
  %2103 = vmatprep.subr.mxu0 %v401
  %2104 = vmatpush2.msra.mxu0 %v400
  %2105 = vmatprep.subr.mxu0 %v389
  %2106 = vmatpush2.msra.mxu0 %v388
  %2107 = vmatprep.subr.mxu0 %v377
  %2108 = vmatpush2.msra.mxu0 %v376
  %2109 = vmatprep.subr.mxu0 %v365
  %2110 = vmatpush2.msra.mxu0 %v364
  %2111 = vmatprep.subr.mxu0 %v353
  %2112 = vmatpush2.msra.mxu0 %v352
  %2113 = vmatprep.subr.mxu0 %v341
  %2114 = vmatpush2.msra.mxu0 %v340
  %2115 = vmatprep.subr.mxu0 %v329
  %2116 = vmatpush2.msra.mxu0 %v328
  %2117 = vmatprep.subr.mxu0 %v317
  %2118 = vmatpush2.msra.mxu0 %v316
  %2119 = vmatprep.subr.mxu0 %v305
  %2120 = vmatpush2.msra.mxu0 %v304
  %2121 = vmatprep.subr.mxu0 %v293
  %2122 = vmatpush2.msra.mxu0 %v292
  %2123 = vmatprep.subr.mxu0 %v281
  %2124 = vmatpush2.msra.mxu0 %v280
  %2125 = vmatprep.subr.mxu0 %v269
  %2126 = vmatpush2.msra.mxu0 %v268
  %2127 = vmatprep.subr.mxu0 %v257
  %2128 = vmatpush2.msra.mxu0 %v256
  %2129 = vmatprep.subr.mxu0 %v245
  %2130 = vmatpush2.msra.mxu0 %v244
  %2131 = vmatprep.subr.mxu0 %v233
  %2132 = vmatpush2.msra.mxu0 %v232
  %2133 = vmatprep.subr.mxu0 %v221
  %2134 = vmatpush2.msra.mxu0 %v220
  %2135 = vmatprep.mubr.f32.mxu0 %v1767
  %2136 = vmatmul.mubr.f32.gmra.mxu0 %v1766
  %v2137 = vpop.f32.mrf.mxu0
  %v2138 = vadd.f32 0.0, %v2137
  %v2139 = vpop.f32.mrf.mxu0
  %v2140 = vadd.f32 0.0, %v2139
  %2141 = vdwg.mxu0
  %2142 = vmatprep.subr.mxu0 %v593
  %2143 = vmatpush1.msra.mxu0 %v592
  %2144 = vmatprep.subr.mxu0 %v581
  %2145 = vmatpush1.msra.mxu0 %v580
  %2146 = vmatprep.subr.mxu0 %v569
  %2147 = vmatpush1.msra.mxu0 %v568
  %2148 = vmatprep.subr.mxu0 %v557
  %2149 = vmatpush1.msra.mxu0 %v556
  %2150 = vmatprep.subr.mxu0 %v545
  %2151 = vmatpush1.msra.mxu0 %v544
  %2152 = vmatprep.subr.mxu0 %v533
  %2153 = vmatpush1.msra.mxu0 %v532
  %2154 = vmatprep.subr.mxu0 %v521
  %2155 = vmatpush1.msra.mxu0 %v520
  %2156 = vmatprep.subr.mxu0 %v509
  %2157 = vmatpush1.msra.mxu0 %v508
  %2158 = vmatprep.subr.mxu0 %v497
  %2159 = vmatpush1.msra.mxu0 %v496
  %2160 = vmatprep.subr.mxu0 %v485
  %2161 = vmatpush1.msra.mxu0 %v484
  %2162 = vmatprep.subr.mxu0 %v473
  %2163 = vmatpush1.msra.mxu0 %v472
  %2164 = vmatprep.subr.mxu0 %v461
  %2165 = vmatpush1.msra.mxu0 %v460
  %2166 = vmatprep.subr.mxu0 %v449
  %2167 = vmatpush1.msra.mxu0 %v448
  %2168 = vmatprep.subr.mxu0 %v437
  %2169 = vmatpush1.msra.mxu0 %v436
  %2170 = vmatprep.subr.mxu0 %v425
  %2171 = vmatpush1.msra.mxu0 %v424
  %2172 = vmatprep.subr.mxu0 %v413
  %2173 = vmatpush1.msra.mxu0 %v412
  %2174 = vmatprep.subr.mxu0 %v785
  %2175 = vmatpush2.msra.mxu0 %v784
  %2176 = vmatprep.subr.mxu0 %v773
  %2177 = vmatpush2.msra.mxu0 %v772
  %2178 = vmatprep.subr.mxu0 %v761
  %2179 = vmatpush2.msra.mxu0 %v760
  %2180 = vmatprep.subr.mxu0 %v749
  %2181 = vmatpush2.msra.mxu0 %v748
  %2182 = vmatprep.subr.mxu0 %v737
  %2183 = vmatpush2.msra.mxu0 %v736
  %2184 = vmatprep.subr.mxu0 %v725
  %2185 = vmatpush2.msra.mxu0 %v724
  %2186 = vmatprep.subr.mxu0 %v713
  %2187 = vmatpush2.msra.mxu0 %v712
  %2188 = vmatprep.subr.mxu0 %v701
  %2189 = vmatpush2.msra.mxu0 %v700
  %2190 = vmatprep.subr.mxu0 %v689
  %2191 = vmatpush2.msra.mxu0 %v688
  %2192 = vmatprep.subr.mxu0 %v677
  %2193 = vmatpush2.msra.mxu0 %v676
  %2194 = vmatprep.subr.mxu0 %v665
  %2195 = vmatpush2.msra.mxu0 %v664
  %2196 = vmatprep.subr.mxu0 %v653
  %2197 = vmatpush2.msra.mxu0 %v652
  %2198 = vmatprep.subr.mxu0 %v641
  %2199 = vmatpush2.msra.mxu0 %v640
  %2200 = vmatprep.subr.mxu0 %v629
  %2201 = vmatpush2.msra.mxu0 %v628
  %2202 = vmatprep.subr.mxu0 %v617
  %2203 = vmatpush2.msra.mxu0 %v616
  %2204 = vmatprep.subr.mxu0 %v605
  %2205 = vmatpush2.msra.mxu0 %v604
  %2206 = vmatprep.mubr.f32.mxu0 %v1769
  %2207 = vmatmul.mubr.f32.gmra.mxu0 %v1768
  %v2208 = vpop.f32.mrf.mxu0
  %v2209 = vadd.f32 %v2138, %v2208
  %v2210 = vpop.f32.mrf.mxu0
  %v2211 = vadd.f32 %v2140, %v2210
  %2212 = vdwg.mxu0
  %2213 = vmatprep.subr.mxu0 %v211
  %2214 = vmatpush1.msra.mxu0 %v210
  %2215 = vmatprep.subr.mxu0 %v199
  %2216 = vmatpush1.msra.mxu0 %v198
  %2217 = vmatprep.subr.mxu0 %v187
  %2218 = vmatpush1.msra.mxu0 %v186
  %2219 = vmatprep.subr.mxu0 %v175
  %2220 = vmatpush1.msra.mxu0 %v174
  %2221 = vmatprep.subr.mxu0 %v163
  %2222 = vmatpush1.msra.mxu0 %v162
  %2223 = vmatprep.subr.mxu0 %v151
  %2224 = vmatpush1.msra.mxu0 %v150
  %2225 = vmatprep.subr.mxu0 %v139
  %2226 = vmatpush1.msra.mxu0 %v138
  %2227 = vmatprep.subr.mxu0 %v127
  %2228 = vmatpush1.msra.mxu0 %v126
  %2229 = vmatprep.subr.mxu0 %v115
  %2230 = vmatpush1.msra.mxu0 %v114
  %2231 = vmatprep.subr.mxu0 %v103
  %2232 = vmatpush1.msra.mxu0 %v102
  %2233 = vmatprep.subr.mxu0 %v91
  %2234 = vmatpush1.msra.mxu0 %v90
  %2235 = vmatprep.subr.mxu0 %v79
  %2236 = vmatpush1.msra.mxu0 %v78
  %2237 = vmatprep.subr.mxu0 %v67
  %2238 = vmatpush1.msra.mxu0 %v66
  %2239 = vmatprep.subr.mxu0 %v55
  %2240 = vmatpush1.msra.mxu0 %v54
  %2241 = vmatprep.subr.mxu0 %v43
  %2242 = vmatpush1.msra.mxu0 %v42
  %2243 = vmatprep.subr.mxu0 %v31
  %2244 = vmatpush1.msra.mxu0 %v30
  %2245 = vmatprep.subr.mxu0 %v403
  %2246 = vmatpush2.msra.mxu0 %v402
  %2247 = vmatprep.subr.mxu0 %v391
  %2248 = vmatpush2.msra.mxu0 %v390
  %2249 = vmatprep.subr.mxu0 %v379
  %2250 = vmatpush2.msra.mxu0 %v378
  %2251 = vmatprep.subr.mxu0 %v367
  %2252 = vmatpush2.msra.mxu0 %v366
  %2253 = vmatprep.subr.mxu0 %v355
  %2254 = vmatpush2.msra.mxu0 %v354
  %2255 = vmatprep.subr.mxu0 %v343
  %2256 = vmatpush2.msra.mxu0 %v342
  %2257 = vmatprep.subr.mxu0 %v331
  %2258 = vmatpush2.msra.mxu0 %v330
  %2259 = vmatprep.subr.mxu0 %v319
  %2260 = vmatpush2.msra.mxu0 %v318
  %2261 = vmatprep.subr.mxu0 %v307
  %2262 = vmatpush2.msra.mxu0 %v306
  %2263 = vmatprep.subr.mxu0 %v295
  %2264 = vmatpush2.msra.mxu0 %v294
  %2265 = vmatprep.subr.mxu0 %v283
  %2266 = vmatpush2.msra.mxu0 %v282
  %2267 = vmatprep.subr.mxu0 %v271
  %2268 = vmatpush2.msra.mxu0 %v270
  %2269 = vmatprep.subr.mxu0 %v259
  %2270 = vmatpush2.msra.mxu0 %v258
  %2271 = vmatprep.subr.mxu0 %v247
  %2272 = vmatpush2.msra.mxu0 %v246
  %2273 = vmatprep.subr.mxu0 %v235
  %2274 = vmatpush2.msra.mxu0 %v234
  %2275 = vmatprep.subr.mxu0 %v223
  %2276 = vmatpush2.msra.mxu0 %v222
  %2277 = vmatprep.mubr.f32.mxu0 %v1767
  %2278 = vmatmul.mubr.f32.gmra.mxu0 %v1766
  %v2279 = vpop.f32.mrf.mxu0
  %v2280 = vadd.f32 0.0, %v2279
  %v2281 = vpop.f32.mrf.mxu0
  %v2282 = vadd.f32 0.0, %v2281
  %2283 = vdwg.mxu0
  %2284 = vmatprep.subr.mxu0 %v595
  %2285 = vmatpush1.msra.mxu0 %v594
  %2286 = vmatprep.subr.mxu0 %v583
  %2287 = vmatpush1.msra.mxu0 %v582
  %2288 = vmatprep.subr.mxu0 %v571
  %2289 = vmatpush1.msra.mxu0 %v570
  %2290 = vmatprep.subr.mxu0 %v559
  %2291 = vmatpush1.msra.mxu0 %v558
  %2292 = vmatprep.subr.mxu0 %v547
  %2293 = vmatpush1.msra.mxu0 %v546
  %2294 = vmatprep.subr.mxu0 %v535
  %2295 = vmatpush1.msra.mxu0 %v534
  %2296 = vmatprep.subr.mxu0 %v523
  %2297 = vmatpush1.msra.mxu0 %v522
  %2298 = vmatprep.subr.mxu0 %v511
  %2299 = vmatpush1.msra.mxu0 %v510
  %2300 = vmatprep.subr.mxu0 %v499
  %2301 = vmatpush1.msra.mxu0 %v498
  %2302 = vmatprep.subr.mxu0 %v487
  %2303 = vmatpush1.msra.mxu0 %v486
  %2304 = vmatprep.subr.mxu0 %v475
  %2305 = vmatpush1.msra.mxu0 %v474
  %2306 = vmatprep.subr.mxu0 %v463
  %2307 = vmatpush1.msra.mxu0 %v462
  %2308 = vmatprep.subr.mxu0 %v451
  %2309 = vmatpush1.msra.mxu0 %v450
  %2310 = vmatprep.subr.mxu0 %v439
  %2311 = vmatpush1.msra.mxu0 %v438
  %2312 = vmatprep.subr.mxu0 %v427
  %2313 = vmatpush1.msra.mxu0 %v426
  %2314 = vmatprep.subr.mxu0 %v415
  %2315 = vmatpush1.msra.mxu0 %v414
  %2316 = vmatprep.subr.mxu0 %v787
  %2317 = vmatpush2.msra.mxu0 %v786
  %2318 = vmatprep.subr.mxu0 %v775
  %2319 = vmatpush2.msra.mxu0 %v774
  %2320 = vmatprep.subr.mxu0 %v763
  %2321 = vmatpush2.msra.mxu0 %v762
  %2322 = vmatprep.subr.mxu0 %v751
  %2323 = vmatpush2.msra.mxu0 %v750
  %2324 = vmatprep.subr.mxu0 %v739
  %2325 = vmatpush2.msra.mxu0 %v738
  %2326 = vmatprep.subr.mxu0 %v727
  %2327 = vmatpush2.msra.mxu0 %v726
  %2328 = vmatprep.subr.mxu0 %v715
  %2329 = vmatpush2.msra.mxu0 %v714
  %2330 = vmatprep.subr.mxu0 %v703
  %2331 = vmatpush2.msra.mxu0 %v702
  %2332 = vmatprep.subr.mxu0 %v691
  %2333 = vmatpush2.msra.mxu0 %v690
  %2334 = vmatprep.subr.mxu0 %v679
  %2335 = vmatpush2.msra.mxu0 %v678
  %2336 = vmatprep.subr.mxu0 %v667
  %2337 = vmatpush2.msra.mxu0 %v666
  %2338 = vmatprep.subr.mxu0 %v655
  %2339 = vmatpush2.msra.mxu0 %v654
  %2340 = vmatprep.subr.mxu0 %v643
  %2341 = vmatpush2.msra.mxu0 %v642
  %2342 = vmatprep.subr.mxu0 %v631
  %2343 = vmatpush2.msra.mxu0 %v630
  %2344 = vmatprep.subr.mxu0 %v619
  %2345 = vmatpush2.msra.mxu0 %v618
  %2346 = vmatprep.subr.mxu0 %v607
  %2347 = vmatpush2.msra.mxu0 %v606
  %2348 = vmatprep.mubr.f32.mxu0 %v1769
  %2349 = vmatmul.mubr.f32.gmra.mxu0 %v1768
  %v2350 = vpop.f32.mrf.mxu0
  %v2351 = vadd.f32 %v2280, %v2350
  %v2352 = vpop.f32.mrf.mxu0
  %v2353 = vadd.f32 %v2282, %v2352
  %2354 = vdwg.mxu0
  %2355 = vmatprep.subr.mxu0 %v213
  %2356 = vmatpush1.msra.mxu0 %v212
  %2357 = vmatprep.subr.mxu0 %v201
  %2358 = vmatpush1.msra.mxu0 %v200
  %2359 = vmatprep.subr.mxu0 %v189
  %2360 = vmatpush1.msra.mxu0 %v188
  %2361 = vmatprep.subr.mxu0 %v177
  %2362 = vmatpush1.msra.mxu0 %v176
  %2363 = vmatprep.subr.mxu0 %v165
  %2364 = vmatpush1.msra.mxu0 %v164
  %2365 = vmatprep.subr.mxu0 %v153
  %2366 = vmatpush1.msra.mxu0 %v152
  %2367 = vmatprep.subr.mxu0 %v141
  %2368 = vmatpush1.msra.mxu0 %v140
  %2369 = vmatprep.subr.mxu0 %v129
  %2370 = vmatpush1.msra.mxu0 %v128
  %2371 = vmatprep.subr.mxu0 %v117
  %2372 = vmatpush1.msra.mxu0 %v116
  %2373 = vmatprep.subr.mxu0 %v105
  %2374 = vmatpush1.msra.mxu0 %v104
  %2375 = vmatprep.subr.mxu0 %v93
  %2376 = vmatpush1.msra.mxu0 %v92
  %2377 = vmatprep.subr.mxu0 %v81
  %2378 = vmatpush1.msra.mxu0 %v80
  %2379 = vmatprep.subr.mxu0 %v69
  %2380 = vmatpush1.msra.mxu0 %v68
  %2381 = vmatprep.subr.mxu0 %v57
  %2382 = vmatpush1.msra.mxu0 %v56
  %2383 = vmatprep.subr.mxu0 %v45
  %2384 = vmatpush1.msra.mxu0 %v44
  %2385 = vmatprep.subr.mxu0 %v33
  %2386 = vmatpush1.msra.mxu0 %v32
  %2387 = vmatprep.subr.mxu0 %v405
  %2388 = vmatpush2.msra.mxu0 %v404
  %2389 = vmatprep.subr.mxu0 %v393
  %2390 = vmatpush2.msra.mxu0 %v392
  %2391 = vmatprep.subr.mxu0 %v381
  %2392 = vmatpush2.msra.mxu0 %v380
  %2393 = vmatprep.subr.mxu0 %v369
  %2394 = vmatpush2.msra.mxu0 %v368
  %2395 = vmatprep.subr.mxu0 %v357
  %2396 = vmatpush2.msra.mxu0 %v356
  %2397 = vmatprep.subr.mxu0 %v345
  %2398 = vmatpush2.msra.mxu0 %v344
  %2399 = vmatprep.subr.mxu0 %v333
  %2400 = vmatpush2.msra.mxu0 %v332
  %2401 = vmatprep.subr.mxu0 %v321
  %2402 = vmatpush2.msra.mxu0 %v320
  %2403 = vmatprep.subr.mxu0 %v309
  %2404 = vmatpush2.msra.mxu0 %v308
  %2405 = vmatprep.subr.mxu0 %v297
  %2406 = vmatpush2.msra.mxu0 %v296
  %2407 = vmatprep.subr.mxu0 %v285
  %2408 = vmatpush2.msra.mxu0 %v284
  %2409 = vmatprep.subr.mxu0 %v273
  %2410 = vmatpush2.msra.mxu0 %v272
  %2411 = vmatprep.subr.mxu0 %v261
  %2412 = vmatpush2.msra.mxu0 %v260
  %2413 = vmatprep.subr.mxu0 %v249
  %2414 = vmatpush2.msra.mxu0 %v248
  %2415 = vmatprep.subr.mxu0 %v237
  %2416 = vmatpush2.msra.mxu0 %v236
  %2417 = vmatprep.subr.mxu0 %v225
  %2418 = vmatpush2.msra.mxu0 %v224
  %2419 = vmatprep.mubr.f32.mxu0 %v1767
  %2420 = vmatmul.mubr.f32.gmra.mxu0 %v1766
  %v2421 = vpop.f32.mrf.mxu0
  %v2422 = vadd.f32 0.0, %v2421
  %v2423 = vpop.f32.mrf.mxu0
  %v2424 = vadd.f32 0.0, %v2423
  %2425 = vdwg.mxu0
  %2426 = vmatprep.subr.mxu0 %v597
  %2427 = vmatpush1.msra.mxu0 %v596
  %2428 = vmatprep.subr.mxu0 %v585
  %2429 = vmatpush1.msra.mxu0 %v584
  %2430 = vmatprep.subr.mxu0 %v573
  %2431 = vmatpush1.msra.mxu0 %v572
  %2432 = vmatprep.subr.mxu0 %v561
  %2433 = vmatpush1.msra.mxu0 %v560
  %2434 = vmatprep.subr.mxu0 %v549
  %2435 = vmatpush1.msra.mxu0 %v548
  %2436 = vmatprep.subr.mxu0 %v537
  %2437 = vmatpush1.msra.mxu0 %v536
  %2438 = vmatprep.subr.mxu0 %v525
  %2439 = vmatpush1.msra.mxu0 %v524
  %2440 = vmatprep.subr.mxu0 %v513
  %2441 = vmatpush1.msra.mxu0 %v512
  %2442 = vmatprep.subr.mxu0 %v501
  %2443 = vmatpush1.msra.mxu0 %v500
  %2444 = vmatprep.subr.mxu0 %v489
  %2445 = vmatpush1.msra.mxu0 %v488
  %2446 = vmatprep.subr.mxu0 %v477
  %2447 = vmatpush1.msra.mxu0 %v476
  %2448 = vmatprep.subr.mxu0 %v465
  %2449 = vmatpush1.msra.mxu0 %v464
  %2450 = vmatprep.subr.mxu0 %v453
  %2451 = vmatpush1.msra.mxu0 %v452
  %2452 = vmatprep.subr.mxu0 %v441
  %2453 = vmatpush1.msra.mxu0 %v440
  %2454 = vmatprep.subr.mxu0 %v429
  %2455 = vmatpush1.msra.mxu0 %v428
  %2456 = vmatprep.subr.mxu0 %v417
  %2457 = vmatpush1.msra.mxu0 %v416
  %2458 = vmatprep.subr.mxu0 %v789
  %2459 = vmatpush2.msra.mxu0 %v788
  %2460 = vmatprep.subr.mxu0 %v777
  %2461 = vmatpush2.msra.mxu0 %v776
  %2462 = vmatprep.subr.mxu0 %v765
  %2463 = vmatpush2.msra.mxu0 %v764
  %2464 = vmatprep.subr.mxu0 %v753
  %2465 = vmatpush2.msra.mxu0 %v752
  %2466 = vmatprep.subr.mxu0 %v741
  %2467 = vmatpush2.msra.mxu0 %v740
  %2468 = vmatprep.subr.mxu0 %v729
  %2469 = vmatpush2.msra.mxu0 %v728
  %2470 = vmatprep.subr.mxu0 %v717
  %2471 = vmatpush2.msra.mxu0 %v716
  %2472 = vmatprep.subr.mxu0 %v705
  %2473 = vmatpush2.msra.mxu0 %v704
  %2474 = vmatprep.subr.mxu0 %v693
  %2475 = vmatpush2.msra.mxu0 %v692
  %2476 = vmatprep.subr.mxu0 %v681
  %2477 = vmatpush2.msra.mxu0 %v680
  %2478 = vmatprep.subr.mxu0 %v669
  %2479 = vmatpush2.msra.mxu0 %v668
  %2480 = vmatprep.subr.mxu0 %v657
  %2481 = vmatpush2.msra.mxu0 %v656
  %2482 = vmatprep.subr.mxu0 %v645
  %2483 = vmatpush2.msra.mxu0 %v644
  %2484 = vmatprep.subr.mxu0 %v633
  %2485 = vmatpush2.msra.mxu0 %v632
  %2486 = vmatprep.subr.mxu0 %v621
  %2487 = vmatpush2.msra.mxu0 %v620
  %2488 = vmatprep.subr.mxu0 %v609
  %2489 = vmatpush2.msra.mxu0 %v608
  %2490 = vmatprep.mubr.f32.mxu0 %v1769
  %2491 = vmatmul.mubr.f32.gmra.mxu0 %v1768
  %v2492 = vpop.f32.mrf.mxu0
  %v2493 = vadd.f32 %v2422, %v2492
  %v2494 = vpop.f32.mrf.mxu0
  %v2495 = vadd.f32 %v2424, %v2494
  %2496 = vdwg.mxu0
  %2497 = vmatprep.subr.mxu0 %v215
  %2498 = vmatpush1.msra.mxu0 %v214
  %2499 = vmatprep.subr.mxu0 %v203
  %2500 = vmatpush1.msra.mxu0 %v202
  %2501 = vmatprep.subr.mxu0 %v191
  %2502 = vmatpush1.msra.mxu0 %v190
  %2503 = vmatprep.subr.mxu0 %v179
  %2504 = vmatpush1.msra.mxu0 %v178
  %2505 = vmatprep.subr.mxu0 %v167
  %2506 = vmatpush1.msra.mxu0 %v166
  %2507 = vmatprep.subr.mxu0 %v155
  %2508 = vmatpush1.msra.mxu0 %v154
  %2509 = vmatprep.subr.mxu0 %v143
  %2510 = vmatpush1.msra.mxu0 %v142
  %2511 = vmatprep.subr.mxu0 %v131
  %2512 = vmatpush1.msra.mxu0 %v130
  %2513 = vmatprep.subr.mxu0 %v119
  %2514 = vmatpush1.msra.mxu0 %v118
  %2515 = vmatprep.subr.mxu0 %v107
  %2516 = vmatpush1.msra.mxu0 %v106
  %2517 = vmatprep.subr.mxu0 %v95
  %2518 = vmatpush1.msra.mxu0 %v94
  %2519 = vmatprep.subr.mxu0 %v83
  %2520 = vmatpush1.msra.mxu0 %v82
  %2521 = vmatprep.subr.mxu0 %v71
  %2522 = vmatpush1.msra.mxu0 %v70
  %2523 = vmatprep.subr.mxu0 %v59
  %2524 = vmatpush1.msra.mxu0 %v58
  %2525 = vmatprep.subr.mxu0 %v47
  %2526 = vmatpush1.msra.mxu0 %v46
  %2527 = vmatprep.subr.mxu0 %v35
  %2528 = vmatpush1.msra.mxu0 %v34
  %2529 = vmatprep.subr.mxu0 %v407
  %2530 = vmatpush2.msra.mxu0 %v406
  %2531 = vmatprep.subr.mxu0 %v395
  %2532 = vmatpush2.msra.mxu0 %v394
  %2533 = vmatprep.subr.mxu0 %v383
  %2534 = vmatpush2.msra.mxu0 %v382
  %2535 = vmatprep.subr.mxu0 %v371
  %2536 = vmatpush2.msra.mxu0 %v370
  %2537 = vmatprep.subr.mxu0 %v359
  %2538 = vmatpush2.msra.mxu0 %v358
  %2539 = vmatprep.subr.mxu0 %v347
  %2540 = vmatpush2.msra.mxu0 %v346
  %2541 = vmatprep.subr.mxu0 %v335
  %2542 = vmatpush2.msra.mxu0 %v334
  %2543 = vmatprep.subr.mxu0 %v323
  %2544 = vmatpush2.msra.mxu0 %v322
  %2545 = vmatprep.subr.mxu0 %v311
  %2546 = vmatpush2.msra.mxu0 %v310
  %2547 = vmatprep.subr.mxu0 %v299
  %2548 = vmatpush2.msra.mxu0 %v298
  %2549 = vmatprep.subr.mxu0 %v287
  %2550 = vmatpush2.msra.mxu0 %v286
  %2551 = vmatprep.subr.mxu0 %v275
  %2552 = vmatpush2.msra.mxu0 %v274
  %2553 = vmatprep.subr.mxu0 %v263
  %2554 = vmatpush2.msra.mxu0 %v262
  %2555 = vmatprep.subr.mxu0 %v251
  %2556 = vmatpush2.msra.mxu0 %v250
  %2557 = vmatprep.subr.mxu0 %v239
  %2558 = vmatpush2.msra.mxu0 %v238
  %2559 = vmatprep.subr.mxu0 %v227
  %2560 = vmatpush2.msra.mxu0 %v226
  %2561 = vmatprep.mubr.f32.mxu0 %v1767
  %2562 = vmatmul.mubr.f32.gmra.mxu0 %v1766
  %v2563 = vpop.f32.mrf.mxu0
  %v2564 = vadd.f32 0.0, %v2563
  %v2565 = vpop.f32.mrf.mxu0
  %v2566 = vadd.f32 0.0, %v2565
  %2567 = vdwg.mxu0
  %2568 = vmatprep.subr.mxu0 %v599
  %2569 = vmatpush1.msra.mxu0 %v598
  %2570 = vmatprep.subr.mxu0 %v587
  %2571 = vmatpush1.msra.mxu0 %v586
  %2572 = vmatprep.subr.mxu0 %v575
  %2573 = vmatpush1.msra.mxu0 %v574
  %2574 = vmatprep.subr.mxu0 %v563
  %2575 = vmatpush1.msra.mxu0 %v562
  %2576 = vmatprep.subr.mxu0 %v551
  %2577 = vmatpush1.msra.mxu0 %v550
  %2578 = vmatprep.subr.mxu0 %v539
  %2579 = vmatpush1.msra.mxu0 %v538
  %2580 = vmatprep.subr.mxu0 %v527
  %2581 = vmatpush1.msra.mxu0 %v526
  %2582 = vmatprep.subr.mxu0 %v515
  %2583 = vmatpush1.msra.mxu0 %v514
  %2584 = vmatprep.subr.mxu0 %v503
  %2585 = vmatpush1.msra.mxu0 %v502
  %2586 = vmatprep.subr.mxu0 %v491
  %2587 = vmatpush1.msra.mxu0 %v490
  %2588 = vmatprep.subr.mxu0 %v479
  %2589 = vmatpush1.msra.mxu0 %v478
  %2590 = vmatprep.subr.mxu0 %v467
  %2591 = vmatpush1.msra.mxu0 %v466
  %2592 = vmatprep.subr.mxu0 %v455
  %2593 = vmatpush1.msra.mxu0 %v454
  %2594 = vmatprep.subr.mxu0 %v443
  %2595 = vmatpush1.msra.mxu0 %v442
  %2596 = vmatprep.subr.mxu0 %v431
  %2597 = vmatpush1.msra.mxu0 %v430
  %2598 = vmatprep.subr.mxu0 %v419
  %2599 = vmatpush1.msra.mxu0 %v418
  %2600 = vmatprep.subr.mxu0 %v791
  %2601 = vmatpush2.msra.mxu0 %v790
  %2602 = vmatprep.subr.mxu0 %v779
  %2603 = vmatpush2.msra.mxu0 %v778
  %2604 = vmatprep.subr.mxu0 %v767
  %2605 = vmatpush2.msra.mxu0 %v766
  %2606 = vmatprep.subr.mxu0 %v755
  %2607 = vmatpush2.msra.mxu0 %v754
  %2608 = vmatprep.subr.mxu0 %v743
  %2609 = vmatpush2.msra.mxu0 %v742
  %2610 = vmatprep.subr.mxu0 %v731
  %2611 = vmatpush2.msra.mxu0 %v730
  %2612 = vmatprep.subr.mxu0 %v719
  %2613 = vmatpush2.msra.mxu0 %v718
  %2614 = vmatprep.subr.mxu0 %v707
  %2615 = vmatpush2.msra.mxu0 %v706
  %2616 = vmatprep.subr.mxu0 %v695
  %2617 = vmatpush2.msra.mxu0 %v694
  %2618 = vmatprep.subr.mxu0 %v683
  %2619 = vmatpush2.msra.mxu0 %v682
  %2620 = vmatprep.subr.mxu0 %v671
  %2621 = vmatpush2.msra.mxu0 %v670
  %2622 = vmatprep.subr.mxu0 %v659
  %2623 = vmatpush2.msra.mxu0 %v658
  %2624 = vmatprep.subr.mxu0 %v647
  %2625 = vmatpush2.msra.mxu0 %v646
  %2626 = vmatprep.subr.mxu0 %v635
  %2627 = vmatpush2.msra.mxu0 %v634
  %2628 = vmatprep.subr.mxu0 %v623
  %2629 = vmatpush2.msra.mxu0 %v622
  %2630 = vmatprep.subr.mxu0 %v611
  %2631 = vmatpush2.msra.mxu0 %v610
  %2632 = vmatprep.mubr.f32.mxu0 %v1769
  %2633 = vmatmul.mubr.f32.gmra.mxu0 %v1768
  %v2634 = vpop.f32.mrf.mxu0
  %v2635 = vadd.f32 %v2564, %v2634
  %v2636 = vpop.f32.mrf.mxu0
  %v2637 = vadd.f32 %v2566, %v2636
  %2638 = vdwg.mxu0
  %v2639 = vadd.f32 %v1775, %v1925
  %v2640 = vadd.f32 %v1776, %v1927
  %v2641 = vadd.f32 %v1777, %v2067
  %v2642 = vadd.f32 %v1778, %v2069
  %v2643 = vxor.u32 %v2639, 2147483648
  %v2644 = vxor.u32 %v2640, 2147483648
  %v2645 = vxor.u32 %v2641, 2147483648
  %v2646 = vxor.u32 %v2642, 2147483648
  %v2647 = vmul.f32 %v2643, 1.442695
  %v2648 = vpow.pop %v2647
  %v2649 = vmul.f32 %v2644, 1.442695
  %v2650 = vpow.pop %v2649
  %v2651 = vmul.f32 %v2645, 1.442695
  %v2652 = vpow.pop %v2651
  %v2653 = vmul.f32 %v2646, 1.442695
  %v2654 = vpow.pop %v2653
  %v2655 = vadd.f32 %v2648, 1.0
  %v2656 = vadd.f32 %v2650, 1.0
  %v2657 = vadd.f32 %v2652, 1.0
  %v2658 = vadd.f32 %v2654, 1.0
  %v2659 = vrcp.pop %v2655
  %v2660 = vmul.f32 1.0, %v2659
  %v2661 = vrcp.pop %v2656
  %v2662 = vmul.f32 1.0, %v2661
  %v2663 = vrcp.pop %v2657
  %v2664 = vmul.f32 1.0, %v2663
  %v2665 = vrcp.pop %v2658
  %v2666 = vmul.f32 1.0, %v2665
  %v2667 = vadd.f32 %v1779, %v2209
  %v2668 = vadd.f32 %v1780, %v2211
  %v2669 = vadd.f32 %v1781, %v2351
  %v2670 = vadd.f32 %v1782, %v2353
  %v2671 = vxor.u32 %v2667, 2147483648
  %v2672 = vxor.u32 %v2668, 2147483648
  %v2673 = vxor.u32 %v2669, 2147483648
  %v2674 = vxor.u32 %v2670, 2147483648
  %v2675 = vmul.f32 %v2671, 1.442695
  %v2676 = vpow.pop %v2675
  %v2677 = vmul.f32 %v2672, 1.442695
  %v2678 = vpow.pop %v2677
  %v2679 = vmul.f32 %v2673, 1.442695
  %v2680 = vpow.pop %v2679
  %v2681 = vmul.f32 %v2674, 1.442695
  %v2682 = vpow.pop %v2681
  %v2683 = vadd.f32 %v2676, 1.0
  %v2684 = vadd.f32 %v2678, 1.0
  %v2685 = vadd.f32 %v2680, 1.0
  %v2686 = vadd.f32 %v2682, 1.0
  %v2687 = vrcp.pop %v2683
  %v2688 = vmul.f32 1.0, %v2687
  %v2689 = vrcp.pop %v2684
  %v2690 = vmul.f32 1.0, %v2689
  %v2691 = vrcp.pop %v2685
  %v2692 = vmul.f32 1.0, %v2691
  %v2693 = vrcp.pop %v2686
  %v2694 = vmul.f32 1.0, %v2693
  %v2695 = vadd.f32 %v2493, %v1721
  %v2696 = vadd.f32 %v2495, %v1725
  %v2697 = vadd.f32 %v2635, %v1729
  %v2698 = vadd.f32 %v2637, %v1733
  %v2699 = vmul.f32 %v2660, %v2695
  %v2700 = vmul.f32 %v2662, %v2696
  %v2701 = vmul.f32 %v2664, %v2697
  %v2702 = vmul.f32 %v2666, %v2698
  %v2703 = vadd.f32 %v1783, %v2699
  %v2704 = vadd.f32 %v1784, %v2700
  %v2705 = vadd.f32 %v1785, %v2701
  %v2706 = vadd.f32 %v1786, %v2702
  %v2707 = vtanh.pop %v2703
  %v2708 = vtanh.pop %v2704
  %v2709 = vtanh.pop %v2705
  %v2710 = vtanh.pop %v2706
  %v2711 = vsub.f32 1.0, %v2688
  %v2712 = vsub.f32 1.0, %v2690
  %v2713 = vsub.f32 1.0, %v2692
  %v2714 = vsub.f32 1.0, %v2694
  %v2715 = vmul.f32 %v2711, %v2707
  %v2716 = vmul.f32 %v2712, %v2708
  %v2717 = vmul.f32 %v2713, %v2709
  %v2718 = vmul.f32 %v2714, %v2710
  %v2719 = vmul.f32 %v2688, %v1766
  %v2720 = vmul.f32 %v2690, %v1767
  %v2721 = vmul.f32 %v2692, %v1768
  %v2722 = vmul.f32 %v2694, %v1769
  %v2723 = vadd.f32 %v2715, %v2719
  %v2724 = vadd.f32 %v2716, %v2720
  %v2725 = vadd.f32 %v2717, %v2721
  %v2726 = vadd.f32 %v2718, %v2722
  %s2727 = scalar_lea.vmem %s3, 32
  %2728 = vst [vmem:[%s2727] sm:$0xff] %v2723
  %2729 = vst [vmem:[%s2727 + $0x8] sm:$0xff] %v2724
  %2730 = vst [vmem:[%s2727 + $0x10] sm:$0xff] %v2725
  %2731 = vst [vmem:[%s2727 + $0x18] sm:$0xff] %v2726
  %s2732 = scalar_lea.vmem %s0, 192
  %v2733 = vld [vmem:[%s2732] sm:$0xff]
  %v2734 = vld [vmem:[%s2732 + $0x8] sm:$0xff]
  %v2735 = vld [vmem:[%s2732 + $0x10] sm:$0xff]
  %v2736 = vld [vmem:[%s2732 + $0x18] sm:$0xff]
  %v2737 = vld [vmem:[%s2732 + $0x20] sm:$0xff]
  %v2738 = vld [vmem:[%s2732 + $0x28] sm:$0xff]
  %v2739 = vld [vmem:[%s2732 + $0x30] sm:$0xff]
  %v2740 = vld [vmem:[%s2732 + $0x38] sm:$0xff]
  %v2741 = vld [vmem:[%s2732 + $0x40] sm:$0xff]
  %v2742 = vld [vmem:[%s2732 + $0x48] sm:$0xff]
  %v2743 = vld [vmem:[%s2732 + $0x50] sm:$0xff]
  %v2744 = vld [vmem:[%s2732 + $0x58] sm:$0xff]
  %2745 = vmatprep.subr.mxu0 %v205
  %2746 = vmatpush1.msra.mxu0 %v204
  %2747 = vmatprep.subr.mxu0 %v193
  %2748 = vmatpush1.msra.mxu0 %v192
  %2749 = vmatprep.subr.mxu0 %v181
  %2750 = vmatpush1.msra.mxu0 %v180
  %2751 = vmatprep.subr.mxu0 %v169
  %2752 = vmatpush1.msra.mxu0 %v168
  %2753 = vmatprep.subr.mxu0 %v157
  %2754 = vmatpush1.msra.mxu0 %v156
  %2755 = vmatprep.subr.mxu0 %v145
  %2756 = vmatpush1.msra.mxu0 %v144
  %2757 = vmatprep.subr.mxu0 %v133
  %2758 = vmatpush1.msra.mxu0 %v132
  %2759 = vmatprep.subr.mxu0 %v121
  %2760 = vmatpush1.msra.mxu0 %v120
  %2761 = vmatprep.subr.mxu0 %v109
  %2762 = vmatpush1.msra.mxu0 %v108
  %2763 = vmatprep.subr.mxu0 %v97
  %2764 = vmatpush1.msra.mxu0 %v96
  %2765 = vmatprep.subr.mxu0 %v85
  %2766 = vmatpush1.msra.mxu0 %v84
  %2767 = vmatprep.subr.mxu0 %v73
  %2768 = vmatpush1.msra.mxu0 %v72
  %2769 = vmatprep.subr.mxu0 %v61
  %2770 = vmatpush1.msra.mxu0 %v60
  %2771 = vmatprep.subr.mxu0 %v49
  %2772 = vmatpush1.msra.mxu0 %v48
  %2773 = vmatprep.subr.mxu0 %v37
  %2774 = vmatpush1.msra.mxu0 %v36
  %2775 = vmatprep.subr.mxu0 %v25
  %2776 = vmatpush1.msra.mxu0 %v24
  %2777 = vmatprep.subr.mxu0 %v397
  %2778 = vmatpush2.msra.mxu0 %v396
  %2779 = vmatprep.subr.mxu0 %v385
  %2780 = vmatpush2.msra.mxu0 %v384
  %2781 = vmatprep.subr.mxu0 %v373
  %2782 = vmatpush2.msra.mxu0 %v372
  %2783 = vmatprep.subr.mxu0 %v361
  %2784 = vmatpush2.msra.mxu0 %v360
  %2785 = vmatprep.subr.mxu0 %v349
  %2786 = vmatpush2.msra.mxu0 %v348
  %2787 = vmatprep.subr.mxu0 %v337
  %2788 = vmatpush2.msra.mxu0 %v336
  %2789 = vmatprep.subr.mxu0 %v325
  %2790 = vmatpush2.msra.mxu0 %v324
  %2791 = vmatprep.subr.mxu0 %v313
  %2792 = vmatpush2.msra.mxu0 %v312
  %2793 = vmatprep.subr.mxu0 %v301
  %2794 = vmatpush2.msra.mxu0 %v300
  %2795 = vmatprep.subr.mxu0 %v289
  %2796 = vmatpush2.msra.mxu0 %v288
  %2797 = vmatprep.subr.mxu0 %v277
  %2798 = vmatpush2.msra.mxu0 %v276
  %2799 = vmatprep.subr.mxu0 %v265
  %2800 = vmatpush2.msra.mxu0 %v264
  %2801 = vmatprep.subr.mxu0 %v253
  %2802 = vmatpush2.msra.mxu0 %v252
  %2803 = vmatprep.subr.mxu0 %v241
  %2804 = vmatpush2.msra.mxu0 %v240
  %2805 = vmatprep.subr.mxu0 %v229
  %2806 = vmatpush2.msra.mxu0 %v228
  %2807 = vmatprep.subr.mxu0 %v217
  %2808 = vmatpush2.msra.mxu0 %v216
  %2809 = vmatprep.mubr.f32.mxu0 %v2724
  %2810 = vmatmul.mubr.f32.gmra.mxu0 %v2723
  %v2811 = vpop.f32.mrf.mxu0
  %v2812 = vadd.f32 0.0, %v2811
  %v2813 = vpop.f32.mrf.mxu0
  %v2814 = vadd.f32 0.0, %v2813
  %2815 = vdwg.mxu0
  %2816 = vmatprep.subr.mxu0 %v589
  %2817 = vmatpush1.msra.mxu0 %v588
  %2818 = vmatprep.subr.mxu0 %v577
  %2819 = vmatpush1.msra.mxu0 %v576
  %2820 = vmatprep.subr.mxu0 %v565
  %2821 = vmatpush1.msra.mxu0 %v564
  %2822 = vmatprep.subr.mxu0 %v553
  %2823 = vmatpush1.msra.mxu0 %v552
  %2824 = vmatprep.subr.mxu0 %v541
  %2825 = vmatpush1.msra.mxu0 %v540
  %2826 = vmatprep.subr.mxu0 %v529
  %2827 = vmatpush1.msra.mxu0 %v528
  %2828 = vmatprep.subr.mxu0 %v517
  %2829 = vmatpush1.msra.mxu0 %v516
  %2830 = vmatprep.subr.mxu0 %v505
  %2831 = vmatpush1.msra.mxu0 %v504
  %2832 = vmatprep.subr.mxu0 %v493
  %2833 = vmatpush1.msra.mxu0 %v492
  %2834 = vmatprep.subr.mxu0 %v481
  %2835 = vmatpush1.msra.mxu0 %v480
  %2836 = vmatprep.subr.mxu0 %v469
  %2837 = vmatpush1.msra.mxu0 %v468
  %2838 = vmatprep.subr.mxu0 %v457
  %2839 = vmatpush1.msra.mxu0 %v456
  %2840 = vmatprep.subr.mxu0 %v445
  %2841 = vmatpush1.msra.mxu0 %v444
  %2842 = vmatprep.subr.mxu0 %v433
  %2843 = vmatpush1.msra.mxu0 %v432
  %2844 = vmatprep.subr.mxu0 %v421
  %2845 = vmatpush1.msra.mxu0 %v420
  %2846 = vmatprep.subr.mxu0 %v409
  %2847 = vmatpush1.msra.mxu0 %v408
  %2848 = vmatprep.subr.mxu0 %v781
  %2849 = vmatpush2.msra.mxu0 %v780
  %2850 = vmatprep.subr.mxu0 %v769
  %2851 = vmatpush2.msra.mxu0 %v768
  %2852 = vmatprep.subr.mxu0 %v757
  %2853 = vmatpush2.msra.mxu0 %v756
  %2854 = vmatprep.subr.mxu0 %v745
  %2855 = vmatpush2.msra.mxu0 %v744
  %2856 = vmatprep.subr.mxu0 %v733
  %2857 = vmatpush2.msra.mxu0 %v732
  %2858 = vmatprep.subr.mxu0 %v721
  %2859 = vmatpush2.msra.mxu0 %v720
  %2860 = vmatprep.subr.mxu0 %v709
  %2861 = vmatpush2.msra.mxu0 %v708
  %2862 = vmatprep.subr.mxu0 %v697
  %2863 = vmatpush2.msra.mxu0 %v696
  %2864 = vmatprep.subr.mxu0 %v685
  %2865 = vmatpush2.msra.mxu0 %v684
  %2866 = vmatprep.subr.mxu0 %v673
  %2867 = vmatpush2.msra.mxu0 %v672
  %2868 = vmatprep.subr.mxu0 %v661
  %2869 = vmatpush2.msra.mxu0 %v660
  %2870 = vmatprep.subr.mxu0 %v649
  %2871 = vmatpush2.msra.mxu0 %v648
  %2872 = vmatprep.subr.mxu0 %v637
  %2873 = vmatpush2.msra.mxu0 %v636
  %2874 = vmatprep.subr.mxu0 %v625
  %2875 = vmatpush2.msra.mxu0 %v624
  %2876 = vmatprep.subr.mxu0 %v613
  %2877 = vmatpush2.msra.mxu0 %v612
  %2878 = vmatprep.subr.mxu0 %v601
  %2879 = vmatpush2.msra.mxu0 %v600
  %2880 = vmatprep.mubr.f32.mxu0 %v2726
  %2881 = vmatmul.mubr.f32.gmra.mxu0 %v2725
  %v2882 = vpop.f32.mrf.mxu0
  %v2883 = vadd.f32 %v2812, %v2882
  %v2884 = vpop.f32.mrf.mxu0
  %v2885 = vadd.f32 %v2814, %v2884
  %2886 = vdwg.mxu0
  %2887 = vmatprep.subr.mxu0 %v207
  %2888 = vmatpush1.msra.mxu0 %v206
  %2889 = vmatprep.subr.mxu0 %v195
  %2890 = vmatpush1.msra.mxu0 %v194
  %2891 = vmatprep.subr.mxu0 %v183
  %2892 = vmatpush1.msra.mxu0 %v182
  %2893 = vmatprep.subr.mxu0 %v171
  %2894 = vmatpush1.msra.mxu0 %v170
  %2895 = vmatprep.subr.mxu0 %v159
  %2896 = vmatpush1.msra.mxu0 %v158
  %2897 = vmatprep.subr.mxu0 %v147
  %2898 = vmatpush1.msra.mxu0 %v146
  %2899 = vmatprep.subr.mxu0 %v135
  %2900 = vmatpush1.msra.mxu0 %v134
  %2901 = vmatprep.subr.mxu0 %v123
  %2902 = vmatpush1.msra.mxu0 %v122
  %2903 = vmatprep.subr.mxu0 %v111
  %2904 = vmatpush1.msra.mxu0 %v110
  %2905 = vmatprep.subr.mxu0 %v99
  %2906 = vmatpush1.msra.mxu0 %v98
  %2907 = vmatprep.subr.mxu0 %v87
  %2908 = vmatpush1.msra.mxu0 %v86
  %2909 = vmatprep.subr.mxu0 %v75
  %2910 = vmatpush1.msra.mxu0 %v74
  %2911 = vmatprep.subr.mxu0 %v63
  %2912 = vmatpush1.msra.mxu0 %v62
  %2913 = vmatprep.subr.mxu0 %v51
  %2914 = vmatpush1.msra.mxu0 %v50
  %2915 = vmatprep.subr.mxu0 %v39
  %2916 = vmatpush1.msra.mxu0 %v38
  %2917 = vmatprep.subr.mxu0 %v27
  %2918 = vmatpush1.msra.mxu0 %v26
  %2919 = vmatprep.subr.mxu0 %v399
  %2920 = vmatpush2.msra.mxu0 %v398
  %2921 = vmatprep.subr.mxu0 %v387
  %2922 = vmatpush2.msra.mxu0 %v386
  %2923 = vmatprep.subr.mxu0 %v375
  %2924 = vmatpush2.msra.mxu0 %v374
  %2925 = vmatprep.subr.mxu0 %v363
  %2926 = vmatpush2.msra.mxu0 %v362
  %2927 = vmatprep.subr.mxu0 %v351
  %2928 = vmatpush2.msra.mxu0 %v350
  %2929 = vmatprep.subr.mxu0 %v339
  %2930 = vmatpush2.msra.mxu0 %v338
  %2931 = vmatprep.subr.mxu0 %v327
  %2932 = vmatpush2.msra.mxu0 %v326
  %2933 = vmatprep.subr.mxu0 %v315
  %2934 = vmatpush2.msra.mxu0 %v314
  %2935 = vmatprep.subr.mxu0 %v303
  %2936 = vmatpush2.msra.mxu0 %v302
  %2937 = vmatprep.subr.mxu0 %v291
  %2938 = vmatpush2.msra.mxu0 %v290
  %2939 = vmatprep.subr.mxu0 %v279
  %2940 = vmatpush2.msra.mxu0 %v278
  %2941 = vmatprep.subr.mxu0 %v267
  %2942 = vmatpush2.msra.mxu0 %v266
  %2943 = vmatprep.subr.mxu0 %v255
  %2944 = vmatpush2.msra.mxu0 %v254
  %2945 = vmatprep.subr.mxu0 %v243
  %2946 = vmatpush2.msra.mxu0 %v242
  %2947 = vmatprep.subr.mxu0 %v231
  %2948 = vmatpush2.msra.mxu0 %v230
  %2949 = vmatprep.subr.mxu0 %v219
  %2950 = vmatpush2.msra.mxu0 %v218
  %2951 = vmatprep.mubr.f32.mxu0 %v2724
  %2952 = vmatmul.mubr.f32.gmra.mxu0 %v2723
  %v2953 = vpop.f32.mrf.mxu0
  %v2954 = vadd.f32 0.0, %v2953
  %v2955 = vpop.f32.mrf.mxu0
  %v2956 = vadd.f32 0.0, %v2955
  %2957 = vdwg.mxu0
  %2958 = vmatprep.subr.mxu0 %v591
  %2959 = vmatpush1.msra.mxu0 %v590
  %2960 = vmatprep.subr.mxu0 %v579
  %2961 = vmatpush1.msra.mxu0 %v578
  %2962 = vmatprep.subr.mxu0 %v567
  %2963 = vmatpush1.msra.mxu0 %v566
  %2964 = vmatprep.subr.mxu0 %v555
  %2965 = vmatpush1.msra.mxu0 %v554
  %2966 = vmatprep.subr.mxu0 %v543
  %2967 = vmatpush1.msra.mxu0 %v542
  %2968 = vmatprep.subr.mxu0 %v531
  %2969 = vmatpush1.msra.mxu0 %v530
  %2970 = vmatprep.subr.mxu0 %v519
  %2971 = vmatpush1.msra.mxu0 %v518
  %2972 = vmatprep.subr.mxu0 %v507
  %2973 = vmatpush1.msra.mxu0 %v506
  %2974 = vmatprep.subr.mxu0 %v495
  %2975 = vmatpush1.msra.mxu0 %v494
  %2976 = vmatprep.subr.mxu0 %v483
  %2977 = vmatpush1.msra.mxu0 %v482
  %2978 = vmatprep.subr.mxu0 %v471
  %2979 = vmatpush1.msra.mxu0 %v470
  %2980 = vmatprep.subr.mxu0 %v459
  %2981 = vmatpush1.msra.mxu0 %v458
  %2982 = vmatprep.subr.mxu0 %v447
  %2983 = vmatpush1.msra.mxu0 %v446
  %2984 = vmatprep.subr.mxu0 %v435
  %2985 = vmatpush1.msra.mxu0 %v434
  %2986 = vmatprep.subr.mxu0 %v423
  %2987 = vmatpush1.msra.mxu0 %v422
  %2988 = vmatprep.subr.mxu0 %v411
  %2989 = vmatpush1.msra.mxu0 %v410
  %2990 = vmatprep.subr.mxu0 %v783
  %2991 = vmatpush2.msra.mxu0 %v782
  %2992 = vmatprep.subr.mxu0 %v771
  %2993 = vmatpush2.msra.mxu0 %v770
  %2994 = vmatprep.subr.mxu0 %v759
  %2995 = vmatpush2.msra.mxu0 %v758
  %2996 = vmatprep.subr.mxu0 %v747
  %2997 = vmatpush2.msra.mxu0 %v746
  %2998 = vmatprep.subr.mxu0 %v735
  %2999 = vmatpush2.msra.mxu0 %v734
  %3000 = vmatprep.subr.mxu0 %v723
  %3001 = vmatpush2.msra.mxu0 %v722
  %3002 = vmatprep.subr.mxu0 %v711
  %3003 = vmatpush2.msra.mxu0 %v710
  %3004 = vmatprep.subr.mxu0 %v699
  %3005 = vmatpush2.msra.mxu0 %v698
  %3006 = vmatprep.subr.mxu0 %v687
  %3007 = vmatpush2.msra.mxu0 %v686
  %3008 = vmatprep.subr.mxu0 %v675
  %3009 = vmatpush2.msra.mxu0 %v674
  %3010 = vmatprep.subr.mxu0 %v663
  %3011 = vmatpush2.msra.mxu0 %v662
  %3012 = vmatprep.subr.mxu0 %v651
  %3013 = vmatpush2.msra.mxu0 %v650
  %3014 = vmatprep.subr.mxu0 %v639
  %3015 = vmatpush2.msra.mxu0 %v638
  %3016 = vmatprep.subr.mxu0 %v627
  %3017 = vmatpush2.msra.mxu0 %v626
  %3018 = vmatprep.subr.mxu0 %v615
  %3019 = vmatpush2.msra.mxu0 %v614
  %3020 = vmatprep.subr.mxu0 %v603
  %3021 = vmatpush2.msra.mxu0 %v602
  %3022 = vmatprep.mubr.f32.mxu0 %v2726
  %3023 = vmatmul.mubr.f32.gmra.mxu0 %v2725
  %v3024 = vpop.f32.mrf.mxu0
  %v3025 = vadd.f32 %v2954, %v3024
  %v3026 = vpop.f32.mrf.mxu0
  %v3027 = vadd.f32 %v2956, %v3026
  %3028 = vdwg.mxu0
  %3029 = vmatprep.subr.mxu0 %v209
  %3030 = vmatpush1.msra.mxu0 %v208
  %3031 = vmatprep.subr.mxu0 %v197
  %3032 = vmatpush1.msra.mxu0 %v196
  %3033 = vmatprep.subr.mxu0 %v185
  %3034 = vmatpush1.msra.mxu0 %v184
  %3035 = vmatprep.subr.mxu0 %v173
  %3036 = vmatpush1.msra.mxu0 %v172
  %3037 = vmatprep.subr.mxu0 %v161
  %3038 = vmatpush1.msra.mxu0 %v160
  %3039 = vmatprep.subr.mxu0 %v149
  %3040 = vmatpush1.msra.mxu0 %v148
  %3041 = vmatprep.subr.mxu0 %v137
  %3042 = vmatpush1.msra.mxu0 %v136
  %3043 = vmatprep.subr.mxu0 %v125
  %3044 = vmatpush1.msra.mxu0 %v124
  %3045 = vmatprep.subr.mxu0 %v113
  %3046 = vmatpush1.msra.mxu0 %v112
  %3047 = vmatprep.subr.mxu0 %v101
  %3048 = vmatpush1.msra.mxu0 %v100
  %3049 = vmatprep.subr.mxu0 %v89
  %3050 = vmatpush1.msra.mxu0 %v88
  %3051 = vmatprep.subr.mxu0 %v77
  %3052 = vmatpush1.msra.mxu0 %v76
  %3053 = vmatprep.subr.mxu0 %v65
  %3054 = vmatpush1.msra.mxu0 %v64
  %3055 = vmatprep.subr.mxu0 %v53
  %3056 = vmatpush1.msra.mxu0 %v52
  %3057 = vmatprep.subr.mxu0 %v41
  %3058 = vmatpush1.msra.mxu0 %v40
  %3059 = vmatprep.subr.mxu0 %v29
  %3060 = vmatpush1.msra.mxu0 %v28
  %3061 = vmatprep.subr.mxu0 %v401
  %3062 = vmatpush2.msra.mxu0 %v400
  %3063 = vmatprep.subr.mxu0 %v389
  %3064 = vmatpush2.msra.mxu0 %v388
  %3065 = vmatprep.subr.mxu0 %v377
  %3066 = vmatpush2.msra.mxu0 %v376
  %3067 = vmatprep.subr.mxu0 %v365
  %3068 = vmatpush2.msra.mxu0 %v364
  %3069 = vmatprep.subr.mxu0 %v353
  %3070 = vmatpush2.msra.mxu0 %v352
  %3071 = vmatprep.subr.mxu0 %v341
  %3072 = vmatpush2.msra.mxu0 %v340
  %3073 = vmatprep.subr.mxu0 %v329
  %3074 = vmatpush2.msra.mxu0 %v328
  %3075 = vmatprep.subr.mxu0 %v317
  %3076 = vmatpush2.msra.mxu0 %v316
  %3077 = vmatprep.subr.mxu0 %v305
  %3078 = vmatpush2.msra.mxu0 %v304
  %3079 = vmatprep.subr.mxu0 %v293
  %3080 = vmatpush2.msra.mxu0 %v292
  %3081 = vmatprep.subr.mxu0 %v281
  %3082 = vmatpush2.msra.mxu0 %v280
  %3083 = vmatprep.subr.mxu0 %v269
  %3084 = vmatpush2.msra.mxu0 %v268
  %3085 = vmatprep.subr.mxu0 %v257
  %3086 = vmatpush2.msra.mxu0 %v256
  %3087 = vmatprep.subr.mxu0 %v245
  %3088 = vmatpush2.msra.mxu0 %v244
  %3089 = vmatprep.subr.mxu0 %v233
  %3090 = vmatpush2.msra.mxu0 %v232
  %3091 = vmatprep.subr.mxu0 %v221
  %3092 = vmatpush2.msra.mxu0 %v220
  %3093 = vmatprep.mubr.f32.mxu0 %v2724
  %3094 = vmatmul.mubr.f32.gmra.mxu0 %v2723
  %v3095 = vpop.f32.mrf.mxu0
  %v3096 = vadd.f32 0.0, %v3095
  %v3097 = vpop.f32.mrf.mxu0
  %v3098 = vadd.f32 0.0, %v3097
  %3099 = vdwg.mxu0
  %3100 = vmatprep.subr.mxu0 %v593
  %3101 = vmatpush1.msra.mxu0 %v592
  %3102 = vmatprep.subr.mxu0 %v581
  %3103 = vmatpush1.msra.mxu0 %v580
  %3104 = vmatprep.subr.mxu0 %v569
  %3105 = vmatpush1.msra.mxu0 %v568
  %3106 = vmatprep.subr.mxu0 %v557
  %3107 = vmatpush1.msra.mxu0 %v556
  %3108 = vmatprep.subr.mxu0 %v545
  %3109 = vmatpush1.msra.mxu0 %v544
  %3110 = vmatprep.subr.mxu0 %v533
  %3111 = vmatpush1.msra.mxu0 %v532
  %3112 = vmatprep.subr.mxu0 %v521
  %3113 = vmatpush1.msra.mxu0 %v520
  %3114 = vmatprep.subr.mxu0 %v509
  %3115 = vmatpush1.msra.mxu0 %v508
  %3116 = vmatprep.subr.mxu0 %v497
  %3117 = vmatpush1.msra.mxu0 %v496
  %3118 = vmatprep.subr.mxu0 %v485
  %3119 = vmatpush1.msra.mxu0 %v484
  %3120 = vmatprep.subr.mxu0 %v473
  %3121 = vmatpush1.msra.mxu0 %v472
  %3122 = vmatprep.subr.mxu0 %v461
  %3123 = vmatpush1.msra.mxu0 %v460
  %3124 = vmatprep.subr.mxu0 %v449
  %3125 = vmatpush1.msra.mxu0 %v448
  %3126 = vmatprep.subr.mxu0 %v437
  %3127 = vmatpush1.msra.mxu0 %v436
  %3128 = vmatprep.subr.mxu0 %v425
  %3129 = vmatpush1.msra.mxu0 %v424
  %3130 = vmatprep.subr.mxu0 %v413
  %3131 = vmatpush1.msra.mxu0 %v412
  %3132 = vmatprep.subr.mxu0 %v785
  %3133 = vmatpush2.msra.mxu0 %v784
  %3134 = vmatprep.subr.mxu0 %v773
  %3135 = vmatpush2.msra.mxu0 %v772
  %3136 = vmatprep.subr.mxu0 %v761
  %3137 = vmatpush2.msra.mxu0 %v760
  %3138 = vmatprep.subr.mxu0 %v749
  %3139 = vmatpush2.msra.mxu0 %v748
  %3140 = vmatprep.subr.mxu0 %v737
  %3141 = vmatpush2.msra.mxu0 %v736
  %3142 = vmatprep.subr.mxu0 %v725
  %3143 = vmatpush2.msra.mxu0 %v724
  %3144 = vmatprep.subr.mxu0 %v713
  %3145 = vmatpush2.msra.mxu0 %v712
  %3146 = vmatprep.subr.mxu0 %v701
  %3147 = vmatpush2.msra.mxu0 %v700
  %3148 = vmatprep.subr.mxu0 %v689
  %3149 = vmatpush2.msra.mxu0 %v688
  %3150 = vmatprep.subr.mxu0 %v677
  %3151 = vmatpush2.msra.mxu0 %v676
  %3152 = vmatprep.subr.mxu0 %v665
  %3153 = vmatpush2.msra.mxu0 %v664
  %3154 = vmatprep.subr.mxu0 %v653
  %3155 = vmatpush2.msra.mxu0 %v652
  %3156 = vmatprep.subr.mxu0 %v641
  %3157 = vmatpush2.msra.mxu0 %v640
  %3158 = vmatprep.subr.mxu0 %v629
  %3159 = vmatpush2.msra.mxu0 %v628
  %3160 = vmatprep.subr.mxu0 %v617
  %3161 = vmatpush2.msra.mxu0 %v616
  %3162 = vmatprep.subr.mxu0 %v605
  %3163 = vmatpush2.msra.mxu0 %v604
  %3164 = vmatprep.mubr.f32.mxu0 %v2726
  %3165 = vmatmul.mubr.f32.gmra.mxu0 %v2725
  %v3166 = vpop.f32.mrf.mxu0
  %v3167 = vadd.f32 %v3096, %v3166
  %v3168 = vpop.f32.mrf.mxu0
  %v3169 = vadd.f32 %v3098, %v3168
  %3170 = vdwg.mxu0
  %3171 = vmatprep.subr.mxu0 %v211
  %3172 = vmatpush1.msra.mxu0 %v210
  %3173 = vmatprep.subr.mxu0 %v199
  %3174 = vmatpush1.msra.mxu0 %v198
  %3175 = vmatprep.subr.mxu0 %v187
  %3176 = vmatpush1.msra.mxu0 %v186
  %3177 = vmatprep.subr.mxu0 %v175
  %3178 = vmatpush1.msra.mxu0 %v174
  %3179 = vmatprep.subr.mxu0 %v163
  %3180 = vmatpush1.msra.mxu0 %v162
  %3181 = vmatprep.subr.mxu0 %v151
  %3182 = vmatpush1.msra.mxu0 %v150
  %3183 = vmatprep.subr.mxu0 %v139
  %3184 = vmatpush1.msra.mxu0 %v138
  %3185 = vmatprep.subr.mxu0 %v127
  %3186 = vmatpush1.msra.mxu0 %v126
  %3187 = vmatprep.subr.mxu0 %v115
  %3188 = vmatpush1.msra.mxu0 %v114
  %3189 = vmatprep.subr.mxu0 %v103
  %3190 = vmatpush1.msra.mxu0 %v102
  %3191 = vmatprep.subr.mxu0 %v91
  %3192 = vmatpush1.msra.mxu0 %v90
  %3193 = vmatprep.subr.mxu0 %v79
  %3194 = vmatpush1.msra.mxu0 %v78
  %3195 = vmatprep.subr.mxu0 %v67
  %3196 = vmatpush1.msra.mxu0 %v66
  %3197 = vmatprep.subr.mxu0 %v55
  %3198 = vmatpush1.msra.mxu0 %v54
  %3199 = vmatprep.subr.mxu0 %v43
  %3200 = vmatpush1.msra.mxu0 %v42
  %3201 = vmatprep.subr.mxu0 %v31
  %3202 = vmatpush1.msra.mxu0 %v30
  %3203 = vmatprep.subr.mxu0 %v403
  %3204 = vmatpush2.msra.mxu0 %v402
  %3205 = vmatprep.subr.mxu0 %v391
  %3206 = vmatpush2.msra.mxu0 %v390
  %3207 = vmatprep.subr.mxu0 %v379
  %3208 = vmatpush2.msra.mxu0 %v378
  %3209 = vmatprep.subr.mxu0 %v367
  %3210 = vmatpush2.msra.mxu0 %v366
  %3211 = vmatprep.subr.mxu0 %v355
  %3212 = vmatpush2.msra.mxu0 %v354
  %3213 = vmatprep.subr.mxu0 %v343
  %3214 = vmatpush2.msra.mxu0 %v342
  %3215 = vmatprep.subr.mxu0 %v331
  %3216 = vmatpush2.msra.mxu0 %v330
  %3217 = vmatprep.subr.mxu0 %v319
  %3218 = vmatpush2.msra.mxu0 %v318
  %3219 = vmatprep.subr.mxu0 %v307
  %3220 = vmatpush2.msra.mxu0 %v306
  %3221 = vmatprep.subr.mxu0 %v295
  %3222 = vmatpush2.msra.mxu0 %v294
  %3223 = vmatprep.subr.mxu0 %v283
  %3224 = vmatpush2.msra.mxu0 %v282
  %3225 = vmatprep.subr.mxu0 %v271
  %3226 = vmatpush2.msra.mxu0 %v270
  %3227 = vmatprep.subr.mxu0 %v259
  %3228 = vmatpush2.msra.mxu0 %v258
  %3229 = vmatprep.subr.mxu0 %v247
  %3230 = vmatpush2.msra.mxu0 %v246
  %3231 = vmatprep.subr.mxu0 %v235
  %3232 = vmatpush2.msra.mxu0 %v234
  %3233 = vmatprep.subr.mxu0 %v223
  %3234 = vmatpush2.msra.mxu0 %v222
  %3235 = vmatprep.mubr.f32.mxu0 %v2724
  %3236 = vmatmul.mubr.f32.gmra.mxu0 %v2723
  %v3237 = vpop.f32.mrf.mxu0
  %v3238 = vadd.f32 0.0, %v3237
  %v3239 = vpop.f32.mrf.mxu0
  %v3240 = vadd.f32 0.0, %v3239
  %3241 = vdwg.mxu0
  %3242 = vmatprep.subr.mxu0 %v595
  %3243 = vmatpush1.msra.mxu0 %v594
  %3244 = vmatprep.subr.mxu0 %v583
  %3245 = vmatpush1.msra.mxu0 %v582
  %3246 = vmatprep.subr.mxu0 %v571
  %3247 = vmatpush1.msra.mxu0 %v570
  %3248 = vmatprep.subr.mxu0 %v559
  %3249 = vmatpush1.msra.mxu0 %v558
  %3250 = vmatprep.subr.mxu0 %v547
  %3251 = vmatpush1.msra.mxu0 %v546
  %3252 = vmatprep.subr.mxu0 %v535
  %3253 = vmatpush1.msra.mxu0 %v534
  %3254 = vmatprep.subr.mxu0 %v523
  %3255 = vmatpush1.msra.mxu0 %v522
  %3256 = vmatprep.subr.mxu0 %v511
  %3257 = vmatpush1.msra.mxu0 %v510
  %3258 = vmatprep.subr.mxu0 %v499
  %3259 = vmatpush1.msra.mxu0 %v498
  %3260 = vmatprep.subr.mxu0 %v487
  %3261 = vmatpush1.msra.mxu0 %v486
  %3262 = vmatprep.subr.mxu0 %v475
  %3263 = vmatpush1.msra.mxu0 %v474
  %3264 = vmatprep.subr.mxu0 %v463
  %3265 = vmatpush1.msra.mxu0 %v462
  %3266 = vmatprep.subr.mxu0 %v451
  %3267 = vmatpush1.msra.mxu0 %v450
  %3268 = vmatprep.subr.mxu0 %v439
  %3269 = vmatpush1.msra.mxu0 %v438
  %3270 = vmatprep.subr.mxu0 %v427
  %3271 = vmatpush1.msra.mxu0 %v426
  %3272 = vmatprep.subr.mxu0 %v415
  %3273 = vmatpush1.msra.mxu0 %v414
  %3274 = vmatprep.subr.mxu0 %v787
  %3275 = vmatpush2.msra.mxu0 %v786
  %3276 = vmatprep.subr.mxu0 %v775
  %3277 = vmatpush2.msra.mxu0 %v774
  %3278 = vmatprep.subr.mxu0 %v763
  %3279 = vmatpush2.msra.mxu0 %v762
  %3280 = vmatprep.subr.mxu0 %v751
  %3281 = vmatpush2.msra.mxu0 %v750
  %3282 = vmatprep.subr.mxu0 %v739
  %3283 = vmatpush2.msra.mxu0 %v738
  %3284 = vmatprep.subr.mxu0 %v727
  %3285 = vmatpush2.msra.mxu0 %v726
  %3286 = vmatprep.subr.mxu0 %v715
  %3287 = vmatpush2.msra.mxu0 %v714
  %3288 = vmatprep.subr.mxu0 %v703
  %3289 = vmatpush2.msra.mxu0 %v702
  %3290 = vmatprep.subr.mxu0 %v691
  %3291 = vmatpush2.msra.mxu0 %v690
  %3292 = vmatprep.subr.mxu0 %v679
  %3293 = vmatpush2.msra.mxu0 %v678
  %3294 = vmatprep.subr.mxu0 %v667
  %3295 = vmatpush2.msra.mxu0 %v666
  %3296 = vmatprep.subr.mxu0 %v655
  %3297 = vmatpush2.msra.mxu0 %v654
  %3298 = vmatprep.subr.mxu0 %v643
  %3299 = vmatpush2.msra.mxu0 %v642
  %3300 = vmatprep.subr.mxu0 %v631
  %3301 = vmatpush2.msra.mxu0 %v630
  %3302 = vmatprep.subr.mxu0 %v619
  %3303 = vmatpush2.msra.mxu0 %v618
  %3304 = vmatprep.subr.mxu0 %v607
  %3305 = vmatpush2.msra.mxu0 %v606
  %3306 = vmatprep.mubr.f32.mxu0 %v2726
  %3307 = vmatmul.mubr.f32.gmra.mxu0 %v2725
  %v3308 = vpop.f32.mrf.mxu0
  %v3309 = vadd.f32 %v3238, %v3308
  %v3310 = vpop.f32.mrf.mxu0
  %v3311 = vadd.f32 %v3240, %v3310
  %3312 = vdwg.mxu0
  %3313 = vmatprep.subr.mxu0 %v213
  %3314 = vmatpush1.msra.mxu0 %v212
  %3315 = vmatprep.subr.mxu0 %v201
  %3316 = vmatpush1.msra.mxu0 %v200
  %3317 = vmatprep.subr.mxu0 %v189
  %3318 = vmatpush1.msra.mxu0 %v188
  %3319 = vmatprep.subr.mxu0 %v177
  %3320 = vmatpush1.msra.mxu0 %v176
  %3321 = vmatprep.subr.mxu0 %v165
  %3322 = vmatpush1.msra.mxu0 %v164
  %3323 = vmatprep.subr.mxu0 %v153
  %3324 = vmatpush1.msra.mxu0 %v152
  %3325 = vmatprep.subr.mxu0 %v141
  %3326 = vmatpush1.msra.mxu0 %v140
  %3327 = vmatprep.subr.mxu0 %v129
  %3328 = vmatpush1.msra.mxu0 %v128
  %3329 = vmatprep.subr.mxu0 %v117
  %3330 = vmatpush1.msra.mxu0 %v116
  %3331 = vmatprep.subr.mxu0 %v105
  %3332 = vmatpush1.msra.mxu0 %v104
  %3333 = vmatprep.subr.mxu0 %v93
  %3334 = vmatpush1.msra.mxu0 %v92
  %3335 = vmatprep.subr.mxu0 %v81
  %3336 = vmatpush1.msra.mxu0 %v80
  %3337 = vmatprep.subr.mxu0 %v69
  %3338 = vmatpush1.msra.mxu0 %v68
  %3339 = vmatprep.subr.mxu0 %v57
  %3340 = vmatpush1.msra.mxu0 %v56
  %3341 = vmatprep.subr.mxu0 %v45
  %3342 = vmatpush1.msra.mxu0 %v44
  %3343 = vmatprep.subr.mxu0 %v33
  %3344 = vmatpush1.msra.mxu0 %v32
  %3345 = vmatprep.subr.mxu0 %v405
  %3346 = vmatpush2.msra.mxu0 %v404
  %3347 = vmatprep.subr.mxu0 %v393
  %3348 = vmatpush2.msra.mxu0 %v392
  %3349 = vmatprep.subr.mxu0 %v381
  %3350 = vmatpush2.msra.mxu0 %v380
  %3351 = vmatprep.subr.mxu0 %v369
  %3352 = vmatpush2.msra.mxu0 %v368
  %3353 = vmatprep.subr.mxu0 %v357
  %3354 = vmatpush2.msra.mxu0 %v356
  %3355 = vmatprep.subr.mxu0 %v345
  %3356 = vmatpush2.msra.mxu0 %v344
  %3357 = vmatprep.subr.mxu0 %v333
  %3358 = vmatpush2.msra.mxu0 %v332
  %3359 = vmatprep.subr.mxu0 %v321
  %3360 = vmatpush2.msra.mxu0 %v320
  %3361 = vmatprep.subr.mxu0 %v309
  %3362 = vmatpush2.msra.mxu0 %v308
  %3363 = vmatprep.subr.mxu0 %v297
  %3364 = vmatpush2.msra.mxu0 %v296
  %3365 = vmatprep.subr.mxu0 %v285
  %3366 = vmatpush2.msra.mxu0 %v284
  %3367 = vmatprep.subr.mxu0 %v273
  %3368 = vmatpush2.msra.mxu0 %v272
  %3369 = vmatprep.subr.mxu0 %v261
  %3370 = vmatpush2.msra.mxu0 %v260
  %3371 = vmatprep.subr.mxu0 %v249
  %3372 = vmatpush2.msra.mxu0 %v248
  %3373 = vmatprep.subr.mxu0 %v237
  %3374 = vmatpush2.msra.mxu0 %v236
  %3375 = vmatprep.subr.mxu0 %v225
  %3376 = vmatpush2.msra.mxu0 %v224
  %3377 = vmatprep.mubr.f32.mxu0 %v2724
  %3378 = vmatmul.mubr.f32.gmra.mxu0 %v2723
  %v3379 = vpop.f32.mrf.mxu0
  %v3380 = vadd.f32 0.0, %v3379
  %v3381 = vpop.f32.mrf.mxu0
  %v3382 = vadd.f32 0.0, %v3381
  %3383 = vdwg.mxu0
  %3384 = vmatprep.subr.mxu0 %v597
  %3385 = vmatpush1.msra.mxu0 %v596
  %3386 = vmatprep.subr.mxu0 %v585
  %3387 = vmatpush1.msra.mxu0 %v584
  %3388 = vmatprep.subr.mxu0 %v573
  %3389 = vmatpush1.msra.mxu0 %v572
  %3390 = vmatprep.subr.mxu0 %v561
  %3391 = vmatpush1.msra.mxu0 %v560
  %3392 = vmatprep.subr.mxu0 %v549
  %3393 = vmatpush1.msra.mxu0 %v548
  %3394 = vmatprep.subr.mxu0 %v537
  %3395 = vmatpush1.msra.mxu0 %v536
  %3396 = vmatprep.subr.mxu0 %v525
  %3397 = vmatpush1.msra.mxu0 %v524
  %3398 = vmatprep.subr.mxu0 %v513
  %3399 = vmatpush1.msra.mxu0 %v512
  %3400 = vmatprep.subr.mxu0 %v501
  %3401 = vmatpush1.msra.mxu0 %v500
  %3402 = vmatprep.subr.mxu0 %v489
  %3403 = vmatpush1.msra.mxu0 %v488
  %3404 = vmatprep.subr.mxu0 %v477
  %3405 = vmatpush1.msra.mxu0 %v476
  %3406 = vmatprep.subr.mxu0 %v465
  %3407 = vmatpush1.msra.mxu0 %v464
  %3408 = vmatprep.subr.mxu0 %v453
  %3409 = vmatpush1.msra.mxu0 %v452
  %3410 = vmatprep.subr.mxu0 %v441
  %3411 = vmatpush1.msra.mxu0 %v440
  %3412 = vmatprep.subr.mxu0 %v429
  %3413 = vmatpush1.msra.mxu0 %v428
  %3414 = vmatprep.subr.mxu0 %v417
  %3415 = vmatpush1.msra.mxu0 %v416
  %3416 = vmatprep.subr.mxu0 %v789
  %3417 = vmatpush2.msra.mxu0 %v788
  %3418 = vmatprep.subr.mxu0 %v777
  %3419 = vmatpush2.msra.mxu0 %v776
  %3420 = vmatprep.subr.mxu0 %v765
  %3421 = vmatpush2.msra.mxu0 %v764
  %3422 = vmatprep.subr.mxu0 %v753
  %3423 = vmatpush2.msra.mxu0 %v752
  %3424 = vmatprep.subr.mxu0 %v741
  %3425 = vmatpush2.msra.mxu0 %v740
  %3426 = vmatprep.subr.mxu0 %v729
  %3427 = vmatpush2.msra.mxu0 %v728
  %3428 = vmatprep.subr.mxu0 %v717
  %3429 = vmatpush2.msra.mxu0 %v716
  %3430 = vmatprep.subr.mxu0 %v705
  %3431 = vmatpush2.msra.mxu0 %v704
  %3432 = vmatprep.subr.mxu0 %v693
  %3433 = vmatpush2.msra.mxu0 %v692
  %3434 = vmatprep.subr.mxu0 %v681
  %3435 = vmatpush2.msra.mxu0 %v680
  %3436 = vmatprep.subr.mxu0 %v669
  %3437 = vmatpush2.msra.mxu0 %v668
  %3438 = vmatprep.subr.mxu0 %v657
  %3439 = vmatpush2.msra.mxu0 %v656
  %3440 = vmatprep.subr.mxu0 %v645
  %3441 = vmatpush2.msra.mxu0 %v644
  %3442 = vmatprep.subr.mxu0 %v633
  %3443 = vmatpush2.msra.mxu0 %v632
  %3444 = vmatprep.subr.mxu0 %v621
  %3445 = vmatpush2.msra.mxu0 %v620
  %3446 = vmatprep.subr.mxu0 %v609
  %3447 = vmatpush2.msra.mxu0 %v608
  %3448 = vmatprep.mubr.f32.mxu0 %v2726
  %3449 = vmatmul.mubr.f32.gmra.mxu0 %v2725
  %v3450 = vpop.f32.mrf.mxu0
  %v3451 = vadd.f32 %v3380, %v3450
  %v3452 = vpop.f32.mrf.mxu0
  %v3453 = vadd.f32 %v3382, %v3452
  %3454 = vdwg.mxu0
  %3455 = vmatprep.subr.mxu0 %v215
  %3456 = vmatpush1.msra.mxu0 %v214
  %3457 = vmatprep.subr.mxu0 %v203
  %3458 = vmatpush1.msra.mxu0 %v202
  %3459 = vmatprep.subr.mxu0 %v191
  %3460 = vmatpush1.msra.mxu0 %v190
  %3461 = vmatprep.subr.mxu0 %v179
  %3462 = vmatpush1.msra.mxu0 %v178
  %3463 = vmatprep.subr.mxu0 %v167
  %3464 = vmatpush1.msra.mxu0 %v166
  %3465 = vmatprep.subr.mxu0 %v155
  %3466 = vmatpush1.msra.mxu0 %v154
  %3467 = vmatprep.subr.mxu0 %v143
  %3468 = vmatpush1.msra.mxu0 %v142
  %3469 = vmatprep.subr.mxu0 %v131
  %3470 = vmatpush1.msra.mxu0 %v130
  %3471 = vmatprep.subr.mxu0 %v119
  %3472 = vmatpush1.msra.mxu0 %v118
  %3473 = vmatprep.subr.mxu0 %v107
  %3474 = vmatpush1.msra.mxu0 %v106
  %3475 = vmatprep.subr.mxu0 %v95
  %3476 = vmatpush1.msra.mxu0 %v94
  %3477 = vmatprep.subr.mxu0 %v83
  %3478 = vmatpush1.msra.mxu0 %v82
  %3479 = vmatprep.subr.mxu0 %v71
  %3480 = vmatpush1.msra.mxu0 %v70
  %3481 = vmatprep.subr.mxu0 %v59
  %3482 = vmatpush1.msra.mxu0 %v58
  %3483 = vmatprep.subr.mxu0 %v47
  %3484 = vmatpush1.msra.mxu0 %v46
  %3485 = vmatprep.subr.mxu0 %v35
  %3486 = vmatpush1.msra.mxu0 %v34
  %3487 = vmatprep.subr.mxu0 %v407
  %3488 = vmatpush2.msra.mxu0 %v406
  %3489 = vmatprep.subr.mxu0 %v395
  %3490 = vmatpush2.msra.mxu0 %v394
  %3491 = vmatprep.subr.mxu0 %v383
  %3492 = vmatpush2.msra.mxu0 %v382
  %3493 = vmatprep.subr.mxu0 %v371
  %3494 = vmatpush2.msra.mxu0 %v370
  %3495 = vmatprep.subr.mxu0 %v359
  %3496 = vmatpush2.msra.mxu0 %v358
  %3497 = vmatprep.subr.mxu0 %v347
  %3498 = vmatpush2.msra.mxu0 %v346
  %3499 = vmatprep.subr.mxu0 %v335
  %3500 = vmatpush2.msra.mxu0 %v334
  %3501 = vmatprep.subr.mxu0 %v323
  %3502 = vmatpush2.msra.mxu0 %v322
  %3503 = vmatprep.subr.mxu0 %v311
  %3504 = vmatpush2.msra.mxu0 %v310
  %3505 = vmatprep.subr.mxu0 %v299
  %3506 = vmatpush2.msra.mxu0 %v298
  %3507 = vmatprep.subr.mxu0 %v287
  %3508 = vmatpush2.msra.mxu0 %v286
  %3509 = vmatprep.subr.mxu0 %v275
  %3510 = vmatpush2.msra.mxu0 %v274
  %3511 = vmatprep.subr.mxu0 %v263
  %3512 = vmatpush2.msra.mxu0 %v262
  %3513 = vmatprep.subr.mxu0 %v251
  %3514 = vmatpush2.msra.mxu0 %v250
  %3515 = vmatprep.subr.mxu0 %v239
  %3516 = vmatpush2.msra.mxu0 %v238
  %3517 = vmatprep.subr.mxu0 %v227
  %3518 = vmatpush2.msra.mxu0 %v226
  %3519 = vmatprep.mubr.f32.mxu0 %v2724
  %3520 = vmatmul.mubr.f32.gmra.mxu0 %v2723
  %v3521 = vpop.f32.mrf.mxu0
  %v3522 = vadd.f32 0.0, %v3521
  %v3523 = vpop.f32.mrf.mxu0
  %v3524 = vadd.f32 0.0, %v3523
  %3525 = vdwg.mxu0
  %3526 = vmatprep.subr.mxu0 %v599
  %3527 = vmatpush1.msra.mxu0 %v598
  %3528 = vmatprep.subr.mxu0 %v587
  %3529 = vmatpush1.msra.mxu0 %v586
  %3530 = vmatprep.subr.mxu0 %v575
  %3531 = vmatpush1.msra.mxu0 %v574
  %3532 = vmatprep.subr.mxu0 %v563
  %3533 = vmatpush1.msra.mxu0 %v562
  %3534 = vmatprep.subr.mxu0 %v551
  %3535 = vmatpush1.msra.mxu0 %v550
  %3536 = vmatprep.subr.mxu0 %v539
  %3537 = vmatpush1.msra.mxu0 %v538
  %3538 = vmatprep.subr.mxu0 %v527
  %3539 = vmatpush1.msra.mxu0 %v526
  %3540 = vmatprep.subr.mxu0 %v515
  %3541 = vmatpush1.msra.mxu0 %v514
  %3542 = vmatprep.subr.mxu0 %v503
  %3543 = vmatpush1.msra.mxu0 %v502
  %3544 = vmatprep.subr.mxu0 %v491
  %3545 = vmatpush1.msra.mxu0 %v490
  %3546 = vmatprep.subr.mxu0 %v479
  %3547 = vmatpush1.msra.mxu0 %v478
  %3548 = vmatprep.subr.mxu0 %v467
  %3549 = vmatpush1.msra.mxu0 %v466
  %3550 = vmatprep.subr.mxu0 %v455
  %3551 = vmatpush1.msra.mxu0 %v454
  %3552 = vmatprep.subr.mxu0 %v443
  %3553 = vmatpush1.msra.mxu0 %v442
  %3554 = vmatprep.subr.mxu0 %v431
  %3555 = vmatpush1.msra.mxu0 %v430
  %3556 = vmatprep.subr.mxu0 %v419
  %3557 = vmatpush1.msra.mxu0 %v418
  %3558 = vmatprep.subr.mxu0 %v791
  %3559 = vmatpush2.msra.mxu0 %v790
  %3560 = vmatprep.subr.mxu0 %v779
  %3561 = vmatpush2.msra.mxu0 %v778
  %3562 = vmatprep.subr.mxu0 %v767
  %3563 = vmatpush2.msra.mxu0 %v766
  %3564 = vmatprep.subr.mxu0 %v755
  %3565 = vmatpush2.msra.mxu0 %v754
  %3566 = vmatprep.subr.mxu0 %v743
  %3567 = vmatpush2.msra.mxu0 %v742
  %3568 = vmatprep.subr.mxu0 %v731
  %3569 = vmatpush2.msra.mxu0 %v730
  %3570 = vmatprep.subr.mxu0 %v719
  %3571 = vmatpush2.msra.mxu0 %v718
  %3572 = vmatprep.subr.mxu0 %v707
  %3573 = vmatpush2.msra.mxu0 %v706
  %3574 = vmatprep.subr.mxu0 %v695
  %3575 = vmatpush2.msra.mxu0 %v694
  %3576 = vmatprep.subr.mxu0 %v683
  %3577 = vmatpush2.msra.mxu0 %v682
  %3578 = vmatprep.subr.mxu0 %v671
  %3579 = vmatpush2.msra.mxu0 %v670
  %3580 = vmatprep.subr.mxu0 %v659
  %3581 = vmatpush2.msra.mxu0 %v658
  %3582 = vmatprep.subr.mxu0 %v647
  %3583 = vmatpush2.msra.mxu0 %v646
  %3584 = vmatprep.subr.mxu0 %v635
  %3585 = vmatpush2.msra.mxu0 %v634
  %3586 = vmatprep.subr.mxu0 %v623
  %3587 = vmatpush2.msra.mxu0 %v622
  %3588 = vmatprep.subr.mxu0 %v611
  %3589 = vmatpush2.msra.mxu0 %v610
  %3590 = vmatprep.mubr.f32.mxu0 %v2726
  %3591 = vmatmul.mubr.f32.gmra.mxu0 %v2725
  %v3592 = vpop.f32.mrf.mxu0
  %v3593 = vadd.f32 %v3522, %v3592
  %v3594 = vpop.f32.mrf.mxu0
  %v3595 = vadd.f32 %v3524, %v3594
  %3596 = vdwg.mxu0
  %v3597 = vadd.f32 %v2733, %v2883
  %v3598 = vadd.f32 %v2734, %v2885
  %v3599 = vadd.f32 %v2735, %v3025
  %v3600 = vadd.f32 %v2736, %v3027
  %v3601 = vxor.u32 %v3597, 2147483648
  %v3602 = vxor.u32 %v3598, 2147483648
  %v3603 = vxor.u32 %v3599, 2147483648
  %v3604 = vxor.u32 %v3600, 2147483648
  %v3605 = vmul.f32 %v3601, 1.442695
  %v3606 = vpow.pop %v3605
  %v3607 = vmul.f32 %v3602, 1.442695
  %v3608 = vpow.pop %v3607
  %v3609 = vmul.f32 %v3603, 1.442695
  %v3610 = vpow.pop %v3609
  %v3611 = vmul.f32 %v3604, 1.442695
  %v3612 = vpow.pop %v3611
  %v3613 = vadd.f32 %v3606, 1.0
  %v3614 = vadd.f32 %v3608, 1.0
  %v3615 = vadd.f32 %v3610, 1.0
  %v3616 = vadd.f32 %v3612, 1.0
  %v3617 = vrcp.pop %v3613
  %v3618 = vmul.f32 1.0, %v3617
  %v3619 = vrcp.pop %v3614
  %v3620 = vmul.f32 1.0, %v3619
  %v3621 = vrcp.pop %v3615
  %v3622 = vmul.f32 1.0, %v3621
  %v3623 = vrcp.pop %v3616
  %v3624 = vmul.f32 1.0, %v3623
  %v3625 = vadd.f32 %v2737, %v3167
  %v3626 = vadd.f32 %v2738, %v3169
  %v3627 = vadd.f32 %v2739, %v3309
  %v3628 = vadd.f32 %v2740, %v3311
  %v3629 = vxor.u32 %v3625, 2147483648
  %v3630 = vxor.u32 %v3626, 2147483648
  %v3631 = vxor.u32 %v3627, 2147483648
  %v3632 = vxor.u32 %v3628, 2147483648
  %v3633 = vmul.f32 %v3629, 1.442695
  %v3634 = vpow.pop %v3633
  %v3635 = vmul.f32 %v3630, 1.442695
  %v3636 = vpow.pop %v3635
  %v3637 = vmul.f32 %v3631, 1.442695
  %v3638 = vpow.pop %v3637
  %v3639 = vmul.f32 %v3632, 1.442695
  %v3640 = vpow.pop %v3639
  %v3641 = vadd.f32 %v3634, 1.0
  %v3642 = vadd.f32 %v3636, 1.0
  %v3643 = vadd.f32 %v3638, 1.0
  %v3644 = vadd.f32 %v3640, 1.0
  %v3645 = vrcp.pop %v3641
  %v3646 = vmul.f32 1.0, %v3645
  %v3647 = vrcp.pop %v3642
  %v3648 = vmul.f32 1.0, %v3647
  %v3649 = vrcp.pop %v3643
  %v3650 = vmul.f32 1.0, %v3649
  %v3651 = vrcp.pop %v3644
  %v3652 = vmul.f32 1.0, %v3651
  %v3653 = vadd.f32 %v3451, %v1721
  %v3654 = vadd.f32 %v3453, %v1725
  %v3655 = vadd.f32 %v3593, %v1729
  %v3656 = vadd.f32 %v3595, %v1733
  %v3657 = vmul.f32 %v3618, %v3653
  %v3658 = vmul.f32 %v3620, %v3654
  %v3659 = vmul.f32 %v3622, %v3655
  %v3660 = vmul.f32 %v3624, %v3656
  %v3661 = vadd.f32 %v2741, %v3657
  %v3662 = vadd.f32 %v2742, %v3658
  %v3663 = vadd.f32 %v2743, %v3659
  %v3664 = vadd.f32 %v2744, %v3660
  %v3665 = vtanh.pop %v3661
  %v3666 = vtanh.pop %v3662
  %v3667 = vtanh.pop %v3663
  %v3668 = vtanh.pop %v3664
  %v3669 = vsub.f32 1.0, %v3646
  %v3670 = vsub.f32 1.0, %v3648
  %v3671 = vsub.f32 1.0, %v3650
  %v3672 = vsub.f32 1.0, %v3652
  %v3673 = vmul.f32 %v3669, %v3665
  %v3674 = vmul.f32 %v3670, %v3666
  %v3675 = vmul.f32 %v3671, %v3667
  %v3676 = vmul.f32 %v3672, %v3668
  %v3677 = vmul.f32 %v3646, %v2723
  %v3678 = vmul.f32 %v3648, %v2724
  %v3679 = vmul.f32 %v3650, %v2725
  %v3680 = vmul.f32 %v3652, %v2726
  %v3681 = vadd.f32 %v3673, %v3677
  %v3682 = vadd.f32 %v3674, %v3678
  %v3683 = vadd.f32 %v3675, %v3679
  %v3684 = vadd.f32 %v3676, %v3680
  %s3685 = scalar_lea.vmem %s3, 64
  %3686 = vst [vmem:[%s3685] sm:$0xff] %v3681
  %3687 = vst [vmem:[%s3685 + $0x8] sm:$0xff] %v3682
  %3688 = vst [vmem:[%s3685 + $0x10] sm:$0xff] %v3683
  %3689 = vst [vmem:[%s3685 + $0x18] sm:$0xff] %v3684
  %s3690 = scalar_lea.vmem %s0, 288
  %v3691 = vld [vmem:[%s3690] sm:$0xff]
  %v3692 = vld [vmem:[%s3690 + $0x8] sm:$0xff]
  %v3693 = vld [vmem:[%s3690 + $0x10] sm:$0xff]
  %v3694 = vld [vmem:[%s3690 + $0x18] sm:$0xff]
  %v3695 = vld [vmem:[%s3690 + $0x20] sm:$0xff]
  %v3696 = vld [vmem:[%s3690 + $0x28] sm:$0xff]
  %v3697 = vld [vmem:[%s3690 + $0x30] sm:$0xff]
  %v3698 = vld [vmem:[%s3690 + $0x38] sm:$0xff]
  %v3699 = vld [vmem:[%s3690 + $0x40] sm:$0xff]
  %v3700 = vld [vmem:[%s3690 + $0x48] sm:$0xff]
  %v3701 = vld [vmem:[%s3690 + $0x50] sm:$0xff]
  %v3702 = vld [vmem:[%s3690 + $0x58] sm:$0xff]
  %3703 = vmatprep.subr.mxu0 %v205
  %3704 = vmatpush1.msra.mxu0 %v204
  %3705 = vmatprep.subr.mxu0 %v193
  %3706 = vmatpush1.msra.mxu0 %v192
  %3707 = vmatprep.subr.mxu0 %v181
  %3708 = vmatpush1.msra.mxu0 %v180
  %3709 = vmatprep.subr.mxu0 %v169
  %3710 = vmatpush1.msra.mxu0 %v168
  %3711 = vmatprep.subr.mxu0 %v157
  %3712 = vmatpush1.msra.mxu0 %v156
  %3713 = vmatprep.subr.mxu0 %v145
  %3714 = vmatpush1.msra.mxu0 %v144
  %3715 = vmatprep.subr.mxu0 %v133
  %3716 = vmatpush1.msra.mxu0 %v132
  %3717 = vmatprep.subr.mxu0 %v121
  %3718 = vmatpush1.msra.mxu0 %v120
  %3719 = vmatprep.subr.mxu0 %v109
  %3720 = vmatpush1.msra.mxu0 %v108
  %3721 = vmatprep.subr.mxu0 %v97
  %3722 = vmatpush1.msra.mxu0 %v96
  %3723 = vmatprep.subr.mxu0 %v85
  %3724 = vmatpush1.msra.mxu0 %v84
  %3725 = vmatprep.subr.mxu0 %v73
  %3726 = vmatpush1.msra.mxu0 %v72
  %3727 = vmatprep.subr.mxu0 %v61
  %3728 = vmatpush1.msra.mxu0 %v60
  %3729 = vmatprep.subr.mxu0 %v49
  %3730 = vmatpush1.msra.mxu0 %v48
  %3731 = vmatprep.subr.mxu0 %v37
  %3732 = vmatpush1.msra.mxu0 %v36
  %3733 = vmatprep.subr.mxu0 %v25
  %3734 = vmatpush1.msra.mxu0 %v24
  %3735 = vmatprep.subr.mxu0 %v397
  %3736 = vmatpush2.msra.mxu0 %v396
  %3737 = vmatprep.subr.mxu0 %v385
  %3738 = vmatpush2.msra.mxu0 %v384
  %3739 = vmatprep.subr.mxu0 %v373
  %3740 = vmatpush2.msra.mxu0 %v372
  %3741 = vmatprep.subr.mxu0 %v361
  %3742 = vmatpush2.msra.mxu0 %v360
  %3743 = vmatprep.subr.mxu0 %v349
  %3744 = vmatpush2.msra.mxu0 %v348
  %3745 = vmatprep.subr.mxu0 %v337
  %3746 = vmatpush2.msra.mxu0 %v336
  %3747 = vmatprep.subr.mxu0 %v325
  %3748 = vmatpush2.msra.mxu0 %v324
  %3749 = vmatprep.subr.mxu0 %v313
  %3750 = vmatpush2.msra.mxu0 %v312
  %3751 = vmatprep.subr.mxu0 %v301
  %3752 = vmatpush2.msra.mxu0 %v300
  %3753 = vmatprep.subr.mxu0 %v289
  %3754 = vmatpush2.msra.mxu0 %v288
  %3755 = vmatprep.subr.mxu0 %v277
  %3756 = vmatpush2.msra.mxu0 %v276
  %3757 = vmatprep.subr.mxu0 %v265
  %3758 = vmatpush2.msra.mxu0 %v264
  %3759 = vmatprep.subr.mxu0 %v253
  %3760 = vmatpush2.msra.mxu0 %v252
  %3761 = vmatprep.subr.mxu0 %v241
  %3762 = vmatpush2.msra.mxu0 %v240
  %3763 = vmatprep.subr.mxu0 %v229
  %3764 = vmatpush2.msra.mxu0 %v228
  %3765 = vmatprep.subr.mxu0 %v217
  %3766 = vmatpush2.msra.mxu0 %v216
  %3767 = vmatprep.mubr.f32.mxu0 %v3682
  %3768 = vmatmul.mubr.f32.gmra.mxu0 %v3681
  %v3769 = vpop.f32.mrf.mxu0
  %v3770 = vadd.f32 0.0, %v3769
  %v3771 = vpop.f32.mrf.mxu0
  %v3772 = vadd.f32 0.0, %v3771
  %3773 = vdwg.mxu0
  %3774 = vmatprep.subr.mxu0 %v589
  %3775 = vmatpush1.msra.mxu0 %v588
  %3776 = vmatprep.subr.mxu0 %v577
  %3777 = vmatpush1.msra.mxu0 %v576
  %3778 = vmatprep.subr.mxu0 %v565
  %3779 = vmatpush1.msra.mxu0 %v564
  %3780 = vmatprep.subr.mxu0 %v553
  %3781 = vmatpush1.msra.mxu0 %v552
  %3782 = vmatprep.subr.mxu0 %v541
  %3783 = vmatpush1.msra.mxu0 %v540
  %3784 = vmatprep.subr.mxu0 %v529
  %3785 = vmatpush1.msra.mxu0 %v528
  %3786 = vmatprep.subr.mxu0 %v517
  %3787 = vmatpush1.msra.mxu0 %v516
  %3788 = vmatprep.subr.mxu0 %v505
  %3789 = vmatpush1.msra.mxu0 %v504
  %3790 = vmatprep.subr.mxu0 %v493
  %3791 = vmatpush1.msra.mxu0 %v492
  %3792 = vmatprep.subr.mxu0 %v481
  %3793 = vmatpush1.msra.mxu0 %v480
  %3794 = vmatprep.subr.mxu0 %v469
  %3795 = vmatpush1.msra.mxu0 %v468
  %3796 = vmatprep.subr.mxu0 %v457
  %3797 = vmatpush1.msra.mxu0 %v456
  %3798 = vmatprep.subr.mxu0 %v445
  %3799 = vmatpush1.msra.mxu0 %v444
  %3800 = vmatprep.subr.mxu0 %v433
  %3801 = vmatpush1.msra.mxu0 %v432
  %3802 = vmatprep.subr.mxu0 %v421
  %3803 = vmatpush1.msra.mxu0 %v420
  %3804 = vmatprep.subr.mxu0 %v409
  %3805 = vmatpush1.msra.mxu0 %v408
  %3806 = vmatprep.subr.mxu0 %v781
  %3807 = vmatpush2.msra.mxu0 %v780
  %3808 = vmatprep.subr.mxu0 %v769
  %3809 = vmatpush2.msra.mxu0 %v768
  %3810 = vmatprep.subr.mxu0 %v757
  %3811 = vmatpush2.msra.mxu0 %v756
  %3812 = vmatprep.subr.mxu0 %v745
  %3813 = vmatpush2.msra.mxu0 %v744
  %3814 = vmatprep.subr.mxu0 %v733
  %3815 = vmatpush2.msra.mxu0 %v732
  %3816 = vmatprep.subr.mxu0 %v721
  %3817 = vmatpush2.msra.mxu0 %v720
  %3818 = vmatprep.subr.mxu0 %v709
  %3819 = vmatpush2.msra.mxu0 %v708
  %3820 = vmatprep.subr.mxu0 %v697
  %3821 = vmatpush2.msra.mxu0 %v696
  %3822 = vmatprep.subr.mxu0 %v685
  %3823 = vmatpush2.msra.mxu0 %v684
  %3824 = vmatprep.subr.mxu0 %v673
  %3825 = vmatpush2.msra.mxu0 %v672
  %3826 = vmatprep.subr.mxu0 %v661
  %3827 = vmatpush2.msra.mxu0 %v660
  %3828 = vmatprep.subr.mxu0 %v649
  %3829 = vmatpush2.msra.mxu0 %v648
  %3830 = vmatprep.subr.mxu0 %v637
  %3831 = vmatpush2.msra.mxu0 %v636
  %3832 = vmatprep.subr.mxu0 %v625
  %3833 = vmatpush2.msra.mxu0 %v624
  %3834 = vmatprep.subr.mxu0 %v613
  %3835 = vmatpush2.msra.mxu0 %v612
  %3836 = vmatprep.subr.mxu0 %v601
  %3837 = vmatpush2.msra.mxu0 %v600
  %3838 = vmatprep.mubr.f32.mxu0 %v3684
  %3839 = vmatmul.mubr.f32.gmra.mxu0 %v3683
  %v3840 = vpop.f32.mrf.mxu0
  %v3841 = vadd.f32 %v3770, %v3840
  %v3842 = vpop.f32.mrf.mxu0
  %v3843 = vadd.f32 %v3772, %v3842
  %3844 = vdwg.mxu0
  %3845 = vmatprep.subr.mxu0 %v207
  %3846 = vmatpush1.msra.mxu0 %v206
  %3847 = vmatprep.subr.mxu0 %v195
  %3848 = vmatpush1.msra.mxu0 %v194
  %3849 = vmatprep.subr.mxu0 %v183
  %3850 = vmatpush1.msra.mxu0 %v182
  %3851 = vmatprep.subr.mxu0 %v171
  %3852 = vmatpush1.msra.mxu0 %v170
  %3853 = vmatprep.subr.mxu0 %v159
  %3854 = vmatpush1.msra.mxu0 %v158
  %3855 = vmatprep.subr.mxu0 %v147
  %3856 = vmatpush1.msra.mxu0 %v146
  %3857 = vmatprep.subr.mxu0 %v135
  %3858 = vmatpush1.msra.mxu0 %v134
  %3859 = vmatprep.subr.mxu0 %v123
  %3860 = vmatpush1.msra.mxu0 %v122
  %3861 = vmatprep.subr.mxu0 %v111
  %3862 = vmatpush1.msra.mxu0 %v110
  %3863 = vmatprep.subr.mxu0 %v99
  %3864 = vmatpush1.msra.mxu0 %v98
  %3865 = vmatprep.subr.mxu0 %v87
  %3866 = vmatpush1.msra.mxu0 %v86
  %3867 = vmatprep.subr.mxu0 %v75
  %3868 = vmatpush1.msra.mxu0 %v74
  %3869 = vmatprep.subr.mxu0 %v63
  %3870 = vmatpush1.msra.mxu0 %v62
  %3871 = vmatprep.subr.mxu0 %v51
  %3872 = vmatpush1.msra.mxu0 %v50
  %3873 = vmatprep.subr.mxu0 %v39
  %3874 = vmatpush1.msra.mxu0 %v38
  %3875 = vmatprep.subr.mxu0 %v27
  %3876 = vmatpush1.msra.mxu0 %v26
  %3877 = vmatprep.subr.mxu0 %v399
  %3878 = vmatpush2.msra.mxu0 %v398
  %3879 = vmatprep.subr.mxu0 %v387
  %3880 = vmatpush2.msra.mxu0 %v386
  %3881 = vmatprep.subr.mxu0 %v375
  %3882 = vmatpush2.msra.mxu0 %v374
  %3883 = vmatprep.subr.mxu0 %v363
  %3884 = vmatpush2.msra.mxu0 %v362
  %3885 = vmatprep.subr.mxu0 %v351
  %3886 = vmatpush2.msra.mxu0 %v350
  %3887 = vmatprep.subr.mxu0 %v339
  %3888 = vmatpush2.msra.mxu0 %v338
  %3889 = vmatprep.subr.mxu0 %v327
  %3890 = vmatpush2.msra.mxu0 %v326
  %3891 = vmatprep.subr.mxu0 %v315
  %3892 = vmatpush2.msra.mxu0 %v314
  %3893 = vmatprep.subr.mxu0 %v303
  %3894 = vmatpush2.msra.mxu0 %v302
  %3895 = vmatprep.subr.mxu0 %v291
  %3896 = vmatpush2.msra.mxu0 %v290
  %3897 = vmatprep.subr.mxu0 %v279
  %3898 = vmatpush2.msra.mxu0 %v278
  %3899 = vmatprep.subr.mxu0 %v267
  %3900 = vmatpush2.msra.mxu0 %v266
  %3901 = vmatprep.subr.mxu0 %v255
  %3902 = vmatpush2.msra.mxu0 %v254
  %3903 = vmatprep.subr.mxu0 %v243
  %3904 = vmatpush2.msra.mxu0 %v242
  %3905 = vmatprep.subr.mxu0 %v231
  %3906 = vmatpush2.msra.mxu0 %v230
  %3907 = vmatprep.subr.mxu0 %v219
  %3908 = vmatpush2.msra.mxu0 %v218
  %3909 = vmatprep.mubr.f32.mxu0 %v3682
  %3910 = vmatmul.mubr.f32.gmra.mxu0 %v3681
  %v3911 = vpop.f32.mrf.mxu0
  %v3912 = vadd.f32 0.0, %v3911
  %v3913 = vpop.f32.mrf.mxu0
  %v3914 = vadd.f32 0.0, %v3913
  %3915 = vdwg.mxu0
  %3916 = vmatprep.subr.mxu0 %v591
  %3917 = vmatpush1.msra.mxu0 %v590
  %3918 = vmatprep.subr.mxu0 %v579
  %3919 = vmatpush1.msra.mxu0 %v578
  %3920 = vmatprep.subr.mxu0 %v567
  %3921 = vmatpush1.msra.mxu0 %v566
  %3922 = vmatprep.subr.mxu0 %v555
  %3923 = vmatpush1.msra.mxu0 %v554
  %3924 = vmatprep.subr.mxu0 %v543
  %3925 = vmatpush1.msra.mxu0 %v542
  %3926 = vmatprep.subr.mxu0 %v531
  %3927 = vmatpush1.msra.mxu0 %v530
  %3928 = vmatprep.subr.mxu0 %v519
  %3929 = vmatpush1.msra.mxu0 %v518
  %3930 = vmatprep.subr.mxu0 %v507
  %3931 = vmatpush1.msra.mxu0 %v506
  %3932 = vmatprep.subr.mxu0 %v495
  %3933 = vmatpush1.msra.mxu0 %v494
  %3934 = vmatprep.subr.mxu0 %v483
  %3935 = vmatpush1.msra.mxu0 %v482
  %3936 = vmatprep.subr.mxu0 %v471
  %3937 = vmatpush1.msra.mxu0 %v470
  %3938 = vmatprep.subr.mxu0 %v459
  %3939 = vmatpush1.msra.mxu0 %v458
  %3940 = vmatprep.subr.mxu0 %v447
  %3941 = vmatpush1.msra.mxu0 %v446
  %3942 = vmatprep.subr.mxu0 %v435
  %3943 = vmatpush1.msra.mxu0 %v434
  %3944 = vmatprep.subr.mxu0 %v423
  %3945 = vmatpush1.msra.mxu0 %v422
  %3946 = vmatprep.subr.mxu0 %v411
  %3947 = vmatpush1.msra.mxu0 %v410
  %3948 = vmatprep.subr.mxu0 %v783
  %3949 = vmatpush2.msra.mxu0 %v782
  %3950 = vmatprep.subr.mxu0 %v771
  %3951 = vmatpush2.msra.mxu0 %v770
  %3952 = vmatprep.subr.mxu0 %v759
  %3953 = vmatpush2.msra.mxu0 %v758
  %3954 = vmatprep.subr.mxu0 %v747
  %3955 = vmatpush2.msra.mxu0 %v746
  %3956 = vmatprep.subr.mxu0 %v735
  %3957 = vmatpush2.msra.mxu0 %v734
  %3958 = vmatprep.subr.mxu0 %v723
  %3959 = vmatpush2.msra.mxu0 %v722
  %3960 = vmatprep.subr.mxu0 %v711
  %3961 = vmatpush2.msra.mxu0 %v710
  %3962 = vmatprep.subr.mxu0 %v699
  %3963 = vmatpush2.msra.mxu0 %v698
  %3964 = vmatprep.subr.mxu0 %v687
  %3965 = vmatpush2.msra.mxu0 %v686
  %3966 = vmatprep.subr.mxu0 %v675
  %3967 = vmatpush2.msra.mxu0 %v674
  %3968 = vmatprep.subr.mxu0 %v663
  %3969 = vmatpush2.msra.mxu0 %v662
  %3970 = vmatprep.subr.mxu0 %v651
  %3971 = vmatpush2.msra.mxu0 %v650
  %3972 = vmatprep.subr.mxu0 %v639
  %3973 = vmatpush2.msra.mxu0 %v638
  %3974 = vmatprep.subr.mxu0 %v627
  %3975 = vmatpush2.msra.mxu0 %v626
  %3976 = vmatprep.subr.mxu0 %v615
  %3977 = vmatpush2.msra.mxu0 %v614
  %3978 = vmatprep.subr.mxu0 %v603
  %3979 = vmatpush2.msra.mxu0 %v602
  %3980 = vmatprep.mubr.f32.mxu0 %v3684
  %3981 = vmatmul.mubr.f32.gmra.mxu0 %v3683
  %v3982 = vpop.f32.mrf.mxu0
  %v3983 = vadd.f32 %v3912, %v3982
  %v3984 = vpop.f32.mrf.mxu0
  %v3985 = vadd.f32 %v3914, %v3984
  %3986 = vdwg.mxu0
  %3987 = vmatprep.subr.mxu0 %v209
  %3988 = vmatpush1.msra.mxu0 %v208
  %3989 = vmatprep.subr.mxu0 %v197
  %3990 = vmatpush1.msra.mxu0 %v196
  %3991 = vmatprep.subr.mxu0 %v185
  %3992 = vmatpush1.msra.mxu0 %v184
  %3993 = vmatprep.subr.mxu0 %v173
  %3994 = vmatpush1.msra.mxu0 %v172
  %3995 = vmatprep.subr.mxu0 %v161
  %3996 = vmatpush1.msra.mxu0 %v160
  %3997 = vmatprep.subr.mxu0 %v149
  %3998 = vmatpush1.msra.mxu0 %v148
  %3999 = vmatprep.subr.mxu0 %v137
  %4000 = vmatpush1.msra.mxu0 %v136
  %4001 = vmatprep.subr.mxu0 %v125
  %4002 = vmatpush1.msra.mxu0 %v124
  %4003 = vmatprep.subr.mxu0 %v113
  %4004 = vmatpush1.msra.mxu0 %v112
  %4005 = vmatprep.subr.mxu0 %v101
  %4006 = vmatpush1.msra.mxu0 %v100
  %4007 = vmatprep.subr.mxu0 %v89
  %4008 = vmatpush1.msra.mxu0 %v88
  %4009 = vmatprep.subr.mxu0 %v77
  %4010 = vmatpush1.msra.mxu0 %v76
  %4011 = vmatprep.subr.mxu0 %v65
  %4012 = vmatpush1.msra.mxu0 %v64
  %4013 = vmatprep.subr.mxu0 %v53
  %4014 = vmatpush1.msra.mxu0 %v52
  %4015 = vmatprep.subr.mxu0 %v41
  %4016 = vmatpush1.msra.mxu0 %v40
  %4017 = vmatprep.subr.mxu0 %v29
  %4018 = vmatpush1.msra.mxu0 %v28
  %4019 = vmatprep.subr.mxu0 %v401
  %4020 = vmatpush2.msra.mxu0 %v400
  %4021 = vmatprep.subr.mxu0 %v389
  %4022 = vmatpush2.msra.mxu0 %v388
  %4023 = vmatprep.subr.mxu0 %v377
  %4024 = vmatpush2.msra.mxu0 %v376
  %4025 = vmatprep.subr.mxu0 %v365
  %4026 = vmatpush2.msra.mxu0 %v364
  %4027 = vmatprep.subr.mxu0 %v353
  %4028 = vmatpush2.msra.mxu0 %v352
  %4029 = vmatprep.subr.mxu0 %v341
  %4030 = vmatpush2.msra.mxu0 %v340
  %4031 = vmatprep.subr.mxu0 %v329
  %4032 = vmatpush2.msra.mxu0 %v328
  %4033 = vmatprep.subr.mxu0 %v317
  %4034 = vmatpush2.msra.mxu0 %v316
  %4035 = vmatprep.subr.mxu0 %v305
  %4036 = vmatpush2.msra.mxu0 %v304
  %4037 = vmatprep.subr.mxu0 %v293
  %4038 = vmatpush2.msra.mxu0 %v292
  %4039 = vmatprep.subr.mxu0 %v281
  %4040 = vmatpush2.msra.mxu0 %v280
  %4041 = vmatprep.subr.mxu0 %v269
  %4042 = vmatpush2.msra.mxu0 %v268
  %4043 = vmatprep.subr.mxu0 %v257
  %4044 = vmatpush2.msra.mxu0 %v256
  %4045 = vmatprep.subr.mxu0 %v245
  %4046 = vmatpush2.msra.mxu0 %v244
  %4047 = vmatprep.subr.mxu0 %v233
  %4048 = vmatpush2.msra.mxu0 %v232
  %4049 = vmatprep.subr.mxu0 %v221
  %4050 = vmatpush2.msra.mxu0 %v220
  %4051 = vmatprep.mubr.f32.mxu0 %v3682
  %4052 = vmatmul.mubr.f32.gmra.mxu0 %v3681
  %v4053 = vpop.f32.mrf.mxu0
  %v4054 = vadd.f32 0.0, %v4053
  %v4055 = vpop.f32.mrf.mxu0
  %v4056 = vadd.f32 0.0, %v4055
  %4057 = vdwg.mxu0
  %4058 = vmatprep.subr.mxu0 %v593
  %4059 = vmatpush1.msra.mxu0 %v592
  %4060 = vmatprep.subr.mxu0 %v581
  %4061 = vmatpush1.msra.mxu0 %v580
  %4062 = vmatprep.subr.mxu0 %v569
  %4063 = vmatpush1.msra.mxu0 %v568
  %4064 = vmatprep.subr.mxu0 %v557
  %4065 = vmatpush1.msra.mxu0 %v556
  %4066 = vmatprep.subr.mxu0 %v545
  %4067 = vmatpush1.msra.mxu0 %v544
  %4068 = vmatprep.subr.mxu0 %v533
  %4069 = vmatpush1.msra.mxu0 %v532
  %4070 = vmatprep.subr.mxu0 %v521
  %4071 = vmatpush1.msra.mxu0 %v520
  %4072 = vmatprep.subr.mxu0 %v509
  %4073 = vmatpush1.msra.mxu0 %v508
  %4074 = vmatprep.subr.mxu0 %v497
  %4075 = vmatpush1.msra.mxu0 %v496
  %4076 = vmatprep.subr.mxu0 %v485
  %4077 = vmatpush1.msra.mxu0 %v484
  %4078 = vmatprep.subr.mxu0 %v473
  %4079 = vmatpush1.msra.mxu0 %v472
  %4080 = vmatprep.subr.mxu0 %v461
  %4081 = vmatpush1.msra.mxu0 %v460
  %4082 = vmatprep.subr.mxu0 %v449
  %4083 = vmatpush1.msra.mxu0 %v448
  %4084 = vmatprep.subr.mxu0 %v437
  %4085 = vmatpush1.msra.mxu0 %v436
  %4086 = vmatprep.subr.mxu0 %v425
  %4087 = vmatpush1.msra.mxu0 %v424
  %4088 = vmatprep.subr.mxu0 %v413
  %4089 = vmatpush1.msra.mxu0 %v412
  %4090 = vmatprep.subr.mxu0 %v785
  %4091 = vmatpush2.msra.mxu0 %v784
  %4092 = vmatprep.subr.mxu0 %v773
  %4093 = vmatpush2.msra.mxu0 %v772
  %4094 = vmatprep.subr.mxu0 %v761
  %4095 = vmatpush2.msra.mxu0 %v760
  %4096 = vmatprep.subr.mxu0 %v749
  %4097 = vmatpush2.msra.mxu0 %v748
  %4098 = vmatprep.subr.mxu0 %v737
  %4099 = vmatpush2.msra.mxu0 %v736
  %4100 = vmatprep.subr.mxu0 %v725
  %4101 = vmatpush2.msra.mxu0 %v724
  %4102 = vmatprep.subr.mxu0 %v713
  %4103 = vmatpush2.msra.mxu0 %v712
  %4104 = vmatprep.subr.mxu0 %v701
  %4105 = vmatpush2.msra.mxu0 %v700
  %4106 = vmatprep.subr.mxu0 %v689
  %4107 = vmatpush2.msra.mxu0 %v688
  %4108 = vmatprep.subr.mxu0 %v677
  %4109 = vmatpush2.msra.mxu0 %v676
  %4110 = vmatprep.subr.mxu0 %v665
  %4111 = vmatpush2.msra.mxu0 %v664
  %4112 = vmatprep.subr.mxu0 %v653
  %4113 = vmatpush2.msra.mxu0 %v652
  %4114 = vmatprep.subr.mxu0 %v641
  %4115 = vmatpush2.msra.mxu0 %v640
  %4116 = vmatprep.subr.mxu0 %v629
  %4117 = vmatpush2.msra.mxu0 %v628
  %4118 = vmatprep.subr.mxu0 %v617
  %4119 = vmatpush2.msra.mxu0 %v616
  %4120 = vmatprep.subr.mxu0 %v605
  %4121 = vmatpush2.msra.mxu0 %v604
  %4122 = vmatprep.mubr.f32.mxu0 %v3684
  %4123 = vmatmul.mubr.f32.gmra.mxu0 %v3683
  %v4124 = vpop.f32.mrf.mxu0
  %v4125 = vadd.f32 %v4054, %v4124
  %v4126 = vpop.f32.mrf.mxu0
  %v4127 = vadd.f32 %v4056, %v4126
  %4128 = vdwg.mxu0
  %4129 = vmatprep.subr.mxu0 %v211
  %4130 = vmatpush1.msra.mxu0 %v210
  %4131 = vmatprep.subr.mxu0 %v199
  %4132 = vmatpush1.msra.mxu0 %v198
  %4133 = vmatprep.subr.mxu0 %v187
  %4134 = vmatpush1.msra.mxu0 %v186
  %4135 = vmatprep.subr.mxu0 %v175
  %4136 = vmatpush1.msra.mxu0 %v174
  %4137 = vmatprep.subr.mxu0 %v163
  %4138 = vmatpush1.msra.mxu0 %v162
  %4139 = vmatprep.subr.mxu0 %v151
  %4140 = vmatpush1.msra.mxu0 %v150
  %4141 = vmatprep.subr.mxu0 %v139
  %4142 = vmatpush1.msra.mxu0 %v138
  %4143 = vmatprep.subr.mxu0 %v127
  %4144 = vmatpush1.msra.mxu0 %v126
  %4145 = vmatprep.subr.mxu0 %v115
  %4146 = vmatpush1.msra.mxu0 %v114
  %4147 = vmatprep.subr.mxu0 %v103
  %4148 = vmatpush1.msra.mxu0 %v102
  %4149 = vmatprep.subr.mxu0 %v91
  %4150 = vmatpush1.msra.mxu0 %v90
  %4151 = vmatprep.subr.mxu0 %v79
  %4152 = vmatpush1.msra.mxu0 %v78
  %4153 = vmatprep.subr.mxu0 %v67
  %4154 = vmatpush1.msra.mxu0 %v66
  %4155 = vmatprep.subr.mxu0 %v55
  %4156 = vmatpush1.msra.mxu0 %v54
  %4157 = vmatprep.subr.mxu0 %v43
  %4158 = vmatpush1.msra.mxu0 %v42
  %4159 = vmatprep.subr.mxu0 %v31
  %4160 = vmatpush1.msra.mxu0 %v30
  %4161 = vmatprep.subr.mxu0 %v403
  %4162 = vmatpush2.msra.mxu0 %v402
  %4163 = vmatprep.subr.mxu0 %v391
  %4164 = vmatpush2.msra.mxu0 %v390
  %4165 = vmatprep.subr.mxu0 %v379
  %4166 = vmatpush2.msra.mxu0 %v378
  %4167 = vmatprep.subr.mxu0 %v367
  %4168 = vmatpush2.msra.mxu0 %v366
  %4169 = vmatprep.subr.mxu0 %v355
  %4170 = vmatpush2.msra.mxu0 %v354
  %4171 = vmatprep.subr.mxu0 %v343
  %4172 = vmatpush2.msra.mxu0 %v342
  %4173 = vmatprep.subr.mxu0 %v331
  %4174 = vmatpush2.msra.mxu0 %v330
  %4175 = vmatprep.subr.mxu0 %v319
  %4176 = vmatpush2.msra.mxu0 %v318
  %4177 = vmatprep.subr.mxu0 %v307
  %4178 = vmatpush2.msra.mxu0 %v306
  %4179 = vmatprep.subr.mxu0 %v295
  %4180 = vmatpush2.msra.mxu0 %v294
  %4181 = vmatprep.subr.mxu0 %v283
  %4182 = vmatpush2.msra.mxu0 %v282
  %4183 = vmatprep.subr.mxu0 %v271
  %4184 = vmatpush2.msra.mxu0 %v270
  %4185 = vmatprep.subr.mxu0 %v259
  %4186 = vmatpush2.msra.mxu0 %v258
  %4187 = vmatprep.subr.mxu0 %v247
  %4188 = vmatpush2.msra.mxu0 %v246
  %4189 = vmatprep.subr.mxu0 %v235
  %4190 = vmatpush2.msra.mxu0 %v234
  %4191 = vmatprep.subr.mxu0 %v223
  %4192 = vmatpush2.msra.mxu0 %v222
  %4193 = vmatprep.mubr.f32.mxu0 %v3682
  %4194 = vmatmul.mubr.f32.gmra.mxu0 %v3681
  %v4195 = vpop.f32.mrf.mxu0
  %v4196 = vadd.f32 0.0, %v4195
  %v4197 = vpop.f32.mrf.mxu0
  %v4198 = vadd.f32 0.0, %v4197
  %4199 = vdwg.mxu0
  %4200 = vmatprep.subr.mxu0 %v595
  %4201 = vmatpush1.msra.mxu0 %v594
  %4202 = vmatprep.subr.mxu0 %v583
  %4203 = vmatpush1.msra.mxu0 %v582
  %4204 = vmatprep.subr.mxu0 %v571
  %4205 = vmatpush1.msra.mxu0 %v570
  %4206 = vmatprep.subr.mxu0 %v559
  %4207 = vmatpush1.msra.mxu0 %v558
  %4208 = vmatprep.subr.mxu0 %v547
  %4209 = vmatpush1.msra.mxu0 %v546
  %4210 = vmatprep.subr.mxu0 %v535
  %4211 = vmatpush1.msra.mxu0 %v534
  %4212 = vmatprep.subr.mxu0 %v523
  %4213 = vmatpush1.msra.mxu0 %v522
  %4214 = vmatprep.subr.mxu0 %v511
  %4215 = vmatpush1.msra.mxu0 %v510
  %4216 = vmatprep.subr.mxu0 %v499
  %4217 = vmatpush1.msra.mxu0 %v498
  %4218 = vmatprep.subr.mxu0 %v487
  %4219 = vmatpush1.msra.mxu0 %v486
  %4220 = vmatprep.subr.mxu0 %v475
  %4221 = vmatpush1.msra.mxu0 %v474
  %4222 = vmatprep.subr.mxu0 %v463
  %4223 = vmatpush1.msra.mxu0 %v462
  %4224 = vmatprep.subr.mxu0 %v451
  %4225 = vmatpush1.msra.mxu0 %v450
  %4226 = vmatprep.subr.mxu0 %v439
  %4227 = vmatpush1.msra.mxu0 %v438
  %4228 = vmatprep.subr.mxu0 %v427
  %4229 = vmatpush1.msra.mxu0 %v426
  %4230 = vmatprep.subr.mxu0 %v415
  %4231 = vmatpush1.msra.mxu0 %v414
  %4232 = vmatprep.subr.mxu0 %v787
  %4233 = vmatpush2.msra.mxu0 %v786
  %4234 = vmatprep.subr.mxu0 %v775
  %4235 = vmatpush2.msra.mxu0 %v774
  %4236 = vmatprep.subr.mxu0 %v763
  %4237 = vmatpush2.msra.mxu0 %v762
  %4238 = vmatprep.subr.mxu0 %v751
  %4239 = vmatpush2.msra.mxu0 %v750
  %4240 = vmatprep.subr.mxu0 %v739
  %4241 = vmatpush2.msra.mxu0 %v738
  %4242 = vmatprep.subr.mxu0 %v727
  %4243 = vmatpush2.msra.mxu0 %v726
  %4244 = vmatprep.subr.mxu0 %v715
  %4245 = vmatpush2.msra.mxu0 %v714
  %4246 = vmatprep.subr.mxu0 %v703
  %4247 = vmatpush2.msra.mxu0 %v702
  %4248 = vmatprep.subr.mxu0 %v691
  %4249 = vmatpush2.msra.mxu0 %v690
  %4250 = vmatprep.subr.mxu0 %v679
  %4251 = vmatpush2.msra.mxu0 %v678
  %4252 = vmatprep.subr.mxu0 %v667
  %4253 = vmatpush2.msra.mxu0 %v666
  %4254 = vmatprep.subr.mxu0 %v655
  %4255 = vmatpush2.msra.mxu0 %v654
  %4256 = vmatprep.subr.mxu0 %v643
  %4257 = vmatpush2.msra.mxu0 %v642
  %4258 = vmatprep.subr.mxu0 %v631
  %4259 = vmatpush2.msra.mxu0 %v630
  %4260 = vmatprep.subr.mxu0 %v619
  %4261 = vmatpush2.msra.mxu0 %v618
  %4262 = vmatprep.subr.mxu0 %v607
  %4263 = vmatpush2.msra.mxu0 %v606
  %4264 = vmatprep.mubr.f32.mxu0 %v3684
  %4265 = vmatmul.mubr.f32.gmra.mxu0 %v3683
  %v4266 = vpop.f32.mrf.mxu0
  %v4267 = vadd.f32 %v4196, %v4266
  %v4268 = vpop.f32.mrf.mxu0
  %v4269 = vadd.f32 %v4198, %v4268
  %4270 = vdwg.mxu0
  %4271 = vmatprep.subr.mxu0 %v213
  %4272 = vmatpush1.msra.mxu0 %v212
  %4273 = vmatprep.subr.mxu0 %v201
  %4274 = vmatpush1.msra.mxu0 %v200
  %4275 = vmatprep.subr.mxu0 %v189
  %4276 = vmatpush1.msra.mxu0 %v188
  %4277 = vmatprep.subr.mxu0 %v177
  %4278 = vmatpush1.msra.mxu0 %v176
  %4279 = vmatprep.subr.mxu0 %v165
  %4280 = vmatpush1.msra.mxu0 %v164
  %4281 = vmatprep.subr.mxu0 %v153
  %4282 = vmatpush1.msra.mxu0 %v152
  %4283 = vmatprep.subr.mxu0 %v141
  %4284 = vmatpush1.msra.mxu0 %v140
  %4285 = vmatprep.subr.mxu0 %v129
  %4286 = vmatpush1.msra.mxu0 %v128
  %4287 = vmatprep.subr.mxu0 %v117
  %4288 = vmatpush1.msra.mxu0 %v116
  %4289 = vmatprep.subr.mxu0 %v105
  %4290 = vmatpush1.msra.mxu0 %v104
  %4291 = vmatprep.subr.mxu0 %v93
  %4292 = vmatpush1.msra.mxu0 %v92
  %4293 = vmatprep.subr.mxu0 %v81
  %4294 = vmatpush1.msra.mxu0 %v80
  %4295 = vmatprep.subr.mxu0 %v69
  %4296 = vmatpush1.msra.mxu0 %v68
  %4297 = vmatprep.subr.mxu0 %v57
  %4298 = vmatpush1.msra.mxu0 %v56
  %4299 = vmatprep.subr.mxu0 %v45
  %4300 = vmatpush1.msra.mxu0 %v44
  %4301 = vmatprep.subr.mxu0 %v33
  %4302 = vmatpush1.msra.mxu0 %v32
  %4303 = vmatprep.subr.mxu0 %v405
  %4304 = vmatpush2.msra.mxu0 %v404
  %4305 = vmatprep.subr.mxu0 %v393
  %4306 = vmatpush2.msra.mxu0 %v392
  %4307 = vmatprep.subr.mxu0 %v381
  %4308 = vmatpush2.msra.mxu0 %v380
  %4309 = vmatprep.subr.mxu0 %v369
  %4310 = vmatpush2.msra.mxu0 %v368
  %4311 = vmatprep.subr.mxu0 %v357
  %4312 = vmatpush2.msra.mxu0 %v356
  %4313 = vmatprep.subr.mxu0 %v345
  %4314 = vmatpush2.msra.mxu0 %v344
  %4315 = vmatprep.subr.mxu0 %v333
  %4316 = vmatpush2.msra.mxu0 %v332
  %4317 = vmatprep.subr.mxu0 %v321
  %4318 = vmatpush2.msra.mxu0 %v320
  %4319 = vmatprep.subr.mxu0 %v309
  %4320 = vmatpush2.msra.mxu0 %v308
  %4321 = vmatprep.subr.mxu0 %v297
  %4322 = vmatpush2.msra.mxu0 %v296
  %4323 = vmatprep.subr.mxu0 %v285
  %4324 = vmatpush2.msra.mxu0 %v284
  %4325 = vmatprep.subr.mxu0 %v273
  %4326 = vmatpush2.msra.mxu0 %v272
  %4327 = vmatprep.subr.mxu0 %v261
  %4328 = vmatpush2.msra.mxu0 %v260
  %4329 = vmatprep.subr.mxu0 %v249
  %4330 = vmatpush2.msra.mxu0 %v248
  %4331 = vmatprep.subr.mxu0 %v237
  %4332 = vmatpush2.msra.mxu0 %v236
  %4333 = vmatprep.subr.mxu0 %v225
  %4334 = vmatpush2.msra.mxu0 %v224
  %4335 = vmatprep.mubr.f32.mxu0 %v3682
  %4336 = vmatmul.mubr.f32.gmra.mxu0 %v3681
  %v4337 = vpop.f32.mrf.mxu0
  %v4338 = vadd.f32 0.0, %v4337
  %v4339 = vpop.f32.mrf.mxu0
  %v4340 = vadd.f32 0.0, %v4339
  %4341 = vdwg.mxu0
  %4342 = vmatprep.subr.mxu0 %v597
  %4343 = vmatpush1.msra.mxu0 %v596
  %4344 = vmatprep.subr.mxu0 %v585
  %4345 = vmatpush1.msra.mxu0 %v584
  %4346 = vmatprep.subr.mxu0 %v573
  %4347 = vmatpush1.msra.mxu0 %v572
  %4348 = vmatprep.subr.mxu0 %v561
  %4349 = vmatpush1.msra.mxu0 %v560
  %4350 = vmatprep.subr.mxu0 %v549
  %4351 = vmatpush1.msra.mxu0 %v548
  %4352 = vmatprep.subr.mxu0 %v537
  %4353 = vmatpush1.msra.mxu0 %v536
  %4354 = vmatprep.subr.mxu0 %v525
  %4355 = vmatpush1.msra.mxu0 %v524
  %4356 = vmatprep.subr.mxu0 %v513
  %4357 = vmatpush1.msra.mxu0 %v512
  %4358 = vmatprep.subr.mxu0 %v501
  %4359 = vmatpush1.msra.mxu0 %v500
  %4360 = vmatprep.subr.mxu0 %v489
  %4361 = vmatpush1.msra.mxu0 %v488
  %4362 = vmatprep.subr.mxu0 %v477
  %4363 = vmatpush1.msra.mxu0 %v476
  %4364 = vmatprep.subr.mxu0 %v465
  %4365 = vmatpush1.msra.mxu0 %v464
  %4366 = vmatprep.subr.mxu0 %v453
  %4367 = vmatpush1.msra.mxu0 %v452
  %4368 = vmatprep.subr.mxu0 %v441
  %4369 = vmatpush1.msra.mxu0 %v440
  %4370 = vmatprep.subr.mxu0 %v429
  %4371 = vmatpush1.msra.mxu0 %v428
  %4372 = vmatprep.subr.mxu0 %v417
  %4373 = vmatpush1.msra.mxu0 %v416
  %4374 = vmatprep.subr.mxu0 %v789
  %4375 = vmatpush2.msra.mxu0 %v788
  %4376 = vmatprep.subr.mxu0 %v777
  %4377 = vmatpush2.msra.mxu0 %v776
  %4378 = vmatprep.subr.mxu0 %v765
  %4379 = vmatpush2.msra.mxu0 %v764
  %4380 = vmatprep.subr.mxu0 %v753
  %4381 = vmatpush2.msra.mxu0 %v752
  %4382 = vmatprep.subr.mxu0 %v741
  %4383 = vmatpush2.msra.mxu0 %v740
  %4384 = vmatprep.subr.mxu0 %v729
  %4385 = vmatpush2.msra.mxu0 %v728
  %4386 = vmatprep.subr.mxu0 %v717
  %4387 = vmatpush2.msra.mxu0 %v716
  %4388 = vmatprep.subr.mxu0 %v705
  %4389 = vmatpush2.msra.mxu0 %v704
  %4390 = vmatprep.subr.mxu0 %v693
  %4391 = vmatpush2.msra.mxu0 %v692
  %4392 = vmatprep.subr.mxu0 %v681
  %4393 = vmatpush2.msra.mxu0 %v680
  %4394 = vmatprep.subr.mxu0 %v669
  %4395 = vmatpush2.msra.mxu0 %v668
  %4396 = vmatprep.subr.mxu0 %v657
  %4397 = vmatpush2.msra.mxu0 %v656
  %4398 = vmatprep.subr.mxu0 %v645
  %4399 = vmatpush2.msra.mxu0 %v644
  %4400 = vmatprep.subr.mxu0 %v633
  %4401 = vmatpush2.msra.mxu0 %v632
  %4402 = vmatprep.subr.mxu0 %v621
  %4403 = vmatpush2.msra.mxu0 %v620
  %4404 = vmatprep.subr.mxu0 %v609
  %4405 = vmatpush2.msra.mxu0 %v608
  %4406 = vmatprep.mubr.f32.mxu0 %v3684
  %4407 = vmatmul.mubr.f32.gmra.mxu0 %v3683
  %v4408 = vpop.f32.mrf.mxu0
  %v4409 = vadd.f32 %v4338, %v4408
  %v4410 = vpop.f32.mrf.mxu0
  %v4411 = vadd.f32 %v4340, %v4410
  %4412 = vdwg.mxu0
  %4413 = vmatprep.subr.mxu0 %v215
  %4414 = vmatpush1.msra.mxu0 %v214
  %4415 = vmatprep.subr.mxu0 %v203
  %4416 = vmatpush1.msra.mxu0 %v202
  %4417 = vmatprep.subr.mxu0 %v191
  %4418 = vmatpush1.msra.mxu0 %v190
  %4419 = vmatprep.subr.mxu0 %v179
  %4420 = vmatpush1.msra.mxu0 %v178
  %4421 = vmatprep.subr.mxu0 %v167
  %4422 = vmatpush1.msra.mxu0 %v166
  %4423 = vmatprep.subr.mxu0 %v155
  %4424 = vmatpush1.msra.mxu0 %v154
  %4425 = vmatprep.subr.mxu0 %v143
  %4426 = vmatpush1.msra.mxu0 %v142
  %4427 = vmatprep.subr.mxu0 %v131
  %4428 = vmatpush1.msra.mxu0 %v130
  %4429 = vmatprep.subr.mxu0 %v119
  %4430 = vmatpush1.msra.mxu0 %v118
  %4431 = vmatprep.subr.mxu0 %v107
  %4432 = vmatpush1.msra.mxu0 %v106
  %4433 = vmatprep.subr.mxu0 %v95
  %4434 = vmatpush1.msra.mxu0 %v94
  %4435 = vmatprep.subr.mxu0 %v83
  %4436 = vmatpush1.msra.mxu0 %v82
  %4437 = vmatprep.subr.mxu0 %v71
  %4438 = vmatpush1.msra.mxu0 %v70
  %4439 = vmatprep.subr.mxu0 %v59
  %4440 = vmatpush1.msra.mxu0 %v58
  %4441 = vmatprep.subr.mxu0 %v47
  %4442 = vmatpush1.msra.mxu0 %v46
  %4443 = vmatprep.subr.mxu0 %v35
  %4444 = vmatpush1.msra.mxu0 %v34
  %4445 = vmatprep.subr.mxu0 %v407
  %4446 = vmatpush2.msra.mxu0 %v406
  %4447 = vmatprep.subr.mxu0 %v395
  %4448 = vmatpush2.msra.mxu0 %v394
  %4449 = vmatprep.subr.mxu0 %v383
  %4450 = vmatpush2.msra.mxu0 %v382
  %4451 = vmatprep.subr.mxu0 %v371
  %4452 = vmatpush2.msra.mxu0 %v370
  %4453 = vmatprep.subr.mxu0 %v359
  %4454 = vmatpush2.msra.mxu0 %v358
  %4455 = vmatprep.subr.mxu0 %v347
  %4456 = vmatpush2.msra.mxu0 %v346
  %4457 = vmatprep.subr.mxu0 %v335
  %4458 = vmatpush2.msra.mxu0 %v334
  %4459 = vmatprep.subr.mxu0 %v323
  %4460 = vmatpush2.msra.mxu0 %v322
  %4461 = vmatprep.subr.mxu0 %v311
  %4462 = vmatpush2.msra.mxu0 %v310
  %4463 = vmatprep.subr.mxu0 %v299
  %4464 = vmatpush2.msra.mxu0 %v298
  %4465 = vmatprep.subr.mxu0 %v287
  %4466 = vmatpush2.msra.mxu0 %v286
  %4467 = vmatprep.subr.mxu0 %v275
  %4468 = vmatpush2.msra.mxu0 %v274
  %4469 = vmatprep.subr.mxu0 %v263
  %4470 = vmatpush2.msra.mxu0 %v262
  %4471 = vmatprep.subr.mxu0 %v251
  %4472 = vmatpush2.msra.mxu0 %v250
  %4473 = vmatprep.subr.mxu0 %v239
  %4474 = vmatpush2.msra.mxu0 %v238
  %4475 = vmatprep.subr.mxu0 %v227
  %4476 = vmatpush2.msra.mxu0 %v226
  %4477 = vmatprep.mubr.f32.mxu0 %v3682
  %4478 = vmatmul.mubr.f32.gmra.mxu0 %v3681
  %v4479 = vpop.f32.mrf.mxu0
  %v4480 = vadd.f32 0.0, %v4479
  %v4481 = vpop.f32.mrf.mxu0
  %v4482 = vadd.f32 0.0, %v4481
  %4483 = vdwg.mxu0
  %4484 = vmatprep.subr.mxu0 %v599
  %4485 = vmatpush1.msra.mxu0 %v598
  %4486 = vmatprep.subr.mxu0 %v587
  %4487 = vmatpush1.msra.mxu0 %v586
  %4488 = vmatprep.subr.mxu0 %v575
  %4489 = vmatpush1.msra.mxu0 %v574
  %4490 = vmatprep.subr.mxu0 %v563
  %4491 = vmatpush1.msra.mxu0 %v562
  %4492 = vmatprep.subr.mxu0 %v551
  %4493 = vmatpush1.msra.mxu0 %v550
  %4494 = vmatprep.subr.mxu0 %v539
  %4495 = vmatpush1.msra.mxu0 %v538
  %4496 = vmatprep.subr.mxu0 %v527
  %4497 = vmatpush1.msra.mxu0 %v526
  %4498 = vmatprep.subr.mxu0 %v515
  %4499 = vmatpush1.msra.mxu0 %v514
  %4500 = vmatprep.subr.mxu0 %v503
  %4501 = vmatpush1.msra.mxu0 %v502
  %4502 = vmatprep.subr.mxu0 %v491
  %4503 = vmatpush1.msra.mxu0 %v490
  %4504 = vmatprep.subr.mxu0 %v479
  %4505 = vmatpush1.msra.mxu0 %v478
  %4506 = vmatprep.subr.mxu0 %v467
  %4507 = vmatpush1.msra.mxu0 %v466
  %4508 = vmatprep.subr.mxu0 %v455
  %4509 = vmatpush1.msra.mxu0 %v454
  %4510 = vmatprep.subr.mxu0 %v443
  %4511 = vmatpush1.msra.mxu0 %v442
  %4512 = vmatprep.subr.mxu0 %v431
  %4513 = vmatpush1.msra.mxu0 %v430
  %4514 = vmatprep.subr.mxu0 %v419
  %4515 = vmatpush1.msra.mxu0 %v418
  %4516 = vmatprep.subr.mxu0 %v791
  %4517 = vmatpush2.msra.mxu0 %v790
  %4518 = vmatprep.subr.mxu0 %v779
  %4519 = vmatpush2.msra.mxu0 %v778
  %4520 = vmatprep.subr.mxu0 %v767
  %4521 = vmatpush2.msra.mxu0 %v766
  %4522 = vmatprep.subr.mxu0 %v755
  %4523 = vmatpush2.msra.mxu0 %v754
  %4524 = vmatprep.subr.mxu0 %v743
  %4525 = vmatpush2.msra.mxu0 %v742
  %4526 = vmatprep.subr.mxu0 %v731
  %4527 = vmatpush2.msra.mxu0 %v730
  %4528 = vmatprep.subr.mxu0 %v719
  %4529 = vmatpush2.msra.mxu0 %v718
  %4530 = vmatprep.subr.mxu0 %v707
  %4531 = vmatpush2.msra.mxu0 %v706
  %4532 = vmatprep.subr.mxu0 %v695
  %4533 = vmatpush2.msra.mxu0 %v694
  %4534 = vmatprep.subr.mxu0 %v683
  %4535 = vmatpush2.msra.mxu0 %v682
  %4536 = vmatprep.subr.mxu0 %v671
  %4537 = vmatpush2.msra.mxu0 %v670
  %4538 = vmatprep.subr.mxu0 %v659
  %4539 = vmatpush2.msra.mxu0 %v658
  %4540 = vmatprep.subr.mxu0 %v647
  %4541 = vmatpush2.msra.mxu0 %v646
  %4542 = vmatprep.subr.mxu0 %v635
  %4543 = vmatpush2.msra.mxu0 %v634
  %4544 = vmatprep.subr.mxu0 %v623
  %4545 = vmatpush2.msra.mxu0 %v622
  %4546 = vmatprep.subr.mxu0 %v611
  %4547 = vmatpush2.msra.mxu0 %v610
  %4548 = vmatprep.mubr.f32.mxu0 %v3684
  %4549 = vmatmul.mubr.f32.gmra.mxu0 %v3683
  %v4550 = vpop.f32.mrf.mxu0
  %v4551 = vadd.f32 %v4480, %v4550
  %v4552 = vpop.f32.mrf.mxu0
  %v4553 = vadd.f32 %v4482, %v4552
  %4554 = vdwg.mxu0
  %v4555 = vadd.f32 %v3691, %v3841
  %v4556 = vadd.f32 %v3692, %v3843
  %v4557 = vadd.f32 %v3693, %v3983
  %v4558 = vadd.f32 %v3694, %v3985
  %v4559 = vxor.u32 %v4555, 2147483648
  %v4560 = vxor.u32 %v4556, 2147483648
  %v4561 = vxor.u32 %v4557, 2147483648
  %v4562 = vxor.u32 %v4558, 2147483648
  %v4563 = vmul.f32 %v4559, 1.442695
  %v4564 = vpow.pop %v4563
  %v4565 = vmul.f32 %v4560, 1.442695
  %v4566 = vpow.pop %v4565
  %v4567 = vmul.f32 %v4561, 1.442695
  %v4568 = vpow.pop %v4567
  %v4569 = vmul.f32 %v4562, 1.442695
  %v4570 = vpow.pop %v4569
  %v4571 = vadd.f32 %v4564, 1.0
  %v4572 = vadd.f32 %v4566, 1.0
  %v4573 = vadd.f32 %v4568, 1.0
  %v4574 = vadd.f32 %v4570, 1.0
  %v4575 = vrcp.pop %v4571
  %v4576 = vmul.f32 1.0, %v4575
  %v4577 = vrcp.pop %v4572
  %v4578 = vmul.f32 1.0, %v4577
  %v4579 = vrcp.pop %v4573
  %v4580 = vmul.f32 1.0, %v4579
  %v4581 = vrcp.pop %v4574
  %v4582 = vmul.f32 1.0, %v4581
  %v4583 = vadd.f32 %v3695, %v4125
  %v4584 = vadd.f32 %v3696, %v4127
  %v4585 = vadd.f32 %v3697, %v4267
  %v4586 = vadd.f32 %v3698, %v4269
  %v4587 = vxor.u32 %v4583, 2147483648
  %v4588 = vxor.u32 %v4584, 2147483648
  %v4589 = vxor.u32 %v4585, 2147483648
  %v4590 = vxor.u32 %v4586, 2147483648
  %v4591 = vmul.f32 %v4587, 1.442695
  %v4592 = vpow.pop %v4591
  %v4593 = vmul.f32 %v4588, 1.442695
  %v4594 = vpow.pop %v4593
  %v4595 = vmul.f32 %v4589, 1.442695
  %v4596 = vpow.pop %v4595
  %v4597 = vmul.f32 %v4590, 1.442695
  %v4598 = vpow.pop %v4597
  %v4599 = vadd.f32 %v4592, 1.0
  %v4600 = vadd.f32 %v4594, 1.0
  %v4601 = vadd.f32 %v4596, 1.0
  %v4602 = vadd.f32 %v4598, 1.0
  %v4603 = vrcp.pop %v4599
  %v4604 = vmul.f32 1.0, %v4603
  %v4605 = vrcp.pop %v4600
  %v4606 = vmul.f32 1.0, %v4605
  %v4607 = vrcp.pop %v4601
  %v4608 = vmul.f32 1.0, %v4607
  %v4609 = vrcp.pop %v4602
  %v4610 = vmul.f32 1.0, %v4609
  %v4611 = vadd.f32 %v4409, %v1721
  %v4612 = vadd.f32 %v4411, %v1725
  %v4613 = vadd.f32 %v4551, %v1729
  %v4614 = vadd.f32 %v4553, %v1733
  %v4615 = vmul.f32 %v4576, %v4611
  %v4616 = vmul.f32 %v4578, %v4612
  %v4617 = vmul.f32 %v4580, %v4613
  %v4618 = vmul.f32 %v4582, %v4614
  %v4619 = vadd.f32 %v3699, %v4615
  %v4620 = vadd.f32 %v3700, %v4616
  %v4621 = vadd.f32 %v3701, %v4617
  %v4622 = vadd.f32 %v3702, %v4618
  %v4623 = vtanh.pop %v4619
  %v4624 = vtanh.pop %v4620
  %v4625 = vtanh.pop %v4621
  %v4626 = vtanh.pop %v4622
  %v4627 = vsub.f32 1.0, %v4604
  %v4628 = vsub.f32 1.0, %v4606
  %v4629 = vsub.f32 1.0, %v4608
  %v4630 = vsub.f32 1.0, %v4610
  %v4631 = vmul.f32 %v4627, %v4623
  %v4632 = vmul.f32 %v4628, %v4624
  %v4633 = vmul.f32 %v4629, %v4625
  %v4634 = vmul.f32 %v4630, %v4626
  %v4635 = vmul.f32 %v4604, %v3681
  %v4636 = vmul.f32 %v4606, %v3682
  %v4637 = vmul.f32 %v4608, %v3683
  %v4638 = vmul.f32 %v4610, %v3684
  %v4639 = vadd.f32 %v4631, %v4635
  %v4640 = vadd.f32 %v4632, %v4636
  %v4641 = vadd.f32 %v4633, %v4637
  %v4642 = vadd.f32 %v4634, %v4638
  %s4643 = scalar_lea.vmem %s3, 96
  %4644 = vst [vmem:[%s4643] sm:$0xff] %v4639
  %4645 = vst [vmem:[%s4643 + $0x8] sm:$0xff] %v4640
  %4646 = vst [vmem:[%s4643 + $0x10] sm:$0xff] %v4641
  %4647 = vst [vmem:[%s4643 + $0x18] sm:$0xff] %v4642
  %s4648 = scalar_lea.vmem %s0, 384
  %v4649 = vld [vmem:[%s4648] sm:$0xff]
  %v4650 = vld [vmem:[%s4648 + $0x8] sm:$0xff]
  %v4651 = vld [vmem:[%s4648 + $0x10] sm:$0xff]
  %v4652 = vld [vmem:[%s4648 + $0x18] sm:$0xff]
  %v4653 = vld [vmem:[%s4648 + $0x20] sm:$0xff]
  %v4654 = vld [vmem:[%s4648 + $0x28] sm:$0xff]
  %v4655 = vld [vmem:[%s4648 + $0x30] sm:$0xff]
  %v4656 = vld [vmem:[%s4648 + $0x38] sm:$0xff]
  %v4657 = vld [vmem:[%s4648 + $0x40] sm:$0xff]
  %v4658 = vld [vmem:[%s4648 + $0x48] sm:$0xff]
  %v4659 = vld [vmem:[%s4648 + $0x50] sm:$0xff]
  %v4660 = vld [vmem:[%s4648 + $0x58] sm:$0xff]
  %4661 = vmatprep.subr.mxu0 %v205
  %4662 = vmatpush1.msra.mxu0 %v204
  %4663 = vmatprep.subr.mxu0 %v193
  %4664 = vmatpush1.msra.mxu0 %v192
  %4665 = vmatprep.subr.mxu0 %v181
  %4666 = vmatpush1.msra.mxu0 %v180
  %4667 = vmatprep.subr.mxu0 %v169
  %4668 = vmatpush1.msra.mxu0 %v168
  %4669 = vmatprep.subr.mxu0 %v157
  %4670 = vmatpush1.msra.mxu0 %v156
  %4671 = vmatprep.subr.mxu0 %v145
  %4672 = vmatpush1.msra.mxu0 %v144
  %4673 = vmatprep.subr.mxu0 %v133
  %4674 = vmatpush1.msra.mxu0 %v132
  %4675 = vmatprep.subr.mxu0 %v121
  %4676 = vmatpush1.msra.mxu0 %v120
  %4677 = vmatprep.subr.mxu0 %v109
  %4678 = vmatpush1.msra.mxu0 %v108
  %4679 = vmatprep.subr.mxu0 %v97
  %4680 = vmatpush1.msra.mxu0 %v96
  %4681 = vmatprep.subr.mxu0 %v85
  %4682 = vmatpush1.msra.mxu0 %v84
  %4683 = vmatprep.subr.mxu0 %v73
  %4684 = vmatpush1.msra.mxu0 %v72
  %4685 = vmatprep.subr.mxu0 %v61
  %4686 = vmatpush1.msra.mxu0 %v60
  %4687 = vmatprep.subr.mxu0 %v49
  %4688 = vmatpush1.msra.mxu0 %v48
  %4689 = vmatprep.subr.mxu0 %v37
  %4690 = vmatpush1.msra.mxu0 %v36
  %4691 = vmatprep.subr.mxu0 %v25
  %4692 = vmatpush1.msra.mxu0 %v24
  %4693 = vmatprep.subr.mxu0 %v397
  %4694 = vmatpush2.msra.mxu0 %v396
  %4695 = vmatprep.subr.mxu0 %v385
  %4696 = vmatpush2.msra.mxu0 %v384
  %4697 = vmatprep.subr.mxu0 %v373
  %4698 = vmatpush2.msra.mxu0 %v372
  %4699 = vmatprep.subr.mxu0 %v361
  %4700 = vmatpush2.msra.mxu0 %v360
  %4701 = vmatprep.subr.mxu0 %v349
  %4702 = vmatpush2.msra.mxu0 %v348
  %4703 = vmatprep.subr.mxu0 %v337
  %4704 = vmatpush2.msra.mxu0 %v336
  %4705 = vmatprep.subr.mxu0 %v325
  %4706 = vmatpush2.msra.mxu0 %v324
  %4707 = vmatprep.subr.mxu0 %v313
  %4708 = vmatpush2.msra.mxu0 %v312
  %4709 = vmatprep.subr.mxu0 %v301
  %4710 = vmatpush2.msra.mxu0 %v300
  %4711 = vmatprep.subr.mxu0 %v289
  %4712 = vmatpush2.msra.mxu0 %v288
  %4713 = vmatprep.subr.mxu0 %v277
  %4714 = vmatpush2.msra.mxu0 %v276
  %4715 = vmatprep.subr.mxu0 %v265
  %4716 = vmatpush2.msra.mxu0 %v264
  %4717 = vmatprep.subr.mxu0 %v253
  %4718 = vmatpush2.msra.mxu0 %v252
  %4719 = vmatprep.subr.mxu0 %v241
  %4720 = vmatpush2.msra.mxu0 %v240
  %4721 = vmatprep.subr.mxu0 %v229
  %4722 = vmatpush2.msra.mxu0 %v228
  %4723 = vmatprep.subr.mxu0 %v217
  %4724 = vmatpush2.msra.mxu0 %v216
  %4725 = vmatprep.mubr.f32.mxu0 %v4640
  %4726 = vmatmul.mubr.f32.gmra.mxu0 %v4639
  %v4727 = vpop.f32.mrf.mxu0
  %v4728 = vadd.f32 0.0, %v4727
  %v4729 = vpop.f32.mrf.mxu0
  %v4730 = vadd.f32 0.0, %v4729
  %4731 = vdwg.mxu0
  %4732 = vmatprep.subr.mxu0 %v589
  %4733 = vmatpush1.msra.mxu0 %v588
  %4734 = vmatprep.subr.mxu0 %v577
  %4735 = vmatpush1.msra.mxu0 %v576
  %4736 = vmatprep.subr.mxu0 %v565
  %4737 = vmatpush1.msra.mxu0 %v564
  %4738 = vmatprep.subr.mxu0 %v553
  %4739 = vmatpush1.msra.mxu0 %v552
  %4740 = vmatprep.subr.mxu0 %v541
  %4741 = vmatpush1.msra.mxu0 %v540
  %4742 = vmatprep.subr.mxu0 %v529
  %4743 = vmatpush1.msra.mxu0 %v528
  %4744 = vmatprep.subr.mxu0 %v517
  %4745 = vmatpush1.msra.mxu0 %v516
  %4746 = vmatprep.subr.mxu0 %v505
  %4747 = vmatpush1.msra.mxu0 %v504
  %4748 = vmatprep.subr.mxu0 %v493
  %4749 = vmatpush1.msra.mxu0 %v492
  %4750 = vmatprep.subr.mxu0 %v481
  %4751 = vmatpush1.msra.mxu0 %v480
  %4752 = vmatprep.subr.mxu0 %v469
  %4753 = vmatpush1.msra.mxu0 %v468
  %4754 = vmatprep.subr.mxu0 %v457
  %4755 = vmatpush1.msra.mxu0 %v456
  %4756 = vmatprep.subr.mxu0 %v445
  %4757 = vmatpush1.msra.mxu0 %v444
  %4758 = vmatprep.subr.mxu0 %v433
  %4759 = vmatpush1.msra.mxu0 %v432
  %4760 = vmatprep.subr.mxu0 %v421
  %4761 = vmatpush1.msra.mxu0 %v420
  %4762 = vmatprep.subr.mxu0 %v409
  %4763 = vmatpush1.msra.mxu0 %v408
  %4764 = vmatprep.subr.mxu0 %v781
  %4765 = vmatpush2.msra.mxu0 %v780
  %4766 = vmatprep.subr.mxu0 %v769
  %4767 = vmatpush2.msra.mxu0 %v768
  %4768 = vmatprep.subr.mxu0 %v757
  %4769 = vmatpush2.msra.mxu0 %v756
  %4770 = vmatprep.subr.mxu0 %v745
  %4771 = vmatpush2.msra.mxu0 %v744
  %4772 = vmatprep.subr.mxu0 %v733
  %4773 = vmatpush2.msra.mxu0 %v732
  %4774 = vmatprep.subr.mxu0 %v721
  %4775 = vmatpush2.msra.mxu0 %v720
  %4776 = vmatprep.subr.mxu0 %v709
  %4777 = vmatpush2.msra.mxu0 %v708
  %4778 = vmatprep.subr.mxu0 %v697
  %4779 = vmatpush2.msra.mxu0 %v696
  %4780 = vmatprep.subr.mxu0 %v685
  %4781 = vmatpush2.msra.mxu0 %v684
  %4782 = vmatprep.subr.mxu0 %v673
  %4783 = vmatpush2.msra.mxu0 %v672
  %4784 = vmatprep.subr.mxu0 %v661
  %4785 = vmatpush2.msra.mxu0 %v660
  %4786 = vmatprep.subr.mxu0 %v649
  %4787 = vmatpush2.msra.mxu0 %v648
  %4788 = vmatprep.subr.mxu0 %v637
  %4789 = vmatpush2.msra.mxu0 %v636
  %4790 = vmatprep.subr.mxu0 %v625
  %4791 = vmatpush2.msra.mxu0 %v624
  %4792 = vmatprep.subr.mxu0 %v613
  %4793 = vmatpush2.msra.mxu0 %v612
  %4794 = vmatprep.subr.mxu0 %v601
  %4795 = vmatpush2.msra.mxu0 %v600
  %4796 = vmatprep.mubr.f32.mxu0 %v4642
  %4797 = vmatmul.mubr.f32.gmra.mxu0 %v4641
  %v4798 = vpop.f32.mrf.mxu0
  %v4799 = vadd.f32 %v4728, %v4798
  %v4800 = vpop.f32.mrf.mxu0
  %v4801 = vadd.f32 %v4730, %v4800
  %4802 = vdwg.mxu0
  %4803 = vmatprep.subr.mxu0 %v207
  %4804 = vmatpush1.msra.mxu0 %v206
  %4805 = vmatprep.subr.mxu0 %v195
  %4806 = vmatpush1.msra.mxu0 %v194
  %4807 = vmatprep.subr.mxu0 %v183
  %4808 = vmatpush1.msra.mxu0 %v182
  %4809 = vmatprep.subr.mxu0 %v171
  %4810 = vmatpush1.msra.mxu0 %v170
  %4811 = vmatprep.subr.mxu0 %v159
  %4812 = vmatpush1.msra.mxu0 %v158
  %4813 = vmatprep.subr.mxu0 %v147
  %4814 = vmatpush1.msra.mxu0 %v146
  %4815 = vmatprep.subr.mxu0 %v135
  %4816 = vmatpush1.msra.mxu0 %v134
  %4817 = vmatprep.subr.mxu0 %v123
  %4818 = vmatpush1.msra.mxu0 %v122
  %4819 = vmatprep.subr.mxu0 %v111
  %4820 = vmatpush1.msra.mxu0 %v110
  %4821 = vmatprep.subr.mxu0 %v99
  %4822 = vmatpush1.msra.mxu0 %v98
  %4823 = vmatprep.subr.mxu0 %v87
  %4824 = vmatpush1.msra.mxu0 %v86
  %4825 = vmatprep.subr.mxu0 %v75
  %4826 = vmatpush1.msra.mxu0 %v74
  %4827 = vmatprep.subr.mxu0 %v63
  %4828 = vmatpush1.msra.mxu0 %v62
  %4829 = vmatprep.subr.mxu0 %v51
  %4830 = vmatpush1.msra.mxu0 %v50
  %4831 = vmatprep.subr.mxu0 %v39
  %4832 = vmatpush1.msra.mxu0 %v38
  %4833 = vmatprep.subr.mxu0 %v27
  %4834 = vmatpush1.msra.mxu0 %v26
  %4835 = vmatprep.subr.mxu0 %v399
  %4836 = vmatpush2.msra.mxu0 %v398
  %4837 = vmatprep.subr.mxu0 %v387
  %4838 = vmatpush2.msra.mxu0 %v386
  %4839 = vmatprep.subr.mxu0 %v375
  %4840 = vmatpush2.msra.mxu0 %v374
  %4841 = vmatprep.subr.mxu0 %v363
  %4842 = vmatpush2.msra.mxu0 %v362
  %4843 = vmatprep.subr.mxu0 %v351
  %4844 = vmatpush2.msra.mxu0 %v350
  %4845 = vmatprep.subr.mxu0 %v339
  %4846 = vmatpush2.msra.mxu0 %v338
  %4847 = vmatprep.subr.mxu0 %v327
  %4848 = vmatpush2.msra.mxu0 %v326
  %4849 = vmatprep.subr.mxu0 %v315
  %4850 = vmatpush2.msra.mxu0 %v314
  %4851 = vmatprep.subr.mxu0 %v303
  %4852 = vmatpush2.msra.mxu0 %v302
  %4853 = vmatprep.subr.mxu0 %v291
  %4854 = vmatpush2.msra.mxu0 %v290
  %4855 = vmatprep.subr.mxu0 %v279
  %4856 = vmatpush2.msra.mxu0 %v278
  %4857 = vmatprep.subr.mxu0 %v267
  %4858 = vmatpush2.msra.mxu0 %v266
  %4859 = vmatprep.subr.mxu0 %v255
  %4860 = vmatpush2.msra.mxu0 %v254
  %4861 = vmatprep.subr.mxu0 %v243
  %4862 = vmatpush2.msra.mxu0 %v242
  %4863 = vmatprep.subr.mxu0 %v231
  %4864 = vmatpush2.msra.mxu0 %v230
  %4865 = vmatprep.subr.mxu0 %v219
  %4866 = vmatpush2.msra.mxu0 %v218
  %4867 = vmatprep.mubr.f32.mxu0 %v4640
  %4868 = vmatmul.mubr.f32.gmra.mxu0 %v4639
  %v4869 = vpop.f32.mrf.mxu0
  %v4870 = vadd.f32 0.0, %v4869
  %v4871 = vpop.f32.mrf.mxu0
  %v4872 = vadd.f32 0.0, %v4871
  %4873 = vdwg.mxu0
  %4874 = vmatprep.subr.mxu0 %v591
  %4875 = vmatpush1.msra.mxu0 %v590
  %4876 = vmatprep.subr.mxu0 %v579
  %4877 = vmatpush1.msra.mxu0 %v578
  %4878 = vmatprep.subr.mxu0 %v567
  %4879 = vmatpush1.msra.mxu0 %v566
  %4880 = vmatprep.subr.mxu0 %v555
  %4881 = vmatpush1.msra.mxu0 %v554
  %4882 = vmatprep.subr.mxu0 %v543
  %4883 = vmatpush1.msra.mxu0 %v542
  %4884 = vmatprep.subr.mxu0 %v531
  %4885 = vmatpush1.msra.mxu0 %v530
  %4886 = vmatprep.subr.mxu0 %v519
  %4887 = vmatpush1.msra.mxu0 %v518
  %4888 = vmatprep.subr.mxu0 %v507
  %4889 = vmatpush1.msra.mxu0 %v506
  %4890 = vmatprep.subr.mxu0 %v495
  %4891 = vmatpush1.msra.mxu0 %v494
  %4892 = vmatprep.subr.mxu0 %v483
  %4893 = vmatpush1.msra.mxu0 %v482
  %4894 = vmatprep.subr.mxu0 %v471
  %4895 = vmatpush1.msra.mxu0 %v470
  %4896 = vmatprep.subr.mxu0 %v459
  %4897 = vmatpush1.msra.mxu0 %v458
  %4898 = vmatprep.subr.mxu0 %v447
  %4899 = vmatpush1.msra.mxu0 %v446
  %4900 = vmatprep.subr.mxu0 %v435
  %4901 = vmatpush1.msra.mxu0 %v434
  %4902 = vmatprep.subr.mxu0 %v423
  %4903 = vmatpush1.msra.mxu0 %v422
  %4904 = vmatprep.subr.mxu0 %v411
  %4905 = vmatpush1.msra.mxu0 %v410
  %4906 = vmatprep.subr.mxu0 %v783
  %4907 = vmatpush2.msra.mxu0 %v782
  %4908 = vmatprep.subr.mxu0 %v771
  %4909 = vmatpush2.msra.mxu0 %v770
  %4910 = vmatprep.subr.mxu0 %v759
  %4911 = vmatpush2.msra.mxu0 %v758
  %4912 = vmatprep.subr.mxu0 %v747
  %4913 = vmatpush2.msra.mxu0 %v746
  %4914 = vmatprep.subr.mxu0 %v735
  %4915 = vmatpush2.msra.mxu0 %v734
  %4916 = vmatprep.subr.mxu0 %v723
  %4917 = vmatpush2.msra.mxu0 %v722
  %4918 = vmatprep.subr.mxu0 %v711
  %4919 = vmatpush2.msra.mxu0 %v710
  %4920 = vmatprep.subr.mxu0 %v699
  %4921 = vmatpush2.msra.mxu0 %v698
  %4922 = vmatprep.subr.mxu0 %v687
  %4923 = vmatpush2.msra.mxu0 %v686
  %4924 = vmatprep.subr.mxu0 %v675
  %4925 = vmatpush2.msra.mxu0 %v674
  %4926 = vmatprep.subr.mxu0 %v663
  %4927 = vmatpush2.msra.mxu0 %v662
  %4928 = vmatprep.subr.mxu0 %v651
  %4929 = vmatpush2.msra.mxu0 %v650
  %4930 = vmatprep.subr.mxu0 %v639
  %4931 = vmatpush2.msra.mxu0 %v638
  %4932 = vmatprep.subr.mxu0 %v627
  %4933 = vmatpush2.msra.mxu0 %v626
  %4934 = vmatprep.subr.mxu0 %v615
  %4935 = vmatpush2.msra.mxu0 %v614
  %4936 = vmatprep.subr.mxu0 %v603
  %4937 = vmatpush2.msra.mxu0 %v602
  %4938 = vmatprep.mubr.f32.mxu0 %v4642
  %4939 = vmatmul.mubr.f32.gmra.mxu0 %v4641
  %v4940 = vpop.f32.mrf.mxu0
  %v4941 = vadd.f32 %v4870, %v4940
  %v4942 = vpop.f32.mrf.mxu0
  %v4943 = vadd.f32 %v4872, %v4942
  %4944 = vdwg.mxu0
  %4945 = vmatprep.subr.mxu0 %v209
  %4946 = vmatpush1.msra.mxu0 %v208
  %4947 = vmatprep.subr.mxu0 %v197
  %4948 = vmatpush1.msra.mxu0 %v196
  %4949 = vmatprep.subr.mxu0 %v185
  %4950 = vmatpush1.msra.mxu0 %v184
  %4951 = vmatprep.subr.mxu0 %v173
  %4952 = vmatpush1.msra.mxu0 %v172
  %4953 = vmatprep.subr.mxu0 %v161
  %4954 = vmatpush1.msra.mxu0 %v160
  %4955 = vmatprep.subr.mxu0 %v149
  %4956 = vmatpush1.msra.mxu0 %v148
  %4957 = vmatprep.subr.mxu0 %v137
  %4958 = vmatpush1.msra.mxu0 %v136
  %4959 = vmatprep.subr.mxu0 %v125
  %4960 = vmatpush1.msra.mxu0 %v124
  %4961 = vmatprep.subr.mxu0 %v113
  %4962 = vmatpush1.msra.mxu0 %v112
  %4963 = vmatprep.subr.mxu0 %v101
  %4964 = vmatpush1.msra.mxu0 %v100
  %4965 = vmatprep.subr.mxu0 %v89
  %4966 = vmatpush1.msra.mxu0 %v88
  %4967 = vmatprep.subr.mxu0 %v77
  %4968 = vmatpush1.msra.mxu0 %v76
  %4969 = vmatprep.subr.mxu0 %v65
  %4970 = vmatpush1.msra.mxu0 %v64
  %4971 = vmatprep.subr.mxu0 %v53
  %4972 = vmatpush1.msra.mxu0 %v52
  %4973 = vmatprep.subr.mxu0 %v41
  %4974 = vmatpush1.msra.mxu0 %v40
  %4975 = vmatprep.subr.mxu0 %v29
  %4976 = vmatpush1.msra.mxu0 %v28
  %4977 = vmatprep.subr.mxu0 %v401
  %4978 = vmatpush2.msra.mxu0 %v400
  %4979 = vmatprep.subr.mxu0 %v389
  %4980 = vmatpush2.msra.mxu0 %v388
  %4981 = vmatprep.subr.mxu0 %v377
  %4982 = vmatpush2.msra.mxu0 %v376
  %4983 = vmatprep.subr.mxu0 %v365
  %4984 = vmatpush2.msra.mxu0 %v364
  %4985 = vmatprep.subr.mxu0 %v353
  %4986 = vmatpush2.msra.mxu0 %v352
  %4987 = vmatprep.subr.mxu0 %v341
  %4988 = vmatpush2.msra.mxu0 %v340
  %4989 = vmatprep.subr.mxu0 %v329
  %4990 = vmatpush2.msra.mxu0 %v328
  %4991 = vmatprep.subr.mxu0 %v317
  %4992 = vmatpush2.msra.mxu0 %v316
  %4993 = vmatprep.subr.mxu0 %v305
  %4994 = vmatpush2.msra.mxu0 %v304
  %4995 = vmatprep.subr.mxu0 %v293
  %4996 = vmatpush2.msra.mxu0 %v292
  %4997 = vmatprep.subr.mxu0 %v281
  %4998 = vmatpush2.msra.mxu0 %v280
  %4999 = vmatprep.subr.mxu0 %v269
  %5000 = vmatpush2.msra.mxu0 %v268
  %5001 = vmatprep.subr.mxu0 %v257
  %5002 = vmatpush2.msra.mxu0 %v256
  %5003 = vmatprep.subr.mxu0 %v245
  %5004 = vmatpush2.msra.mxu0 %v244
  %5005 = vmatprep.subr.mxu0 %v233
  %5006 = vmatpush2.msra.mxu0 %v232
  %5007 = vmatprep.subr.mxu0 %v221
  %5008 = vmatpush2.msra.mxu0 %v220
  %5009 = vmatprep.mubr.f32.mxu0 %v4640
  %5010 = vmatmul.mubr.f32.gmra.mxu0 %v4639
  %v5011 = vpop.f32.mrf.mxu0
  %v5012 = vadd.f32 0.0, %v5011
  %v5013 = vpop.f32.mrf.mxu0
  %v5014 = vadd.f32 0.0, %v5013
  %5015 = vdwg.mxu0
  %5016 = vmatprep.subr.mxu0 %v593
  %5017 = vmatpush1.msra.mxu0 %v592
  %5018 = vmatprep.subr.mxu0 %v581
  %5019 = vmatpush1.msra.mxu0 %v580
  %5020 = vmatprep.subr.mxu0 %v569
  %5021 = vmatpush1.msra.mxu0 %v568
  %5022 = vmatprep.subr.mxu0 %v557
  %5023 = vmatpush1.msra.mxu0 %v556
  %5024 = vmatprep.subr.mxu0 %v545
  %5025 = vmatpush1.msra.mxu0 %v544
  %5026 = vmatprep.subr.mxu0 %v533
  %5027 = vmatpush1.msra.mxu0 %v532
  %5028 = vmatprep.subr.mxu0 %v521
  %5029 = vmatpush1.msra.mxu0 %v520
  %5030 = vmatprep.subr.mxu0 %v509
  %5031 = vmatpush1.msra.mxu0 %v508
  %5032 = vmatprep.subr.mxu0 %v497
  %5033 = vmatpush1.msra.mxu0 %v496
  %5034 = vmatprep.subr.mxu0 %v485
  %5035 = vmatpush1.msra.mxu0 %v484
  %5036 = vmatprep.subr.mxu0 %v473
  %5037 = vmatpush1.msra.mxu0 %v472
  %5038 = vmatprep.subr.mxu0 %v461
  %5039 = vmatpush1.msra.mxu0 %v460
  %5040 = vmatprep.subr.mxu0 %v449
  %5041 = vmatpush1.msra.mxu0 %v448
  %5042 = vmatprep.subr.mxu0 %v437
  %5043 = vmatpush1.msra.mxu0 %v436
  %5044 = vmatprep.subr.mxu0 %v425
  %5045 = vmatpush1.msra.mxu0 %v424
  %5046 = vmatprep.subr.mxu0 %v413
  %5047 = vmatpush1.msra.mxu0 %v412
  %5048 = vmatprep.subr.mxu0 %v785
  %5049 = vmatpush2.msra.mxu0 %v784
  %5050 = vmatprep.subr.mxu0 %v773
  %5051 = vmatpush2.msra.mxu0 %v772
  %5052 = vmatprep.subr.mxu0 %v761
  %5053 = vmatpush2.msra.mxu0 %v760
  %5054 = vmatprep.subr.mxu0 %v749
  %5055 = vmatpush2.msra.mxu0 %v748
  %5056 = vmatprep.subr.mxu0 %v737
  %5057 = vmatpush2.msra.mxu0 %v736
  %5058 = vmatprep.subr.mxu0 %v725
  %5059 = vmatpush2.msra.mxu0 %v724
  %5060 = vmatprep.subr.mxu0 %v713
  %5061 = vmatpush2.msra.mxu0 %v712
  %5062 = vmatprep.subr.mxu0 %v701
  %5063 = vmatpush2.msra.mxu0 %v700
  %5064 = vmatprep.subr.mxu0 %v689
  %5065 = vmatpush2.msra.mxu0 %v688
  %5066 = vmatprep.subr.mxu0 %v677
  %5067 = vmatpush2.msra.mxu0 %v676
  %5068 = vmatprep.subr.mxu0 %v665
  %5069 = vmatpush2.msra.mxu0 %v664
  %5070 = vmatprep.subr.mxu0 %v653
  %5071 = vmatpush2.msra.mxu0 %v652
  %5072 = vmatprep.subr.mxu0 %v641
  %5073 = vmatpush2.msra.mxu0 %v640
  %5074 = vmatprep.subr.mxu0 %v629
  %5075 = vmatpush2.msra.mxu0 %v628
  %5076 = vmatprep.subr.mxu0 %v617
  %5077 = vmatpush2.msra.mxu0 %v616
  %5078 = vmatprep.subr.mxu0 %v605
  %5079 = vmatpush2.msra.mxu0 %v604
  %5080 = vmatprep.mubr.f32.mxu0 %v4642
  %5081 = vmatmul.mubr.f32.gmra.mxu0 %v4641
  %v5082 = vpop.f32.mrf.mxu0
  %v5083 = vadd.f32 %v5012, %v5082
  %v5084 = vpop.f32.mrf.mxu0
  %v5085 = vadd.f32 %v5014, %v5084
  %5086 = vdwg.mxu0
  %5087 = vmatprep.subr.mxu0 %v211
  %5088 = vmatpush1.msra.mxu0 %v210
  %5089 = vmatprep.subr.mxu0 %v199
  %5090 = vmatpush1.msra.mxu0 %v198
  %5091 = vmatprep.subr.mxu0 %v187
  %5092 = vmatpush1.msra.mxu0 %v186
  %5093 = vmatprep.subr.mxu0 %v175
  %5094 = vmatpush1.msra.mxu0 %v174
  %5095 = vmatprep.subr.mxu0 %v163
  %5096 = vmatpush1.msra.mxu0 %v162
  %5097 = vmatprep.subr.mxu0 %v151
  %5098 = vmatpush1.msra.mxu0 %v150
  %5099 = vmatprep.subr.mxu0 %v139
  %5100 = vmatpush1.msra.mxu0 %v138
  %5101 = vmatprep.subr.mxu0 %v127
  %5102 = vmatpush1.msra.mxu0 %v126
  %5103 = vmatprep.subr.mxu0 %v115
  %5104 = vmatpush1.msra.mxu0 %v114
  %5105 = vmatprep.subr.mxu0 %v103
  %5106 = vmatpush1.msra.mxu0 %v102
  %5107 = vmatprep.subr.mxu0 %v91
  %5108 = vmatpush1.msra.mxu0 %v90
  %5109 = vmatprep.subr.mxu0 %v79
  %5110 = vmatpush1.msra.mxu0 %v78
  %5111 = vmatprep.subr.mxu0 %v67
  %5112 = vmatpush1.msra.mxu0 %v66
  %5113 = vmatprep.subr.mxu0 %v55
  %5114 = vmatpush1.msra.mxu0 %v54
  %5115 = vmatprep.subr.mxu0 %v43
  %5116 = vmatpush1.msra.mxu0 %v42
  %5117 = vmatprep.subr.mxu0 %v31
  %5118 = vmatpush1.msra.mxu0 %v30
  %5119 = vmatprep.subr.mxu0 %v403
  %5120 = vmatpush2.msra.mxu0 %v402
  %5121 = vmatprep.subr.mxu0 %v391
  %5122 = vmatpush2.msra.mxu0 %v390
  %5123 = vmatprep.subr.mxu0 %v379
  %5124 = vmatpush2.msra.mxu0 %v378
  %5125 = vmatprep.subr.mxu0 %v367
  %5126 = vmatpush2.msra.mxu0 %v366
  %5127 = vmatprep.subr.mxu0 %v355
  %5128 = vmatpush2.msra.mxu0 %v354
  %5129 = vmatprep.subr.mxu0 %v343
  %5130 = vmatpush2.msra.mxu0 %v342
  %5131 = vmatprep.subr.mxu0 %v331
  %5132 = vmatpush2.msra.mxu0 %v330
  %5133 = vmatprep.subr.mxu0 %v319
  %5134 = vmatpush2.msra.mxu0 %v318
  %5135 = vmatprep.subr.mxu0 %v307
  %5136 = vmatpush2.msra.mxu0 %v306
  %5137 = vmatprep.subr.mxu0 %v295
  %5138 = vmatpush2.msra.mxu0 %v294
  %5139 = vmatprep.subr.mxu0 %v283
  %5140 = vmatpush2.msra.mxu0 %v282
  %5141 = vmatprep.subr.mxu0 %v271
  %5142 = vmatpush2.msra.mxu0 %v270
  %5143 = vmatprep.subr.mxu0 %v259
  %5144 = vmatpush2.msra.mxu0 %v258
  %5145 = vmatprep.subr.mxu0 %v247
  %5146 = vmatpush2.msra.mxu0 %v246
  %5147 = vmatprep.subr.mxu0 %v235
  %5148 = vmatpush2.msra.mxu0 %v234
  %5149 = vmatprep.subr.mxu0 %v223
  %5150 = vmatpush2.msra.mxu0 %v222
  %5151 = vmatprep.mubr.f32.mxu0 %v4640
  %5152 = vmatmul.mubr.f32.gmra.mxu0 %v4639
  %v5153 = vpop.f32.mrf.mxu0
  %v5154 = vadd.f32 0.0, %v5153
  %v5155 = vpop.f32.mrf.mxu0
  %v5156 = vadd.f32 0.0, %v5155
  %5157 = vdwg.mxu0
  %5158 = vmatprep.subr.mxu0 %v595
  %5159 = vmatpush1.msra.mxu0 %v594
  %5160 = vmatprep.subr.mxu0 %v583
  %5161 = vmatpush1.msra.mxu0 %v582
  %5162 = vmatprep.subr.mxu0 %v571
  %5163 = vmatpush1.msra.mxu0 %v570
  %5164 = vmatprep.subr.mxu0 %v559
  %5165 = vmatpush1.msra.mxu0 %v558
  %5166 = vmatprep.subr.mxu0 %v547
  %5167 = vmatpush1.msra.mxu0 %v546
  %5168 = vmatprep.subr.mxu0 %v535
  %5169 = vmatpush1.msra.mxu0 %v534
  %5170 = vmatprep.subr.mxu0 %v523
  %5171 = vmatpush1.msra.mxu0 %v522
  %5172 = vmatprep.subr.mxu0 %v511
  %5173 = vmatpush1.msra.mxu0 %v510
  %5174 = vmatprep.subr.mxu0 %v499
  %5175 = vmatpush1.msra.mxu0 %v498
  %5176 = vmatprep.subr.mxu0 %v487
  %5177 = vmatpush1.msra.mxu0 %v486
  %5178 = vmatprep.subr.mxu0 %v475
  %5179 = vmatpush1.msra.mxu0 %v474
  %5180 = vmatprep.subr.mxu0 %v463
  %5181 = vmatpush1.msra.mxu0 %v462
  %5182 = vmatprep.subr.mxu0 %v451
  %5183 = vmatpush1.msra.mxu0 %v450
  %5184 = vmatprep.subr.mxu0 %v439
  %5185 = vmatpush1.msra.mxu0 %v438
  %5186 = vmatprep.subr.mxu0 %v427
  %5187 = vmatpush1.msra.mxu0 %v426
  %5188 = vmatprep.subr.mxu0 %v415
  %5189 = vmatpush1.msra.mxu0 %v414
  %5190 = vmatprep.subr.mxu0 %v787
  %5191 = vmatpush2.msra.mxu0 %v786
  %5192 = vmatprep.subr.mxu0 %v775
  %5193 = vmatpush2.msra.mxu0 %v774
  %5194 = vmatprep.subr.mxu0 %v763
  %5195 = vmatpush2.msra.mxu0 %v762
  %5196 = vmatprep.subr.mxu0 %v751
  %5197 = vmatpush2.msra.mxu0 %v750
  %5198 = vmatprep.subr.mxu0 %v739
  %5199 = vmatpush2.msra.mxu0 %v738
  %5200 = vmatprep.subr.mxu0 %v727
  %5201 = vmatpush2.msra.mxu0 %v726
  %5202 = vmatprep.subr.mxu0 %v715
  %5203 = vmatpush2.msra.mxu0 %v714
  %5204 = vmatprep.subr.mxu0 %v703
  %5205 = vmatpush2.msra.mxu0 %v702
  %5206 = vmatprep.subr.mxu0 %v691
  %5207 = vmatpush2.msra.mxu0 %v690
  %5208 = vmatprep.subr.mxu0 %v679
  %5209 = vmatpush2.msra.mxu0 %v678
  %5210 = vmatprep.subr.mxu0 %v667
  %5211 = vmatpush2.msra.mxu0 %v666
  %5212 = vmatprep.subr.mxu0 %v655
  %5213 = vmatpush2.msra.mxu0 %v654
  %5214 = vmatprep.subr.mxu0 %v643
  %5215 = vmatpush2.msra.mxu0 %v642
  %5216 = vmatprep.subr.mxu0 %v631
  %5217 = vmatpush2.msra.mxu0 %v630
  %5218 = vmatprep.subr.mxu0 %v619
  %5219 = vmatpush2.msra.mxu0 %v618
  %5220 = vmatprep.subr.mxu0 %v607
  %5221 = vmatpush2.msra.mxu0 %v606
  %5222 = vmatprep.mubr.f32.mxu0 %v4642
  %5223 = vmatmul.mubr.f32.gmra.mxu0 %v4641
  %v5224 = vpop.f32.mrf.mxu0
  %v5225 = vadd.f32 %v5154, %v5224
  %v5226 = vpop.f32.mrf.mxu0
  %v5227 = vadd.f32 %v5156, %v5226
  %5228 = vdwg.mxu0
  %5229 = vmatprep.subr.mxu0 %v213
  %5230 = vmatpush1.msra.mxu0 %v212
  %5231 = vmatprep.subr.mxu0 %v201
  %5232 = vmatpush1.msra.mxu0 %v200
  %5233 = vmatprep.subr.mxu0 %v189
  %5234 = vmatpush1.msra.mxu0 %v188
  %5235 = vmatprep.subr.mxu0 %v177
  %5236 = vmatpush1.msra.mxu0 %v176
  %5237 = vmatprep.subr.mxu0 %v165
  %5238 = vmatpush1.msra.mxu0 %v164
  %5239 = vmatprep.subr.mxu0 %v153
  %5240 = vmatpush1.msra.mxu0 %v152
  %5241 = vmatprep.subr.mxu0 %v141
  %5242 = vmatpush1.msra.mxu0 %v140
  %5243 = vmatprep.subr.mxu0 %v129
  %5244 = vmatpush1.msra.mxu0 %v128
  %5245 = vmatprep.subr.mxu0 %v117
  %5246 = vmatpush1.msra.mxu0 %v116
  %5247 = vmatprep.subr.mxu0 %v105
  %5248 = vmatpush1.msra.mxu0 %v104
  %5249 = vmatprep.subr.mxu0 %v93
  %5250 = vmatpush1.msra.mxu0 %v92
  %5251 = vmatprep.subr.mxu0 %v81
  %5252 = vmatpush1.msra.mxu0 %v80
  %5253 = vmatprep.subr.mxu0 %v69
  %5254 = vmatpush1.msra.mxu0 %v68
  %5255 = vmatprep.subr.mxu0 %v57
  %5256 = vmatpush1.msra.mxu0 %v56
  %5257 = vmatprep.subr.mxu0 %v45
  %5258 = vmatpush1.msra.mxu0 %v44
  %5259 = vmatprep.subr.mxu0 %v33
  %5260 = vmatpush1.msra.mxu0 %v32
  %5261 = vmatprep.subr.mxu0 %v405
  %5262 = vmatpush2.msra.mxu0 %v404
  %5263 = vmatprep.subr.mxu0 %v393
  %5264 = vmatpush2.msra.mxu0 %v392
  %5265 = vmatprep.subr.mxu0 %v381
  %5266 = vmatpush2.msra.mxu0 %v380
  %5267 = vmatprep.subr.mxu0 %v369
  %5268 = vmatpush2.msra.mxu0 %v368
  %5269 = vmatprep.subr.mxu0 %v357
  %5270 = vmatpush2.msra.mxu0 %v356
  %5271 = vmatprep.subr.mxu0 %v345
  %5272 = vmatpush2.msra.mxu0 %v344
  %5273 = vmatprep.subr.mxu0 %v333
  %5274 = vmatpush2.msra.mxu0 %v332
  %5275 = vmatprep.subr.mxu0 %v321
  %5276 = vmatpush2.msra.mxu0 %v320
  %5277 = vmatprep.subr.mxu0 %v309
  %5278 = vmatpush2.msra.mxu0 %v308
  %5279 = vmatprep.subr.mxu0 %v297
  %5280 = vmatpush2.msra.mxu0 %v296
  %5281 = vmatprep.subr.mxu0 %v285
  %5282 = vmatpush2.msra.mxu0 %v284
  %5283 = vmatprep.subr.mxu0 %v273
  %5284 = vmatpush2.msra.mxu0 %v272
  %5285 = vmatprep.subr.mxu0 %v261
  %5286 = vmatpush2.msra.mxu0 %v260
  %5287 = vmatprep.subr.mxu0 %v249
  %5288 = vmatpush2.msra.mxu0 %v248
  %5289 = vmatprep.subr.mxu0 %v237
  %5290 = vmatpush2.msra.mxu0 %v236
  %5291 = vmatprep.subr.mxu0 %v225
  %5292 = vmatpush2.msra.mxu0 %v224
  %5293 = vmatprep.mubr.f32.mxu0 %v4640
  %5294 = vmatmul.mubr.f32.gmra.mxu0 %v4639
  %v5295 = vpop.f32.mrf.mxu0
  %v5296 = vadd.f32 0.0, %v5295
  %v5297 = vpop.f32.mrf.mxu0
  %v5298 = vadd.f32 0.0, %v5297
  %5299 = vdwg.mxu0
  %5300 = vmatprep.subr.mxu0 %v597
  %5301 = vmatpush1.msra.mxu0 %v596
  %5302 = vmatprep.subr.mxu0 %v585
  %5303 = vmatpush1.msra.mxu0 %v584
  %5304 = vmatprep.subr.mxu0 %v573
  %5305 = vmatpush1.msra.mxu0 %v572
  %5306 = vmatprep.subr.mxu0 %v561
  %5307 = vmatpush1.msra.mxu0 %v560
  %5308 = vmatprep.subr.mxu0 %v549
  %5309 = vmatpush1.msra.mxu0 %v548
  %5310 = vmatprep.subr.mxu0 %v537
  %5311 = vmatpush1.msra.mxu0 %v536
  %5312 = vmatprep.subr.mxu0 %v525
  %5313 = vmatpush1.msra.mxu0 %v524
  %5314 = vmatprep.subr.mxu0 %v513
  %5315 = vmatpush1.msra.mxu0 %v512
  %5316 = vmatprep.subr.mxu0 %v501
  %5317 = vmatpush1.msra.mxu0 %v500
  %5318 = vmatprep.subr.mxu0 %v489
  %5319 = vmatpush1.msra.mxu0 %v488
  %5320 = vmatprep.subr.mxu0 %v477
  %5321 = vmatpush1.msra.mxu0 %v476
  %5322 = vmatprep.subr.mxu0 %v465
  %5323 = vmatpush1.msra.mxu0 %v464
  %5324 = vmatprep.subr.mxu0 %v453
  %5325 = vmatpush1.msra.mxu0 %v452
  %5326 = vmatprep.subr.mxu0 %v441
  %5327 = vmatpush1.msra.mxu0 %v440
  %5328 = vmatprep.subr.mxu0 %v429
  %5329 = vmatpush1.msra.mxu0 %v428
  %5330 = vmatprep.subr.mxu0 %v417
  %5331 = vmatpush1.msra.mxu0 %v416
  %5332 = vmatprep.subr.mxu0 %v789
  %5333 = vmatpush2.msra.mxu0 %v788
  %5334 = vmatprep.subr.mxu0 %v777
  %5335 = vmatpush2.msra.mxu0 %v776
  %5336 = vmatprep.subr.mxu0 %v765
  %5337 = vmatpush2.msra.mxu0 %v764
  %5338 = vmatprep.subr.mxu0 %v753
  %5339 = vmatpush2.msra.mxu0 %v752
  %5340 = vmatprep.subr.mxu0 %v741
  %5341 = vmatpush2.msra.mxu0 %v740
  %5342 = vmatprep.subr.mxu0 %v729
  %5343 = vmatpush2.msra.mxu0 %v728
  %5344 = vmatprep.subr.mxu0 %v717
  %5345 = vmatpush2.msra.mxu0 %v716
  %5346 = vmatprep.subr.mxu0 %v705
  %5347 = vmatpush2.msra.mxu0 %v704
  %5348 = vmatprep.subr.mxu0 %v693
  %5349 = vmatpush2.msra.mxu0 %v692
  %5350 = vmatprep.subr.mxu0 %v681
  %5351 = vmatpush2.msra.mxu0 %v680
  %5352 = vmatprep.subr.mxu0 %v669
  %5353 = vmatpush2.msra.mxu0 %v668
  %5354 = vmatprep.subr.mxu0 %v657
  %5355 = vmatpush2.msra.mxu0 %v656
  %5356 = vmatprep.subr.mxu0 %v645
  %5357 = vmatpush2.msra.mxu0 %v644
  %5358 = vmatprep.subr.mxu0 %v633
  %5359 = vmatpush2.msra.mxu0 %v632
  %5360 = vmatprep.subr.mxu0 %v621
  %5361 = vmatpush2.msra.mxu0 %v620
  %5362 = vmatprep.subr.mxu0 %v609
  %5363 = vmatpush2.msra.mxu0 %v608
  %5364 = vmatprep.mubr.f32.mxu0 %v4642
  %5365 = vmatmul.mubr.f32.gmra.mxu0 %v4641
  %v5366 = vpop.f32.mrf.mxu0
  %v5367 = vadd.f32 %v5296, %v5366
  %v5368 = vpop.f32.mrf.mxu0
  %v5369 = vadd.f32 %v5298, %v5368
  %5370 = vdwg.mxu0
  %5371 = vmatprep.subr.mxu0 %v215
  %5372 = vmatpush1.msra.mxu0 %v214
  %5373 = vmatprep.subr.mxu0 %v203
  %5374 = vmatpush1.msra.mxu0 %v202
  %5375 = vmatprep.subr.mxu0 %v191
  %5376 = vmatpush1.msra.mxu0 %v190
  %5377 = vmatprep.subr.mxu0 %v179
  %5378 = vmatpush1.msra.mxu0 %v178
  %5379 = vmatprep.subr.mxu0 %v167
  %5380 = vmatpush1.msra.mxu0 %v166
  %5381 = vmatprep.subr.mxu0 %v155
  %5382 = vmatpush1.msra.mxu0 %v154
  %5383 = vmatprep.subr.mxu0 %v143
  %5384 = vmatpush1.msra.mxu0 %v142
  %5385 = vmatprep.subr.mxu0 %v131
  %5386 = vmatpush1.msra.mxu0 %v130
  %5387 = vmatprep.subr.mxu0 %v119
  %5388 = vmatpush1.msra.mxu0 %v118
  %5389 = vmatprep.subr.mxu0 %v107
  %5390 = vmatpush1.msra.mxu0 %v106
  %5391 = vmatprep.subr.mxu0 %v95
  %5392 = vmatpush1.msra.mxu0 %v94
  %5393 = vmatprep.subr.mxu0 %v83
  %5394 = vmatpush1.msra.mxu0 %v82
  %5395 = vmatprep.subr.mxu0 %v71
  %5396 = vmatpush1.msra.mxu0 %v70
  %5397 = vmatprep.subr.mxu0 %v59
  %5398 = vmatpush1.msra.mxu0 %v58
  %5399 = vmatprep.subr.mxu0 %v47
  %5400 = vmatpush1.msra.mxu0 %v46
  %5401 = vmatprep.subr.mxu0 %v35
  %5402 = vmatpush1.msra.mxu0 %v34
  %5403 = vmatprep.subr.mxu0 %v407
  %5404 = vmatpush2.msra.mxu0 %v406
  %5405 = vmatprep.subr.mxu0 %v395
  %5406 = vmatpush2.msra.mxu0 %v394
  %5407 = vmatprep.subr.mxu0 %v383
  %5408 = vmatpush2.msra.mxu0 %v382
  %5409 = vmatprep.subr.mxu0 %v371
  %5410 = vmatpush2.msra.mxu0 %v370
  %5411 = vmatprep.subr.mxu0 %v359
  %5412 = vmatpush2.msra.mxu0 %v358
  %5413 = vmatprep.subr.mxu0 %v347
  %5414 = vmatpush2.msra.mxu0 %v346
  %5415 = vmatprep.subr.mxu0 %v335
  %5416 = vmatpush2.msra.mxu0 %v334
  %5417 = vmatprep.subr.mxu0 %v323
  %5418 = vmatpush2.msra.mxu0 %v322
  %5419 = vmatprep.subr.mxu0 %v311
  %5420 = vmatpush2.msra.mxu0 %v310
  %5421 = vmatprep.subr.mxu0 %v299
  %5422 = vmatpush2.msra.mxu0 %v298
  %5423 = vmatprep.subr.mxu0 %v287
  %5424 = vmatpush2.msra.mxu0 %v286
  %5425 = vmatprep.subr.mxu0 %v275
  %5426 = vmatpush2.msra.mxu0 %v274
  %5427 = vmatprep.subr.mxu0 %v263
  %5428 = vmatpush2.msra.mxu0 %v262
  %5429 = vmatprep.subr.mxu0 %v251
  %5430 = vmatpush2.msra.mxu0 %v250
  %5431 = vmatprep.subr.mxu0 %v239
  %5432 = vmatpush2.msra.mxu0 %v238
  %5433 = vmatprep.subr.mxu0 %v227
  %5434 = vmatpush2.msra.mxu0 %v226
  %5435 = vmatprep.mubr.f32.mxu0 %v4640
  %5436 = vmatmul.mubr.f32.gmra.mxu0 %v4639
  %v5437 = vpop.f32.mrf.mxu0
  %v5438 = vadd.f32 0.0, %v5437
  %v5439 = vpop.f32.mrf.mxu0
  %v5440 = vadd.f32 0.0, %v5439
  %5441 = vdwg.mxu0
  %5442 = vmatprep.subr.mxu0 %v599
  %5443 = vmatpush1.msra.mxu0 %v598
  %5444 = vmatprep.subr.mxu0 %v587
  %5445 = vmatpush1.msra.mxu0 %v586
  %5446 = vmatprep.subr.mxu0 %v575
  %5447 = vmatpush1.msra.mxu0 %v574
  %5448 = vmatprep.subr.mxu0 %v563
  %5449 = vmatpush1.msra.mxu0 %v562
  %5450 = vmatprep.subr.mxu0 %v551
  %5451 = vmatpush1.msra.mxu0 %v550
  %5452 = vmatprep.subr.mxu0 %v539
  %5453 = vmatpush1.msra.mxu0 %v538
  %5454 = vmatprep.subr.mxu0 %v527
  %5455 = vmatpush1.msra.mxu0 %v526
  %5456 = vmatprep.subr.mxu0 %v515
  %5457 = vmatpush1.msra.mxu0 %v514
  %5458 = vmatprep.subr.mxu0 %v503
  %5459 = vmatpush1.msra.mxu0 %v502
  %5460 = vmatprep.subr.mxu0 %v491
  %5461 = vmatpush1.msra.mxu0 %v490
  %5462 = vmatprep.subr.mxu0 %v479
  %5463 = vmatpush1.msra.mxu0 %v478
  %5464 = vmatprep.subr.mxu0 %v467
  %5465 = vmatpush1.msra.mxu0 %v466
  %5466 = vmatprep.subr.mxu0 %v455
  %5467 = vmatpush1.msra.mxu0 %v454
  %5468 = vmatprep.subr.mxu0 %v443
  %5469 = vmatpush1.msra.mxu0 %v442
  %5470 = vmatprep.subr.mxu0 %v431
  %5471 = vmatpush1.msra.mxu0 %v430
  %5472 = vmatprep.subr.mxu0 %v419
  %5473 = vmatpush1.msra.mxu0 %v418
  %5474 = vmatprep.subr.mxu0 %v791
  %5475 = vmatpush2.msra.mxu0 %v790
  %5476 = vmatprep.subr.mxu0 %v779
  %5477 = vmatpush2.msra.mxu0 %v778
  %5478 = vmatprep.subr.mxu0 %v767
  %5479 = vmatpush2.msra.mxu0 %v766
  %5480 = vmatprep.subr.mxu0 %v755
  %5481 = vmatpush2.msra.mxu0 %v754
  %5482 = vmatprep.subr.mxu0 %v743
  %5483 = vmatpush2.msra.mxu0 %v742
  %5484 = vmatprep.subr.mxu0 %v731
  %5485 = vmatpush2.msra.mxu0 %v730
  %5486 = vmatprep.subr.mxu0 %v719
  %5487 = vmatpush2.msra.mxu0 %v718
  %5488 = vmatprep.subr.mxu0 %v707
  %5489 = vmatpush2.msra.mxu0 %v706
  %5490 = vmatprep.subr.mxu0 %v695
  %5491 = vmatpush2.msra.mxu0 %v694
  %5492 = vmatprep.subr.mxu0 %v683
  %5493 = vmatpush2.msra.mxu0 %v682
  %5494 = vmatprep.subr.mxu0 %v671
  %5495 = vmatpush2.msra.mxu0 %v670
  %5496 = vmatprep.subr.mxu0 %v659
  %5497 = vmatpush2.msra.mxu0 %v658
  %5498 = vmatprep.subr.mxu0 %v647
  %5499 = vmatpush2.msra.mxu0 %v646
  %5500 = vmatprep.subr.mxu0 %v635
  %5501 = vmatpush2.msra.mxu0 %v634
  %5502 = vmatprep.subr.mxu0 %v623
  %5503 = vmatpush2.msra.mxu0 %v622
  %5504 = vmatprep.subr.mxu0 %v611
  %5505 = vmatpush2.msra.mxu0 %v610
  %5506 = vmatprep.mubr.f32.mxu0 %v4642
  %5507 = vmatmul.mubr.f32.gmra.mxu0 %v4641
  %v5508 = vpop.f32.mrf.mxu0
  %v5509 = vadd.f32 %v5438, %v5508
  %v5510 = vpop.f32.mrf.mxu0
  %v5511 = vadd.f32 %v5440, %v5510
  %5512 = vdwg.mxu0
  %v5513 = vadd.f32 %v4649, %v4799
  %v5514 = vadd.f32 %v4650, %v4801
  %v5515 = vadd.f32 %v4651, %v4941
  %v5516 = vadd.f32 %v4652, %v4943
  %v5517 = vxor.u32 %v5513, 2147483648
  %v5518 = vxor.u32 %v5514, 2147483648
  %v5519 = vxor.u32 %v5515, 2147483648
  %v5520 = vxor.u32 %v5516, 2147483648
  %v5521 = vmul.f32 %v5517, 1.442695
  %v5522 = vpow.pop %v5521
  %v5523 = vmul.f32 %v5518, 1.442695
  %v5524 = vpow.pop %v5523
  %v5525 = vmul.f32 %v5519, 1.442695
  %v5526 = vpow.pop %v5525
  %v5527 = vmul.f32 %v5520, 1.442695
  %v5528 = vpow.pop %v5527
  %v5529 = vadd.f32 %v5522, 1.0
  %v5530 = vadd.f32 %v5524, 1.0
  %v5531 = vadd.f32 %v5526, 1.0
  %v5532 = vadd.f32 %v5528, 1.0
  %v5533 = vrcp.pop %v5529
  %v5534 = vmul.f32 1.0, %v5533
  %v5535 = vrcp.pop %v5530
  %v5536 = vmul.f32 1.0, %v5535
  %v5537 = vrcp.pop %v5531
  %v5538 = vmul.f32 1.0, %v5537
  %v5539 = vrcp.pop %v5532
  %v5540 = vmul.f32 1.0, %v5539
  %v5541 = vadd.f32 %v4653, %v5083
  %v5542 = vadd.f32 %v4654, %v5085
  %v5543 = vadd.f32 %v4655, %v5225
  %v5544 = vadd.f32 %v4656, %v5227
  %v5545 = vxor.u32 %v5541, 2147483648
  %v5546 = vxor.u32 %v5542, 2147483648
  %v5547 = vxor.u32 %v5543, 2147483648
  %v5548 = vxor.u32 %v5544, 2147483648
  %v5549 = vmul.f32 %v5545, 1.442695
  %v5550 = vpow.pop %v5549
  %v5551 = vmul.f32 %v5546, 1.442695
  %v5552 = vpow.pop %v5551
  %v5553 = vmul.f32 %v5547, 1.442695
  %v5554 = vpow.pop %v5553
  %v5555 = vmul.f32 %v5548, 1.442695
  %v5556 = vpow.pop %v5555
  %v5557 = vadd.f32 %v5550, 1.0
  %v5558 = vadd.f32 %v5552, 1.0
  %v5559 = vadd.f32 %v5554, 1.0
  %v5560 = vadd.f32 %v5556, 1.0
  %v5561 = vrcp.pop %v5557
  %v5562 = vmul.f32 1.0, %v5561
  %v5563 = vrcp.pop %v5558
  %v5564 = vmul.f32 1.0, %v5563
  %v5565 = vrcp.pop %v5559
  %v5566 = vmul.f32 1.0, %v5565
  %v5567 = vrcp.pop %v5560
  %v5568 = vmul.f32 1.0, %v5567
  %v5569 = vadd.f32 %v5367, %v1721
  %v5570 = vadd.f32 %v5369, %v1725
  %v5571 = vadd.f32 %v5509, %v1729
  %v5572 = vadd.f32 %v5511, %v1733
  %v5573 = vmul.f32 %v5534, %v5569
  %v5574 = vmul.f32 %v5536, %v5570
  %v5575 = vmul.f32 %v5538, %v5571
  %v5576 = vmul.f32 %v5540, %v5572
  %v5577 = vadd.f32 %v4657, %v5573
  %v5578 = vadd.f32 %v4658, %v5574
  %v5579 = vadd.f32 %v4659, %v5575
  %v5580 = vadd.f32 %v4660, %v5576
  %v5581 = vtanh.pop %v5577
  %v5582 = vtanh.pop %v5578
  %v5583 = vtanh.pop %v5579
  %v5584 = vtanh.pop %v5580
  %v5585 = vsub.f32 1.0, %v5562
  %v5586 = vsub.f32 1.0, %v5564
  %v5587 = vsub.f32 1.0, %v5566
  %v5588 = vsub.f32 1.0, %v5568
  %v5589 = vmul.f32 %v5585, %v5581
  %v5590 = vmul.f32 %v5586, %v5582
  %v5591 = vmul.f32 %v5587, %v5583
  %v5592 = vmul.f32 %v5588, %v5584
  %v5593 = vmul.f32 %v5562, %v4639
  %v5594 = vmul.f32 %v5564, %v4640
  %v5595 = vmul.f32 %v5566, %v4641
  %v5596 = vmul.f32 %v5568, %v4642
  %v5597 = vadd.f32 %v5589, %v5593
  %v5598 = vadd.f32 %v5590, %v5594
  %v5599 = vadd.f32 %v5591, %v5595
  %v5600 = vadd.f32 %v5592, %v5596
  %s5601 = scalar_lea.vmem %s3, 128
  %5602 = vst [vmem:[%s5601] sm:$0xff] %v5597
  %5603 = vst [vmem:[%s5601 + $0x8] sm:$0xff] %v5598
  %5604 = vst [vmem:[%s5601 + $0x10] sm:$0xff] %v5599
  %5605 = vst [vmem:[%s5601 + $0x18] sm:$0xff] %v5600
  %s5606 = scalar_lea.vmem %s0, 480
  %v5607 = vld [vmem:[%s5606] sm:$0xff]
  %v5608 = vld [vmem:[%s5606 + $0x8] sm:$0xff]
  %v5609 = vld [vmem:[%s5606 + $0x10] sm:$0xff]
  %v5610 = vld [vmem:[%s5606 + $0x18] sm:$0xff]
  %v5611 = vld [vmem:[%s5606 + $0x20] sm:$0xff]
  %v5612 = vld [vmem:[%s5606 + $0x28] sm:$0xff]
  %v5613 = vld [vmem:[%s5606 + $0x30] sm:$0xff]
  %v5614 = vld [vmem:[%s5606 + $0x38] sm:$0xff]
  %v5615 = vld [vmem:[%s5606 + $0x40] sm:$0xff]
  %v5616 = vld [vmem:[%s5606 + $0x48] sm:$0xff]
  %v5617 = vld [vmem:[%s5606 + $0x50] sm:$0xff]
  %v5618 = vld [vmem:[%s5606 + $0x58] sm:$0xff]
  %5619 = vmatprep.subr.mxu0 %v205
  %5620 = vmatpush1.msra.mxu0 %v204
  %5621 = vmatprep.subr.mxu0 %v193
  %5622 = vmatpush1.msra.mxu0 %v192
  %5623 = vmatprep.subr.mxu0 %v181
  %5624 = vmatpush1.msra.mxu0 %v180
  %5625 = vmatprep.subr.mxu0 %v169
  %5626 = vmatpush1.msra.mxu0 %v168
  %5627 = vmatprep.subr.mxu0 %v157
  %5628 = vmatpush1.msra.mxu0 %v156
  %5629 = vmatprep.subr.mxu0 %v145
  %5630 = vmatpush1.msra.mxu0 %v144
  %5631 = vmatprep.subr.mxu0 %v133
  %5632 = vmatpush1.msra.mxu0 %v132
  %5633 = vmatprep.subr.mxu0 %v121
  %5634 = vmatpush1.msra.mxu0 %v120
  %5635 = vmatprep.subr.mxu0 %v109
  %5636 = vmatpush1.msra.mxu0 %v108
  %5637 = vmatprep.subr.mxu0 %v97
  %5638 = vmatpush1.msra.mxu0 %v96
  %5639 = vmatprep.subr.mxu0 %v85
  %5640 = vmatpush1.msra.mxu0 %v84
  %5641 = vmatprep.subr.mxu0 %v73
  %5642 = vmatpush1.msra.mxu0 %v72
  %5643 = vmatprep.subr.mxu0 %v61
  %5644 = vmatpush1.msra.mxu0 %v60
  %5645 = vmatprep.subr.mxu0 %v49
  %5646 = vmatpush1.msra.mxu0 %v48
  %5647 = vmatprep.subr.mxu0 %v37
  %5648 = vmatpush1.msra.mxu0 %v36
  %5649 = vmatprep.subr.mxu0 %v25
  %5650 = vmatpush1.msra.mxu0 %v24
  %5651 = vmatprep.subr.mxu0 %v397
  %5652 = vmatpush2.msra.mxu0 %v396
  %5653 = vmatprep.subr.mxu0 %v385
  %5654 = vmatpush2.msra.mxu0 %v384
  %5655 = vmatprep.subr.mxu0 %v373
  %5656 = vmatpush2.msra.mxu0 %v372
  %5657 = vmatprep.subr.mxu0 %v361
  %5658 = vmatpush2.msra.mxu0 %v360
  %5659 = vmatprep.subr.mxu0 %v349
  %5660 = vmatpush2.msra.mxu0 %v348
  %5661 = vmatprep.subr.mxu0 %v337
  %5662 = vmatpush2.msra.mxu0 %v336
  %5663 = vmatprep.subr.mxu0 %v325
  %5664 = vmatpush2.msra.mxu0 %v324
  %5665 = vmatprep.subr.mxu0 %v313
  %5666 = vmatpush2.msra.mxu0 %v312
  %5667 = vmatprep.subr.mxu0 %v301
  %5668 = vmatpush2.msra.mxu0 %v300
  %5669 = vmatprep.subr.mxu0 %v289
  %5670 = vmatpush2.msra.mxu0 %v288
  %5671 = vmatprep.subr.mxu0 %v277
  %5672 = vmatpush2.msra.mxu0 %v276
  %5673 = vmatprep.subr.mxu0 %v265
  %5674 = vmatpush2.msra.mxu0 %v264
  %5675 = vmatprep.subr.mxu0 %v253
  %5676 = vmatpush2.msra.mxu0 %v252
  %5677 = vmatprep.subr.mxu0 %v241
  %5678 = vmatpush2.msra.mxu0 %v240
  %5679 = vmatprep.subr.mxu0 %v229
  %5680 = vmatpush2.msra.mxu0 %v228
  %5681 = vmatprep.subr.mxu0 %v217
  %5682 = vmatpush2.msra.mxu0 %v216
  %5683 = vmatprep.mubr.f32.mxu0 %v5598
  %5684 = vmatmul.mubr.f32.gmra.mxu0 %v5597
  %v5685 = vpop.f32.mrf.mxu0
  %v5686 = vadd.f32 0.0, %v5685
  %v5687 = vpop.f32.mrf.mxu0
  %v5688 = vadd.f32 0.0, %v5687
  %5689 = vdwg.mxu0
  %5690 = vmatprep.subr.mxu0 %v589
  %5691 = vmatpush1.msra.mxu0 %v588
  %5692 = vmatprep.subr.mxu0 %v577
  %5693 = vmatpush1.msra.mxu0 %v576
  %5694 = vmatprep.subr.mxu0 %v565
  %5695 = vmatpush1.msra.mxu0 %v564
  %5696 = vmatprep.subr.mxu0 %v553
  %5697 = vmatpush1.msra.mxu0 %v552
  %5698 = vmatprep.subr.mxu0 %v541
  %5699 = vmatpush1.msra.mxu0 %v540
  %5700 = vmatprep.subr.mxu0 %v529
  %5701 = vmatpush1.msra.mxu0 %v528
  %5702 = vmatprep.subr.mxu0 %v517
  %5703 = vmatpush1.msra.mxu0 %v516
  %5704 = vmatprep.subr.mxu0 %v505
  %5705 = vmatpush1.msra.mxu0 %v504
  %5706 = vmatprep.subr.mxu0 %v493
  %5707 = vmatpush1.msra.mxu0 %v492
  %5708 = vmatprep.subr.mxu0 %v481
  %5709 = vmatpush1.msra.mxu0 %v480
  %5710 = vmatprep.subr.mxu0 %v469
  %5711 = vmatpush1.msra.mxu0 %v468
  %5712 = vmatprep.subr.mxu0 %v457
  %5713 = vmatpush1.msra.mxu0 %v456
  %5714 = vmatprep.subr.mxu0 %v445
  %5715 = vmatpush1.msra.mxu0 %v444
  %5716 = vmatprep.subr.mxu0 %v433
  %5717 = vmatpush1.msra.mxu0 %v432
  %5718 = vmatprep.subr.mxu0 %v421
  %5719 = vmatpush1.msra.mxu0 %v420
  %5720 = vmatprep.subr.mxu0 %v409
  %5721 = vmatpush1.msra.mxu0 %v408
  %5722 = vmatprep.subr.mxu0 %v781
  %5723 = vmatpush2.msra.mxu0 %v780
  %5724 = vmatprep.subr.mxu0 %v769
  %5725 = vmatpush2.msra.mxu0 %v768
  %5726 = vmatprep.subr.mxu0 %v757
  %5727 = vmatpush2.msra.mxu0 %v756
  %5728 = vmatprep.subr.mxu0 %v745
  %5729 = vmatpush2.msra.mxu0 %v744
  %5730 = vmatprep.subr.mxu0 %v733
  %5731 = vmatpush2.msra.mxu0 %v732
  %5732 = vmatprep.subr.mxu0 %v721
  %5733 = vmatpush2.msra.mxu0 %v720
  %5734 = vmatprep.subr.mxu0 %v709
  %5735 = vmatpush2.msra.mxu0 %v708
  %5736 = vmatprep.subr.mxu0 %v697
  %5737 = vmatpush2.msra.mxu0 %v696
  %5738 = vmatprep.subr.mxu0 %v685
  %5739 = vmatpush2.msra.mxu0 %v684
  %5740 = vmatprep.subr.mxu0 %v673
  %5741 = vmatpush2.msra.mxu0 %v672
  %5742 = vmatprep.subr.mxu0 %v661
  %5743 = vmatpush2.msra.mxu0 %v660
  %5744 = vmatprep.subr.mxu0 %v649
  %5745 = vmatpush2.msra.mxu0 %v648
  %5746 = vmatprep.subr.mxu0 %v637
  %5747 = vmatpush2.msra.mxu0 %v636
  %5748 = vmatprep.subr.mxu0 %v625
  %5749 = vmatpush2.msra.mxu0 %v624
  %5750 = vmatprep.subr.mxu0 %v613
  %5751 = vmatpush2.msra.mxu0 %v612
  %5752 = vmatprep.subr.mxu0 %v601
  %5753 = vmatpush2.msra.mxu0 %v600
  %5754 = vmatprep.mubr.f32.mxu0 %v5600
  %5755 = vmatmul.mubr.f32.gmra.mxu0 %v5599
  %v5756 = vpop.f32.mrf.mxu0
  %v5757 = vadd.f32 %v5686, %v5756
  %v5758 = vpop.f32.mrf.mxu0
  %v5759 = vadd.f32 %v5688, %v5758
  %5760 = vdwg.mxu0
  %5761 = vmatprep.subr.mxu0 %v207
  %5762 = vmatpush1.msra.mxu0 %v206
  %5763 = vmatprep.subr.mxu0 %v195
  %5764 = vmatpush1.msra.mxu0 %v194
  %5765 = vmatprep.subr.mxu0 %v183
  %5766 = vmatpush1.msra.mxu0 %v182
  %5767 = vmatprep.subr.mxu0 %v171
  %5768 = vmatpush1.msra.mxu0 %v170
  %5769 = vmatprep.subr.mxu0 %v159
  %5770 = vmatpush1.msra.mxu0 %v158
  %5771 = vmatprep.subr.mxu0 %v147
  %5772 = vmatpush1.msra.mxu0 %v146
  %5773 = vmatprep.subr.mxu0 %v135
  %5774 = vmatpush1.msra.mxu0 %v134
  %5775 = vmatprep.subr.mxu0 %v123
  %5776 = vmatpush1.msra.mxu0 %v122
  %5777 = vmatprep.subr.mxu0 %v111
  %5778 = vmatpush1.msra.mxu0 %v110
  %5779 = vmatprep.subr.mxu0 %v99
  %5780 = vmatpush1.msra.mxu0 %v98
  %5781 = vmatprep.subr.mxu0 %v87
  %5782 = vmatpush1.msra.mxu0 %v86
  %5783 = vmatprep.subr.mxu0 %v75
  %5784 = vmatpush1.msra.mxu0 %v74
  %5785 = vmatprep.subr.mxu0 %v63
  %5786 = vmatpush1.msra.mxu0 %v62
  %5787 = vmatprep.subr.mxu0 %v51
  %5788 = vmatpush1.msra.mxu0 %v50
  %5789 = vmatprep.subr.mxu0 %v39
  %5790 = vmatpush1.msra.mxu0 %v38
  %5791 = vmatprep.subr.mxu0 %v27
  %5792 = vmatpush1.msra.mxu0 %v26
  %5793 = vmatprep.subr.mxu0 %v399
  %5794 = vmatpush2.msra.mxu0 %v398
  %5795 = vmatprep.subr.mxu0 %v387
  %5796 = vmatpush2.msra.mxu0 %v386
  %5797 = vmatprep.subr.mxu0 %v375
  %5798 = vmatpush2.msra.mxu0 %v374
  %5799 = vmatprep.subr.mxu0 %v363
  %5800 = vmatpush2.msra.mxu0 %v362
  %5801 = vmatprep.subr.mxu0 %v351
  %5802 = vmatpush2.msra.mxu0 %v350
  %5803 = vmatprep.subr.mxu0 %v339
  %5804 = vmatpush2.msra.mxu0 %v338
  %5805 = vmatprep.subr.mxu0 %v327
  %5806 = vmatpush2.msra.mxu0 %v326
  %5807 = vmatprep.subr.mxu0 %v315
  %5808 = vmatpush2.msra.mxu0 %v314
  %5809 = vmatprep.subr.mxu0 %v303
  %5810 = vmatpush2.msra.mxu0 %v302
  %5811 = vmatprep.subr.mxu0 %v291
  %5812 = vmatpush2.msra.mxu0 %v290
  %5813 = vmatprep.subr.mxu0 %v279
  %5814 = vmatpush2.msra.mxu0 %v278
  %5815 = vmatprep.subr.mxu0 %v267
  %5816 = vmatpush2.msra.mxu0 %v266
  %5817 = vmatprep.subr.mxu0 %v255
  %5818 = vmatpush2.msra.mxu0 %v254
  %5819 = vmatprep.subr.mxu0 %v243
  %5820 = vmatpush2.msra.mxu0 %v242
  %5821 = vmatprep.subr.mxu0 %v231
  %5822 = vmatpush2.msra.mxu0 %v230
  %5823 = vmatprep.subr.mxu0 %v219
  %5824 = vmatpush2.msra.mxu0 %v218
  %5825 = vmatprep.mubr.f32.mxu0 %v5598
  %5826 = vmatmul.mubr.f32.gmra.mxu0 %v5597
  %v5827 = vpop.f32.mrf.mxu0
  %v5828 = vadd.f32 0.0, %v5827
  %v5829 = vpop.f32.mrf.mxu0
  %v5830 = vadd.f32 0.0, %v5829
  %5831 = vdwg.mxu0
  %5832 = vmatprep.subr.mxu0 %v591
  %5833 = vmatpush1.msra.mxu0 %v590
  %5834 = vmatprep.subr.mxu0 %v579
  %5835 = vmatpush1.msra.mxu0 %v578
  %5836 = vmatprep.subr.mxu0 %v567
  %5837 = vmatpush1.msra.mxu0 %v566
  %5838 = vmatprep.subr.mxu0 %v555
  %5839 = vmatpush1.msra.mxu0 %v554
  %5840 = vmatprep.subr.mxu0 %v543
  %5841 = vmatpush1.msra.mxu0 %v542
  %5842 = vmatprep.subr.mxu0 %v531
  %5843 = vmatpush1.msra.mxu0 %v530
  %5844 = vmatprep.subr.mxu0 %v519
  %5845 = vmatpush1.msra.mxu0 %v518
  %5846 = vmatprep.subr.mxu0 %v507
  %5847 = vmatpush1.msra.mxu0 %v506
  %5848 = vmatprep.subr.mxu0 %v495
  %5849 = vmatpush1.msra.mxu0 %v494
  %5850 = vmatprep.subr.mxu0 %v483
  %5851 = vmatpush1.msra.mxu0 %v482
  %5852 = vmatprep.subr.mxu0 %v471
  %5853 = vmatpush1.msra.mxu0 %v470
  %5854 = vmatprep.subr.mxu0 %v459
  %5855 = vmatpush1.msra.mxu0 %v458
  %5856 = vmatprep.subr.mxu0 %v447
  %5857 = vmatpush1.msra.mxu0 %v446
  %5858 = vmatprep.subr.mxu0 %v435
  %5859 = vmatpush1.msra.mxu0 %v434
  %5860 = vmatprep.subr.mxu0 %v423
  %5861 = vmatpush1.msra.mxu0 %v422
  %5862 = vmatprep.subr.mxu0 %v411
  %5863 = vmatpush1.msra.mxu0 %v410
  %5864 = vmatprep.subr.mxu0 %v783
  %5865 = vmatpush2.msra.mxu0 %v782
  %5866 = vmatprep.subr.mxu0 %v771
  %5867 = vmatpush2.msra.mxu0 %v770
  %5868 = vmatprep.subr.mxu0 %v759
  %5869 = vmatpush2.msra.mxu0 %v758
  %5870 = vmatprep.subr.mxu0 %v747
  %5871 = vmatpush2.msra.mxu0 %v746
  %5872 = vmatprep.subr.mxu0 %v735
  %5873 = vmatpush2.msra.mxu0 %v734
  %5874 = vmatprep.subr.mxu0 %v723
  %5875 = vmatpush2.msra.mxu0 %v722
  %5876 = vmatprep.subr.mxu0 %v711
  %5877 = vmatpush2.msra.mxu0 %v710
  %5878 = vmatprep.subr.mxu0 %v699
  %5879 = vmatpush2.msra.mxu0 %v698
  %5880 = vmatprep.subr.mxu0 %v687
  %5881 = vmatpush2.msra.mxu0 %v686
  %5882 = vmatprep.subr.mxu0 %v675
  %5883 = vmatpush2.msra.mxu0 %v674
  %5884 = vmatprep.subr.mxu0 %v663
  %5885 = vmatpush2.msra.mxu0 %v662
  %5886 = vmatprep.subr.mxu0 %v651
  %5887 = vmatpush2.msra.mxu0 %v650
  %5888 = vmatprep.subr.mxu0 %v639
  %5889 = vmatpush2.msra.mxu0 %v638
  %5890 = vmatprep.subr.mxu0 %v627
  %5891 = vmatpush2.msra.mxu0 %v626
  %5892 = vmatprep.subr.mxu0 %v615
  %5893 = vmatpush2.msra.mxu0 %v614
  %5894 = vmatprep.subr.mxu0 %v603
  %5895 = vmatpush2.msra.mxu0 %v602
  %5896 = vmatprep.mubr.f32.mxu0 %v5600
  %5897 = vmatmul.mubr.f32.gmra.mxu0 %v5599
  %v5898 = vpop.f32.mrf.mxu0
  %v5899 = vadd.f32 %v5828, %v5898
  %v5900 = vpop.f32.mrf.mxu0
  %v5901 = vadd.f32 %v5830, %v5900
  %5902 = vdwg.mxu0
  %5903 = vmatprep.subr.mxu0 %v209
  %5904 = vmatpush1.msra.mxu0 %v208
  %5905 = vmatprep.subr.mxu0 %v197
  %5906 = vmatpush1.msra.mxu0 %v196
  %5907 = vmatprep.subr.mxu0 %v185
  %5908 = vmatpush1.msra.mxu0 %v184
  %5909 = vmatprep.subr.mxu0 %v173
  %5910 = vmatpush1.msra.mxu0 %v172
  %5911 = vmatprep.subr.mxu0 %v161
  %5912 = vmatpush1.msra.mxu0 %v160
  %5913 = vmatprep.subr.mxu0 %v149
  %5914 = vmatpush1.msra.mxu0 %v148
  %5915 = vmatprep.subr.mxu0 %v137
  %5916 = vmatpush1.msra.mxu0 %v136
  %5917 = vmatprep.subr.mxu0 %v125
  %5918 = vmatpush1.msra.mxu0 %v124
  %5919 = vmatprep.subr.mxu0 %v113
  %5920 = vmatpush1.msra.mxu0 %v112
  %5921 = vmatprep.subr.mxu0 %v101
  %5922 = vmatpush1.msra.mxu0 %v100
  %5923 = vmatprep.subr.mxu0 %v89
  %5924 = vmatpush1.msra.mxu0 %v88
  %5925 = vmatprep.subr.mxu0 %v77
  %5926 = vmatpush1.msra.mxu0 %v76
  %5927 = vmatprep.subr.mxu0 %v65
  %5928 = vmatpush1.msra.mxu0 %v64
  %5929 = vmatprep.subr.mxu0 %v53
  %5930 = vmatpush1.msra.mxu0 %v52
  %5931 = vmatprep.subr.mxu0 %v41
  %5932 = vmatpush1.msra.mxu0 %v40
  %5933 = vmatprep.subr.mxu0 %v29
  %5934 = vmatpush1.msra.mxu0 %v28
  %5935 = vmatprep.subr.mxu0 %v401
  %5936 = vmatpush2.msra.mxu0 %v400
  %5937 = vmatprep.subr.mxu0 %v389
  %5938 = vmatpush2.msra.mxu0 %v388
  %5939 = vmatprep.subr.mxu0 %v377
  %5940 = vmatpush2.msra.mxu0 %v376
  %5941 = vmatprep.subr.mxu0 %v365
  %5942 = vmatpush2.msra.mxu0 %v364
  %5943 = vmatprep.subr.mxu0 %v353
  %5944 = vmatpush2.msra.mxu0 %v352
  %5945 = vmatprep.subr.mxu0 %v341
  %5946 = vmatpush2.msra.mxu0 %v340
  %5947 = vmatprep.subr.mxu0 %v329
  %5948 = vmatpush2.msra.mxu0 %v328
  %5949 = vmatprep.subr.mxu0 %v317
  %5950 = vmatpush2.msra.mxu0 %v316
  %5951 = vmatprep.subr.mxu0 %v305
  %5952 = vmatpush2.msra.mxu0 %v304
  %5953 = vmatprep.subr.mxu0 %v293
  %5954 = vmatpush2.msra.mxu0 %v292
  %5955 = vmatprep.subr.mxu0 %v281
  %5956 = vmatpush2.msra.mxu0 %v280
  %5957 = vmatprep.subr.mxu0 %v269
  %5958 = vmatpush2.msra.mxu0 %v268
  %5959 = vmatprep.subr.mxu0 %v257
  %5960 = vmatpush2.msra.mxu0 %v256
  %5961 = vmatprep.subr.mxu0 %v245
  %5962 = vmatpush2.msra.mxu0 %v244
  %5963 = vmatprep.subr.mxu0 %v233
  %5964 = vmatpush2.msra.mxu0 %v232
  %5965 = vmatprep.subr.mxu0 %v221
  %5966 = vmatpush2.msra.mxu0 %v220
  %5967 = vmatprep.mubr.f32.mxu0 %v5598
  %5968 = vmatmul.mubr.f32.gmra.mxu0 %v5597
  %v5969 = vpop.f32.mrf.mxu0
  %v5970 = vadd.f32 0.0, %v5969
  %v5971 = vpop.f32.mrf.mxu0
  %v5972 = vadd.f32 0.0, %v5971
  %5973 = vdwg.mxu0
  %5974 = vmatprep.subr.mxu0 %v593
  %5975 = vmatpush1.msra.mxu0 %v592
  %5976 = vmatprep.subr.mxu0 %v581
  %5977 = vmatpush1.msra.mxu0 %v580
  %5978 = vmatprep.subr.mxu0 %v569
  %5979 = vmatpush1.msra.mxu0 %v568
  %5980 = vmatprep.subr.mxu0 %v557
  %5981 = vmatpush1.msra.mxu0 %v556
  %5982 = vmatprep.subr.mxu0 %v545
  %5983 = vmatpush1.msra.mxu0 %v544
  %5984 = vmatprep.subr.mxu0 %v533
  %5985 = vmatpush1.msra.mxu0 %v532
  %5986 = vmatprep.subr.mxu0 %v521
  %5987 = vmatpush1.msra.mxu0 %v520
  %5988 = vmatprep.subr.mxu0 %v509
  %5989 = vmatpush1.msra.mxu0 %v508
  %5990 = vmatprep.subr.mxu0 %v497
  %5991 = vmatpush1.msra.mxu0 %v496
  %5992 = vmatprep.subr.mxu0 %v485
  %5993 = vmatpush1.msra.mxu0 %v484
  %5994 = vmatprep.subr.mxu0 %v473
  %5995 = vmatpush1.msra.mxu0 %v472
  %5996 = vmatprep.subr.mxu0 %v461
  %5997 = vmatpush1.msra.mxu0 %v460
  %5998 = vmatprep.subr.mxu0 %v449
  %5999 = vmatpush1.msra.mxu0 %v448
  %6000 = vmatprep.subr.mxu0 %v437
  %6001 = vmatpush1.msra.mxu0 %v436
  %6002 = vmatprep.subr.mxu0 %v425
  %6003 = vmatpush1.msra.mxu0 %v424
  %6004 = vmatprep.subr.mxu0 %v413
  %6005 = vmatpush1.msra.mxu0 %v412
  %6006 = vmatprep.subr.mxu0 %v785
  %6007 = vmatpush2.msra.mxu0 %v784
  %6008 = vmatprep.subr.mxu0 %v773
  %6009 = vmatpush2.msra.mxu0 %v772
  %6010 = vmatprep.subr.mxu0 %v761
  %6011 = vmatpush2.msra.mxu0 %v760
  %6012 = vmatprep.subr.mxu0 %v749
  %6013 = vmatpush2.msra.mxu0 %v748
  %6014 = vmatprep.subr.mxu0 %v737
  %6015 = vmatpush2.msra.mxu0 %v736
  %6016 = vmatprep.subr.mxu0 %v725
  %6017 = vmatpush2.msra.mxu0 %v724
  %6018 = vmatprep.subr.mxu0 %v713
  %6019 = vmatpush2.msra.mxu0 %v712
  %6020 = vmatprep.subr.mxu0 %v701
  %6021 = vmatpush2.msra.mxu0 %v700
  %6022 = vmatprep.subr.mxu0 %v689
  %6023 = vmatpush2.msra.mxu0 %v688
  %6024 = vmatprep.subr.mxu0 %v677
  %6025 = vmatpush2.msra.mxu0 %v676
  %6026 = vmatprep.subr.mxu0 %v665
  %6027 = vmatpush2.msra.mxu0 %v664
  %6028 = vmatprep.subr.mxu0 %v653
  %6029 = vmatpush2.msra.mxu0 %v652
  %6030 = vmatprep.subr.mxu0 %v641
  %6031 = vmatpush2.msra.mxu0 %v640
  %6032 = vmatprep.subr.mxu0 %v629
  %6033 = vmatpush2.msra.mxu0 %v628
  %6034 = vmatprep.subr.mxu0 %v617
  %6035 = vmatpush2.msra.mxu0 %v616
  %6036 = vmatprep.subr.mxu0 %v605
  %6037 = vmatpush2.msra.mxu0 %v604
  %6038 = vmatprep.mubr.f32.mxu0 %v5600
  %6039 = vmatmul.mubr.f32.gmra.mxu0 %v5599
  %v6040 = vpop.f32.mrf.mxu0
  %v6041 = vadd.f32 %v5970, %v6040
  %v6042 = vpop.f32.mrf.mxu0
  %v6043 = vadd.f32 %v5972, %v6042
  %6044 = vdwg.mxu0
  %6045 = vmatprep.subr.mxu0 %v211
  %6046 = vmatpush1.msra.mxu0 %v210
  %6047 = vmatprep.subr.mxu0 %v199
  %6048 = vmatpush1.msra.mxu0 %v198
  %6049 = vmatprep.subr.mxu0 %v187
  %6050 = vmatpush1.msra.mxu0 %v186
  %6051 = vmatprep.subr.mxu0 %v175
  %6052 = vmatpush1.msra.mxu0 %v174
  %6053 = vmatprep.subr.mxu0 %v163
  %6054 = vmatpush1.msra.mxu0 %v162
  %6055 = vmatprep.subr.mxu0 %v151
  %6056 = vmatpush1.msra.mxu0 %v150
  %6057 = vmatprep.subr.mxu0 %v139
  %6058 = vmatpush1.msra.mxu0 %v138
  %6059 = vmatprep.subr.mxu0 %v127
  %6060 = vmatpush1.msra.mxu0 %v126
  %6061 = vmatprep.subr.mxu0 %v115
  %6062 = vmatpush1.msra.mxu0 %v114
  %6063 = vmatprep.subr.mxu0 %v103
  %6064 = vmatpush1.msra.mxu0 %v102
  %6065 = vmatprep.subr.mxu0 %v91
  %6066 = vmatpush1.msra.mxu0 %v90
  %6067 = vmatprep.subr.mxu0 %v79
  %6068 = vmatpush1.msra.mxu0 %v78
  %6069 = vmatprep.subr.mxu0 %v67
  %6070 = vmatpush1.msra.mxu0 %v66
  %6071 = vmatprep.subr.mxu0 %v55
  %6072 = vmatpush1.msra.mxu0 %v54
  %6073 = vmatprep.subr.mxu0 %v43
  %6074 = vmatpush1.msra.mxu0 %v42
  %6075 = vmatprep.subr.mxu0 %v31
  %6076 = vmatpush1.msra.mxu0 %v30
  %6077 = vmatprep.subr.mxu0 %v403
  %6078 = vmatpush2.msra.mxu0 %v402
  %6079 = vmatprep.subr.mxu0 %v391
  %6080 = vmatpush2.msra.mxu0 %v390
  %6081 = vmatprep.subr.mxu0 %v379
  %6082 = vmatpush2.msra.mxu0 %v378
  %6083 = vmatprep.subr.mxu0 %v367
  %6084 = vmatpush2.msra.mxu0 %v366
  %6085 = vmatprep.subr.mxu0 %v355
  %6086 = vmatpush2.msra.mxu0 %v354
  %6087 = vmatprep.subr.mxu0 %v343
  %6088 = vmatpush2.msra.mxu0 %v342
  %6089 = vmatprep.subr.mxu0 %v331
  %6090 = vmatpush2.msra.mxu0 %v330
  %6091 = vmatprep.subr.mxu0 %v319
  %6092 = vmatpush2.msra.mxu0 %v318
  %6093 = vmatprep.subr.mxu0 %v307
  %6094 = vmatpush2.msra.mxu0 %v306
  %6095 = vmatprep.subr.mxu0 %v295
  %6096 = vmatpush2.msra.mxu0 %v294
  %6097 = vmatprep.subr.mxu0 %v283
  %6098 = vmatpush2.msra.mxu0 %v282
  %6099 = vmatprep.subr.mxu0 %v271
  %6100 = vmatpush2.msra.mxu0 %v270
  %6101 = vmatprep.subr.mxu0 %v259
  %6102 = vmatpush2.msra.mxu0 %v258
  %6103 = vmatprep.subr.mxu0 %v247
  %6104 = vmatpush2.msra.mxu0 %v246
  %6105 = vmatprep.subr.mxu0 %v235
  %6106 = vmatpush2.msra.mxu0 %v234
  %6107 = vmatprep.subr.mxu0 %v223
  %6108 = vmatpush2.msra.mxu0 %v222
  %6109 = vmatprep.mubr.f32.mxu0 %v5598
  %6110 = vmatmul.mubr.f32.gmra.mxu0 %v5597
  %v6111 = vpop.f32.mrf.mxu0
  %v6112 = vadd.f32 0.0, %v6111
  %v6113 = vpop.f32.mrf.mxu0
  %v6114 = vadd.f32 0.0, %v6113
  %6115 = vdwg.mxu0
  %6116 = vmatprep.subr.mxu0 %v595
  %6117 = vmatpush1.msra.mxu0 %v594
  %6118 = vmatprep.subr.mxu0 %v583
  %6119 = vmatpush1.msra.mxu0 %v582
  %6120 = vmatprep.subr.mxu0 %v571
  %6121 = vmatpush1.msra.mxu0 %v570
  %6122 = vmatprep.subr.mxu0 %v559
  %6123 = vmatpush1.msra.mxu0 %v558
  %6124 = vmatprep.subr.mxu0 %v547
  %6125 = vmatpush1.msra.mxu0 %v546
  %6126 = vmatprep.subr.mxu0 %v535
  %6127 = vmatpush1.msra.mxu0 %v534
  %6128 = vmatprep.subr.mxu0 %v523
  %6129 = vmatpush1.msra.mxu0 %v522
  %6130 = vmatprep.subr.mxu0 %v511
  %6131 = vmatpush1.msra.mxu0 %v510
  %6132 = vmatprep.subr.mxu0 %v499
  %6133 = vmatpush1.msra.mxu0 %v498
  %6134 = vmatprep.subr.mxu0 %v487
  %6135 = vmatpush1.msra.mxu0 %v486
  %6136 = vmatprep.subr.mxu0 %v475
  %6137 = vmatpush1.msra.mxu0 %v474
  %6138 = vmatprep.subr.mxu0 %v463
  %6139 = vmatpush1.msra.mxu0 %v462
  %6140 = vmatprep.subr.mxu0 %v451
  %6141 = vmatpush1.msra.mxu0 %v450
  %6142 = vmatprep.subr.mxu0 %v439
  %6143 = vmatpush1.msra.mxu0 %v438
  %6144 = vmatprep.subr.mxu0 %v427
  %6145 = vmatpush1.msra.mxu0 %v426
  %6146 = vmatprep.subr.mxu0 %v415
  %6147 = vmatpush1.msra.mxu0 %v414
  %6148 = vmatprep.subr.mxu0 %v787
  %6149 = vmatpush2.msra.mxu0 %v786
  %6150 = vmatprep.subr.mxu0 %v775
  %6151 = vmatpush2.msra.mxu0 %v774
  %6152 = vmatprep.subr.mxu0 %v763
  %6153 = vmatpush2.msra.mxu0 %v762
  %6154 = vmatprep.subr.mxu0 %v751
  %6155 = vmatpush2.msra.mxu0 %v750
  %6156 = vmatprep.subr.mxu0 %v739
  %6157 = vmatpush2.msra.mxu0 %v738
  %6158 = vmatprep.subr.mxu0 %v727
  %6159 = vmatpush2.msra.mxu0 %v726
  %6160 = vmatprep.subr.mxu0 %v715
  %6161 = vmatpush2.msra.mxu0 %v714
  %6162 = vmatprep.subr.mxu0 %v703
  %6163 = vmatpush2.msra.mxu0 %v702
  %6164 = vmatprep.subr.mxu0 %v691
  %6165 = vmatpush2.msra.mxu0 %v690
  %6166 = vmatprep.subr.mxu0 %v679
  %6167 = vmatpush2.msra.mxu0 %v678
  %6168 = vmatprep.subr.mxu0 %v667
  %6169 = vmatpush2.msra.mxu0 %v666
  %6170 = vmatprep.subr.mxu0 %v655
  %6171 = vmatpush2.msra.mxu0 %v654
  %6172 = vmatprep.subr.mxu0 %v643
  %6173 = vmatpush2.msra.mxu0 %v642
  %6174 = vmatprep.subr.mxu0 %v631
  %6175 = vmatpush2.msra.mxu0 %v630
  %6176 = vmatprep.subr.mxu0 %v619
  %6177 = vmatpush2.msra.mxu0 %v618
  %6178 = vmatprep.subr.mxu0 %v607
  %6179 = vmatpush2.msra.mxu0 %v606
  %6180 = vmatprep.mubr.f32.mxu0 %v5600
  %6181 = vmatmul.mubr.f32.gmra.mxu0 %v5599
  %v6182 = vpop.f32.mrf.mxu0
  %v6183 = vadd.f32 %v6112, %v6182
  %v6184 = vpop.f32.mrf.mxu0
  %v6185 = vadd.f32 %v6114, %v6184
  %6186 = vdwg.mxu0
  %6187 = vmatprep.subr.mxu0 %v213
  %6188 = vmatpush1.msra.mxu0 %v212
  %6189 = vmatprep.subr.mxu0 %v201
  %6190 = vmatpush1.msra.mxu0 %v200
  %6191 = vmatprep.subr.mxu0 %v189
  %6192 = vmatpush1.msra.mxu0 %v188
  %6193 = vmatprep.subr.mxu0 %v177
  %6194 = vmatpush1.msra.mxu0 %v176
  %6195 = vmatprep.subr.mxu0 %v165
  %6196 = vmatpush1.msra.mxu0 %v164
  %6197 = vmatprep.subr.mxu0 %v153
  %6198 = vmatpush1.msra.mxu0 %v152
  %6199 = vmatprep.subr.mxu0 %v141
  %6200 = vmatpush1.msra.mxu0 %v140
  %6201 = vmatprep.subr.mxu0 %v129
  %6202 = vmatpush1.msra.mxu0 %v128
  %6203 = vmatprep.subr.mxu0 %v117
  %6204 = vmatpush1.msra.mxu0 %v116
  %6205 = vmatprep.subr.mxu0 %v105
  %6206 = vmatpush1.msra.mxu0 %v104
  %6207 = vmatprep.subr.mxu0 %v93
  %6208 = vmatpush1.msra.mxu0 %v92
  %6209 = vmatprep.subr.mxu0 %v81
  %6210 = vmatpush1.msra.mxu0 %v80
  %6211 = vmatprep.subr.mxu0 %v69
  %6212 = vmatpush1.msra.mxu0 %v68
  %6213 = vmatprep.subr.mxu0 %v57
  %6214 = vmatpush1.msra.mxu0 %v56
  %6215 = vmatprep.subr.mxu0 %v45
  %6216 = vmatpush1.msra.mxu0 %v44
  %6217 = vmatprep.subr.mxu0 %v33
  %6218 = vmatpush1.msra.mxu0 %v32
  %6219 = vmatprep.subr.mxu0 %v405
  %6220 = vmatpush2.msra.mxu0 %v404
  %6221 = vmatprep.subr.mxu0 %v393
  %6222 = vmatpush2.msra.mxu0 %v392
  %6223 = vmatprep.subr.mxu0 %v381
  %6224 = vmatpush2.msra.mxu0 %v380
  %6225 = vmatprep.subr.mxu0 %v369
  %6226 = vmatpush2.msra.mxu0 %v368
  %6227 = vmatprep.subr.mxu0 %v357
  %6228 = vmatpush2.msra.mxu0 %v356
  %6229 = vmatprep.subr.mxu0 %v345
  %6230 = vmatpush2.msra.mxu0 %v344
  %6231 = vmatprep.subr.mxu0 %v333
  %6232 = vmatpush2.msra.mxu0 %v332
  %6233 = vmatprep.subr.mxu0 %v321
  %6234 = vmatpush2.msra.mxu0 %v320
  %6235 = vmatprep.subr.mxu0 %v309
  %6236 = vmatpush2.msra.mxu0 %v308
  %6237 = vmatprep.subr.mxu0 %v297
  %6238 = vmatpush2.msra.mxu0 %v296
  %6239 = vmatprep.subr.mxu0 %v285
  %6240 = vmatpush2.msra.mxu0 %v284
  %6241 = vmatprep.subr.mxu0 %v273
  %6242 = vmatpush2.msra.mxu0 %v272
  %6243 = vmatprep.subr.mxu0 %v261
  %6244 = vmatpush2.msra.mxu0 %v260
  %6245 = vmatprep.subr.mxu0 %v249
  %6246 = vmatpush2.msra.mxu0 %v248
  %6247 = vmatprep.subr.mxu0 %v237
  %6248 = vmatpush2.msra.mxu0 %v236
  %6249 = vmatprep.subr.mxu0 %v225
  %6250 = vmatpush2.msra.mxu0 %v224
  %6251 = vmatprep.mubr.f32.mxu0 %v5598
  %6252 = vmatmul.mubr.f32.gmra.mxu0 %v5597
  %v6253 = vpop.f32.mrf.mxu0
  %v6254 = vadd.f32 0.0, %v6253
  %v6255 = vpop.f32.mrf.mxu0
  %v6256 = vadd.f32 0.0, %v6255
  %6257 = vdwg.mxu0
  %6258 = vmatprep.subr.mxu0 %v597
  %6259 = vmatpush1.msra.mxu0 %v596
  %6260 = vmatprep.subr.mxu0 %v585
  %6261 = vmatpush1.msra.mxu0 %v584
  %6262 = vmatprep.subr.mxu0 %v573
  %6263 = vmatpush1.msra.mxu0 %v572
  %6264 = vmatprep.subr.mxu0 %v561
  %6265 = vmatpush1.msra.mxu0 %v560
  %6266 = vmatprep.subr.mxu0 %v549
  %6267 = vmatpush1.msra.mxu0 %v548
  %6268 = vmatprep.subr.mxu0 %v537
  %6269 = vmatpush1.msra.mxu0 %v536
  %6270 = vmatprep.subr.mxu0 %v525
  %6271 = vmatpush1.msra.mxu0 %v524
  %6272 = vmatprep.subr.mxu0 %v513
  %6273 = vmatpush1.msra.mxu0 %v512
  %6274 = vmatprep.subr.mxu0 %v501
  %6275 = vmatpush1.msra.mxu0 %v500
  %6276 = vmatprep.subr.mxu0 %v489
  %6277 = vmatpush1.msra.mxu0 %v488
  %6278 = vmatprep.subr.mxu0 %v477
  %6279 = vmatpush1.msra.mxu0 %v476
  %6280 = vmatprep.subr.mxu0 %v465
  %6281 = vmatpush1.msra.mxu0 %v464
  %6282 = vmatprep.subr.mxu0 %v453
  %6283 = vmatpush1.msra.mxu0 %v452
  %6284 = vmatprep.subr.mxu0 %v441
  %6285 = vmatpush1.msra.mxu0 %v440
  %6286 = vmatprep.subr.mxu0 %v429
  %6287 = vmatpush1.msra.mxu0 %v428
  %6288 = vmatprep.subr.mxu0 %v417
  %6289 = vmatpush1.msra.mxu0 %v416
  %6290 = vmatprep.subr.mxu0 %v789
  %6291 = vmatpush2.msra.mxu0 %v788
  %6292 = vmatprep.subr.mxu0 %v777
  %6293 = vmatpush2.msra.mxu0 %v776
  %6294 = vmatprep.subr.mxu0 %v765
  %6295 = vmatpush2.msra.mxu0 %v764
  %6296 = vmatprep.subr.mxu0 %v753
  %6297 = vmatpush2.msra.mxu0 %v752
  %6298 = vmatprep.subr.mxu0 %v741
  %6299 = vmatpush2.msra.mxu0 %v740
  %6300 = vmatprep.subr.mxu0 %v729
  %6301 = vmatpush2.msra.mxu0 %v728
  %6302 = vmatprep.subr.mxu0 %v717
  %6303 = vmatpush2.msra.mxu0 %v716
  %6304 = vmatprep.subr.mxu0 %v705
  %6305 = vmatpush2.msra.mxu0 %v704
  %6306 = vmatprep.subr.mxu0 %v693
  %6307 = vmatpush2.msra.mxu0 %v692
  %6308 = vmatprep.subr.mxu0 %v681
  %6309 = vmatpush2.msra.mxu0 %v680
  %6310 = vmatprep.subr.mxu0 %v669
  %6311 = vmatpush2.msra.mxu0 %v668
  %6312 = vmatprep.subr.mxu0 %v657
  %6313 = vmatpush2.msra.mxu0 %v656
  %6314 = vmatprep.subr.mxu0 %v645
  %6315 = vmatpush2.msra.mxu0 %v644
  %6316 = vmatprep.subr.mxu0 %v633
  %6317 = vmatpush2.msra.mxu0 %v632
  %6318 = vmatprep.subr.mxu0 %v621
  %6319 = vmatpush2.msra.mxu0 %v620
  %6320 = vmatprep.subr.mxu0 %v609
  %6321 = vmatpush2.msra.mxu0 %v608
  %6322 = vmatprep.mubr.f32.mxu0 %v5600
  %6323 = vmatmul.mubr.f32.gmra.mxu0 %v5599
  %v6324 = vpop.f32.mrf.mxu0
  %v6325 = vadd.f32 %v6254, %v6324
  %v6326 = vpop.f32.mrf.mxu0
  %v6327 = vadd.f32 %v6256, %v6326
  %6328 = vdwg.mxu0
  %6329 = vmatprep.subr.mxu0 %v215
  %6330 = vmatpush1.msra.mxu0 %v214
  %6331 = vmatprep.subr.mxu0 %v203
  %6332 = vmatpush1.msra.mxu0 %v202
  %6333 = vmatprep.subr.mxu0 %v191
  %6334 = vmatpush1.msra.mxu0 %v190
  %6335 = vmatprep.subr.mxu0 %v179
  %6336 = vmatpush1.msra.mxu0 %v178
  %6337 = vmatprep.subr.mxu0 %v167
  %6338 = vmatpush1.msra.mxu0 %v166
  %6339 = vmatprep.subr.mxu0 %v155
  %6340 = vmatpush1.msra.mxu0 %v154
  %6341 = vmatprep.subr.mxu0 %v143
  %6342 = vmatpush1.msra.mxu0 %v142
  %6343 = vmatprep.subr.mxu0 %v131
  %6344 = vmatpush1.msra.mxu0 %v130
  %6345 = vmatprep.subr.mxu0 %v119
  %6346 = vmatpush1.msra.mxu0 %v118
  %6347 = vmatprep.subr.mxu0 %v107
  %6348 = vmatpush1.msra.mxu0 %v106
  %6349 = vmatprep.subr.mxu0 %v95
  %6350 = vmatpush1.msra.mxu0 %v94
  %6351 = vmatprep.subr.mxu0 %v83
  %6352 = vmatpush1.msra.mxu0 %v82
  %6353 = vmatprep.subr.mxu0 %v71
  %6354 = vmatpush1.msra.mxu0 %v70
  %6355 = vmatprep.subr.mxu0 %v59
  %6356 = vmatpush1.msra.mxu0 %v58
  %6357 = vmatprep.subr.mxu0 %v47
  %6358 = vmatpush1.msra.mxu0 %v46
  %6359 = vmatprep.subr.mxu0 %v35
  %6360 = vmatpush1.msra.mxu0 %v34
  %6361 = vmatprep.subr.mxu0 %v407
  %6362 = vmatpush2.msra.mxu0 %v406
  %6363 = vmatprep.subr.mxu0 %v395
  %6364 = vmatpush2.msra.mxu0 %v394
  %6365 = vmatprep.subr.mxu0 %v383
  %6366 = vmatpush2.msra.mxu0 %v382
  %6367 = vmatprep.subr.mxu0 %v371
  %6368 = vmatpush2.msra.mxu0 %v370
  %6369 = vmatprep.subr.mxu0 %v359
  %6370 = vmatpush2.msra.mxu0 %v358
  %6371 = vmatprep.subr.mxu0 %v347
  %6372 = vmatpush2.msra.mxu0 %v346
  %6373 = vmatprep.subr.mxu0 %v335
  %6374 = vmatpush2.msra.mxu0 %v334
  %6375 = vmatprep.subr.mxu0 %v323
  %6376 = vmatpush2.msra.mxu0 %v322
  %6377 = vmatprep.subr.mxu0 %v311
  %6378 = vmatpush2.msra.mxu0 %v310
  %6379 = vmatprep.subr.mxu0 %v299
  %6380 = vmatpush2.msra.mxu0 %v298
  %6381 = vmatprep.subr.mxu0 %v287
  %6382 = vmatpush2.msra.mxu0 %v286
  %6383 = vmatprep.subr.mxu0 %v275
  %6384 = vmatpush2.msra.mxu0 %v274
  %6385 = vmatprep.subr.mxu0 %v263
  %6386 = vmatpush2.msra.mxu0 %v262
  %6387 = vmatprep.subr.mxu0 %v251
  %6388 = vmatpush2.msra.mxu0 %v250
  %6389 = vmatprep.subr.mxu0 %v239
  %6390 = vmatpush2.msra.mxu0 %v238
  %6391 = vmatprep.subr.mxu0 %v227
  %6392 = vmatpush2.msra.mxu0 %v226
  %6393 = vmatprep.mubr.f32.mxu0 %v5598
  %6394 = vmatmul.mubr.f32.gmra.mxu0 %v5597
  %v6395 = vpop.f32.mrf.mxu0
  %v6396 = vadd.f32 0.0, %v6395
  %v6397 = vpop.f32.mrf.mxu0
  %v6398 = vadd.f32 0.0, %v6397
  %6399 = vdwg.mxu0
  %6400 = vmatprep.subr.mxu0 %v599
  %6401 = vmatpush1.msra.mxu0 %v598
  %6402 = vmatprep.subr.mxu0 %v587
  %6403 = vmatpush1.msra.mxu0 %v586
  %6404 = vmatprep.subr.mxu0 %v575
  %6405 = vmatpush1.msra.mxu0 %v574
  %6406 = vmatprep.subr.mxu0 %v563
  %6407 = vmatpush1.msra.mxu0 %v562
  %6408 = vmatprep.subr.mxu0 %v551
  %6409 = vmatpush1.msra.mxu0 %v550
  %6410 = vmatprep.subr.mxu0 %v539
  %6411 = vmatpush1.msra.mxu0 %v538
  %6412 = vmatprep.subr.mxu0 %v527
  %6413 = vmatpush1.msra.mxu0 %v526
  %6414 = vmatprep.subr.mxu0 %v515
  %6415 = vmatpush1.msra.mxu0 %v514
  %6416 = vmatprep.subr.mxu0 %v503
  %6417 = vmatpush1.msra.mxu0 %v502
  %6418 = vmatprep.subr.mxu0 %v491
  %6419 = vmatpush1.msra.mxu0 %v490
  %6420 = vmatprep.subr.mxu0 %v479
  %6421 = vmatpush1.msra.mxu0 %v478
  %6422 = vmatprep.subr.mxu0 %v467
  %6423 = vmatpush1.msra.mxu0 %v466
  %6424 = vmatprep.subr.mxu0 %v455
  %6425 = vmatpush1.msra.mxu0 %v454
  %6426 = vmatprep.subr.mxu0 %v443
  %6427 = vmatpush1.msra.mxu0 %v442
  %6428 = vmatprep.subr.mxu0 %v431
  %6429 = vmatpush1.msra.mxu0 %v430
  %6430 = vmatprep.subr.mxu0 %v419
  %6431 = vmatpush1.msra.mxu0 %v418
  %6432 = vmatprep.subr.mxu0 %v791
  %6433 = vmatpush2.msra.mxu0 %v790
  %6434 = vmatprep.subr.mxu0 %v779
  %6435 = vmatpush2.msra.mxu0 %v778
  %6436 = vmatprep.subr.mxu0 %v767
  %6437 = vmatpush2.msra.mxu0 %v766
  %6438 = vmatprep.subr.mxu0 %v755
  %6439 = vmatpush2.msra.mxu0 %v754
  %6440 = vmatprep.subr.mxu0 %v743
  %6441 = vmatpush2.msra.mxu0 %v742
  %6442 = vmatprep.subr.mxu0 %v731
  %6443 = vmatpush2.msra.mxu0 %v730
  %6444 = vmatprep.subr.mxu0 %v719
  %6445 = vmatpush2.msra.mxu0 %v718
  %6446 = vmatprep.subr.mxu0 %v707
  %6447 = vmatpush2.msra.mxu0 %v706
  %6448 = vmatprep.subr.mxu0 %v695
  %6449 = vmatpush2.msra.mxu0 %v694
  %6450 = vmatprep.subr.mxu0 %v683
  %6451 = vmatpush2.msra.mxu0 %v682
  %6452 = vmatprep.subr.mxu0 %v671
  %6453 = vmatpush2.msra.mxu0 %v670
  %6454 = vmatprep.subr.mxu0 %v659
  %6455 = vmatpush2.msra.mxu0 %v658
  %6456 = vmatprep.subr.mxu0 %v647
  %6457 = vmatpush2.msra.mxu0 %v646
  %6458 = vmatprep.subr.mxu0 %v635
  %6459 = vmatpush2.msra.mxu0 %v634
  %6460 = vmatprep.subr.mxu0 %v623
  %6461 = vmatpush2.msra.mxu0 %v622
  %6462 = vmatprep.subr.mxu0 %v611
  %6463 = vmatpush2.msra.mxu0 %v610
  %6464 = vmatprep.mubr.f32.mxu0 %v5600
  %6465 = vmatmul.mubr.f32.gmra.mxu0 %v5599
  %v6466 = vpop.f32.mrf.mxu0
  %v6467 = vadd.f32 %v6396, %v6466
  %v6468 = vpop.f32.mrf.mxu0
  %v6469 = vadd.f32 %v6398, %v6468
  %6470 = vdwg.mxu0
  %v6471 = vadd.f32 %v5607, %v5757
  %v6472 = vadd.f32 %v5608, %v5759
  %v6473 = vadd.f32 %v5609, %v5899
  %v6474 = vadd.f32 %v5610, %v5901
  %v6475 = vxor.u32 %v6471, 2147483648
  %v6476 = vxor.u32 %v6472, 2147483648
  %v6477 = vxor.u32 %v6473, 2147483648
  %v6478 = vxor.u32 %v6474, 2147483648
  %v6479 = vmul.f32 %v6475, 1.442695
  %v6480 = vpow.pop %v6479
  %v6481 = vmul.f32 %v6476, 1.442695
  %v6482 = vpow.pop %v6481
  %v6483 = vmul.f32 %v6477, 1.442695
  %v6484 = vpow.pop %v6483
  %v6485 = vmul.f32 %v6478, 1.442695
  %v6486 = vpow.pop %v6485
  %v6487 = vadd.f32 %v6480, 1.0
  %v6488 = vadd.f32 %v6482, 1.0
  %v6489 = vadd.f32 %v6484, 1.0
  %v6490 = vadd.f32 %v6486, 1.0
  %v6491 = vrcp.pop %v6487
  %v6492 = vmul.f32 1.0, %v6491
  %v6493 = vrcp.pop %v6488
  %v6494 = vmul.f32 1.0, %v6493
  %v6495 = vrcp.pop %v6489
  %v6496 = vmul.f32 1.0, %v6495
  %v6497 = vrcp.pop %v6490
  %v6498 = vmul.f32 1.0, %v6497
  %v6499 = vadd.f32 %v5611, %v6041
  %v6500 = vadd.f32 %v5612, %v6043
  %v6501 = vadd.f32 %v5613, %v6183
  %v6502 = vadd.f32 %v5614, %v6185
  %v6503 = vxor.u32 %v6499, 2147483648
  %v6504 = vxor.u32 %v6500, 2147483648
  %v6505 = vxor.u32 %v6501, 2147483648
  %v6506 = vxor.u32 %v6502, 2147483648
  %v6507 = vmul.f32 %v6503, 1.442695
  %v6508 = vpow.pop %v6507
  %v6509 = vmul.f32 %v6504, 1.442695
  %v6510 = vpow.pop %v6509
  %v6511 = vmul.f32 %v6505, 1.442695
  %v6512 = vpow.pop %v6511
  %v6513 = vmul.f32 %v6506, 1.442695
  %v6514 = vpow.pop %v6513
  %v6515 = vadd.f32 %v6508, 1.0
  %v6516 = vadd.f32 %v6510, 1.0
  %v6517 = vadd.f32 %v6512, 1.0
  %v6518 = vadd.f32 %v6514, 1.0
  %v6519 = vrcp.pop %v6515
  %v6520 = vmul.f32 1.0, %v6519
  %v6521 = vrcp.pop %v6516
  %v6522 = vmul.f32 1.0, %v6521
  %v6523 = vrcp.pop %v6517
  %v6524 = vmul.f32 1.0, %v6523
  %v6525 = vrcp.pop %v6518
  %v6526 = vmul.f32 1.0, %v6525
  %v6527 = vadd.f32 %v6325, %v1721
  %v6528 = vadd.f32 %v6327, %v1725
  %v6529 = vadd.f32 %v6467, %v1729
  %v6530 = vadd.f32 %v6469, %v1733
  %v6531 = vmul.f32 %v6492, %v6527
  %v6532 = vmul.f32 %v6494, %v6528
  %v6533 = vmul.f32 %v6496, %v6529
  %v6534 = vmul.f32 %v6498, %v6530
  %v6535 = vadd.f32 %v5615, %v6531
  %v6536 = vadd.f32 %v5616, %v6532
  %v6537 = vadd.f32 %v5617, %v6533
  %v6538 = vadd.f32 %v5618, %v6534
  %v6539 = vtanh.pop %v6535
  %v6540 = vtanh.pop %v6536
  %v6541 = vtanh.pop %v6537
  %v6542 = vtanh.pop %v6538
  %v6543 = vsub.f32 1.0, %v6520
  %v6544 = vsub.f32 1.0, %v6522
  %v6545 = vsub.f32 1.0, %v6524
  %v6546 = vsub.f32 1.0, %v6526
  %v6547 = vmul.f32 %v6543, %v6539
  %v6548 = vmul.f32 %v6544, %v6540
  %v6549 = vmul.f32 %v6545, %v6541
  %v6550 = vmul.f32 %v6546, %v6542
  %v6551 = vmul.f32 %v6520, %v5597
  %v6552 = vmul.f32 %v6522, %v5598
  %v6553 = vmul.f32 %v6524, %v5599
  %v6554 = vmul.f32 %v6526, %v5600
  %v6555 = vadd.f32 %v6547, %v6551
  %v6556 = vadd.f32 %v6548, %v6552
  %v6557 = vadd.f32 %v6549, %v6553
  %v6558 = vadd.f32 %v6550, %v6554
  %s6559 = scalar_lea.vmem %s3, 160
  %6560 = vst [vmem:[%s6559] sm:$0xff] %v6555
  %6561 = vst [vmem:[%s6559 + $0x8] sm:$0xff] %v6556
  %6562 = vst [vmem:[%s6559 + $0x10] sm:$0xff] %v6557
  %6563 = vst [vmem:[%s6559 + $0x18] sm:$0xff] %v6558
  %s6564 = scalar_lea.vmem %s0, 576
  %v6565 = vld [vmem:[%s6564] sm:$0xff]
  %v6566 = vld [vmem:[%s6564 + $0x8] sm:$0xff]
  %v6567 = vld [vmem:[%s6564 + $0x10] sm:$0xff]
  %v6568 = vld [vmem:[%s6564 + $0x18] sm:$0xff]
  %v6569 = vld [vmem:[%s6564 + $0x20] sm:$0xff]
  %v6570 = vld [vmem:[%s6564 + $0x28] sm:$0xff]
  %v6571 = vld [vmem:[%s6564 + $0x30] sm:$0xff]
  %v6572 = vld [vmem:[%s6564 + $0x38] sm:$0xff]
  %v6573 = vld [vmem:[%s6564 + $0x40] sm:$0xff]
  %v6574 = vld [vmem:[%s6564 + $0x48] sm:$0xff]
  %v6575 = vld [vmem:[%s6564 + $0x50] sm:$0xff]
  %v6576 = vld [vmem:[%s6564 + $0x58] sm:$0xff]
  %6577 = vmatprep.subr.mxu0 %v205
  %6578 = vmatpush1.msra.mxu0 %v204
  %6579 = vmatprep.subr.mxu0 %v193
  %6580 = vmatpush1.msra.mxu0 %v192
  %6581 = vmatprep.subr.mxu0 %v181
  %6582 = vmatpush1.msra.mxu0 %v180
  %6583 = vmatprep.subr.mxu0 %v169
  %6584 = vmatpush1.msra.mxu0 %v168
  %6585 = vmatprep.subr.mxu0 %v157
  %6586 = vmatpush1.msra.mxu0 %v156
  %6587 = vmatprep.subr.mxu0 %v145
  %6588 = vmatpush1.msra.mxu0 %v144
  %6589 = vmatprep.subr.mxu0 %v133
  %6590 = vmatpush1.msra.mxu0 %v132
  %6591 = vmatprep.subr.mxu0 %v121
  %6592 = vmatpush1.msra.mxu0 %v120
  %6593 = vmatprep.subr.mxu0 %v109
  %6594 = vmatpush1.msra.mxu0 %v108
  %6595 = vmatprep.subr.mxu0 %v97
  %6596 = vmatpush1.msra.mxu0 %v96
  %6597 = vmatprep.subr.mxu0 %v85
  %6598 = vmatpush1.msra.mxu0 %v84
  %6599 = vmatprep.subr.mxu0 %v73
  %6600 = vmatpush1.msra.mxu0 %v72
  %6601 = vmatprep.subr.mxu0 %v61
  %6602 = vmatpush1.msra.mxu0 %v60
  %6603 = vmatprep.subr.mxu0 %v49
  %6604 = vmatpush1.msra.mxu0 %v48
  %6605 = vmatprep.subr.mxu0 %v37
  %6606 = vmatpush1.msra.mxu0 %v36
  %6607 = vmatprep.subr.mxu0 %v25
  %6608 = vmatpush1.msra.mxu0 %v24
  %6609 = vmatprep.subr.mxu0 %v397
  %6610 = vmatpush2.msra.mxu0 %v396
  %6611 = vmatprep.subr.mxu0 %v385
  %6612 = vmatpush2.msra.mxu0 %v384
  %6613 = vmatprep.subr.mxu0 %v373
  %6614 = vmatpush2.msra.mxu0 %v372
  %6615 = vmatprep.subr.mxu0 %v361
  %6616 = vmatpush2.msra.mxu0 %v360
  %6617 = vmatprep.subr.mxu0 %v349
  %6618 = vmatpush2.msra.mxu0 %v348
  %6619 = vmatprep.subr.mxu0 %v337
  %6620 = vmatpush2.msra.mxu0 %v336
  %6621 = vmatprep.subr.mxu0 %v325
  %6622 = vmatpush2.msra.mxu0 %v324
  %6623 = vmatprep.subr.mxu0 %v313
  %6624 = vmatpush2.msra.mxu0 %v312
  %6625 = vmatprep.subr.mxu0 %v301
  %6626 = vmatpush2.msra.mxu0 %v300
  %6627 = vmatprep.subr.mxu0 %v289
  %6628 = vmatpush2.msra.mxu0 %v288
  %6629 = vmatprep.subr.mxu0 %v277
  %6630 = vmatpush2.msra.mxu0 %v276
  %6631 = vmatprep.subr.mxu0 %v265
  %6632 = vmatpush2.msra.mxu0 %v264
  %6633 = vmatprep.subr.mxu0 %v253
  %6634 = vmatpush2.msra.mxu0 %v252
  %6635 = vmatprep.subr.mxu0 %v241
  %6636 = vmatpush2.msra.mxu0 %v240
  %6637 = vmatprep.subr.mxu0 %v229
  %6638 = vmatpush2.msra.mxu0 %v228
  %6639 = vmatprep.subr.mxu0 %v217
  %6640 = vmatpush2.msra.mxu0 %v216
  %6641 = vmatprep.mubr.f32.mxu0 %v6556
  %6642 = vmatmul.mubr.f32.gmra.mxu0 %v6555
  %v6643 = vpop.f32.mrf.mxu0
  %v6644 = vadd.f32 0.0, %v6643
  %v6645 = vpop.f32.mrf.mxu0
  %v6646 = vadd.f32 0.0, %v6645
  %6647 = vdwg.mxu0
  %6648 = vmatprep.subr.mxu0 %v589
  %6649 = vmatpush1.msra.mxu0 %v588
  %6650 = vmatprep.subr.mxu0 %v577
  %6651 = vmatpush1.msra.mxu0 %v576
  %6652 = vmatprep.subr.mxu0 %v565
  %6653 = vmatpush1.msra.mxu0 %v564
  %6654 = vmatprep.subr.mxu0 %v553
  %6655 = vmatpush1.msra.mxu0 %v552
  %6656 = vmatprep.subr.mxu0 %v541
  %6657 = vmatpush1.msra.mxu0 %v540
  %6658 = vmatprep.subr.mxu0 %v529
  %6659 = vmatpush1.msra.mxu0 %v528
  %6660 = vmatprep.subr.mxu0 %v517
  %6661 = vmatpush1.msra.mxu0 %v516
  %6662 = vmatprep.subr.mxu0 %v505
  %6663 = vmatpush1.msra.mxu0 %v504
  %6664 = vmatprep.subr.mxu0 %v493
  %6665 = vmatpush1.msra.mxu0 %v492
  %6666 = vmatprep.subr.mxu0 %v481
  %6667 = vmatpush1.msra.mxu0 %v480
  %6668 = vmatprep.subr.mxu0 %v469
  %6669 = vmatpush1.msra.mxu0 %v468
  %6670 = vmatprep.subr.mxu0 %v457
  %6671 = vmatpush1.msra.mxu0 %v456
  %6672 = vmatprep.subr.mxu0 %v445
  %6673 = vmatpush1.msra.mxu0 %v444
  %6674 = vmatprep.subr.mxu0 %v433
  %6675 = vmatpush1.msra.mxu0 %v432
  %6676 = vmatprep.subr.mxu0 %v421
  %6677 = vmatpush1.msra.mxu0 %v420
  %6678 = vmatprep.subr.mxu0 %v409
  %6679 = vmatpush1.msra.mxu0 %v408
  %6680 = vmatprep.subr.mxu0 %v781
  %6681 = vmatpush2.msra.mxu0 %v780
  %6682 = vmatprep.subr.mxu0 %v769
  %6683 = vmatpush2.msra.mxu0 %v768
  %6684 = vmatprep.subr.mxu0 %v757
  %6685 = vmatpush2.msra.mxu0 %v756
  %6686 = vmatprep.subr.mxu0 %v745
  %6687 = vmatpush2.msra.mxu0 %v744
  %6688 = vmatprep.subr.mxu0 %v733
  %6689 = vmatpush2.msra.mxu0 %v732
  %6690 = vmatprep.subr.mxu0 %v721
  %6691 = vmatpush2.msra.mxu0 %v720
  %6692 = vmatprep.subr.mxu0 %v709
  %6693 = vmatpush2.msra.mxu0 %v708
  %6694 = vmatprep.subr.mxu0 %v697
  %6695 = vmatpush2.msra.mxu0 %v696
  %6696 = vmatprep.subr.mxu0 %v685
  %6697 = vmatpush2.msra.mxu0 %v684
  %6698 = vmatprep.subr.mxu0 %v673
  %6699 = vmatpush2.msra.mxu0 %v672
  %6700 = vmatprep.subr.mxu0 %v661
  %6701 = vmatpush2.msra.mxu0 %v660
  %6702 = vmatprep.subr.mxu0 %v649
  %6703 = vmatpush2.msra.mxu0 %v648
  %6704 = vmatprep.subr.mxu0 %v637
  %6705 = vmatpush2.msra.mxu0 %v636
  %6706 = vmatprep.subr.mxu0 %v625
  %6707 = vmatpush2.msra.mxu0 %v624
  %6708 = vmatprep.subr.mxu0 %v613
  %6709 = vmatpush2.msra.mxu0 %v612
  %6710 = vmatprep.subr.mxu0 %v601
  %6711 = vmatpush2.msra.mxu0 %v600
  %6712 = vmatprep.mubr.f32.mxu0 %v6558
  %6713 = vmatmul.mubr.f32.gmra.mxu0 %v6557
  %v6714 = vpop.f32.mrf.mxu0
  %v6715 = vadd.f32 %v6644, %v6714
  %v6716 = vpop.f32.mrf.mxu0
  %v6717 = vadd.f32 %v6646, %v6716
  %6718 = vdwg.mxu0
  %6719 = vmatprep.subr.mxu0 %v207
  %6720 = vmatpush1.msra.mxu0 %v206
  %6721 = vmatprep.subr.mxu0 %v195
  %6722 = vmatpush1.msra.mxu0 %v194
  %6723 = vmatprep.subr.mxu0 %v183
  %6724 = vmatpush1.msra.mxu0 %v182
  %6725 = vmatprep.subr.mxu0 %v171
  %6726 = vmatpush1.msra.mxu0 %v170
  %6727 = vmatprep.subr.mxu0 %v159
  %6728 = vmatpush1.msra.mxu0 %v158
  %6729 = vmatprep.subr.mxu0 %v147
  %6730 = vmatpush1.msra.mxu0 %v146
  %6731 = vmatprep.subr.mxu0 %v135
  %6732 = vmatpush1.msra.mxu0 %v134
  %6733 = vmatprep.subr.mxu0 %v123
  %6734 = vmatpush1.msra.mxu0 %v122
  %6735 = vmatprep.subr.mxu0 %v111
  %6736 = vmatpush1.msra.mxu0 %v110
  %6737 = vmatprep.subr.mxu0 %v99
  %6738 = vmatpush1.msra.mxu0 %v98
  %6739 = vmatprep.subr.mxu0 %v87
  %6740 = vmatpush1.msra.mxu0 %v86
  %6741 = vmatprep.subr.mxu0 %v75
  %6742 = vmatpush1.msra.mxu0 %v74
  %6743 = vmatprep.subr.mxu0 %v63
  %6744 = vmatpush1.msra.mxu0 %v62
  %6745 = vmatprep.subr.mxu0 %v51
  %6746 = vmatpush1.msra.mxu0 %v50
  %6747 = vmatprep.subr.mxu0 %v39
  %6748 = vmatpush1.msra.mxu0 %v38
  %6749 = vmatprep.subr.mxu0 %v27
  %6750 = vmatpush1.msra.mxu0 %v26
  %6751 = vmatprep.subr.mxu0 %v399
  %6752 = vmatpush2.msra.mxu0 %v398
  %6753 = vmatprep.subr.mxu0 %v387
  %6754 = vmatpush2.msra.mxu0 %v386
  %6755 = vmatprep.subr.mxu0 %v375
  %6756 = vmatpush2.msra.mxu0 %v374
  %6757 = vmatprep.subr.mxu0 %v363
  %6758 = vmatpush2.msra.mxu0 %v362
  %6759 = vmatprep.subr.mxu0 %v351
  %6760 = vmatpush2.msra.mxu0 %v350
  %6761 = vmatprep.subr.mxu0 %v339
  %6762 = vmatpush2.msra.mxu0 %v338
  %6763 = vmatprep.subr.mxu0 %v327
  %6764 = vmatpush2.msra.mxu0 %v326
  %6765 = vmatprep.subr.mxu0 %v315
  %6766 = vmatpush2.msra.mxu0 %v314
  %6767 = vmatprep.subr.mxu0 %v303
  %6768 = vmatpush2.msra.mxu0 %v302
  %6769 = vmatprep.subr.mxu0 %v291
  %6770 = vmatpush2.msra.mxu0 %v290
  %6771 = vmatprep.subr.mxu0 %v279
  %6772 = vmatpush2.msra.mxu0 %v278
  %6773 = vmatprep.subr.mxu0 %v267
  %6774 = vmatpush2.msra.mxu0 %v266
  %6775 = vmatprep.subr.mxu0 %v255
  %6776 = vmatpush2.msra.mxu0 %v254
  %6777 = vmatprep.subr.mxu0 %v243
  %6778 = vmatpush2.msra.mxu0 %v242
  %6779 = vmatprep.subr.mxu0 %v231
  %6780 = vmatpush2.msra.mxu0 %v230
  %6781 = vmatprep.subr.mxu0 %v219
  %6782 = vmatpush2.msra.mxu0 %v218
  %6783 = vmatprep.mubr.f32.mxu0 %v6556
  %6784 = vmatmul.mubr.f32.gmra.mxu0 %v6555
  %v6785 = vpop.f32.mrf.mxu0
  %v6786 = vadd.f32 0.0, %v6785
  %v6787 = vpop.f32.mrf.mxu0
  %v6788 = vadd.f32 0.0, %v6787
  %6789 = vdwg.mxu0
  %6790 = vmatprep.subr.mxu0 %v591
  %6791 = vmatpush1.msra.mxu0 %v590
  %6792 = vmatprep.subr.mxu0 %v579
  %6793 = vmatpush1.msra.mxu0 %v578
  %6794 = vmatprep.subr.mxu0 %v567
  %6795 = vmatpush1.msra.mxu0 %v566
  %6796 = vmatprep.subr.mxu0 %v555
  %6797 = vmatpush1.msra.mxu0 %v554
  %6798 = vmatprep.subr.mxu0 %v543
  %6799 = vmatpush1.msra.mxu0 %v542
  %6800 = vmatprep.subr.mxu0 %v531
  %6801 = vmatpush1.msra.mxu0 %v530
  %6802 = vmatprep.subr.mxu0 %v519
  %6803 = vmatpush1.msra.mxu0 %v518
  %6804 = vmatprep.subr.mxu0 %v507
  %6805 = vmatpush1.msra.mxu0 %v506
  %6806 = vmatprep.subr.mxu0 %v495
  %6807 = vmatpush1.msra.mxu0 %v494
  %6808 = vmatprep.subr.mxu0 %v483
  %6809 = vmatpush1.msra.mxu0 %v482
  %6810 = vmatprep.subr.mxu0 %v471
  %6811 = vmatpush1.msra.mxu0 %v470
  %6812 = vmatprep.subr.mxu0 %v459
  %6813 = vmatpush1.msra.mxu0 %v458
  %6814 = vmatprep.subr.mxu0 %v447
  %6815 = vmatpush1.msra.mxu0 %v446
  %6816 = vmatprep.subr.mxu0 %v435
  %6817 = vmatpush1.msra.mxu0 %v434
  %6818 = vmatprep.subr.mxu0 %v423
  %6819 = vmatpush1.msra.mxu0 %v422
  %6820 = vmatprep.subr.mxu0 %v411
  %6821 = vmatpush1.msra.mxu0 %v410
  %6822 = vmatprep.subr.mxu0 %v783
  %6823 = vmatpush2.msra.mxu0 %v782
  %6824 = vmatprep.subr.mxu0 %v771
  %6825 = vmatpush2.msra.mxu0 %v770
  %6826 = vmatprep.subr.mxu0 %v759
  %6827 = vmatpush2.msra.mxu0 %v758
  %6828 = vmatprep.subr.mxu0 %v747
  %6829 = vmatpush2.msra.mxu0 %v746
  %6830 = vmatprep.subr.mxu0 %v735
  %6831 = vmatpush2.msra.mxu0 %v734
  %6832 = vmatprep.subr.mxu0 %v723
  %6833 = vmatpush2.msra.mxu0 %v722
  %6834 = vmatprep.subr.mxu0 %v711
  %6835 = vmatpush2.msra.mxu0 %v710
  %6836 = vmatprep.subr.mxu0 %v699
  %6837 = vmatpush2.msra.mxu0 %v698
  %6838 = vmatprep.subr.mxu0 %v687
  %6839 = vmatpush2.msra.mxu0 %v686
  %6840 = vmatprep.subr.mxu0 %v675
  %6841 = vmatpush2.msra.mxu0 %v674
  %6842 = vmatprep.subr.mxu0 %v663
  %6843 = vmatpush2.msra.mxu0 %v662
  %6844 = vmatprep.subr.mxu0 %v651
  %6845 = vmatpush2.msra.mxu0 %v650
  %6846 = vmatprep.subr.mxu0 %v639
  %6847 = vmatpush2.msra.mxu0 %v638
  %6848 = vmatprep.subr.mxu0 %v627
  %6849 = vmatpush2.msra.mxu0 %v626
  %6850 = vmatprep.subr.mxu0 %v615
  %6851 = vmatpush2.msra.mxu0 %v614
  %6852 = vmatprep.subr.mxu0 %v603
  %6853 = vmatpush2.msra.mxu0 %v602
  %6854 = vmatprep.mubr.f32.mxu0 %v6558
  %6855 = vmatmul.mubr.f32.gmra.mxu0 %v6557
  %v6856 = vpop.f32.mrf.mxu0
  %v6857 = vadd.f32 %v6786, %v6856
  %v6858 = vpop.f32.mrf.mxu0
  %v6859 = vadd.f32 %v6788, %v6858
  %6860 = vdwg.mxu0
  %6861 = vmatprep.subr.mxu0 %v209
  %6862 = vmatpush1.msra.mxu0 %v208
  %6863 = vmatprep.subr.mxu0 %v197
  %6864 = vmatpush1.msra.mxu0 %v196
  %6865 = vmatprep.subr.mxu0 %v185
  %6866 = vmatpush1.msra.mxu0 %v184
  %6867 = vmatprep.subr.mxu0 %v173
  %6868 = vmatpush1.msra.mxu0 %v172
  %6869 = vmatprep.subr.mxu0 %v161
  %6870 = vmatpush1.msra.mxu0 %v160
  %6871 = vmatprep.subr.mxu0 %v149
  %6872 = vmatpush1.msra.mxu0 %v148
  %6873 = vmatprep.subr.mxu0 %v137
  %6874 = vmatpush1.msra.mxu0 %v136
  %6875 = vmatprep.subr.mxu0 %v125
  %6876 = vmatpush1.msra.mxu0 %v124
  %6877 = vmatprep.subr.mxu0 %v113
  %6878 = vmatpush1.msra.mxu0 %v112
  %6879 = vmatprep.subr.mxu0 %v101
  %6880 = vmatpush1.msra.mxu0 %v100
  %6881 = vmatprep.subr.mxu0 %v89
  %6882 = vmatpush1.msra.mxu0 %v88
  %6883 = vmatprep.subr.mxu0 %v77
  %6884 = vmatpush1.msra.mxu0 %v76
  %6885 = vmatprep.subr.mxu0 %v65
  %6886 = vmatpush1.msra.mxu0 %v64
  %6887 = vmatprep.subr.mxu0 %v53
  %6888 = vmatpush1.msra.mxu0 %v52
  %6889 = vmatprep.subr.mxu0 %v41
  %6890 = vmatpush1.msra.mxu0 %v40
  %6891 = vmatprep.subr.mxu0 %v29
  %6892 = vmatpush1.msra.mxu0 %v28
  %6893 = vmatprep.subr.mxu0 %v401
  %6894 = vmatpush2.msra.mxu0 %v400
  %6895 = vmatprep.subr.mxu0 %v389
  %6896 = vmatpush2.msra.mxu0 %v388
  %6897 = vmatprep.subr.mxu0 %v377
  %6898 = vmatpush2.msra.mxu0 %v376
  %6899 = vmatprep.subr.mxu0 %v365
  %6900 = vmatpush2.msra.mxu0 %v364
  %6901 = vmatprep.subr.mxu0 %v353
  %6902 = vmatpush2.msra.mxu0 %v352
  %6903 = vmatprep.subr.mxu0 %v341
  %6904 = vmatpush2.msra.mxu0 %v340
  %6905 = vmatprep.subr.mxu0 %v329
  %6906 = vmatpush2.msra.mxu0 %v328
  %6907 = vmatprep.subr.mxu0 %v317
  %6908 = vmatpush2.msra.mxu0 %v316
  %6909 = vmatprep.subr.mxu0 %v305
  %6910 = vmatpush2.msra.mxu0 %v304
  %6911 = vmatprep.subr.mxu0 %v293
  %6912 = vmatpush2.msra.mxu0 %v292
  %6913 = vmatprep.subr.mxu0 %v281
  %6914 = vmatpush2.msra.mxu0 %v280
  %6915 = vmatprep.subr.mxu0 %v269
  %6916 = vmatpush2.msra.mxu0 %v268
  %6917 = vmatprep.subr.mxu0 %v257
  %6918 = vmatpush2.msra.mxu0 %v256
  %6919 = vmatprep.subr.mxu0 %v245
  %6920 = vmatpush2.msra.mxu0 %v244
  %6921 = vmatprep.subr.mxu0 %v233
  %6922 = vmatpush2.msra.mxu0 %v232
  %6923 = vmatprep.subr.mxu0 %v221
  %6924 = vmatpush2.msra.mxu0 %v220
  %6925 = vmatprep.mubr.f32.mxu0 %v6556
  %6926 = vmatmul.mubr.f32.gmra.mxu0 %v6555
  %v6927 = vpop.f32.mrf.mxu0
  %v6928 = vadd.f32 0.0, %v6927
  %v6929 = vpop.f32.mrf.mxu0
  %v6930 = vadd.f32 0.0, %v6929
  %6931 = vdwg.mxu0
  %6932 = vmatprep.subr.mxu0 %v593
  %6933 = vmatpush1.msra.mxu0 %v592
  %6934 = vmatprep.subr.mxu0 %v581
  %6935 = vmatpush1.msra.mxu0 %v580
  %6936 = vmatprep.subr.mxu0 %v569
  %6937 = vmatpush1.msra.mxu0 %v568
  %6938 = vmatprep.subr.mxu0 %v557
  %6939 = vmatpush1.msra.mxu0 %v556
  %6940 = vmatprep.subr.mxu0 %v545
  %6941 = vmatpush1.msra.mxu0 %v544
  %6942 = vmatprep.subr.mxu0 %v533
  %6943 = vmatpush1.msra.mxu0 %v532
  %6944 = vmatprep.subr.mxu0 %v521
  %6945 = vmatpush1.msra.mxu0 %v520
  %6946 = vmatprep.subr.mxu0 %v509
  %6947 = vmatpush1.msra.mxu0 %v508
  %6948 = vmatprep.subr.mxu0 %v497
  %6949 = vmatpush1.msra.mxu0 %v496
  %6950 = vmatprep.subr.mxu0 %v485
  %6951 = vmatpush1.msra.mxu0 %v484
  %6952 = vmatprep.subr.mxu0 %v473
  %6953 = vmatpush1.msra.mxu0 %v472
  %6954 = vmatprep.subr.mxu0 %v461
  %6955 = vmatpush1.msra.mxu0 %v460
  %6956 = vmatprep.subr.mxu0 %v449
  %6957 = vmatpush1.msra.mxu0 %v448
  %6958 = vmatprep.subr.mxu0 %v437
  %6959 = vmatpush1.msra.mxu0 %v436
  %6960 = vmatprep.subr.mxu0 %v425
  %6961 = vmatpush1.msra.mxu0 %v424
  %6962 = vmatprep.subr.mxu0 %v413
  %6963 = vmatpush1.msra.mxu0 %v412
  %6964 = vmatprep.subr.mxu0 %v785
  %6965 = vmatpush2.msra.mxu0 %v784
  %6966 = vmatprep.subr.mxu0 %v773
  %6967 = vmatpush2.msra.mxu0 %v772
  %6968 = vmatprep.subr.mxu0 %v761
  %6969 = vmatpush2.msra.mxu0 %v760
  %6970 = vmatprep.subr.mxu0 %v749
  %6971 = vmatpush2.msra.mxu0 %v748
  %6972 = vmatprep.subr.mxu0 %v737
  %6973 = vmatpush2.msra.mxu0 %v736
  %6974 = vmatprep.subr.mxu0 %v725
  %6975 = vmatpush2.msra.mxu0 %v724
  %6976 = vmatprep.subr.mxu0 %v713
  %6977 = vmatpush2.msra.mxu0 %v712
  %6978 = vmatprep.subr.mxu0 %v701
  %6979 = vmatpush2.msra.mxu0 %v700
  %6980 = vmatprep.subr.mxu0 %v689
  %6981 = vmatpush2.msra.mxu0 %v688
  %6982 = vmatprep.subr.mxu0 %v677
  %6983 = vmatpush2.msra.mxu0 %v676
  %6984 = vmatprep.subr.mxu0 %v665
  %6985 = vmatpush2.msra.mxu0 %v664
  %6986 = vmatprep.subr.mxu0 %v653
  %6987 = vmatpush2.msra.mxu0 %v652
  %6988 = vmatprep.subr.mxu0 %v641
  %6989 = vmatpush2.msra.mxu0 %v640
  %6990 = vmatprep.subr.mxu0 %v629
  %6991 = vmatpush2.msra.mxu0 %v628
  %6992 = vmatprep.subr.mxu0 %v617
  %6993 = vmatpush2.msra.mxu0 %v616
  %6994 = vmatprep.subr.mxu0 %v605
  %6995 = vmatpush2.msra.mxu0 %v604
  %6996 = vmatprep.mubr.f32.mxu0 %v6558
  %6997 = vmatmul.mubr.f32.gmra.mxu0 %v6557
  %v6998 = vpop.f32.mrf.mxu0
  %v6999 = vadd.f32 %v6928, %v6998
  %v7000 = vpop.f32.mrf.mxu0
  %v7001 = vadd.f32 %v6930, %v7000
  %7002 = vdwg.mxu0
  %7003 = vmatprep.subr.mxu0 %v211
  %7004 = vmatpush1.msra.mxu0 %v210
  %7005 = vmatprep.subr.mxu0 %v199
  %7006 = vmatpush1.msra.mxu0 %v198
  %7007 = vmatprep.subr.mxu0 %v187
  %7008 = vmatpush1.msra.mxu0 %v186
  %7009 = vmatprep.subr.mxu0 %v175
  %7010 = vmatpush1.msra.mxu0 %v174
  %7011 = vmatprep.subr.mxu0 %v163
  %7012 = vmatpush1.msra.mxu0 %v162
  %7013 = vmatprep.subr.mxu0 %v151
  %7014 = vmatpush1.msra.mxu0 %v150
  %7015 = vmatprep.subr.mxu0 %v139
  %7016 = vmatpush1.msra.mxu0 %v138
  %7017 = vmatprep.subr.mxu0 %v127
  %7018 = vmatpush1.msra.mxu0 %v126
  %7019 = vmatprep.subr.mxu0 %v115
  %7020 = vmatpush1.msra.mxu0 %v114
  %7021 = vmatprep.subr.mxu0 %v103
  %7022 = vmatpush1.msra.mxu0 %v102
  %7023 = vmatprep.subr.mxu0 %v91
  %7024 = vmatpush1.msra.mxu0 %v90
  %7025 = vmatprep.subr.mxu0 %v79
  %7026 = vmatpush1.msra.mxu0 %v78
  %7027 = vmatprep.subr.mxu0 %v67
  %7028 = vmatpush1.msra.mxu0 %v66
  %7029 = vmatprep.subr.mxu0 %v55
  %7030 = vmatpush1.msra.mxu0 %v54
  %7031 = vmatprep.subr.mxu0 %v43
  %7032 = vmatpush1.msra.mxu0 %v42
  %7033 = vmatprep.subr.mxu0 %v31
  %7034 = vmatpush1.msra.mxu0 %v30
  %7035 = vmatprep.subr.mxu0 %v403
  %7036 = vmatpush2.msra.mxu0 %v402
  %7037 = vmatprep.subr.mxu0 %v391
  %7038 = vmatpush2.msra.mxu0 %v390
  %7039 = vmatprep.subr.mxu0 %v379
  %7040 = vmatpush2.msra.mxu0 %v378
  %7041 = vmatprep.subr.mxu0 %v367
  %7042 = vmatpush2.msra.mxu0 %v366
  %7043 = vmatprep.subr.mxu0 %v355
  %7044 = vmatpush2.msra.mxu0 %v354
  %7045 = vmatprep.subr.mxu0 %v343
  %7046 = vmatpush2.msra.mxu0 %v342
  %7047 = vmatprep.subr.mxu0 %v331
  %7048 = vmatpush2.msra.mxu0 %v330
  %7049 = vmatprep.subr.mxu0 %v319
  %7050 = vmatpush2.msra.mxu0 %v318
  %7051 = vmatprep.subr.mxu0 %v307
  %7052 = vmatpush2.msra.mxu0 %v306
  %7053 = vmatprep.subr.mxu0 %v295
  %7054 = vmatpush2.msra.mxu0 %v294
  %7055 = vmatprep.subr.mxu0 %v283
  %7056 = vmatpush2.msra.mxu0 %v282
  %7057 = vmatprep.subr.mxu0 %v271
  %7058 = vmatpush2.msra.mxu0 %v270
  %7059 = vmatprep.subr.mxu0 %v259
  %7060 = vmatpush2.msra.mxu0 %v258
  %7061 = vmatprep.subr.mxu0 %v247
  %7062 = vmatpush2.msra.mxu0 %v246
  %7063 = vmatprep.subr.mxu0 %v235
  %7064 = vmatpush2.msra.mxu0 %v234
  %7065 = vmatprep.subr.mxu0 %v223
  %7066 = vmatpush2.msra.mxu0 %v222
  %7067 = vmatprep.mubr.f32.mxu0 %v6556
  %7068 = vmatmul.mubr.f32.gmra.mxu0 %v6555
  %v7069 = vpop.f32.mrf.mxu0
  %v7070 = vadd.f32 0.0, %v7069
  %v7071 = vpop.f32.mrf.mxu0
  %v7072 = vadd.f32 0.0, %v7071
  %7073 = vdwg.mxu0
  %7074 = vmatprep.subr.mxu0 %v595
  %7075 = vmatpush1.msra.mxu0 %v594
  %7076 = vmatprep.subr.mxu0 %v583
  %7077 = vmatpush1.msra.mxu0 %v582
  %7078 = vmatprep.subr.mxu0 %v571
  %7079 = vmatpush1.msra.mxu0 %v570
  %7080 = vmatprep.subr.mxu0 %v559
  %7081 = vmatpush1.msra.mxu0 %v558
  %7082 = vmatprep.subr.mxu0 %v547
  %7083 = vmatpush1.msra.mxu0 %v546
  %7084 = vmatprep.subr.mxu0 %v535
  %7085 = vmatpush1.msra.mxu0 %v534
  %7086 = vmatprep.subr.mxu0 %v523
  %7087 = vmatpush1.msra.mxu0 %v522
  %7088 = vmatprep.subr.mxu0 %v511
  %7089 = vmatpush1.msra.mxu0 %v510
  %7090 = vmatprep.subr.mxu0 %v499
  %7091 = vmatpush1.msra.mxu0 %v498
  %7092 = vmatprep.subr.mxu0 %v487
  %7093 = vmatpush1.msra.mxu0 %v486
  %7094 = vmatprep.subr.mxu0 %v475
  %7095 = vmatpush1.msra.mxu0 %v474
  %7096 = vmatprep.subr.mxu0 %v463
  %7097 = vmatpush1.msra.mxu0 %v462
  %7098 = vmatprep.subr.mxu0 %v451
  %7099 = vmatpush1.msra.mxu0 %v450
  %7100 = vmatprep.subr.mxu0 %v439
  %7101 = vmatpush1.msra.mxu0 %v438
  %7102 = vmatprep.subr.mxu0 %v427
  %7103 = vmatpush1.msra.mxu0 %v426
  %7104 = vmatprep.subr.mxu0 %v415
  %7105 = vmatpush1.msra.mxu0 %v414
  %7106 = vmatprep.subr.mxu0 %v787
  %7107 = vmatpush2.msra.mxu0 %v786
  %7108 = vmatprep.subr.mxu0 %v775
  %7109 = vmatpush2.msra.mxu0 %v774
  %7110 = vmatprep.subr.mxu0 %v763
  %7111 = vmatpush2.msra.mxu0 %v762
  %7112 = vmatprep.subr.mxu0 %v751
  %7113 = vmatpush2.msra.mxu0 %v750
  %7114 = vmatprep.subr.mxu0 %v739
  %7115 = vmatpush2.msra.mxu0 %v738
  %7116 = vmatprep.subr.mxu0 %v727
  %7117 = vmatpush2.msra.mxu0 %v726
  %7118 = vmatprep.subr.mxu0 %v715
  %7119 = vmatpush2.msra.mxu0 %v714
  %7120 = vmatprep.subr.mxu0 %v703
  %7121 = vmatpush2.msra.mxu0 %v702
  %7122 = vmatprep.subr.mxu0 %v691
  %7123 = vmatpush2.msra.mxu0 %v690
  %7124 = vmatprep.subr.mxu0 %v679
  %7125 = vmatpush2.msra.mxu0 %v678
  %7126 = vmatprep.subr.mxu0 %v667
  %7127 = vmatpush2.msra.mxu0 %v666
  %7128 = vmatprep.subr.mxu0 %v655
  %7129 = vmatpush2.msra.mxu0 %v654
  %7130 = vmatprep.subr.mxu0 %v643
  %7131 = vmatpush2.msra.mxu0 %v642
  %7132 = vmatprep.subr.mxu0 %v631
  %7133 = vmatpush2.msra.mxu0 %v630
  %7134 = vmatprep.subr.mxu0 %v619
  %7135 = vmatpush2.msra.mxu0 %v618
  %7136 = vmatprep.subr.mxu0 %v607
  %7137 = vmatpush2.msra.mxu0 %v606
  %7138 = vmatprep.mubr.f32.mxu0 %v6558
  %7139 = vmatmul.mubr.f32.gmra.mxu0 %v6557
  %v7140 = vpop.f32.mrf.mxu0
  %v7141 = vadd.f32 %v7070, %v7140
  %v7142 = vpop.f32.mrf.mxu0
  %v7143 = vadd.f32 %v7072, %v7142
  %7144 = vdwg.mxu0
  %7145 = vmatprep.subr.mxu0 %v213
  %7146 = vmatpush1.msra.mxu0 %v212
  %7147 = vmatprep.subr.mxu0 %v201
  %7148 = vmatpush1.msra.mxu0 %v200
  %7149 = vmatprep.subr.mxu0 %v189
  %7150 = vmatpush1.msra.mxu0 %v188
  %7151 = vmatprep.subr.mxu0 %v177
  %7152 = vmatpush1.msra.mxu0 %v176
  %7153 = vmatprep.subr.mxu0 %v165
  %7154 = vmatpush1.msra.mxu0 %v164
  %7155 = vmatprep.subr.mxu0 %v153
  %7156 = vmatpush1.msra.mxu0 %v152
  %7157 = vmatprep.subr.mxu0 %v141
  %7158 = vmatpush1.msra.mxu0 %v140
  %7159 = vmatprep.subr.mxu0 %v129
  %7160 = vmatpush1.msra.mxu0 %v128
  %7161 = vmatprep.subr.mxu0 %v117
  %7162 = vmatpush1.msra.mxu0 %v116
  %7163 = vmatprep.subr.mxu0 %v105
  %7164 = vmatpush1.msra.mxu0 %v104
  %7165 = vmatprep.subr.mxu0 %v93
  %7166 = vmatpush1.msra.mxu0 %v92
  %7167 = vmatprep.subr.mxu0 %v81
  %7168 = vmatpush1.msra.mxu0 %v80
  %7169 = vmatprep.subr.mxu0 %v69
  %7170 = vmatpush1.msra.mxu0 %v68
  %7171 = vmatprep.subr.mxu0 %v57
  %7172 = vmatpush1.msra.mxu0 %v56
  %7173 = vmatprep.subr.mxu0 %v45
  %7174 = vmatpush1.msra.mxu0 %v44
  %7175 = vmatprep.subr.mxu0 %v33
  %7176 = vmatpush1.msra.mxu0 %v32
  %7177 = vmatprep.subr.mxu0 %v405
  %7178 = vmatpush2.msra.mxu0 %v404
  %7179 = vmatprep.subr.mxu0 %v393
  %7180 = vmatpush2.msra.mxu0 %v392
  %7181 = vmatprep.subr.mxu0 %v381
  %7182 = vmatpush2.msra.mxu0 %v380
  %7183 = vmatprep.subr.mxu0 %v369
  %7184 = vmatpush2.msra.mxu0 %v368
  %7185 = vmatprep.subr.mxu0 %v357
  %7186 = vmatpush2.msra.mxu0 %v356
  %7187 = vmatprep.subr.mxu0 %v345
  %7188 = vmatpush2.msra.mxu0 %v344
  %7189 = vmatprep.subr.mxu0 %v333
  %7190 = vmatpush2.msra.mxu0 %v332
  %7191 = vmatprep.subr.mxu0 %v321
  %7192 = vmatpush2.msra.mxu0 %v320
  %7193 = vmatprep.subr.mxu0 %v309
  %7194 = vmatpush2.msra.mxu0 %v308
  %7195 = vmatprep.subr.mxu0 %v297
  %7196 = vmatpush2.msra.mxu0 %v296
  %7197 = vmatprep.subr.mxu0 %v285
  %7198 = vmatpush2.msra.mxu0 %v284
  %7199 = vmatprep.subr.mxu0 %v273
  %7200 = vmatpush2.msra.mxu0 %v272
  %7201 = vmatprep.subr.mxu0 %v261
  %7202 = vmatpush2.msra.mxu0 %v260
  %7203 = vmatprep.subr.mxu0 %v249
  %7204 = vmatpush2.msra.mxu0 %v248
  %7205 = vmatprep.subr.mxu0 %v237
  %7206 = vmatpush2.msra.mxu0 %v236
  %7207 = vmatprep.subr.mxu0 %v225
  %7208 = vmatpush2.msra.mxu0 %v224
  %7209 = vmatprep.mubr.f32.mxu0 %v6556
  %7210 = vmatmul.mubr.f32.gmra.mxu0 %v6555
  %v7211 = vpop.f32.mrf.mxu0
  %v7212 = vadd.f32 0.0, %v7211
  %v7213 = vpop.f32.mrf.mxu0
  %v7214 = vadd.f32 0.0, %v7213
  %7215 = vdwg.mxu0
  %7216 = vmatprep.subr.mxu0 %v597
  %7217 = vmatpush1.msra.mxu0 %v596
  %7218 = vmatprep.subr.mxu0 %v585
  %7219 = vmatpush1.msra.mxu0 %v584
  %7220 = vmatprep.subr.mxu0 %v573
  %7221 = vmatpush1.msra.mxu0 %v572
  %7222 = vmatprep.subr.mxu0 %v561
  %7223 = vmatpush1.msra.mxu0 %v560
  %7224 = vmatprep.subr.mxu0 %v549
  %7225 = vmatpush1.msra.mxu0 %v548
  %7226 = vmatprep.subr.mxu0 %v537
  %7227 = vmatpush1.msra.mxu0 %v536
  %7228 = vmatprep.subr.mxu0 %v525
  %7229 = vmatpush1.msra.mxu0 %v524
  %7230 = vmatprep.subr.mxu0 %v513
  %7231 = vmatpush1.msra.mxu0 %v512
  %7232 = vmatprep.subr.mxu0 %v501
  %7233 = vmatpush1.msra.mxu0 %v500
  %7234 = vmatprep.subr.mxu0 %v489
  %7235 = vmatpush1.msra.mxu0 %v488
  %7236 = vmatprep.subr.mxu0 %v477
  %7237 = vmatpush1.msra.mxu0 %v476
  %7238 = vmatprep.subr.mxu0 %v465
  %7239 = vmatpush1.msra.mxu0 %v464
  %7240 = vmatprep.subr.mxu0 %v453
  %7241 = vmatpush1.msra.mxu0 %v452
  %7242 = vmatprep.subr.mxu0 %v441
  %7243 = vmatpush1.msra.mxu0 %v440
  %7244 = vmatprep.subr.mxu0 %v429
  %7245 = vmatpush1.msra.mxu0 %v428
  %7246 = vmatprep.subr.mxu0 %v417
  %7247 = vmatpush1.msra.mxu0 %v416
  %7248 = vmatprep.subr.mxu0 %v789
  %7249 = vmatpush2.msra.mxu0 %v788
  %7250 = vmatprep.subr.mxu0 %v777
  %7251 = vmatpush2.msra.mxu0 %v776
  %7252 = vmatprep.subr.mxu0 %v765
  %7253 = vmatpush2.msra.mxu0 %v764
  %7254 = vmatprep.subr.mxu0 %v753
  %7255 = vmatpush2.msra.mxu0 %v752
  %7256 = vmatprep.subr.mxu0 %v741
  %7257 = vmatpush2.msra.mxu0 %v740
  %7258 = vmatprep.subr.mxu0 %v729
  %7259 = vmatpush2.msra.mxu0 %v728
  %7260 = vmatprep.subr.mxu0 %v717
  %7261 = vmatpush2.msra.mxu0 %v716
  %7262 = vmatprep.subr.mxu0 %v705
  %7263 = vmatpush2.msra.mxu0 %v704
  %7264 = vmatprep.subr.mxu0 %v693
  %7265 = vmatpush2.msra.mxu0 %v692
  %7266 = vmatprep.subr.mxu0 %v681
  %7267 = vmatpush2.msra.mxu0 %v680
  %7268 = vmatprep.subr.mxu0 %v669
  %7269 = vmatpush2.msra.mxu0 %v668
  %7270 = vmatprep.subr.mxu0 %v657
  %7271 = vmatpush2.msra.mxu0 %v656
  %7272 = vmatprep.subr.mxu0 %v645
  %7273 = vmatpush2.msra.mxu0 %v644
  %7274 = vmatprep.subr.mxu0 %v633
  %7275 = vmatpush2.msra.mxu0 %v632
  %7276 = vmatprep.subr.mxu0 %v621
  %7277 = vmatpush2.msra.mxu0 %v620
  %7278 = vmatprep.subr.mxu0 %v609
  %7279 = vmatpush2.msra.mxu0 %v608
  %7280 = vmatprep.mubr.f32.mxu0 %v6558
  %7281 = vmatmul.mubr.f32.gmra.mxu0 %v6557
  %v7282 = vpop.f32.mrf.mxu0
  %v7283 = vadd.f32 %v7212, %v7282
  %v7284 = vpop.f32.mrf.mxu0
  %v7285 = vadd.f32 %v7214, %v7284
  %7286 = vdwg.mxu0
  %7287 = vmatprep.subr.mxu0 %v215
  %7288 = vmatpush1.msra.mxu0 %v214
  %7289 = vmatprep.subr.mxu0 %v203
  %7290 = vmatpush1.msra.mxu0 %v202
  %7291 = vmatprep.subr.mxu0 %v191
  %7292 = vmatpush1.msra.mxu0 %v190
  %7293 = vmatprep.subr.mxu0 %v179
  %7294 = vmatpush1.msra.mxu0 %v178
  %7295 = vmatprep.subr.mxu0 %v167
  %7296 = vmatpush1.msra.mxu0 %v166
  %7297 = vmatprep.subr.mxu0 %v155
  %7298 = vmatpush1.msra.mxu0 %v154
  %7299 = vmatprep.subr.mxu0 %v143
  %7300 = vmatpush1.msra.mxu0 %v142
  %7301 = vmatprep.subr.mxu0 %v131
  %7302 = vmatpush1.msra.mxu0 %v130
  %7303 = vmatprep.subr.mxu0 %v119
  %7304 = vmatpush1.msra.mxu0 %v118
  %7305 = vmatprep.subr.mxu0 %v107
  %7306 = vmatpush1.msra.mxu0 %v106
  %7307 = vmatprep.subr.mxu0 %v95
  %7308 = vmatpush1.msra.mxu0 %v94
  %7309 = vmatprep.subr.mxu0 %v83
  %7310 = vmatpush1.msra.mxu0 %v82
  %7311 = vmatprep.subr.mxu0 %v71
  %7312 = vmatpush1.msra.mxu0 %v70
  %7313 = vmatprep.subr.mxu0 %v59
  %7314 = vmatpush1.msra.mxu0 %v58
  %7315 = vmatprep.subr.mxu0 %v47
  %7316 = vmatpush1.msra.mxu0 %v46
  %7317 = vmatprep.subr.mxu0 %v35
  %7318 = vmatpush1.msra.mxu0 %v34
  %7319 = vmatprep.subr.mxu0 %v407
  %7320 = vmatpush2.msra.mxu0 %v406
  %7321 = vmatprep.subr.mxu0 %v395
  %7322 = vmatpush2.msra.mxu0 %v394
  %7323 = vmatprep.subr.mxu0 %v383
  %7324 = vmatpush2.msra.mxu0 %v382
  %7325 = vmatprep.subr.mxu0 %v371
  %7326 = vmatpush2.msra.mxu0 %v370
  %7327 = vmatprep.subr.mxu0 %v359
  %7328 = vmatpush2.msra.mxu0 %v358
  %7329 = vmatprep.subr.mxu0 %v347
  %7330 = vmatpush2.msra.mxu0 %v346
  %7331 = vmatprep.subr.mxu0 %v335
  %7332 = vmatpush2.msra.mxu0 %v334
  %7333 = vmatprep.subr.mxu0 %v323
  %7334 = vmatpush2.msra.mxu0 %v322
  %7335 = vmatprep.subr.mxu0 %v311
  %7336 = vmatpush2.msra.mxu0 %v310
  %7337 = vmatprep.subr.mxu0 %v299
  %7338 = vmatpush2.msra.mxu0 %v298
  %7339 = vmatprep.subr.mxu0 %v287
  %7340 = vmatpush2.msra.mxu0 %v286
  %7341 = vmatprep.subr.mxu0 %v275
  %7342 = vmatpush2.msra.mxu0 %v274
  %7343 = vmatprep.subr.mxu0 %v263
  %7344 = vmatpush2.msra.mxu0 %v262
  %7345 = vmatprep.subr.mxu0 %v251
  %7346 = vmatpush2.msra.mxu0 %v250
  %7347 = vmatprep.subr.mxu0 %v239
  %7348 = vmatpush2.msra.mxu0 %v238
  %7349 = vmatprep.subr.mxu0 %v227
  %7350 = vmatpush2.msra.mxu0 %v226
  %7351 = vmatprep.mubr.f32.mxu0 %v6556
  %7352 = vmatmul.mubr.f32.gmra.mxu0 %v6555
  %v7353 = vpop.f32.mrf.mxu0
  %v7354 = vadd.f32 0.0, %v7353
  %v7355 = vpop.f32.mrf.mxu0
  %v7356 = vadd.f32 0.0, %v7355
  %7357 = vdwg.mxu0
  %7358 = vmatprep.subr.mxu0 %v599
  %7359 = vmatpush1.msra.mxu0 %v598
  %7360 = vmatprep.subr.mxu0 %v587
  %7361 = vmatpush1.msra.mxu0 %v586
  %7362 = vmatprep.subr.mxu0 %v575
  %7363 = vmatpush1.msra.mxu0 %v574
  %7364 = vmatprep.subr.mxu0 %v563
  %7365 = vmatpush1.msra.mxu0 %v562
  %7366 = vmatprep.subr.mxu0 %v551
  %7367 = vmatpush1.msra.mxu0 %v550
  %7368 = vmatprep.subr.mxu0 %v539
  %7369 = vmatpush1.msra.mxu0 %v538
  %7370 = vmatprep.subr.mxu0 %v527
  %7371 = vmatpush1.msra.mxu0 %v526
  %7372 = vmatprep.subr.mxu0 %v515
  %7373 = vmatpush1.msra.mxu0 %v514
  %7374 = vmatprep.subr.mxu0 %v503
  %7375 = vmatpush1.msra.mxu0 %v502
  %7376 = vmatprep.subr.mxu0 %v491
  %7377 = vmatpush1.msra.mxu0 %v490
  %7378 = vmatprep.subr.mxu0 %v479
  %7379 = vmatpush1.msra.mxu0 %v478
  %7380 = vmatprep.subr.mxu0 %v467
  %7381 = vmatpush1.msra.mxu0 %v466
  %7382 = vmatprep.subr.mxu0 %v455
  %7383 = vmatpush1.msra.mxu0 %v454
  %7384 = vmatprep.subr.mxu0 %v443
  %7385 = vmatpush1.msra.mxu0 %v442
  %7386 = vmatprep.subr.mxu0 %v431
  %7387 = vmatpush1.msra.mxu0 %v430
  %7388 = vmatprep.subr.mxu0 %v419
  %7389 = vmatpush1.msra.mxu0 %v418
  %7390 = vmatprep.subr.mxu0 %v791
  %7391 = vmatpush2.msra.mxu0 %v790
  %7392 = vmatprep.subr.mxu0 %v779
  %7393 = vmatpush2.msra.mxu0 %v778
  %7394 = vmatprep.subr.mxu0 %v767
  %7395 = vmatpush2.msra.mxu0 %v766
  %7396 = vmatprep.subr.mxu0 %v755
  %7397 = vmatpush2.msra.mxu0 %v754
  %7398 = vmatprep.subr.mxu0 %v743
  %7399 = vmatpush2.msra.mxu0 %v742
  %7400 = vmatprep.subr.mxu0 %v731
  %7401 = vmatpush2.msra.mxu0 %v730
  %7402 = vmatprep.subr.mxu0 %v719
  %7403 = vmatpush2.msra.mxu0 %v718
  %7404 = vmatprep.subr.mxu0 %v707
  %7405 = vmatpush2.msra.mxu0 %v706
  %7406 = vmatprep.subr.mxu0 %v695
  %7407 = vmatpush2.msra.mxu0 %v694
  %7408 = vmatprep.subr.mxu0 %v683
  %7409 = vmatpush2.msra.mxu0 %v682
  %7410 = vmatprep.subr.mxu0 %v671
  %7411 = vmatpush2.msra.mxu0 %v670
  %7412 = vmatprep.subr.mxu0 %v659
  %7413 = vmatpush2.msra.mxu0 %v658
  %7414 = vmatprep.subr.mxu0 %v647
  %7415 = vmatpush2.msra.mxu0 %v646
  %7416 = vmatprep.subr.mxu0 %v635
  %7417 = vmatpush2.msra.mxu0 %v634
  %7418 = vmatprep.subr.mxu0 %v623
  %7419 = vmatpush2.msra.mxu0 %v622
  %7420 = vmatprep.subr.mxu0 %v611
  %7421 = vmatpush2.msra.mxu0 %v610
  %7422 = vmatprep.mubr.f32.mxu0 %v6558
  %7423 = vmatmul.mubr.f32.gmra.mxu0 %v6557
  %v7424 = vpop.f32.mrf.mxu0
  %v7425 = vadd.f32 %v7354, %v7424
  %v7426 = vpop.f32.mrf.mxu0
  %v7427 = vadd.f32 %v7356, %v7426
  %7428 = vdwg.mxu0
  %v7429 = vadd.f32 %v6565, %v6715
  %v7430 = vadd.f32 %v6566, %v6717
  %v7431 = vadd.f32 %v6567, %v6857
  %v7432 = vadd.f32 %v6568, %v6859
  %v7433 = vxor.u32 %v7429, 2147483648
  %v7434 = vxor.u32 %v7430, 2147483648
  %v7435 = vxor.u32 %v7431, 2147483648
  %v7436 = vxor.u32 %v7432, 2147483648
  %v7437 = vmul.f32 %v7433, 1.442695
  %v7438 = vpow.pop %v7437
  %v7439 = vmul.f32 %v7434, 1.442695
  %v7440 = vpow.pop %v7439
  %v7441 = vmul.f32 %v7435, 1.442695
  %v7442 = vpow.pop %v7441
  %v7443 = vmul.f32 %v7436, 1.442695
  %v7444 = vpow.pop %v7443
  %v7445 = vadd.f32 %v7438, 1.0
  %v7446 = vadd.f32 %v7440, 1.0
  %v7447 = vadd.f32 %v7442, 1.0
  %v7448 = vadd.f32 %v7444, 1.0
  %v7449 = vrcp.pop %v7445
  %v7450 = vmul.f32 1.0, %v7449
  %v7451 = vrcp.pop %v7446
  %v7452 = vmul.f32 1.0, %v7451
  %v7453 = vrcp.pop %v7447
  %v7454 = vmul.f32 1.0, %v7453
  %v7455 = vrcp.pop %v7448
  %v7456 = vmul.f32 1.0, %v7455
  %v7457 = vadd.f32 %v6569, %v6999
  %v7458 = vadd.f32 %v6570, %v7001
  %v7459 = vadd.f32 %v6571, %v7141
  %v7460 = vadd.f32 %v6572, %v7143
  %v7461 = vxor.u32 %v7457, 2147483648
  %v7462 = vxor.u32 %v7458, 2147483648
  %v7463 = vxor.u32 %v7459, 2147483648
  %v7464 = vxor.u32 %v7460, 2147483648
  %v7465 = vmul.f32 %v7461, 1.442695
  %v7466 = vpow.pop %v7465
  %v7467 = vmul.f32 %v7462, 1.442695
  %v7468 = vpow.pop %v7467
  %v7469 = vmul.f32 %v7463, 1.442695
  %v7470 = vpow.pop %v7469
  %v7471 = vmul.f32 %v7464, 1.442695
  %v7472 = vpow.pop %v7471
  %v7473 = vadd.f32 %v7466, 1.0
  %v7474 = vadd.f32 %v7468, 1.0
  %v7475 = vadd.f32 %v7470, 1.0
  %v7476 = vadd.f32 %v7472, 1.0
  %v7477 = vrcp.pop %v7473
  %v7478 = vmul.f32 1.0, %v7477
  %v7479 = vrcp.pop %v7474
  %v7480 = vmul.f32 1.0, %v7479
  %v7481 = vrcp.pop %v7475
  %v7482 = vmul.f32 1.0, %v7481
  %v7483 = vrcp.pop %v7476
  %v7484 = vmul.f32 1.0, %v7483
  %v7485 = vadd.f32 %v7283, %v1721
  %v7486 = vadd.f32 %v7285, %v1725
  %v7487 = vadd.f32 %v7425, %v1729
  %v7488 = vadd.f32 %v7427, %v1733
  %v7489 = vmul.f32 %v7450, %v7485
  %v7490 = vmul.f32 %v7452, %v7486
  %v7491 = vmul.f32 %v7454, %v7487
  %v7492 = vmul.f32 %v7456, %v7488
  %v7493 = vadd.f32 %v6573, %v7489
  %v7494 = vadd.f32 %v6574, %v7490
  %v7495 = vadd.f32 %v6575, %v7491
  %v7496 = vadd.f32 %v6576, %v7492
  %v7497 = vtanh.pop %v7493
  %v7498 = vtanh.pop %v7494
  %v7499 = vtanh.pop %v7495
  %v7500 = vtanh.pop %v7496
  %v7501 = vsub.f32 1.0, %v7478
  %v7502 = vsub.f32 1.0, %v7480
  %v7503 = vsub.f32 1.0, %v7482
  %v7504 = vsub.f32 1.0, %v7484
  %v7505 = vmul.f32 %v7501, %v7497
  %v7506 = vmul.f32 %v7502, %v7498
  %v7507 = vmul.f32 %v7503, %v7499
  %v7508 = vmul.f32 %v7504, %v7500
  %v7509 = vmul.f32 %v7478, %v6555
  %v7510 = vmul.f32 %v7480, %v6556
  %v7511 = vmul.f32 %v7482, %v6557
  %v7512 = vmul.f32 %v7484, %v6558
  %v7513 = vadd.f32 %v7505, %v7509
  %v7514 = vadd.f32 %v7506, %v7510
  %v7515 = vadd.f32 %v7507, %v7511
  %v7516 = vadd.f32 %v7508, %v7512
  %s7517 = scalar_lea.vmem %s3, 192
  %7518 = vst [vmem:[%s7517] sm:$0xff] %v7513
  %7519 = vst [vmem:[%s7517 + $0x8] sm:$0xff] %v7514
  %7520 = vst [vmem:[%s7517 + $0x10] sm:$0xff] %v7515
  %7521 = vst [vmem:[%s7517 + $0x18] sm:$0xff] %v7516
  %s7522 = scalar_lea.vmem %s0, 672
  %v7523 = vld [vmem:[%s7522] sm:$0xff]
  %v7524 = vld [vmem:[%s7522 + $0x8] sm:$0xff]
  %v7525 = vld [vmem:[%s7522 + $0x10] sm:$0xff]
  %v7526 = vld [vmem:[%s7522 + $0x18] sm:$0xff]
  %v7527 = vld [vmem:[%s7522 + $0x20] sm:$0xff]
  %v7528 = vld [vmem:[%s7522 + $0x28] sm:$0xff]
  %v7529 = vld [vmem:[%s7522 + $0x30] sm:$0xff]
  %v7530 = vld [vmem:[%s7522 + $0x38] sm:$0xff]
  %v7531 = vld [vmem:[%s7522 + $0x40] sm:$0xff]
  %v7532 = vld [vmem:[%s7522 + $0x48] sm:$0xff]
  %v7533 = vld [vmem:[%s7522 + $0x50] sm:$0xff]
  %v7534 = vld [vmem:[%s7522 + $0x58] sm:$0xff]
  %7535 = vmatprep.subr.mxu0 %v205
  %7536 = vmatpush1.msra.mxu0 %v204
  %7537 = vmatprep.subr.mxu0 %v193
  %7538 = vmatpush1.msra.mxu0 %v192
  %7539 = vmatprep.subr.mxu0 %v181
  %7540 = vmatpush1.msra.mxu0 %v180
  %7541 = vmatprep.subr.mxu0 %v169
  %7542 = vmatpush1.msra.mxu0 %v168
  %7543 = vmatprep.subr.mxu0 %v157
  %7544 = vmatpush1.msra.mxu0 %v156
  %7545 = vmatprep.subr.mxu0 %v145
  %7546 = vmatpush1.msra.mxu0 %v144
  %7547 = vmatprep.subr.mxu0 %v133
  %7548 = vmatpush1.msra.mxu0 %v132
  %7549 = vmatprep.subr.mxu0 %v121
  %7550 = vmatpush1.msra.mxu0 %v120
  %7551 = vmatprep.subr.mxu0 %v109
  %7552 = vmatpush1.msra.mxu0 %v108
  %7553 = vmatprep.subr.mxu0 %v97
  %7554 = vmatpush1.msra.mxu0 %v96
  %7555 = vmatprep.subr.mxu0 %v85
  %7556 = vmatpush1.msra.mxu0 %v84
  %7557 = vmatprep.subr.mxu0 %v73
  %7558 = vmatpush1.msra.mxu0 %v72
  %7559 = vmatprep.subr.mxu0 %v61
  %7560 = vmatpush1.msra.mxu0 %v60
  %7561 = vmatprep.subr.mxu0 %v49
  %7562 = vmatpush1.msra.mxu0 %v48
  %7563 = vmatprep.subr.mxu0 %v37
  %7564 = vmatpush1.msra.mxu0 %v36
  %7565 = vmatprep.subr.mxu0 %v25
  %7566 = vmatpush1.msra.mxu0 %v24
  %7567 = vmatprep.subr.mxu0 %v397
  %7568 = vmatpush2.msra.mxu0 %v396
  %7569 = vmatprep.subr.mxu0 %v385
  %7570 = vmatpush2.msra.mxu0 %v384
  %7571 = vmatprep.subr.mxu0 %v373
  %7572 = vmatpush2.msra.mxu0 %v372
  %7573 = vmatprep.subr.mxu0 %v361
  %7574 = vmatpush2.msra.mxu0 %v360
  %7575 = vmatprep.subr.mxu0 %v349
  %7576 = vmatpush2.msra.mxu0 %v348
  %7577 = vmatprep.subr.mxu0 %v337
  %7578 = vmatpush2.msra.mxu0 %v336
  %7579 = vmatprep.subr.mxu0 %v325
  %7580 = vmatpush2.msra.mxu0 %v324
  %7581 = vmatprep.subr.mxu0 %v313
  %7582 = vmatpush2.msra.mxu0 %v312
  %7583 = vmatprep.subr.mxu0 %v301
  %7584 = vmatpush2.msra.mxu0 %v300
  %7585 = vmatprep.subr.mxu0 %v289
  %7586 = vmatpush2.msra.mxu0 %v288
  %7587 = vmatprep.subr.mxu0 %v277
  %7588 = vmatpush2.msra.mxu0 %v276
  %7589 = vmatprep.subr.mxu0 %v265
  %7590 = vmatpush2.msra.mxu0 %v264
  %7591 = vmatprep.subr.mxu0 %v253
  %7592 = vmatpush2.msra.mxu0 %v252
  %7593 = vmatprep.subr.mxu0 %v241
  %7594 = vmatpush2.msra.mxu0 %v240
  %7595 = vmatprep.subr.mxu0 %v229
  %7596 = vmatpush2.msra.mxu0 %v228
  %7597 = vmatprep.subr.mxu0 %v217
  %7598 = vmatpush2.msra.mxu0 %v216
  %7599 = vmatprep.mubr.f32.mxu0 %v7514
  %7600 = vmatmul.mubr.f32.gmra.mxu0 %v7513
  %v7601 = vpop.f32.mrf.mxu0
  %v7602 = vadd.f32 0.0, %v7601
  %v7603 = vpop.f32.mrf.mxu0
  %v7604 = vadd.f32 0.0, %v7603
  %7605 = vdwg.mxu0
  %7606 = vmatprep.subr.mxu0 %v589
  %7607 = vmatpush1.msra.mxu0 %v588
  %7608 = vmatprep.subr.mxu0 %v577
  %7609 = vmatpush1.msra.mxu0 %v576
  %7610 = vmatprep.subr.mxu0 %v565
  %7611 = vmatpush1.msra.mxu0 %v564
  %7612 = vmatprep.subr.mxu0 %v553
  %7613 = vmatpush1.msra.mxu0 %v552
  %7614 = vmatprep.subr.mxu0 %v541
  %7615 = vmatpush1.msra.mxu0 %v540
  %7616 = vmatprep.subr.mxu0 %v529
  %7617 = vmatpush1.msra.mxu0 %v528
  %7618 = vmatprep.subr.mxu0 %v517
  %7619 = vmatpush1.msra.mxu0 %v516
  %7620 = vmatprep.subr.mxu0 %v505
  %7621 = vmatpush1.msra.mxu0 %v504
  %7622 = vmatprep.subr.mxu0 %v493
  %7623 = vmatpush1.msra.mxu0 %v492
  %7624 = vmatprep.subr.mxu0 %v481
  %7625 = vmatpush1.msra.mxu0 %v480
  %7626 = vmatprep.subr.mxu0 %v469
  %7627 = vmatpush1.msra.mxu0 %v468
  %7628 = vmatprep.subr.mxu0 %v457
  %7629 = vmatpush1.msra.mxu0 %v456
  %7630 = vmatprep.subr.mxu0 %v445
  %7631 = vmatpush1.msra.mxu0 %v444
  %7632 = vmatprep.subr.mxu0 %v433
  %7633 = vmatpush1.msra.mxu0 %v432
  %7634 = vmatprep.subr.mxu0 %v421
  %7635 = vmatpush1.msra.mxu0 %v420
  %7636 = vmatprep.subr.mxu0 %v409
  %7637 = vmatpush1.msra.mxu0 %v408
  %7638 = vmatprep.subr.mxu0 %v781
  %7639 = vmatpush2.msra.mxu0 %v780
  %7640 = vmatprep.subr.mxu0 %v769
  %7641 = vmatpush2.msra.mxu0 %v768
  %7642 = vmatprep.subr.mxu0 %v757
  %7643 = vmatpush2.msra.mxu0 %v756
  %7644 = vmatprep.subr.mxu0 %v745
  %7645 = vmatpush2.msra.mxu0 %v744
  %7646 = vmatprep.subr.mxu0 %v733
  %7647 = vmatpush2.msra.mxu0 %v732
  %7648 = vmatprep.subr.mxu0 %v721
  %7649 = vmatpush2.msra.mxu0 %v720
  %7650 = vmatprep.subr.mxu0 %v709
  %7651 = vmatpush2.msra.mxu0 %v708
  %7652 = vmatprep.subr.mxu0 %v697
  %7653 = vmatpush2.msra.mxu0 %v696
  %7654 = vmatprep.subr.mxu0 %v685
  %7655 = vmatpush2.msra.mxu0 %v684
  %7656 = vmatprep.subr.mxu0 %v673
  %7657 = vmatpush2.msra.mxu0 %v672
  %7658 = vmatprep.subr.mxu0 %v661
  %7659 = vmatpush2.msra.mxu0 %v660
  %7660 = vmatprep.subr.mxu0 %v649
  %7661 = vmatpush2.msra.mxu0 %v648
  %7662 = vmatprep.subr.mxu0 %v637
  %7663 = vmatpush2.msra.mxu0 %v636
  %7664 = vmatprep.subr.mxu0 %v625
  %7665 = vmatpush2.msra.mxu0 %v624
  %7666 = vmatprep.subr.mxu0 %v613
  %7667 = vmatpush2.msra.mxu0 %v612
  %7668 = vmatprep.subr.mxu0 %v601
  %7669 = vmatpush2.msra.mxu0 %v600
  %7670 = vmatprep.mubr.f32.mxu0 %v7516
  %7671 = vmatmul.mubr.f32.gmra.mxu0 %v7515
  %v7672 = vpop.f32.mrf.mxu0
  %v7673 = vadd.f32 %v7602, %v7672
  %v7674 = vpop.f32.mrf.mxu0
  %v7675 = vadd.f32 %v7604, %v7674
  %7676 = vdwg.mxu0
  %7677 = vmatprep.subr.mxu0 %v207
  %7678 = vmatpush1.msra.mxu0 %v206
  %7679 = vmatprep.subr.mxu0 %v195
  %7680 = vmatpush1.msra.mxu0 %v194
  %7681 = vmatprep.subr.mxu0 %v183
  %7682 = vmatpush1.msra.mxu0 %v182
  %7683 = vmatprep.subr.mxu0 %v171
  %7684 = vmatpush1.msra.mxu0 %v170
  %7685 = vmatprep.subr.mxu0 %v159
  %7686 = vmatpush1.msra.mxu0 %v158
  %7687 = vmatprep.subr.mxu0 %v147
  %7688 = vmatpush1.msra.mxu0 %v146
  %7689 = vmatprep.subr.mxu0 %v135
  %7690 = vmatpush1.msra.mxu0 %v134
  %7691 = vmatprep.subr.mxu0 %v123
  %7692 = vmatpush1.msra.mxu0 %v122
  %7693 = vmatprep.subr.mxu0 %v111
  %7694 = vmatpush1.msra.mxu0 %v110
  %7695 = vmatprep.subr.mxu0 %v99
  %7696 = vmatpush1.msra.mxu0 %v98
  %7697 = vmatprep.subr.mxu0 %v87
  %7698 = vmatpush1.msra.mxu0 %v86
  %7699 = vmatprep.subr.mxu0 %v75
  %7700 = vmatpush1.msra.mxu0 %v74
  %7701 = vmatprep.subr.mxu0 %v63
  %7702 = vmatpush1.msra.mxu0 %v62
  %7703 = vmatprep.subr.mxu0 %v51
  %7704 = vmatpush1.msra.mxu0 %v50
  %7705 = vmatprep.subr.mxu0 %v39
  %7706 = vmatpush1.msra.mxu0 %v38
  %7707 = vmatprep.subr.mxu0 %v27
  %7708 = vmatpush1.msra.mxu0 %v26
  %7709 = vmatprep.subr.mxu0 %v399
  %7710 = vmatpush2.msra.mxu0 %v398
  %7711 = vmatprep.subr.mxu0 %v387
  %7712 = vmatpush2.msra.mxu0 %v386
  %7713 = vmatprep.subr.mxu0 %v375
  %7714 = vmatpush2.msra.mxu0 %v374
  %7715 = vmatprep.subr.mxu0 %v363
  %7716 = vmatpush2.msra.mxu0 %v362
  %7717 = vmatprep.subr.mxu0 %v351
  %7718 = vmatpush2.msra.mxu0 %v350
  %7719 = vmatprep.subr.mxu0 %v339
  %7720 = vmatpush2.msra.mxu0 %v338
  %7721 = vmatprep.subr.mxu0 %v327
  %7722 = vmatpush2.msra.mxu0 %v326
  %7723 = vmatprep.subr.mxu0 %v315
  %7724 = vmatpush2.msra.mxu0 %v314
  %7725 = vmatprep.subr.mxu0 %v303
  %7726 = vmatpush2.msra.mxu0 %v302
  %7727 = vmatprep.subr.mxu0 %v291
  %7728 = vmatpush2.msra.mxu0 %v290
  %7729 = vmatprep.subr.mxu0 %v279
  %7730 = vmatpush2.msra.mxu0 %v278
  %7731 = vmatprep.subr.mxu0 %v267
  %7732 = vmatpush2.msra.mxu0 %v266
  %7733 = vmatprep.subr.mxu0 %v255
  %7734 = vmatpush2.msra.mxu0 %v254
  %7735 = vmatprep.subr.mxu0 %v243
  %7736 = vmatpush2.msra.mxu0 %v242
  %7737 = vmatprep.subr.mxu0 %v231
  %7738 = vmatpush2.msra.mxu0 %v230
  %7739 = vmatprep.subr.mxu0 %v219
  %7740 = vmatpush2.msra.mxu0 %v218
  %7741 = vmatprep.mubr.f32.mxu0 %v7514
  %7742 = vmatmul.mubr.f32.gmra.mxu0 %v7513
  %v7743 = vpop.f32.mrf.mxu0
  %v7744 = vadd.f32 0.0, %v7743
  %v7745 = vpop.f32.mrf.mxu0
  %v7746 = vadd.f32 0.0, %v7745
  %7747 = vdwg.mxu0
  %7748 = vmatprep.subr.mxu0 %v591
  %7749 = vmatpush1.msra.mxu0 %v590
  %7750 = vmatprep.subr.mxu0 %v579
  %7751 = vmatpush1.msra.mxu0 %v578
  %7752 = vmatprep.subr.mxu0 %v567
  %7753 = vmatpush1.msra.mxu0 %v566
  %7754 = vmatprep.subr.mxu0 %v555
  %7755 = vmatpush1.msra.mxu0 %v554
  %7756 = vmatprep.subr.mxu0 %v543
  %7757 = vmatpush1.msra.mxu0 %v542
  %7758 = vmatprep.subr.mxu0 %v531
  %7759 = vmatpush1.msra.mxu0 %v530
  %7760 = vmatprep.subr.mxu0 %v519
  %7761 = vmatpush1.msra.mxu0 %v518
  %7762 = vmatprep.subr.mxu0 %v507
  %7763 = vmatpush1.msra.mxu0 %v506
  %7764 = vmatprep.subr.mxu0 %v495
  %7765 = vmatpush1.msra.mxu0 %v494
  %7766 = vmatprep.subr.mxu0 %v483
  %7767 = vmatpush1.msra.mxu0 %v482
  %7768 = vmatprep.subr.mxu0 %v471
  %7769 = vmatpush1.msra.mxu0 %v470
  %7770 = vmatprep.subr.mxu0 %v459
  %7771 = vmatpush1.msra.mxu0 %v458
  %7772 = vmatprep.subr.mxu0 %v447
  %7773 = vmatpush1.msra.mxu0 %v446
  %7774 = vmatprep.subr.mxu0 %v435
  %7775 = vmatpush1.msra.mxu0 %v434
  %7776 = vmatprep.subr.mxu0 %v423
  %7777 = vmatpush1.msra.mxu0 %v422
  %7778 = vmatprep.subr.mxu0 %v411
  %7779 = vmatpush1.msra.mxu0 %v410
  %7780 = vmatprep.subr.mxu0 %v783
  %7781 = vmatpush2.msra.mxu0 %v782
  %7782 = vmatprep.subr.mxu0 %v771
  %7783 = vmatpush2.msra.mxu0 %v770
  %7784 = vmatprep.subr.mxu0 %v759
  %7785 = vmatpush2.msra.mxu0 %v758
  %7786 = vmatprep.subr.mxu0 %v747
  %7787 = vmatpush2.msra.mxu0 %v746
  %7788 = vmatprep.subr.mxu0 %v735
  %7789 = vmatpush2.msra.mxu0 %v734
  %7790 = vmatprep.subr.mxu0 %v723
  %7791 = vmatpush2.msra.mxu0 %v722
  %7792 = vmatprep.subr.mxu0 %v711
  %7793 = vmatpush2.msra.mxu0 %v710
  %7794 = vmatprep.subr.mxu0 %v699
  %7795 = vmatpush2.msra.mxu0 %v698
  %7796 = vmatprep.subr.mxu0 %v687
  %7797 = vmatpush2.msra.mxu0 %v686
  %7798 = vmatprep.subr.mxu0 %v675
  %7799 = vmatpush2.msra.mxu0 %v674
  %7800 = vmatprep.subr.mxu0 %v663
  %7801 = vmatpush2.msra.mxu0 %v662
  %7802 = vmatprep.subr.mxu0 %v651
  %7803 = vmatpush2.msra.mxu0 %v650
  %7804 = vmatprep.subr.mxu0 %v639
  %7805 = vmatpush2.msra.mxu0 %v638
  %7806 = vmatprep.subr.mxu0 %v627
  %7807 = vmatpush2.msra.mxu0 %v626
  %7808 = vmatprep.subr.mxu0 %v615
  %7809 = vmatpush2.msra.mxu0 %v614
  %7810 = vmatprep.subr.mxu0 %v603
  %7811 = vmatpush2.msra.mxu0 %v602
  %7812 = vmatprep.mubr.f32.mxu0 %v7516
  %7813 = vmatmul.mubr.f32.gmra.mxu0 %v7515
  %v7814 = vpop.f32.mrf.mxu0
  %v7815 = vadd.f32 %v7744, %v7814
  %v7816 = vpop.f32.mrf.mxu0
  %v7817 = vadd.f32 %v7746, %v7816
  %7818 = vdwg.mxu0
  %7819 = vmatprep.subr.mxu0 %v209
  %7820 = vmatpush1.msra.mxu0 %v208
  %7821 = vmatprep.subr.mxu0 %v197
  %7822 = vmatpush1.msra.mxu0 %v196
  %7823 = vmatprep.subr.mxu0 %v185
  %7824 = vmatpush1.msra.mxu0 %v184
  %7825 = vmatprep.subr.mxu0 %v173
  %7826 = vmatpush1.msra.mxu0 %v172
  %7827 = vmatprep.subr.mxu0 %v161
  %7828 = vmatpush1.msra.mxu0 %v160
  %7829 = vmatprep.subr.mxu0 %v149
  %7830 = vmatpush1.msra.mxu0 %v148
  %7831 = vmatprep.subr.mxu0 %v137
  %7832 = vmatpush1.msra.mxu0 %v136
  %7833 = vmatprep.subr.mxu0 %v125
  %7834 = vmatpush1.msra.mxu0 %v124
  %7835 = vmatprep.subr.mxu0 %v113
  %7836 = vmatpush1.msra.mxu0 %v112
  %7837 = vmatprep.subr.mxu0 %v101
  %7838 = vmatpush1.msra.mxu0 %v100
  %7839 = vmatprep.subr.mxu0 %v89
  %7840 = vmatpush1.msra.mxu0 %v88
  %7841 = vmatprep.subr.mxu0 %v77
  %7842 = vmatpush1.msra.mxu0 %v76
  %7843 = vmatprep.subr.mxu0 %v65
  %7844 = vmatpush1.msra.mxu0 %v64
  %7845 = vmatprep.subr.mxu0 %v53
  %7846 = vmatpush1.msra.mxu0 %v52
  %7847 = vmatprep.subr.mxu0 %v41
  %7848 = vmatpush1.msra.mxu0 %v40
  %7849 = vmatprep.subr.mxu0 %v29
  %7850 = vmatpush1.msra.mxu0 %v28
  %7851 = vmatprep.subr.mxu0 %v401
  %7852 = vmatpush2.msra.mxu0 %v400
  %7853 = vmatprep.subr.mxu0 %v389
  %7854 = vmatpush2.msra.mxu0 %v388
  %7855 = vmatprep.subr.mxu0 %v377
  %7856 = vmatpush2.msra.mxu0 %v376
  %7857 = vmatprep.subr.mxu0 %v365
  %7858 = vmatpush2.msra.mxu0 %v364
  %7859 = vmatprep.subr.mxu0 %v353
  %7860 = vmatpush2.msra.mxu0 %v352
  %7861 = vmatprep.subr.mxu0 %v341
  %7862 = vmatpush2.msra.mxu0 %v340
  %7863 = vmatprep.subr.mxu0 %v329
  %7864 = vmatpush2.msra.mxu0 %v328
  %7865 = vmatprep.subr.mxu0 %v317
  %7866 = vmatpush2.msra.mxu0 %v316
  %7867 = vmatprep.subr.mxu0 %v305
  %7868 = vmatpush2.msra.mxu0 %v304
  %7869 = vmatprep.subr.mxu0 %v293
  %7870 = vmatpush2.msra.mxu0 %v292
  %7871 = vmatprep.subr.mxu0 %v281
  %7872 = vmatpush2.msra.mxu0 %v280
  %7873 = vmatprep.subr.mxu0 %v269
  %7874 = vmatpush2.msra.mxu0 %v268
  %7875 = vmatprep.subr.mxu0 %v257
  %7876 = vmatpush2.msra.mxu0 %v256
  %7877 = vmatprep.subr.mxu0 %v245
  %7878 = vmatpush2.msra.mxu0 %v244
  %7879 = vmatprep.subr.mxu0 %v233
  %7880 = vmatpush2.msra.mxu0 %v232
  %7881 = vmatprep.subr.mxu0 %v221
  %7882 = vmatpush2.msra.mxu0 %v220
  %7883 = vmatprep.mubr.f32.mxu0 %v7514
  %7884 = vmatmul.mubr.f32.gmra.mxu0 %v7513
  %v7885 = vpop.f32.mrf.mxu0
  %v7886 = vadd.f32 0.0, %v7885
  %v7887 = vpop.f32.mrf.mxu0
  %v7888 = vadd.f32 0.0, %v7887
  %7889 = vdwg.mxu0
  %7890 = vmatprep.subr.mxu0 %v593
  %7891 = vmatpush1.msra.mxu0 %v592
  %7892 = vmatprep.subr.mxu0 %v581
  %7893 = vmatpush1.msra.mxu0 %v580
  %7894 = vmatprep.subr.mxu0 %v569
  %7895 = vmatpush1.msra.mxu0 %v568
  %7896 = vmatprep.subr.mxu0 %v557
  %7897 = vmatpush1.msra.mxu0 %v556
  %7898 = vmatprep.subr.mxu0 %v545
  %7899 = vmatpush1.msra.mxu0 %v544
  %7900 = vmatprep.subr.mxu0 %v533
  %7901 = vmatpush1.msra.mxu0 %v532
  %7902 = vmatprep.subr.mxu0 %v521
  %7903 = vmatpush1.msra.mxu0 %v520
  %7904 = vmatprep.subr.mxu0 %v509
  %7905 = vmatpush1.msra.mxu0 %v508
  %7906 = vmatprep.subr.mxu0 %v497
  %7907 = vmatpush1.msra.mxu0 %v496
  %7908 = vmatprep.subr.mxu0 %v485
  %7909 = vmatpush1.msra.mxu0 %v484
  %7910 = vmatprep.subr.mxu0 %v473
  %7911 = vmatpush1.msra.mxu0 %v472
  %7912 = vmatprep.subr.mxu0 %v461
  %7913 = vmatpush1.msra.mxu0 %v460
  %7914 = vmatprep.subr.mxu0 %v449
  %7915 = vmatpush1.msra.mxu0 %v448
  %7916 = vmatprep.subr.mxu0 %v437
  %7917 = vmatpush1.msra.mxu0 %v436
  %7918 = vmatprep.subr.mxu0 %v425
  %7919 = vmatpush1.msra.mxu0 %v424
  %7920 = vmatprep.subr.mxu0 %v413
  %7921 = vmatpush1.msra.mxu0 %v412
  %7922 = vmatprep.subr.mxu0 %v785
  %7923 = vmatpush2.msra.mxu0 %v784
  %7924 = vmatprep.subr.mxu0 %v773
  %7925 = vmatpush2.msra.mxu0 %v772
  %7926 = vmatprep.subr.mxu0 %v761
  %7927 = vmatpush2.msra.mxu0 %v760
  %7928 = vmatprep.subr.mxu0 %v749
  %7929 = vmatpush2.msra.mxu0 %v748
  %7930 = vmatprep.subr.mxu0 %v737
  %7931 = vmatpush2.msra.mxu0 %v736
  %7932 = vmatprep.subr.mxu0 %v725
  %7933 = vmatpush2.msra.mxu0 %v724
  %7934 = vmatprep.subr.mxu0 %v713
  %7935 = vmatpush2.msra.mxu0 %v712
  %7936 = vmatprep.subr.mxu0 %v701
  %7937 = vmatpush2.msra.mxu0 %v700
  %7938 = vmatprep.subr.mxu0 %v689
  %7939 = vmatpush2.msra.mxu0 %v688
  %7940 = vmatprep.subr.mxu0 %v677
  %7941 = vmatpush2.msra.mxu0 %v676
  %7942 = vmatprep.subr.mxu0 %v665
  %7943 = vmatpush2.msra.mxu0 %v664
  %7944 = vmatprep.subr.mxu0 %v653
  %7945 = vmatpush2.msra.mxu0 %v652
  %7946 = vmatprep.subr.mxu0 %v641
  %7947 = vmatpush2.msra.mxu0 %v640
  %7948 = vmatprep.subr.mxu0 %v629
  %7949 = vmatpush2.msra.mxu0 %v628
  %7950 = vmatprep.subr.mxu0 %v617
  %7951 = vmatpush2.msra.mxu0 %v616
  %7952 = vmatprep.subr.mxu0 %v605
  %7953 = vmatpush2.msra.mxu0 %v604
  %7954 = vmatprep.mubr.f32.mxu0 %v7516
  %7955 = vmatmul.mubr.f32.gmra.mxu0 %v7515
  %v7956 = vpop.f32.mrf.mxu0
  %v7957 = vadd.f32 %v7886, %v7956
  %v7958 = vpop.f32.mrf.mxu0
  %v7959 = vadd.f32 %v7888, %v7958
  %7960 = vdwg.mxu0
  %7961 = vmatprep.subr.mxu0 %v211
  %7962 = vmatpush1.msra.mxu0 %v210
  %7963 = vmatprep.subr.mxu0 %v199
  %7964 = vmatpush1.msra.mxu0 %v198
  %7965 = vmatprep.subr.mxu0 %v187
  %7966 = vmatpush1.msra.mxu0 %v186
  %7967 = vmatprep.subr.mxu0 %v175
  %7968 = vmatpush1.msra.mxu0 %v174
  %7969 = vmatprep.subr.mxu0 %v163
  %7970 = vmatpush1.msra.mxu0 %v162
  %7971 = vmatprep.subr.mxu0 %v151
  %7972 = vmatpush1.msra.mxu0 %v150
  %7973 = vmatprep.subr.mxu0 %v139
  %7974 = vmatpush1.msra.mxu0 %v138
  %7975 = vmatprep.subr.mxu0 %v127
  %7976 = vmatpush1.msra.mxu0 %v126
  %7977 = vmatprep.subr.mxu0 %v115
  %7978 = vmatpush1.msra.mxu0 %v114
  %7979 = vmatprep.subr.mxu0 %v103
  %7980 = vmatpush1.msra.mxu0 %v102
  %7981 = vmatprep.subr.mxu0 %v91
  %7982 = vmatpush1.msra.mxu0 %v90
  %7983 = vmatprep.subr.mxu0 %v79
  %7984 = vmatpush1.msra.mxu0 %v78
  %7985 = vmatprep.subr.mxu0 %v67
  %7986 = vmatpush1.msra.mxu0 %v66
  %7987 = vmatprep.subr.mxu0 %v55
  %7988 = vmatpush1.msra.mxu0 %v54
  %7989 = vmatprep.subr.mxu0 %v43
  %7990 = vmatpush1.msra.mxu0 %v42
  %7991 = vmatprep.subr.mxu0 %v31
  %7992 = vmatpush1.msra.mxu0 %v30
  %7993 = vmatprep.subr.mxu0 %v403
  %7994 = vmatpush2.msra.mxu0 %v402
  %7995 = vmatprep.subr.mxu0 %v391
  %7996 = vmatpush2.msra.mxu0 %v390
  %7997 = vmatprep.subr.mxu0 %v379
  %7998 = vmatpush2.msra.mxu0 %v378
  %7999 = vmatprep.subr.mxu0 %v367
  %8000 = vmatpush2.msra.mxu0 %v366
  %8001 = vmatprep.subr.mxu0 %v355
  %8002 = vmatpush2.msra.mxu0 %v354
  %8003 = vmatprep.subr.mxu0 %v343
  %8004 = vmatpush2.msra.mxu0 %v342
  %8005 = vmatprep.subr.mxu0 %v331
  %8006 = vmatpush2.msra.mxu0 %v330
  %8007 = vmatprep.subr.mxu0 %v319
  %8008 = vmatpush2.msra.mxu0 %v318
  %8009 = vmatprep.subr.mxu0 %v307
  %8010 = vmatpush2.msra.mxu0 %v306
  %8011 = vmatprep.subr.mxu0 %v295
  %8012 = vmatpush2.msra.mxu0 %v294
  %8013 = vmatprep.subr.mxu0 %v283
  %8014 = vmatpush2.msra.mxu0 %v282
  %8015 = vmatprep.subr.mxu0 %v271
  %8016 = vmatpush2.msra.mxu0 %v270
  %8017 = vmatprep.subr.mxu0 %v259
  %8018 = vmatpush2.msra.mxu0 %v258
  %8019 = vmatprep.subr.mxu0 %v247
  %8020 = vmatpush2.msra.mxu0 %v246
  %8021 = vmatprep.subr.mxu0 %v235
  %8022 = vmatpush2.msra.mxu0 %v234
  %8023 = vmatprep.subr.mxu0 %v223
  %8024 = vmatpush2.msra.mxu0 %v222
  %8025 = vmatprep.mubr.f32.mxu0 %v7514
  %8026 = vmatmul.mubr.f32.gmra.mxu0 %v7513
  %v8027 = vpop.f32.mrf.mxu0
  %v8028 = vadd.f32 0.0, %v8027
  %v8029 = vpop.f32.mrf.mxu0
  %v8030 = vadd.f32 0.0, %v8029
  %8031 = vdwg.mxu0
  %8032 = vmatprep.subr.mxu0 %v595
  %8033 = vmatpush1.msra.mxu0 %v594
  %8034 = vmatprep.subr.mxu0 %v583
  %8035 = vmatpush1.msra.mxu0 %v582
  %8036 = vmatprep.subr.mxu0 %v571
  %8037 = vmatpush1.msra.mxu0 %v570
  %8038 = vmatprep.subr.mxu0 %v559
  %8039 = vmatpush1.msra.mxu0 %v558
  %8040 = vmatprep.subr.mxu0 %v547
  %8041 = vmatpush1.msra.mxu0 %v546
  %8042 = vmatprep.subr.mxu0 %v535
  %8043 = vmatpush1.msra.mxu0 %v534
  %8044 = vmatprep.subr.mxu0 %v523
  %8045 = vmatpush1.msra.mxu0 %v522
  %8046 = vmatprep.subr.mxu0 %v511
  %8047 = vmatpush1.msra.mxu0 %v510
  %8048 = vmatprep.subr.mxu0 %v499
  %8049 = vmatpush1.msra.mxu0 %v498
  %8050 = vmatprep.subr.mxu0 %v487
  %8051 = vmatpush1.msra.mxu0 %v486
  %8052 = vmatprep.subr.mxu0 %v475
  %8053 = vmatpush1.msra.mxu0 %v474
  %8054 = vmatprep.subr.mxu0 %v463
  %8055 = vmatpush1.msra.mxu0 %v462
  %8056 = vmatprep.subr.mxu0 %v451
  %8057 = vmatpush1.msra.mxu0 %v450
  %8058 = vmatprep.subr.mxu0 %v439
  %8059 = vmatpush1.msra.mxu0 %v438
  %8060 = vmatprep.subr.mxu0 %v427
  %8061 = vmatpush1.msra.mxu0 %v426
  %8062 = vmatprep.subr.mxu0 %v415
  %8063 = vmatpush1.msra.mxu0 %v414
  %8064 = vmatprep.subr.mxu0 %v787
  %8065 = vmatpush2.msra.mxu0 %v786
  %8066 = vmatprep.subr.mxu0 %v775
  %8067 = vmatpush2.msra.mxu0 %v774
  %8068 = vmatprep.subr.mxu0 %v763
  %8069 = vmatpush2.msra.mxu0 %v762
  %8070 = vmatprep.subr.mxu0 %v751
  %8071 = vmatpush2.msra.mxu0 %v750
  %8072 = vmatprep.subr.mxu0 %v739
  %8073 = vmatpush2.msra.mxu0 %v738
  %8074 = vmatprep.subr.mxu0 %v727
  %8075 = vmatpush2.msra.mxu0 %v726
  %8076 = vmatprep.subr.mxu0 %v715
  %8077 = vmatpush2.msra.mxu0 %v714
  %8078 = vmatprep.subr.mxu0 %v703
  %8079 = vmatpush2.msra.mxu0 %v702
  %8080 = vmatprep.subr.mxu0 %v691
  %8081 = vmatpush2.msra.mxu0 %v690
  %8082 = vmatprep.subr.mxu0 %v679
  %8083 = vmatpush2.msra.mxu0 %v678
  %8084 = vmatprep.subr.mxu0 %v667
  %8085 = vmatpush2.msra.mxu0 %v666
  %8086 = vmatprep.subr.mxu0 %v655
  %8087 = vmatpush2.msra.mxu0 %v654
  %8088 = vmatprep.subr.mxu0 %v643
  %8089 = vmatpush2.msra.mxu0 %v642
  %8090 = vmatprep.subr.mxu0 %v631
  %8091 = vmatpush2.msra.mxu0 %v630
  %8092 = vmatprep.subr.mxu0 %v619
  %8093 = vmatpush2.msra.mxu0 %v618
  %8094 = vmatprep.subr.mxu0 %v607
  %8095 = vmatpush2.msra.mxu0 %v606
  %8096 = vmatprep.mubr.f32.mxu0 %v7516
  %8097 = vmatmul.mubr.f32.gmra.mxu0 %v7515
  %v8098 = vpop.f32.mrf.mxu0
  %v8099 = vadd.f32 %v8028, %v8098
  %v8100 = vpop.f32.mrf.mxu0
  %v8101 = vadd.f32 %v8030, %v8100
  %8102 = vdwg.mxu0
  %8103 = vmatprep.subr.mxu0 %v213
  %8104 = vmatpush1.msra.mxu0 %v212
  %8105 = vmatprep.subr.mxu0 %v201
  %8106 = vmatpush1.msra.mxu0 %v200
  %8107 = vmatprep.subr.mxu0 %v189
  %8108 = vmatpush1.msra.mxu0 %v188
  %8109 = vmatprep.subr.mxu0 %v177
  %8110 = vmatpush1.msra.mxu0 %v176
  %8111 = vmatprep.subr.mxu0 %v165
  %8112 = vmatpush1.msra.mxu0 %v164
  %8113 = vmatprep.subr.mxu0 %v153
  %8114 = vmatpush1.msra.mxu0 %v152
  %8115 = vmatprep.subr.mxu0 %v141
  %8116 = vmatpush1.msra.mxu0 %v140
  %8117 = vmatprep.subr.mxu0 %v129
  %8118 = vmatpush1.msra.mxu0 %v128
  %8119 = vmatprep.subr.mxu0 %v117
  %8120 = vmatpush1.msra.mxu0 %v116
  %8121 = vmatprep.subr.mxu0 %v105
  %8122 = vmatpush1.msra.mxu0 %v104
  %8123 = vmatprep.subr.mxu0 %v93
  %8124 = vmatpush1.msra.mxu0 %v92
  %8125 = vmatprep.subr.mxu0 %v81
  %8126 = vmatpush1.msra.mxu0 %v80
  %8127 = vmatprep.subr.mxu0 %v69
  %8128 = vmatpush1.msra.mxu0 %v68
  %8129 = vmatprep.subr.mxu0 %v57
  %8130 = vmatpush1.msra.mxu0 %v56
  %8131 = vmatprep.subr.mxu0 %v45
  %8132 = vmatpush1.msra.mxu0 %v44
  %8133 = vmatprep.subr.mxu0 %v33
  %8134 = vmatpush1.msra.mxu0 %v32
  %8135 = vmatprep.subr.mxu0 %v405
  %8136 = vmatpush2.msra.mxu0 %v404
  %8137 = vmatprep.subr.mxu0 %v393
  %8138 = vmatpush2.msra.mxu0 %v392
  %8139 = vmatprep.subr.mxu0 %v381
  %8140 = vmatpush2.msra.mxu0 %v380
  %8141 = vmatprep.subr.mxu0 %v369
  %8142 = vmatpush2.msra.mxu0 %v368
  %8143 = vmatprep.subr.mxu0 %v357
  %8144 = vmatpush2.msra.mxu0 %v356
  %8145 = vmatprep.subr.mxu0 %v345
  %8146 = vmatpush2.msra.mxu0 %v344
  %8147 = vmatprep.subr.mxu0 %v333
  %8148 = vmatpush2.msra.mxu0 %v332
  %8149 = vmatprep.subr.mxu0 %v321
  %8150 = vmatpush2.msra.mxu0 %v320
  %8151 = vmatprep.subr.mxu0 %v309
  %8152 = vmatpush2.msra.mxu0 %v308
  %8153 = vmatprep.subr.mxu0 %v297
  %8154 = vmatpush2.msra.mxu0 %v296
  %8155 = vmatprep.subr.mxu0 %v285
  %8156 = vmatpush2.msra.mxu0 %v284
  %8157 = vmatprep.subr.mxu0 %v273
  %8158 = vmatpush2.msra.mxu0 %v272
  %8159 = vmatprep.subr.mxu0 %v261
  %8160 = vmatpush2.msra.mxu0 %v260
  %8161 = vmatprep.subr.mxu0 %v249
  %8162 = vmatpush2.msra.mxu0 %v248
  %8163 = vmatprep.subr.mxu0 %v237
  %8164 = vmatpush2.msra.mxu0 %v236
  %8165 = vmatprep.subr.mxu0 %v225
  %8166 = vmatpush2.msra.mxu0 %v224
  %8167 = vmatprep.mubr.f32.mxu0 %v7514
  %8168 = vmatmul.mubr.f32.gmra.mxu0 %v7513
  %v8169 = vpop.f32.mrf.mxu0
  %v8170 = vadd.f32 0.0, %v8169
  %v8171 = vpop.f32.mrf.mxu0
  %v8172 = vadd.f32 0.0, %v8171
  %8173 = vdwg.mxu0
  %8174 = vmatprep.subr.mxu0 %v597
  %8175 = vmatpush1.msra.mxu0 %v596
  %8176 = vmatprep.subr.mxu0 %v585
  %8177 = vmatpush1.msra.mxu0 %v584
  %8178 = vmatprep.subr.mxu0 %v573
  %8179 = vmatpush1.msra.mxu0 %v572
  %8180 = vmatprep.subr.mxu0 %v561
  %8181 = vmatpush1.msra.mxu0 %v560
  %8182 = vmatprep.subr.mxu0 %v549
  %8183 = vmatpush1.msra.mxu0 %v548
  %8184 = vmatprep.subr.mxu0 %v537
  %8185 = vmatpush1.msra.mxu0 %v536
  %8186 = vmatprep.subr.mxu0 %v525
  %8187 = vmatpush1.msra.mxu0 %v524
  %8188 = vmatprep.subr.mxu0 %v513
  %8189 = vmatpush1.msra.mxu0 %v512
  %8190 = vmatprep.subr.mxu0 %v501
  %8191 = vmatpush1.msra.mxu0 %v500
  %8192 = vmatprep.subr.mxu0 %v489
  %8193 = vmatpush1.msra.mxu0 %v488
  %8194 = vmatprep.subr.mxu0 %v477
  %8195 = vmatpush1.msra.mxu0 %v476
  %8196 = vmatprep.subr.mxu0 %v465
  %8197 = vmatpush1.msra.mxu0 %v464
  %8198 = vmatprep.subr.mxu0 %v453
  %8199 = vmatpush1.msra.mxu0 %v452
  %8200 = vmatprep.subr.mxu0 %v441
  %8201 = vmatpush1.msra.mxu0 %v440
  %8202 = vmatprep.subr.mxu0 %v429
  %8203 = vmatpush1.msra.mxu0 %v428
  %8204 = vmatprep.subr.mxu0 %v417
  %8205 = vmatpush1.msra.mxu0 %v416
  %8206 = vmatprep.subr.mxu0 %v789
  %8207 = vmatpush2.msra.mxu0 %v788
  %8208 = vmatprep.subr.mxu0 %v777
  %8209 = vmatpush2.msra.mxu0 %v776
  %8210 = vmatprep.subr.mxu0 %v765
  %8211 = vmatpush2.msra.mxu0 %v764
  %8212 = vmatprep.subr.mxu0 %v753
  %8213 = vmatpush2.msra.mxu0 %v752
  %8214 = vmatprep.subr.mxu0 %v741
  %8215 = vmatpush2.msra.mxu0 %v740
  %8216 = vmatprep.subr.mxu0 %v729
  %8217 = vmatpush2.msra.mxu0 %v728
  %8218 = vmatprep.subr.mxu0 %v717
  %8219 = vmatpush2.msra.mxu0 %v716
  %8220 = vmatprep.subr.mxu0 %v705
  %8221 = vmatpush2.msra.mxu0 %v704
  %8222 = vmatprep.subr.mxu0 %v693
  %8223 = vmatpush2.msra.mxu0 %v692
  %8224 = vmatprep.subr.mxu0 %v681
  %8225 = vmatpush2.msra.mxu0 %v680
  %8226 = vmatprep.subr.mxu0 %v669
  %8227 = vmatpush2.msra.mxu0 %v668
  %8228 = vmatprep.subr.mxu0 %v657
  %8229 = vmatpush2.msra.mxu0 %v656
  %8230 = vmatprep.subr.mxu0 %v645
  %8231 = vmatpush2.msra.mxu0 %v644
  %8232 = vmatprep.subr.mxu0 %v633
  %8233 = vmatpush2.msra.mxu0 %v632
  %8234 = vmatprep.subr.mxu0 %v621
  %8235 = vmatpush2.msra.mxu0 %v620
  %8236 = vmatprep.subr.mxu0 %v609
  %8237 = vmatpush2.msra.mxu0 %v608
  %8238 = vmatprep.mubr.f32.mxu0 %v7516
  %8239 = vmatmul.mubr.f32.gmra.mxu0 %v7515
  %v8240 = vpop.f32.mrf.mxu0
  %v8241 = vadd.f32 %v8170, %v8240
  %v8242 = vpop.f32.mrf.mxu0
  %v8243 = vadd.f32 %v8172, %v8242
  %8244 = vdwg.mxu0
  %8245 = vmatprep.subr.mxu0 %v215
  %8246 = vmatpush1.msra.mxu0 %v214
  %8247 = vmatprep.subr.mxu0 %v203
  %8248 = vmatpush1.msra.mxu0 %v202
  %8249 = vmatprep.subr.mxu0 %v191
  %8250 = vmatpush1.msra.mxu0 %v190
  %8251 = vmatprep.subr.mxu0 %v179
  %8252 = vmatpush1.msra.mxu0 %v178
  %8253 = vmatprep.subr.mxu0 %v167
  %8254 = vmatpush1.msra.mxu0 %v166
  %8255 = vmatprep.subr.mxu0 %v155
  %8256 = vmatpush1.msra.mxu0 %v154
  %8257 = vmatprep.subr.mxu0 %v143
  %8258 = vmatpush1.msra.mxu0 %v142
  %8259 = vmatprep.subr.mxu0 %v131
  %8260 = vmatpush1.msra.mxu0 %v130
  %8261 = vmatprep.subr.mxu0 %v119
  %8262 = vmatpush1.msra.mxu0 %v118
  %8263 = vmatprep.subr.mxu0 %v107
  %8264 = vmatpush1.msra.mxu0 %v106
  %8265 = vmatprep.subr.mxu0 %v95
  %8266 = vmatpush1.msra.mxu0 %v94
  %8267 = vmatprep.subr.mxu0 %v83
  %8268 = vmatpush1.msra.mxu0 %v82
  %8269 = vmatprep.subr.mxu0 %v71
  %8270 = vmatpush1.msra.mxu0 %v70
  %8271 = vmatprep.subr.mxu0 %v59
  %8272 = vmatpush1.msra.mxu0 %v58
  %8273 = vmatprep.subr.mxu0 %v47
  %8274 = vmatpush1.msra.mxu0 %v46
  %8275 = vmatprep.subr.mxu0 %v35
  %8276 = vmatpush1.msra.mxu0 %v34
  %8277 = vmatprep.subr.mxu0 %v407
  %8278 = vmatpush2.msra.mxu0 %v406
  %8279 = vmatprep.subr.mxu0 %v395
  %8280 = vmatpush2.msra.mxu0 %v394
  %8281 = vmatprep.subr.mxu0 %v383
  %8282 = vmatpush2.msra.mxu0 %v382
  %8283 = vmatprep.subr.mxu0 %v371
  %8284 = vmatpush2.msra.mxu0 %v370
  %8285 = vmatprep.subr.mxu0 %v359
  %8286 = vmatpush2.msra.mxu0 %v358
  %8287 = vmatprep.subr.mxu0 %v347
  %8288 = vmatpush2.msra.mxu0 %v346
  %8289 = vmatprep.subr.mxu0 %v335
  %8290 = vmatpush2.msra.mxu0 %v334
  %8291 = vmatprep.subr.mxu0 %v323
  %8292 = vmatpush2.msra.mxu0 %v322
  %8293 = vmatprep.subr.mxu0 %v311
  %8294 = vmatpush2.msra.mxu0 %v310
  %8295 = vmatprep.subr.mxu0 %v299
  %8296 = vmatpush2.msra.mxu0 %v298
  %8297 = vmatprep.subr.mxu0 %v287
  %8298 = vmatpush2.msra.mxu0 %v286
  %8299 = vmatprep.subr.mxu0 %v275
  %8300 = vmatpush2.msra.mxu0 %v274
  %8301 = vmatprep.subr.mxu0 %v263
  %8302 = vmatpush2.msra.mxu0 %v262
  %8303 = vmatprep.subr.mxu0 %v251
  %8304 = vmatpush2.msra.mxu0 %v250
  %8305 = vmatprep.subr.mxu0 %v239
  %8306 = vmatpush2.msra.mxu0 %v238
  %8307 = vmatprep.subr.mxu0 %v227
  %8308 = vmatpush2.msra.mxu0 %v226
  %8309 = vmatprep.mubr.f32.mxu0 %v7514
  %8310 = vmatmul.mubr.f32.gmra.mxu0 %v7513
  %v8311 = vpop.f32.mrf.mxu0
  %v8312 = vadd.f32 0.0, %v8311
  %v8313 = vpop.f32.mrf.mxu0
  %v8314 = vadd.f32 0.0, %v8313
  %8315 = vdwg.mxu0
  %8316 = vmatprep.subr.mxu0 %v599
  %8317 = vmatpush1.msra.mxu0 %v598
  %8318 = vmatprep.subr.mxu0 %v587
  %8319 = vmatpush1.msra.mxu0 %v586
  %8320 = vmatprep.subr.mxu0 %v575
  %8321 = vmatpush1.msra.mxu0 %v574
  %8322 = vmatprep.subr.mxu0 %v563
  %8323 = vmatpush1.msra.mxu0 %v562
  %8324 = vmatprep.subr.mxu0 %v551
  %8325 = vmatpush1.msra.mxu0 %v550
  %8326 = vmatprep.subr.mxu0 %v539
  %8327 = vmatpush1.msra.mxu0 %v538
  %8328 = vmatprep.subr.mxu0 %v527
  %8329 = vmatpush1.msra.mxu0 %v526
  %8330 = vmatprep.subr.mxu0 %v515
  %8331 = vmatpush1.msra.mxu0 %v514
  %8332 = vmatprep.subr.mxu0 %v503
  %8333 = vmatpush1.msra.mxu0 %v502
  %8334 = vmatprep.subr.mxu0 %v491
  %8335 = vmatpush1.msra.mxu0 %v490
  %8336 = vmatprep.subr.mxu0 %v479
  %8337 = vmatpush1.msra.mxu0 %v478
  %8338 = vmatprep.subr.mxu0 %v467
  %8339 = vmatpush1.msra.mxu0 %v466
  %8340 = vmatprep.subr.mxu0 %v455
  %8341 = vmatpush1.msra.mxu0 %v454
  %8342 = vmatprep.subr.mxu0 %v443
  %8343 = vmatpush1.msra.mxu0 %v442
  %8344 = vmatprep.subr.mxu0 %v431
  %8345 = vmatpush1.msra.mxu0 %v430
  %8346 = vmatprep.subr.mxu0 %v419
  %8347 = vmatpush1.msra.mxu0 %v418
  %8348 = vmatprep.subr.mxu0 %v791
  %8349 = vmatpush2.msra.mxu0 %v790
  %8350 = vmatprep.subr.mxu0 %v779
  %8351 = vmatpush2.msra.mxu0 %v778
  %8352 = vmatprep.subr.mxu0 %v767
  %8353 = vmatpush2.msra.mxu0 %v766
  %8354 = vmatprep.subr.mxu0 %v755
  %8355 = vmatpush2.msra.mxu0 %v754
  %8356 = vmatprep.subr.mxu0 %v743
  %8357 = vmatpush2.msra.mxu0 %v742
  %8358 = vmatprep.subr.mxu0 %v731
  %8359 = vmatpush2.msra.mxu0 %v730
  %8360 = vmatprep.subr.mxu0 %v719
  %8361 = vmatpush2.msra.mxu0 %v718
  %8362 = vmatprep.subr.mxu0 %v707
  %8363 = vmatpush2.msra.mxu0 %v706
  %8364 = vmatprep.subr.mxu0 %v695
  %8365 = vmatpush2.msra.mxu0 %v694
  %8366 = vmatprep.subr.mxu0 %v683
  %8367 = vmatpush2.msra.mxu0 %v682
  %8368 = vmatprep.subr.mxu0 %v671
  %8369 = vmatpush2.msra.mxu0 %v670
  %8370 = vmatprep.subr.mxu0 %v659
  %8371 = vmatpush2.msra.mxu0 %v658
  %8372 = vmatprep.subr.mxu0 %v647
  %8373 = vmatpush2.msra.mxu0 %v646
  %8374 = vmatprep.subr.mxu0 %v635
  %8375 = vmatpush2.msra.mxu0 %v634
  %8376 = vmatprep.subr.mxu0 %v623
  %8377 = vmatpush2.msra.mxu0 %v622
  %8378 = vmatprep.subr.mxu0 %v611
  %8379 = vmatpush2.msra.mxu0 %v610
  %8380 = vmatprep.mubr.f32.mxu0 %v7516
  %8381 = vmatmul.mubr.f32.gmra.mxu0 %v7515
  %v8382 = vpop.f32.mrf.mxu0
  %v8383 = vadd.f32 %v8312, %v8382
  %v8384 = vpop.f32.mrf.mxu0
  %v8385 = vadd.f32 %v8314, %v8384
  %8386 = vdwg.mxu0
  %v8387 = vadd.f32 %v7523, %v7673
  %v8388 = vadd.f32 %v7524, %v7675
  %v8389 = vadd.f32 %v7525, %v7815
  %v8390 = vadd.f32 %v7526, %v7817
  %v8391 = vxor.u32 %v8387, 2147483648
  %v8392 = vxor.u32 %v8388, 2147483648
  %v8393 = vxor.u32 %v8389, 2147483648
  %v8394 = vxor.u32 %v8390, 2147483648
  %v8395 = vmul.f32 %v8391, 1.442695
  %v8396 = vpow.pop %v8395
  %v8397 = vmul.f32 %v8392, 1.442695
  %v8398 = vpow.pop %v8397
  %v8399 = vmul.f32 %v8393, 1.442695
  %v8400 = vpow.pop %v8399
  %v8401 = vmul.f32 %v8394, 1.442695
  %v8402 = vpow.pop %v8401
  %v8403 = vadd.f32 %v8396, 1.0
  %v8404 = vadd.f32 %v8398, 1.0
  %v8405 = vadd.f32 %v8400, 1.0
  %v8406 = vadd.f32 %v8402, 1.0
  %v8407 = vrcp.pop %v8403
  %v8408 = vmul.f32 1.0, %v8407
  %v8409 = vrcp.pop %v8404
  %v8410 = vmul.f32 1.0, %v8409
  %v8411 = vrcp.pop %v8405
  %v8412 = vmul.f32 1.0, %v8411
  %v8413 = vrcp.pop %v8406
  %v8414 = vmul.f32 1.0, %v8413
  %v8415 = vadd.f32 %v7527, %v7957
  %v8416 = vadd.f32 %v7528, %v7959
  %v8417 = vadd.f32 %v7529, %v8099
  %v8418 = vadd.f32 %v7530, %v8101
  %v8419 = vxor.u32 %v8415, 2147483648
  %v8420 = vxor.u32 %v8416, 2147483648
  %v8421 = vxor.u32 %v8417, 2147483648
  %v8422 = vxor.u32 %v8418, 2147483648
  %v8423 = vmul.f32 %v8419, 1.442695
  %v8424 = vpow.pop %v8423
  %v8425 = vmul.f32 %v8420, 1.442695
  %v8426 = vpow.pop %v8425
  %v8427 = vmul.f32 %v8421, 1.442695
  %v8428 = vpow.pop %v8427
  %v8429 = vmul.f32 %v8422, 1.442695
  %v8430 = vpow.pop %v8429
  %v8431 = vadd.f32 %v8424, 1.0
  %v8432 = vadd.f32 %v8426, 1.0
  %v8433 = vadd.f32 %v8428, 1.0
  %v8434 = vadd.f32 %v8430, 1.0
  %v8435 = vrcp.pop %v8431
  %v8436 = vmul.f32 1.0, %v8435
  %v8437 = vrcp.pop %v8432
  %v8438 = vmul.f32 1.0, %v8437
  %v8439 = vrcp.pop %v8433
  %v8440 = vmul.f32 1.0, %v8439
  %v8441 = vrcp.pop %v8434
  %v8442 = vmul.f32 1.0, %v8441
  %v8443 = vadd.f32 %v8241, %v1721
  %v8444 = vadd.f32 %v8243, %v1725
  %v8445 = vadd.f32 %v8383, %v1729
  %v8446 = vadd.f32 %v8385, %v1733
  %v8447 = vmul.f32 %v8408, %v8443
  %v8448 = vmul.f32 %v8410, %v8444
  %v8449 = vmul.f32 %v8412, %v8445
  %v8450 = vmul.f32 %v8414, %v8446
  %v8451 = vadd.f32 %v7531, %v8447
  %v8452 = vadd.f32 %v7532, %v8448
  %v8453 = vadd.f32 %v7533, %v8449
  %v8454 = vadd.f32 %v7534, %v8450
  %v8455 = vtanh.pop %v8451
  %v8456 = vtanh.pop %v8452
  %v8457 = vtanh.pop %v8453
  %v8458 = vtanh.pop %v8454
  %v8459 = vsub.f32 1.0, %v8436
  %v8460 = vsub.f32 1.0, %v8438
  %v8461 = vsub.f32 1.0, %v8440
  %v8462 = vsub.f32 1.0, %v8442
  %v8463 = vmul.f32 %v8459, %v8455
  %v8464 = vmul.f32 %v8460, %v8456
  %v8465 = vmul.f32 %v8461, %v8457
  %v8466 = vmul.f32 %v8462, %v8458
  %v8467 = vmul.f32 %v8436, %v7513
  %v8468 = vmul.f32 %v8438, %v7514
  %v8469 = vmul.f32 %v8440, %v7515
  %v8470 = vmul.f32 %v8442, %v7516
  %v8471 = vadd.f32 %v8463, %v8467
  %v8472 = vadd.f32 %v8464, %v8468
  %v8473 = vadd.f32 %v8465, %v8469
  %v8474 = vadd.f32 %v8466, %v8470
  %s8475 = scalar_lea.vmem %s3, 224
  %8476 = vst [vmem:[%s8475] sm:$0xff] %v8471
  %8477 = vst [vmem:[%s8475 + $0x8] sm:$0xff] %v8472
  %8478 = vst [vmem:[%s8475 + $0x10] sm:$0xff] %v8473
  %8479 = vst [vmem:[%s8475 + $0x18] sm:$0xff] %v8474
  %8480 = vst [vmem:[#allocation2] sm:$0xff] %v8471
  %8481 = vst [vmem:[#allocation2 + $0x8] sm:$0xff] %v8472
  %8482 = vst [vmem:[#allocation2 + $0x10] sm:$0xff] %v8473
  %8483 = vst [vmem:[#allocation2 + $0x18] sm:$0xff] %v8474
  // Predicated region
  $region18: #{encoder_forward.1} parent=0 // pred_check
    %p8484 = pneg %p16
  $region19: #{encoder_forward.1} parent=0 // pred_check_branch
    %8486 = sbr.rel (%p8484) target = $region21
  $region20: #{encoder_forward.1} parent=0 // pred_region
    %8487 = vst [vmem:[%s4] sm:$0xff] %v8471
    %8488 = vst [vmem:[%s4 + $0x8] sm:$0xff] %v8472
    %8489 = vst [vmem:[%s4 + $0x10] sm:$0xff] %v8473
    %8490 = vst [vmem:[%s4 + $0x18] sm:$0xff] %v8474
  $region21: #{encoder_forward.1} parent=0 // pred_fallthru
    _
  // Predicated region
  $region22: #{encoder_forward.1} parent=0 // pred_check
    _
  $region23: #{encoder_forward.1} parent=0 // pred_check_branch
    %8492 = sbr.rel (0) target = $region25
  $region24: #{encoder_forward.1} parent=0 // pred_region
    _
  $region25: #{encoder_forward.1} parent=0 // pred_fallthru
    _
  // Predicated region
  $region26: #{encoder_forward.1} parent=0 // pred_check
    _
  $region27: #{encoder_forward.1} parent=0 // pred_check_branch
    %8494 = sbr.rel (0) target = $region29
  $region28: #{encoder_forward.1} parent=0 // pred_region
    _
  $region29: #{encoder_forward.1} parent=0 // pred_fallthru
    _
  // Predicated region
  $region30: #{encoder_forward.1} parent=0 // pred_check
    _
  $region31: #{encoder_forward.1} parent=0 // pred_check_branch
    %8496 = sbr.rel (0) target = $region33
  $region32: #{encoder_forward.1} parent=0 // pred_region
    _
  $region33: #{encoder_forward.1} parent=0 // pred_fallthru
    _
  // Predicated region
  $region34: #{encoder_forward.1} parent=0 // pred_check
    _
  $region35: #{encoder_forward.1} parent=0 // pred_check_branch
    %8498 = sbr.rel (0) target = $region37
  $region36: #{encoder_forward.1} parent=0 // pred_region
    _
  $region37: #{encoder_forward.1} parent=0 // pred_fallthru
    _

</llo_original>
